<compile_context>
chip_gen: v7x
topology: tpu7x:2x2x1
jax: 0.10.0
libtpu: 0.0.40
codegen_flags: <defaults>
</compile_context>

<pallas_src>
import jax
import jax.numpy as jnp
import numpy as np
from jax.experimental import pallas as pl
from jax.experimental.pallas import tpu as pltpu

NUM_FTRS = 2048            # resnet50.fc.in_features
H1, H2, H3 = 1024, 512, 128
NUM_CLASSES = 5            # calculate_score requires exactly 5 classes
NPAD = 128                 # fc4 output padded to a full lane width
CLASS_WEIGHTS = (1.0, 3.0, 5.0, 7.0, 9.0)
NEG_BIG = -1e30            # bias for padded logit lanes -> exp() == 0

# Resident parameter bytes (bf16 weights + f32 biases / class weights).
_WEIGHT_BYTES = (2 * (NUM_FTRS * H1 + H1 * H2 + H2 * H3 + H3 * NPAD)
                 + 4 * (H1 + H2 + H3 + 2 * NPAD))


def _round_up(x, m):
    return (x + m - 1) // m * m


def _vmem_estimate(tm, hw):
    """Rough VMEM working-set: double-buffered x block + (double-buffered)
    resident weights + in-kernel f32 activations + output."""
    x_block = tm * hw * NUM_FTRS * 4                       # f32 input block
    acts = tm * (NUM_FTRS + H1 + H2 + H3 + NPAD) * 4       # f32 activations
    return 2 * x_block + 2 * _WEIGHT_BYTES + acts + 2 * tm * 4


def _pick_tm(B, hw, budget=44 * 1024 * 1024):
    """Batch-tile size: multiple of 16 (bf16 sublane packing); 256 for large B
    (fills the 256-wide MXU on v6e/v7x); >=2 tiles for moderate B so the
    'parallel' axis can use both v7x TensorCores; shrink if VMEM would blow."""
    if B >= 512:
        tm = 256
    elif B >= 256:
        tm = 128
    elif B >= 64:
        tm = _round_up((B + 1) // 2, 16)   # two batch tiles
    else:
        tm = _round_up(B, 16)              # tiny batch: single tile
    while tm > 16 and _vmem_estimate(tm, hw) > budget:
        tm = max(16, _round_up(tm // 2, 16))
    return tm


def place_pulse_kernel(x_ref, w1_ref, b1_ref, w2_ref, b2_ref, w3_ref, b3_ref,
                       w4_ref, b4_ref, cw_ref, out_ref):
    """One batch tile per grid step: pool + fc1..fc4 + softmax + weighted score."""
    # resnet50 tail: global average pool over spatial positions.
    # x block is [tm, HW, C] f32 with channels lane-dense -> sublane reduce.
    # Pool in f32; only the pooled feats are cast to bf16 for the MXU.
    inv_hw = 1.0 / x_ref.shape[1]
    feats = jnp.sum(x_ref[...], axis=1) * inv_hw                       # [tm, C]

    h = jnp.dot(feats.astype(jnp.bfloat16), w1_ref[...],
                preferred_element_type=jnp.float32) + b1_ref[...]
    h = jnp.maximum(h, 0.0)                                            # fc1+ReLU
    h = jnp.dot(h.astype(jnp.bfloat16), w2_ref[...],
                preferred_element_type=jnp.float32) + b2_ref[...]
    h = jnp.maximum(h, 0.0)                                            # fc2+ReLU
    h = jnp.dot(h.astype(jnp.bfloat16), w3_ref[...],
                preferred_element_type=jnp.float32) + b3_ref[...]
    h = jnp.maximum(h, 0.0)                                            # fc3+ReLU
    logits = jnp.dot(h.astype(jnp.bfloat16), w4_ref[...],
                     preferred_element_type=jnp.float32) + b4_ref[...]

    # softmax over the 128 padded lanes: padded lanes carry a -1e30 bias so
    # exp() underflows to exactly 0 and they drop out of the sum.
    m = jnp.max(logits, axis=-1, keepdims=True)
    e = jnp.exp(logits - m)
    denom = jnp.sum(e, axis=-1, keepdims=True)
    # calculate_score: sum(probs * [1,3,5,7,9]); padded lanes of cw are 0.
    out_ref[...] = jnp.sum(e * cw_ref[...], axis=-1, keepdims=True) / denom


def place_pulse_forward(x_nhwc, params):
    """x_nhwc: [B, H, W, NUM_FTRS] float32 pre-pool resnet50 feature map
    (channels-last, TPU-native) -> scores [B] float32."""
    w1, b1, w2, b2, w3, b3, w4, b4, cw = params
    B, H, W, C = x_nhwc.shape
    assert C == NUM_FTRS
    HW = H * W

    # Lane-dense [B, HW, C]: a free reshape for channels-last input.
    x = x_nhwc.reshape(B, HW, C)

    tm = _pick_tm(B, HW)
    B_pad = _round_up(B, tm)
    if B_pad != B:
        x = jnp.pad(x, ((0, B_pad - B), (0, 0), (0, 0)))

    # bf16 weights (f32 biases); pad fc4 / its bias / class weights to 128 lanes.
    w1b = w1.astype(jnp.bfloat16)
    w2b = w2.astype(jnp.bfloat16)
    w3b = w3.astype(jnp.bfloat16)
    w4p = jnp.zeros((H3, NPAD), jnp.bfloat16).at[:, :NUM_CLASSES].set(
        w4.astype(jnp.bfloat16))
    b4p = jnp.full((1, NPAD), NEG_BIG, jnp.float32).at[:, :NUM_CLASSES].set(b4)
    cwp = jnp.zeros((1, NPAD), jnp.float32).at[:, :NUM_CLASSES].set(cw)

    nb = B_pad // tm

    def const(shape):
        # Resident operand: constant block index across the whole grid, so it
        # is DMA'd into VMEM once and never re-fetched per batch tile.
        return pl.BlockSpec(shape, lambda b: (0,) * len(shape))

    vmem_limit = min(56 * 1024 * 1024,
                     max(32 * 1024 * 1024,
                         _vmem_estimate(tm, HW) + 8 * 1024 * 1024))

    out = pl.pallas_call(
        place_pulse_kernel,
        out_shape=jax.ShapeDtypeStruct((B_pad, 1), jnp.float32),
        grid_spec=pltpu.PrefetchScalarGridSpec(
            num_scalar_prefetch=0,
            grid=(nb,),
            in_specs=[
                pl.BlockSpec((tm, HW, C), lambda b: (b, 0, 0)),        # x
                const((C, H1)), const((1, H1)),                        # w1, b1
                const((H1, H2)), const((1, H2)),                       # w2, b2
                const((H2, H3)), const((1, H3)),                       # w3, b3
                const((H3, NPAD)), const((1, NPAD)),                   # w4, b4
                const((1, NPAD)),                                      # cw
            ],
            out_specs=pl.BlockSpec((tm, 1), lambda b: (b, 0)),
        ),
        compiler_params=pltpu.CompilerParams(
            dimension_semantics=("parallel",),       # batch tiles independent
            vmem_limit_bytes=vmem_limit,
        ),
    )(x, w1b, b1, w2b, b2, w3b, b3, w4p, b4p, cwp)
    return out[:B, 0]


def init_params(key):
    """Deterministic init mirroring nn.Linear default (U(-1/sqrt(fan_in), ...))."""
    ks = jax.random.split(key, 8)

    def lin(kw, kb, fan_in, fan_out):
        bound = 1.0 / np.sqrt(fan_in)
        w = jax.random.uniform(kw, (fan_in, fan_out), jnp.float32, -bound, bound)
        b = jax.random.uniform(kb, (1, fan_out), jnp.float32, -bound, bound)
        return w, b

    w1, b1 = lin(ks[0], ks[1], NUM_FTRS, H1)
    w2, b2 = lin(ks[2], ks[3], H1, H2)
    w3, b3 = lin(ks[4], ks[5], H2, H3)
    w4, b4 = lin(ks[6], ks[7], H3, NUM_CLASSES)
    cw = jnp.asarray([CLASS_WEIGHTS], dtype=jnp.float32)   # (1, 5)
    return (w1, b1, w2, b2, w3, b3, w4, b4, cw)


def ref_forward(x_nhwc, params):
    """Pure-JAX f32 reference of the same forward pass."""
    w1, b1, w2, b2, w3, b3, w4, b4, cw = params
    feats = jnp.mean(x_nhwc, axis=(1, 2))                  # global average pool
    h = jax.nn.relu(feats @ w1 + b1)
    h = jax.nn.relu(h @ w2 + b2)
    h = jax.nn.relu(h @ w3 + b3)
    logits = h @ w4 + b4
    probs = jax.nn.softmax(logits, axis=1)
    return jnp.sum(probs * cw, axis=1)


if __name__ == "__main__":
    key = jax.random.PRNGKey(0)
    k_param, k_x = jax.random.split(key)

    params = init_params(k_param)
    # Small pre-pool resnet50 feature map, channels-last: batch=2, spatial=4x4.
    x = jax.random.normal(k_x, (2, 4, 4, NUM_FTRS), dtype=jnp.float32)

    scores = jax.block_until_ready(place_pulse_forward(x, params))
    ref = jax.block_until_ready(ref_forward(x, params))

    # Pool and accumulation are f32; only MXU operands are bf16.
    np.testing.assert_allclose(np.asarray(scores), np.asarray(ref),
                               rtol=2e-2, atol=2e-2)
    print("KERNEL_OK")
</pallas_src>

<mosaic_0001>
module attributes {stable_mosaic.version = 11 : i64} {
  func.func @place_pulse_kernel(%arg0: i32, %arg1: memref<16x16x2048xf32, #tpu.memory_space<vmem>>, %arg2: memref<2048x1024xbf16, #tpu.memory_space<vmem>>, %arg3: memref<1x1024xf32, #tpu.memory_space<vmem>>, %arg4: memref<1024x512xbf16, #tpu.memory_space<vmem>>, %arg5: memref<1x512xf32, #tpu.memory_space<vmem>>, %arg6: memref<512x128xbf16, #tpu.memory_space<vmem>>, %arg7: memref<1x128xf32, #tpu.memory_space<vmem>>, %arg8: memref<128x128xbf16, #tpu.memory_space<vmem>>, %arg9: memref<1x128xf32, #tpu.memory_space<vmem>>, %arg10: memref<1x128xf32, #tpu.memory_space<vmem>>, %arg11: memref<16x1xf32, #tpu.memory_space<vmem>>) attributes {dimension_semantics = [#tpu.dimension_semantics<parallel>], iteration_bounds = array<i64: 1>, scalar_prefetch = 0 : i64, scratch_operands = 0 : i64, tpu.core_type = #tpu.core_type<tc>, window_params = [{transform_indices = @transform_0, window_bounds = array<i64: 16, 16, 2048>}, {pipeline_mode = #tpu.pipeline_mode<synchronous>, transform_indices = @transform_1, window_bounds = array<i64: 2048, 1024>}, {pipeline_mode = #tpu.pipeline_mode<synchronous>, transform_indices = @transform_2, window_bounds = array<i64: 1, 1024>}, {pipeline_mode = #tpu.pipeline_mode<synchronous>, transform_indices = @transform_3, window_bounds = array<i64: 1024, 512>}, {pipeline_mode = #tpu.pipeline_mode<synchronous>, transform_indices = @transform_4, window_bounds = array<i64: 1, 512>}, {pipeline_mode = #tpu.pipeline_mode<synchronous>, transform_indices = @transform_5, window_bounds = array<i64: 512, 128>}, {pipeline_mode = #tpu.pipeline_mode<synchronous>, transform_indices = @transform_6, window_bounds = array<i64: 1, 128>}, {pipeline_mode = #tpu.pipeline_mode<synchronous>, transform_indices = @transform_7, window_bounds = array<i64: 128, 128>}, {pipeline_mode = #tpu.pipeline_mode<synchronous>, transform_indices = @transform_8, window_bounds = array<i64: 1, 128>}, {pipeline_mode = #tpu.pipeline_mode<synchronous>, transform_indices = @transform_9, window_bounds = array<i64: 1, 128>}, {transform_indices = @transform_10, window_bounds = array<i64: 16, 1>}]} {
    %c0 = arith.constant 0 : index
    %c0_0 = arith.constant 0 : index
    %c0_1 = arith.constant 0 : index
    %0 = vector.load %arg1[%c0, %c0_0, %c0_1] : memref<16x16x2048xf32, #tpu.memory_space<vmem>>, vector<16x16x2048xf32>
    %cst = arith.constant dense<0.000000e+00> : vector<16x2048xf32>
    %1 = vector.multi_reduction <add>, %0, %cst [1] : vector<16x16x2048xf32> to vector<16x2048xf32>
    %cst_2 = arith.constant 6.250000e-02 : f32
    %2 = vector.broadcast %cst_2 : f32 to vector<16x2048xf32>
    %3 = arith.mulf %1, %2 : vector<16x2048xf32>
    %4 = arith.truncf %3 : vector<16x2048xf32> to vector<16x2048xbf16>
    %c0_3 = arith.constant 0 : index
    %c0_4 = arith.constant 0 : index
    %5 = vector.load %arg2[%c0_3, %c0_4] : memref<2048x1024xbf16, #tpu.memory_space<vmem>>, vector<2048x1024xbf16>
    %cst_5 = arith.constant dense<0.000000e+00> : vector<16x1024xf32>
    %6 = tpu.matmul %4, %5, %cst_5 {dimension_numbers = #tpu.dot_dimension_numbers<[1], [0], [0], [1], [0, 0, 1, 1], [], []>} : vector<16x2048xbf16>, vector<2048x1024xbf16>, vector<16x1024xf32> -> vector<16x1024xf32>
    %c0_6 = arith.constant 0 : index
    %c0_7 = arith.constant 0 : index
    %7 = vector.load %arg3[%c0_6, %c0_7] : memref<1x1024xf32, #tpu.memory_space<vmem>>, vector<1x1024xf32>
    %8 = vector.broadcast %7 : vector<1x1024xf32> to vector<16x1024xf32>
    %9 = arith.addf %6, %8 : vector<16x1024xf32>
    %cst_8 = arith.constant 0.000000e+00 : f32
    %10 = vector.broadcast %cst_8 : f32 to vector<16x1024xf32>
    %11 = arith.maximumf %9, %10 : vector<16x1024xf32>
    %12 = arith.truncf %11 : vector<16x1024xf32> to vector<16x1024xbf16>
    %c0_9 = arith.constant 0 : index
    %c0_10 = arith.constant 0 : index
    %13 = vector.load %arg4[%c0_9, %c0_10] : memref<1024x512xbf16, #tpu.memory_space<vmem>>, vector<1024x512xbf16>
    %cst_11 = arith.constant dense<0.000000e+00> : vector<16x512xf32>
    %14 = tpu.matmul %12, %13, %cst_11 {dimension_numbers = #tpu.dot_dimension_numbers<[1], [0], [0], [1], [0, 0, 1, 1], [], []>} : vector<16x1024xbf16>, vector<1024x512xbf16>, vector<16x512xf32> -> vector<16x512xf32>
    %c0_12 = arith.constant 0 : index
    %c0_13 = arith.constant 0 : index
    %15 = vector.load %arg5[%c0_12, %c0_13] : memref<1x512xf32, #tpu.memory_space<vmem>>, vector<1x512xf32>
    %16 = vector.broadcast %15 : vector<1x512xf32> to vector<16x512xf32>
    %17 = arith.addf %14, %16 : vector<16x512xf32>
    %cst_14 = arith.constant 0.000000e+00 : f32
    %18 = vector.broadcast %cst_14 : f32 to vector<16x512xf32>
    %19 = arith.maximumf %17, %18 : vector<16x512xf32>
    %20 = arith.truncf %19 : vector<16x512xf32> to vector<16x512xbf16>
    %c0_15 = arith.constant 0 : index
    %c0_16 = arith.constant 0 : index
    %21 = vector.load %arg6[%c0_15, %c0_16] : memref<512x128xbf16, #tpu.memory_space<vmem>>, vector<512x128xbf16>
    %cst_17 = arith.constant dense<0.000000e+00> : vector<16x128xf32>
    %22 = tpu.matmul %20, %21, %cst_17 {dimension_numbers = #tpu.dot_dimension_numbers<[1], [0], [0], [1], [0, 0, 1, 1], [], []>} : vector<16x512xbf16>, vector<512x128xbf16>, vector<16x128xf32> -> vector<16x128xf32>
    %c0_18 = arith.constant 0 : index
    %c0_19 = arith.constant 0 : index
    %23 = vector.load %arg7[%c0_18, %c0_19] : memref<1x128xf32, #tpu.memory_space<vmem>>, vector<1x128xf32>
    %24 = vector.broadcast %23 : vector<1x128xf32> to vector<16x128xf32>
    %25 = arith.addf %22, %24 : vector<16x128xf32>
    %cst_20 = arith.constant 0.000000e+00 : f32
    %26 = vector.broadcast %cst_20 : f32 to vector<16x128xf32>
    %27 = arith.maximumf %25, %26 : vector<16x128xf32>
    %28 = arith.truncf %27 : vector<16x128xf32> to vector<16x128xbf16>
    %c0_21 = arith.constant 0 : index
    %c0_22 = arith.constant 0 : index
    %29 = vector.load %arg8[%c0_21, %c0_22] : memref<128x128xbf16, #tpu.memory_space<vmem>>, vector<128x128xbf16>
    %cst_23 = arith.constant dense<0.000000e+00> : vector<16x128xf32>
    %30 = tpu.matmul %28, %29, %cst_23 {dimension_numbers = #tpu.dot_dimension_numbers<[1], [0], [0], [1], [0, 0, 1, 1], [], []>} : vector<16x128xbf16>, vector<128x128xbf16>, vector<16x128xf32> -> vector<16x128xf32>
    %c0_24 = arith.constant 0 : index
    %c0_25 = arith.constant 0 : index
    %31 = vector.load %arg9[%c0_24, %c0_25] : memref<1x128xf32, #tpu.memory_space<vmem>>, vector<1x128xf32>
    %32 = vector.broadcast %31 : vector<1x128xf32> to vector<16x128xf32>
    %33 = arith.addf %30, %32 : vector<16x128xf32>
    %cst_26 = arith.constant dense<0xFF800000> : vector<16xf32>
    %34 = vector.multi_reduction <maximumf>, %33, %cst_26 [1] : vector<16x128xf32> to vector<16xf32>
    %35 = vector.shape_cast %34 : vector<16xf32> to vector<16x1xf32>
    %36 = vector.broadcast %35 : vector<16x1xf32> to vector<16x128xf32>
    %37 = arith.subf %33, %36 : vector<16x128xf32>
    %38 = math.exp %37 : vector<16x128xf32>
    %cst_27 = arith.constant dense<0.000000e+00> : vector<16xf32>
    %39 = vector.multi_reduction <add>, %38, %cst_27 [1] : vector<16x128xf32> to vector<16xf32>
    %40 = vector.shape_cast %39 : vector<16xf32> to vector<16x1xf32>
    %c0_28 = arith.constant 0 : index
    %c0_29 = arith.constant 0 : index
    %41 = vector.load %arg10[%c0_28, %c0_29] : memref<1x128xf32, #tpu.memory_space<vmem>>, vector<1x128xf32>
    %42 = vector.broadcast %41 : vector<1x128xf32> to vector<16x128xf32>
    %43 = arith.mulf %38, %42 : vector<16x128xf32>
    %cst_30 = arith.constant dense<0.000000e+00> : vector<16xf32>
    %44 = vector.multi_reduction <add>, %43, %cst_30 [1] : vector<16x128xf32> to vector<16xf32>
    %45 = vector.shape_cast %44 : vector<16xf32> to vector<16x1xf32>
    %46 = arith.divf %45, %40 : vector<16x1xf32>
    %c0_31 = arith.constant 0 : index
    %c0_32 = arith.constant 0 : index
    %47 = vector.load %arg11[%c0_31, %c0_32] : memref<16x1xf32, #tpu.memory_space<vmem>>, vector<16x1xf32>
    tpu.vector_store %arg11[%c0_31, %c0_32], %46 {strides = array<i32>} : memref<16x1xf32, #tpu.memory_space<vmem>>, vector<16x1xf32>,
    return
  }
  func.func @transform_0(%arg0: i32) -> (i32, i32, i32) {
    %c0_i32 = arith.constant 0 : i32
    %c0_i32_0 = arith.constant 0 : i32
    %c0_i32_1 = arith.constant 0 : i32
    return %arg0, %c0_i32, %c0_i32_0 : i32, i32, i32
  }
  func.func @transform_1(%arg0: i32) -> (i32, i32) {
    %c0_i32 = arith.constant 0 : i32
    %c0_i32_0 = arith.constant 0 : i32
    %c0_i32_1 = arith.constant 0 : i32
    return %c0_i32, %c0_i32_0 : i32, i32
  }
  func.func @transform_2(%arg0: i32) -> (i32, i32) {
    %c0_i32 = arith.constant 0 : i32
    %c0_i32_0 = arith.constant 0 : i32
    %c0_i32_1 = arith.constant 0 : i32
    return %c0_i32, %c0_i32_0 : i32, i32
  }
  func.func @transform_3(%arg0: i32) -> (i32, i32) {
    %c0_i32 = arith.constant 0 : i32
    %c0_i32_0 = arith.constant 0 : i32
    %c0_i32_1 = arith.constant 0 : i32
    return %c0_i32, %c0_i32_0 : i32, i32
  }
  func.func @transform_4(%arg0: i32) -> (i32, i32) {
    %c0_i32 = arith.constant 0 : i32
    %c0_i32_0 = arith.constant 0 : i32
    %c0_i32_1 = arith.constant 0 : i32
    return %c0_i32, %c0_i32_0 : i32, i32
  }
  func.func @transform_5(%arg0: i32) -> (i32, i32) {
    %c0_i32 = arith.constant 0 : i32
    %c0_i32_0 = arith.constant 0 : i32
    %c0_i32_1 = arith.constant 0 : i32
    return %c0_i32, %c0_i32_0 : i32, i32
  }
  func.func @transform_6(%arg0: i32) -> (i32, i32) {
    %c0_i32 = arith.constant 0 : i32
    %c0_i32_0 = arith.constant 0 : i32
    %c0_i32_1 = arith.constant 0 : i32
    return %c0_i32, %c0_i32_0 : i32, i32
  }
  func.func @transform_7(%arg0: i32) -> (i32, i32) {
    %c0_i32 = arith.constant 0 : i32
    %c0_i32_0 = arith.constant 0 : i32
    %c0_i32_1 = arith.constant 0 : i32
    return %c0_i32, %c0_i32_0 : i32, i32
  }
  func.func @transform_8(%arg0: i32) -> (i32, i32) {
    %c0_i32 = arith.constant 0 : i32
    %c0_i32_0 = arith.constant 0 : i32
    %c0_i32_1 = arith.constant 0 : i32
    return %c0_i32, %c0_i32_0 : i32, i32
  }
  func.func @transform_9(%arg0: i32) -> (i32, i32) {
    %c0_i32 = arith.constant 0 : i32
    %c0_i32_0 = arith.constant 0 : i32
    %c0_i32_1 = arith.constant 0 : i32
    return %c0_i32, %c0_i32_0 : i32, i32
  }
  func.func @transform_10(%arg0: i32) -> (i32, i32) {
    %c0_i32 = arith.constant 0 : i32
    %c0_i32_0 = arith.constant 0 : i32
    return %arg0, %c0_i32 : i32, i32
  }
}

</mosaic_0001>

<llo_original>
// kernel: tpu_custom_call.1
$region0: #{tpu_custom_call.1}
  #allocation0 [shape = 'u32[]', space=smem, size = 0x4, offset = 0x4, fixed_abs, tag = 'smem constant byte address 0x4 - core index']
  #allocation1 [shape = 'u32[144,128]{1,0:T(1,128)}', space=vmem, size = 0x12000, scoped, tag = 'internal scratch']
  %s0 = inlined_call_operand.hbm [shape: f32[16,16,2048], index: 0, kind: input, shape index: {}]
  %s1 = inlined_call_operand.hbm [shape: bf16[2048,1024], index: 1, kind: input, shape index: {}]
  %s2 = inlined_call_operand.hbm [shape: f32[1,1024], index: 2, kind: input, shape index: {}]
  %s3 = inlined_call_operand.hbm [shape: bf16[1024,512], index: 3, kind: input, shape index: {}]
  %s4 = inlined_call_operand.hbm [shape: f32[1,512], index: 4, kind: input, shape index: {}]
  %s5 = inlined_call_operand.hbm [shape: bf16[512,128], index: 5, kind: input, shape index: {}]
  %s6 = inlined_call_operand.hbm [shape: f32[1,128], index: 6, kind: input, shape index: {}]
  %s7 = inlined_call_operand.hbm [shape: bf16[128,128], index: 7, kind: input, shape index: {}]
  %s8 = inlined_call_operand.hbm [shape: f32[1,128], index: 8, kind: input, shape index: {}]
  %s9 = inlined_call_operand.hbm [shape: f32[1,128], index: 9, kind: input, shape index: {}]
  %s10 = inlined_call_operand.vmem [shape: f32[16,1], index: 10, kind: output, shape index: {}]
  %s11 = sld [smem:[#allocation0]]
  $region90: #{tpu_custom_call.1} parent=0
    _
  %s13 = ssub.s32 1, %s11
  %s14 = scalar_select 0, %s13, %s11
  $region1: #{tpu_custom_call.1} parent=0
    #allocation2 [shape = 'u8[2097152]{0}', space=vmem, size = 0x200000, scoped, tag = 'input window, operand 0, single buffered']
    #allocation3 [shape = 's32[1]{0}', space=sflag, size = 0x4, scoped, tag = 'scoped memory for tpu_custom_call.1']
    #allocation4 [shape = 'u8[4194304]{0}', space=vmem, size = 0x400000, scoped, tag = 'input window, operand 1, single buffered']
    #allocation5 [shape = 's32[1]{0}', space=sflag, size = 0x4, scoped, tag = 'scoped memory for tpu_custom_call.1']
    #allocation6 [shape = 'u8[4096]{0}', space=vmem, size = 0x1000, scoped, tag = 'input window, operand 2, single buffered']
    #allocation7 [shape = 'u8[1048576]{0}', space=vmem, size = 0x100000, scoped, tag = 'input window, operand 3, single buffered']
    #allocation8 [shape = 's32[1]{0}', space=sflag, size = 0x4, scoped, tag = 'scoped memory for tpu_custom_call.1']
    #allocation9 [shape = 'u8[2048]{0}', space=vmem, size = 0x800, scoped, tag = 'input window, operand 4, single buffered']
    #allocation10 [shape = 'u8[131072]{0}', space=vmem, size = 0x20000, scoped, tag = 'input window, operand 5, single buffered']
    #allocation11 [shape = 's32[1]{0}', space=sflag, size = 0x4, scoped, tag = 'scoped memory for tpu_custom_call.1']
    #allocation12 [shape = 'u8[512]{0}', space=vmem, size = 0x400, scoped, tag = 'input window, operand 6, single buffered']
    #allocation13 [shape = 'u8[32768]{0}', space=vmem, size = 0x8000, scoped, tag = 'input window, operand 7, single buffered']
    #allocation14 [shape = 's32[1]{0}', space=sflag, size = 0x4, scoped, tag = 'scoped memory for tpu_custom_call.1']
    #allocation15 [shape = 'u8[512]{0}', space=vmem, size = 0x400, scoped, tag = 'input window, operand 8, single buffered']
    #allocation16 [shape = 'u8[512]{0}', space=vmem, size = 0x400, scoped, tag = 'input window, operand 9, single buffered']
    #allocation17 [shape = 's32[1]{0}', space=sflag, size = 0x4, scoped, tag = 'scoped memory for tpu_custom_call.1']
    %15 = vsyncpa [#allocation3], 0
    %16 = vsyncpa [#allocation5], 0
    %17 = vsyncpa [#allocation8], 0
    %18 = vsyncpa [#allocation11], 0
    %19 = vsyncpa [#allocation14], 0
    %20 = vsyncpa [#allocation17], 0
    // Predicated region
    $region2: #{tpu_custom_call.1} parent=1 // pred_check
      _
    $region3: #{tpu_custom_call.1} parent=1 // pred_check_branch
      %22 = sbr.rel (0) target = $region5
    $region4: #{tpu_custom_call.1} parent=1 // pred_region
      %s24 = ssub.s32 65536, 65536
      %25 = vsyncadd [#allocation3], %s24
      %s26 = sshll.u32 [#allocation2], 4
      %s27 = int_to_ptr.vmem [resolvable:$true] %s26
      %32 = dma.hbm_to_vmem [thread:$0]  %s0, 65536, %s27, [#allocation3], 2048, 2048, 128
    $region5: #{tpu_custom_call.1} parent=1 // pred_fallthru
      _
    // Predicated region
    $region6: #{tpu_custom_call.1} parent=1 // pred_check
      _
    $region7: #{tpu_custom_call.1} parent=1 // pred_check_branch
      %34 = sbr.rel (0) target = $region9
    $region8: #{tpu_custom_call.1} parent=1 // pred_region
      %s36 = ssub.s32 131072, 131072
      %37 = vsyncadd [#allocation5], %s36
      %s38 = sshll.u32 [#allocation4], 4
      %s39 = int_to_ptr.vmem [resolvable:$true] %s38
      %44 = dma.hbm_to_vmem [thread:$0]  %s1, 131072, %s39, [#allocation5], 512, 512, 32
    $region9: #{tpu_custom_call.1} parent=1 // pred_fallthru
      _
    // Predicated region
    $region10: #{tpu_custom_call.1} parent=1 // pred_check
      _
    $region11: #{tpu_custom_call.1} parent=1 // pred_check_branch
      %46 = sbr.rel (0) target = $region13
    $region12: #{tpu_custom_call.1} parent=1 // pred_region
      %s48 = ssub.s32 128, 128
      %49 = vsyncadd [#allocation5], %s48
      %s51 = sshll.u32 [#allocation6], 4
      %s52 = int_to_ptr.vmem [resolvable:$true] %s51
      %54 = dma.hbm_to_vmem [thread:$0]  %s2, 128, %s52, [#allocation5]
    $region13: #{tpu_custom_call.1} parent=1 // pred_fallthru
      _
    // Predicated region
    $region14: #{tpu_custom_call.1} parent=1 // pred_check
      _
    $region15: #{tpu_custom_call.1} parent=1 // pred_check_branch
      %56 = sbr.rel (0) target = $region17
    $region16: #{tpu_custom_call.1} parent=1 // pred_region
      %s58 = ssub.s32 32768, 32768
      %59 = vsyncadd [#allocation8], %s58
      %s60 = sshll.u32 [#allocation7], 4
      %s61 = int_to_ptr.vmem [resolvable:$true] %s60
      %66 = dma.hbm_to_vmem [thread:$0]  %s3, 32768, %s61, [#allocation8], 256, 256, 16
    $region17: #{tpu_custom_call.1} parent=1 // pred_fallthru
      _
    // Predicated region
    $region18: #{tpu_custom_call.1} parent=1 // pred_check
      _
    $region19: #{tpu_custom_call.1} parent=1 // pred_check_branch
      %68 = sbr.rel (0) target = $region21
    $region20: #{tpu_custom_call.1} parent=1 // pred_region
      %s70 = ssub.s32 64, 64
      %71 = vsyncadd [#allocation8], %s70
      %s73 = sshll.u32 [#allocation9], 4
      %s74 = int_to_ptr.vmem [resolvable:$true] %s73
      %76 = dma.hbm_to_vmem [thread:$0]  %s4, 64, %s74, [#allocation8]
    $region21: #{tpu_custom_call.1} parent=1 // pred_fallthru
      _
    // Predicated region
    $region22: #{tpu_custom_call.1} parent=1 // pred_check
      _
    $region23: #{tpu_custom_call.1} parent=1 // pred_check_branch
      %78 = sbr.rel (0) target = $region25
    $region24: #{tpu_custom_call.1} parent=1 // pred_region
      %s80 = ssub.s32 4096, 4096
      %81 = vsyncadd [#allocation11], %s80
      %s82 = sshll.u32 [#allocation10], 4
      %s83 = int_to_ptr.vmem [resolvable:$true] %s82
      %88 = dma.hbm_to_vmem [thread:$0]  %s5, 4096, %s83, [#allocation11], 64, 64, 4
    $region25: #{tpu_custom_call.1} parent=1 // pred_fallthru
      _
    // Predicated region
    $region26: #{tpu_custom_call.1} parent=1 // pred_check
      _
    $region27: #{tpu_custom_call.1} parent=1 // pred_check_branch
      %90 = sbr.rel (0) target = $region29
    $region28: #{tpu_custom_call.1} parent=1 // pred_region
      %s92 = ssub.s32 16, 16
      %93 = vsyncadd [#allocation11], %s92
      %s95 = sshll.u32 [#allocation12], 4
      %s96 = int_to_ptr.vmem [resolvable:$true] %s95
      %98 = dma.hbm_to_vmem [thread:$0]  %s6, 16, %s96, [#allocation11]
    $region29: #{tpu_custom_call.1} parent=1 // pred_fallthru
      _
    // Predicated region
    $region30: #{tpu_custom_call.1} parent=1 // pred_check
      _
    $region31: #{tpu_custom_call.1} parent=1 // pred_check_branch
      %100 = sbr.rel (0) target = $region33
    $region32: #{tpu_custom_call.1} parent=1 // pred_region
      %s102 = ssub.s32 1024, 1024
      %103 = vsyncadd [#allocation14], %s102
      %s104 = sshll.u32 [#allocation13], 4
      %s105 = int_to_ptr.vmem [resolvable:$true] %s104
      %110 = dma.hbm_to_vmem [thread:$0]  %s7, 1024, %s105, [#allocation14], 64, 64, 4
    $region33: #{tpu_custom_call.1} parent=1 // pred_fallthru
      _
    // Predicated region
    $region34: #{tpu_custom_call.1} parent=1 // pred_check
      _
    $region35: #{tpu_custom_call.1} parent=1 // pred_check_branch
      %112 = sbr.rel (0) target = $region37
    $region36: #{tpu_custom_call.1} parent=1 // pred_region
      %s114 = ssub.s32 16, 16
      %115 = vsyncadd [#allocation14], %s114
      %s117 = sshll.u32 [#allocation15], 4
      %s118 = int_to_ptr.vmem [resolvable:$true] %s117
      %120 = dma.hbm_to_vmem [thread:$0]  %s8, 16, %s118, [#allocation14]
    $region37: #{tpu_custom_call.1} parent=1 // pred_fallthru
      _
    // Predicated region
    $region38: #{tpu_custom_call.1} parent=1 // pred_check
      _
    $region39: #{tpu_custom_call.1} parent=1 // pred_check_branch
      %122 = sbr.rel (0) target = $region41
    $region40: #{tpu_custom_call.1} parent=1 // pred_region
      %s124 = ssub.s32 16, 16
      %125 = vsyncadd [#allocation17], %s124
      %s127 = sshll.u32 [#allocation16], 4
      %s128 = int_to_ptr.vmem [resolvable:$true] %s127
      %130 = dma.hbm_to_vmem [thread:$0]  %s9, 16, %s128, [#allocation17]
    $region41: #{tpu_custom_call.1} parent=1 // pred_fallthru
      _
    // Predicated region
    $region42: #{tpu_custom_call.1} parent=1 // pred_check
      _
    $region43: #{tpu_custom_call.1} parent=1 // pred_check_branch
      %132 = sbr.rel (0) target = $region45
    $region44: #{tpu_custom_call.1} parent=1 // pred_region
      %133 = dma.done [#allocation3], 65536
    $region45: #{tpu_custom_call.1} parent=1 // pred_fallthru
      _
    // Predicated region
    $region46: #{tpu_custom_call.1} parent=1 // pred_check
      _
    $region47: #{tpu_custom_call.1} parent=1 // pred_check_branch
      %135 = sbr.rel (0) target = $region49
    $region48: #{tpu_custom_call.1} parent=1 // pred_region
      %136 = dma.done [#allocation5], 131072
    $region49: #{tpu_custom_call.1} parent=1 // pred_fallthru
      _
    // Predicated region
    $region50: #{tpu_custom_call.1} parent=1 // pred_check
      _
    $region51: #{tpu_custom_call.1} parent=1 // pred_check_branch
      %138 = sbr.rel (0) target = $region53
    $region52: #{tpu_custom_call.1} parent=1 // pred_region
      %139 = dma.done [#allocation5], 128
    $region53: #{tpu_custom_call.1} parent=1 // pred_fallthru
      _
    // Predicated region
    $region54: #{tpu_custom_call.1} parent=1 // pred_check
      _
    $region55: #{tpu_custom_call.1} parent=1 // pred_check_branch
      %141 = sbr.rel (0) target = $region57
    $region56: #{tpu_custom_call.1} parent=1 // pred_region
      %142 = dma.done [#allocation8], 32768
    $region57: #{tpu_custom_call.1} parent=1 // pred_fallthru
      _
    // Predicated region
    $region58: #{tpu_custom_call.1} parent=1 // pred_check
      _
    $region59: #{tpu_custom_call.1} parent=1 // pred_check_branch
      %144 = sbr.rel (0) target = $region61
    $region60: #{tpu_custom_call.1} parent=1 // pred_region
      %145 = dma.done [#allocation8], 64
    $region61: #{tpu_custom_call.1} parent=1 // pred_fallthru
      _
    // Predicated region
    $region62: #{tpu_custom_call.1} parent=1 // pred_check
      _
    $region63: #{tpu_custom_call.1} parent=1 // pred_check_branch
      %147 = sbr.rel (0) target = $region65
    $region64: #{tpu_custom_call.1} parent=1 // pred_region
      %148 = dma.done [#allocation11], 4096
    $region65: #{tpu_custom_call.1} parent=1 // pred_fallthru
      _
    // Predicated region
    $region66: #{tpu_custom_call.1} parent=1 // pred_check
      _
    $region67: #{tpu_custom_call.1} parent=1 // pred_check_branch
      %150 = sbr.rel (0) target = $region69
    $region68: #{tpu_custom_call.1} parent=1 // pred_region
      %151 = dma.done [#allocation11], 16
    $region69: #{tpu_custom_call.1} parent=1 // pred_fallthru
      _
    // Predicated region
    $region70: #{tpu_custom_call.1} parent=1 // pred_check
      _
    $region71: #{tpu_custom_call.1} parent=1 // pred_check_branch
      %153 = sbr.rel (0) target = $region73
    $region72: #{tpu_custom_call.1} parent=1 // pred_region
      %154 = dma.done [#allocation14], 1024
    $region73: #{tpu_custom_call.1} parent=1 // pred_fallthru
      _
    // Predicated region
    $region74: #{tpu_custom_call.1} parent=1 // pred_check
      _
    $region75: #{tpu_custom_call.1} parent=1 // pred_check_branch
      %156 = sbr.rel (0) target = $region77
    $region76: #{tpu_custom_call.1} parent=1 // pred_region
      %157 = dma.done [#allocation14], 16
    $region77: #{tpu_custom_call.1} parent=1 // pred_fallthru
      _
    // Predicated region
    $region78: #{tpu_custom_call.1} parent=1 // pred_check
      _
    $region79: #{tpu_custom_call.1} parent=1 // pred_check_branch
      %159 = sbr.rel (0) target = $region81
    $region80: #{tpu_custom_call.1} parent=1 // pred_region
      %160 = dma.done [#allocation17], 16
    $region81: #{tpu_custom_call.1} parent=1 // pred_fallthru
      _
    %v162 = vld [vmem:[#allocation2] sm:$0xff]
    %v163 = vld [vmem:[#allocation2 + $0x8] sm:$0xff]
    %v164 = vld [vmem:[#allocation2 + $0x10] sm:$0xff]
    %v165 = vld [vmem:[#allocation2 + $0x18] sm:$0xff]
    %v166 = vld [vmem:[#allocation2 + $0x20] sm:$0xff]
    %v167 = vld [vmem:[#allocation2 + $0x28] sm:$0xff]
    %v168 = vld [vmem:[#allocation2 + $0x30] sm:$0xff]
    %v169 = vld [vmem:[#allocation2 + $0x38] sm:$0xff]
    %v170 = vld [vmem:[#allocation2 + $0x40] sm:$0xff]
    %v171 = vld [vmem:[#allocation2 + $0x48] sm:$0xff]
    %v172 = vld [vmem:[#allocation2 + $0x50] sm:$0xff]
    %v173 = vld [vmem:[#allocation2 + $0x58] sm:$0xff]
    %v174 = vld [vmem:[#allocation2 + $0x60] sm:$0xff]
    %v175 = vld [vmem:[#allocation2 + $0x68] sm:$0xff]
    %v176 = vld [vmem:[#allocation2 + $0x70] sm:$0xff]
    %v177 = vld [vmem:[#allocation2 + $0x78] sm:$0xff]
    %v178 = vld [vmem:[#allocation2 + $0x80] sm:$0xff]
    %v179 = vld [vmem:[#allocation2 + $0x88] sm:$0xff]
    %v180 = vld [vmem:[#allocation2 + $0x90] sm:$0xff]
    %v181 = vld [vmem:[#allocation2 + $0x98] sm:$0xff]
    %v182 = vld [vmem:[#allocation2 + $0xa0] sm:$0xff]
    %v183 = vld [vmem:[#allocation2 + $0xa8] sm:$0xff]
    %v184 = vld [vmem:[#allocation2 + $0xb0] sm:$0xff]
    %v185 = vld [vmem:[#allocation2 + $0xb8] sm:$0xff]
    %v186 = vld [vmem:[#allocation2 + $0xc0] sm:$0xff]
    %v187 = vld [vmem:[#allocation2 + $0xc8] sm:$0xff]
    %v188 = vld [vmem:[#allocation2 + $0xd0] sm:$0xff]
    %v189 = vld [vmem:[#allocation2 + $0xd8] sm:$0xff]
    %v190 = vld [vmem:[#allocation2 + $0xe0] sm:$0xff]
    %v191 = vld [vmem:[#allocation2 + $0xe8] sm:$0xff]
    %v192 = vld [vmem:[#allocation2 + $0xf0] sm:$0xff]
    %v193 = vld [vmem:[#allocation2 + $0xf8] sm:$0xff]
    %v194 = vld [vmem:[#allocation2 + $0x100] sm:$0xff]
    %v195 = vld [vmem:[#allocation2 + $0x108] sm:$0xff]
    %v196 = vld [vmem:[#allocation2 + $0x110] sm:$0xff]
    %v197 = vld [vmem:[#allocation2 + $0x118] sm:$0xff]
    %v198 = vld [vmem:[#allocation2 + $0x120] sm:$0xff]
    %v199 = vld [vmem:[#allocation2 + $0x128] sm:$0xff]
    %v200 = vld [vmem:[#allocation2 + $0x130] sm:$0xff]
    %v201 = vld [vmem:[#allocation2 + $0x138] sm:$0xff]
    %v202 = vld [vmem:[#allocation2 + $0x140] sm:$0xff]
    %v203 = vld [vmem:[#allocation2 + $0x148] sm:$0xff]
    %v204 = vld [vmem:[#allocation2 + $0x150] sm:$0xff]
    %v205 = vld [vmem:[#allocation2 + $0x158] sm:$0xff]
    %v206 = vld [vmem:[#allocation2 + $0x160] sm:$0xff]
    %v207 = vld [vmem:[#allocation2 + $0x168] sm:$0xff]
    %v208 = vld [vmem:[#allocation2 + $0x170] sm:$0xff]
    %v209 = vld [vmem:[#allocation2 + $0x178] sm:$0xff]
    %v210 = vld [vmem:[#allocation2 + $0x180] sm:$0xff]
    %v211 = vld [vmem:[#allocation2 + $0x188] sm:$0xff]
    %v212 = vld [vmem:[#allocation2 + $0x190] sm:$0xff]
    %v213 = vld [vmem:[#allocation2 + $0x198] sm:$0xff]
    %v214 = vld [vmem:[#allocation2 + $0x1a0] sm:$0xff]
    %v215 = vld [vmem:[#allocation2 + $0x1a8] sm:$0xff]
    %v216 = vld [vmem:[#allocation2 + $0x1b0] sm:$0xff]
    %v217 = vld [vmem:[#allocation2 + $0x1b8] sm:$0xff]
    %v218 = vld [vmem:[#allocation2 + $0x1c0] sm:$0xff]
    %v219 = vld [vmem:[#allocation2 + $0x1c8] sm:$0xff]
    %v220 = vld [vmem:[#allocation2 + $0x1d0] sm:$0xff]
    %v221 = vld [vmem:[#allocation2 + $0x1d8] sm:$0xff]
    %v222 = vld [vmem:[#allocation2 + $0x1e0] sm:$0xff]
    %v223 = vld [vmem:[#allocation2 + $0x1e8] sm:$0xff]
    %v224 = vld [vmem:[#allocation2 + $0x1f0] sm:$0xff]
    %v225 = vld [vmem:[#allocation2 + $0x1f8] sm:$0xff]
    %v226 = vld [vmem:[#allocation2 + $0x200] sm:$0xff]
    %v227 = vld [vmem:[#allocation2 + $0x208] sm:$0xff]
    %v228 = vld [vmem:[#allocation2 + $0x210] sm:$0xff]
    %v229 = vld [vmem:[#allocation2 + $0x218] sm:$0xff]
    %v230 = vld [vmem:[#allocation2 + $0x220] sm:$0xff]
    %v231 = vld [vmem:[#allocation2 + $0x228] sm:$0xff]
    %v232 = vld [vmem:[#allocation2 + $0x230] sm:$0xff]
    %v233 = vld [vmem:[#allocation2 + $0x238] sm:$0xff]
    %v234 = vld [vmem:[#allocation2 + $0x240] sm:$0xff]
    %v235 = vld [vmem:[#allocation2 + $0x248] sm:$0xff]
    %v236 = vld [vmem:[#allocation2 + $0x250] sm:$0xff]
    %v237 = vld [vmem:[#allocation2 + $0x258] sm:$0xff]
    %v238 = vld [vmem:[#allocation2 + $0x260] sm:$0xff]
    %v239 = vld [vmem:[#allocation2 + $0x268] sm:$0xff]
    %v240 = vld [vmem:[#allocation2 + $0x270] sm:$0xff]
    %v241 = vld [vmem:[#allocation2 + $0x278] sm:$0xff]
    %v242 = vld [vmem:[#allocation2 + $0x280] sm:$0xff]
    %v243 = vld [vmem:[#allocation2 + $0x288] sm:$0xff]
    %v244 = vld [vmem:[#allocation2 + $0x290] sm:$0xff]
    %v245 = vld [vmem:[#allocation2 + $0x298] sm:$0xff]
    %v246 = vld [vmem:[#allocation2 + $0x2a0] sm:$0xff]
    %v247 = vld [vmem:[#allocation2 + $0x2a8] sm:$0xff]
    %v248 = vld [vmem:[#allocation2 + $0x2b0] sm:$0xff]
    %v249 = vld [vmem:[#allocation2 + $0x2b8] sm:$0xff]
    %v250 = vld [vmem:[#allocation2 + $0x2c0] sm:$0xff]
    %v251 = vld [vmem:[#allocation2 + $0x2c8] sm:$0xff]
    %v252 = vld [vmem:[#allocation2 + $0x2d0] sm:$0xff]
    %v253 = vld [vmem:[#allocation2 + $0x2d8] sm:$0xff]
    %v254 = vld [vmem:[#allocation2 + $0x2e0] sm:$0xff]
    %v255 = vld [vmem:[#allocation2 + $0x2e8] sm:$0xff]
    %v256 = vld [vmem:[#allocation2 + $0x2f0] sm:$0xff]
    %v257 = vld [vmem:[#allocation2 + $0x2f8] sm:$0xff]
    %v258 = vld [vmem:[#allocation2 + $0x300] sm:$0xff]
    %v259 = vld [vmem:[#allocation2 + $0x308] sm:$0xff]
    %v260 = vld [vmem:[#allocation2 + $0x310] sm:$0xff]
    %v261 = vld [vmem:[#allocation2 + $0x318] sm:$0xff]
    %v262 = vld [vmem:[#allocation2 + $0x320] sm:$0xff]
    %v263 = vld [vmem:[#allocation2 + $0x328] sm:$0xff]
    %v264 = vld [vmem:[#allocation2 + $0x330] sm:$0xff]
    %v265 = vld [vmem:[#allocation2 + $0x338] sm:$0xff]
    %v266 = vld [vmem:[#allocation2 + $0x340] sm:$0xff]
    %v267 = vld [vmem:[#allocation2 + $0x348] sm:$0xff]
    %v268 = vld [vmem:[#allocation2 + $0x350] sm:$0xff]
    %v269 = vld [vmem:[#allocation2 + $0x358] sm:$0xff]
    %v270 = vld [vmem:[#allocation2 + $0x360] sm:$0xff]
    %v271 = vld [vmem:[#allocation2 + $0x368] sm:$0xff]
    %v272 = vld [vmem:[#allocation2 + $0x370] sm:$0xff]
    %v273 = vld [vmem:[#allocation2 + $0x378] sm:$0xff]
    %v274 = vld [vmem:[#allocation2 + $0x380] sm:$0xff]
    %v275 = vld [vmem:[#allocation2 + $0x388] sm:$0xff]
    %v276 = vld [vmem:[#allocation2 + $0x390] sm:$0xff]
    %v277 = vld [vmem:[#allocation2 + $0x398] sm:$0xff]
    %v278 = vld [vmem:[#allocation2 + $0x3a0] sm:$0xff]
    %v279 = vld [vmem:[#allocation2 + $0x3a8] sm:$0xff]
    %v280 = vld [vmem:[#allocation2 + $0x3b0] sm:$0xff]
    %v281 = vld [vmem:[#allocation2 + $0x3b8] sm:$0xff]
    %v282 = vld [vmem:[#allocation2 + $0x3c0] sm:$0xff]
    %v283 = vld [vmem:[#allocation2 + $0x3c8] sm:$0xff]
    %v284 = vld [vmem:[#allocation2 + $0x3d0] sm:$0xff]
    %v285 = vld [vmem:[#allocation2 + $0x3d8] sm:$0xff]
    %v286 = vld [vmem:[#allocation2 + $0x3e0] sm:$0xff]
    %v287 = vld [vmem:[#allocation2 + $0x3e8] sm:$0xff]
    %v288 = vld [vmem:[#allocation2 + $0x3f0] sm:$0xff]
    %v289 = vld [vmem:[#allocation2 + $0x3f8] sm:$0xff]
    %v290 = vld [vmem:[#allocation2 + $0x400] sm:$0xff]
    %v291 = vld [vmem:[#allocation2 + $0x408] sm:$0xff]
    %v292 = vld [vmem:[#allocation2 + $0x410] sm:$0xff]
    %v293 = vld [vmem:[#allocation2 + $0x418] sm:$0xff]
    %v294 = vld [vmem:[#allocation2 + $0x420] sm:$0xff]
    %v295 = vld [vmem:[#allocation2 + $0x428] sm:$0xff]
    %v296 = vld [vmem:[#allocation2 + $0x430] sm:$0xff]
    %v297 = vld [vmem:[#allocation2 + $0x438] sm:$0xff]
    %v298 = vld [vmem:[#allocation2 + $0x440] sm:$0xff]
    %v299 = vld [vmem:[#allocation2 + $0x448] sm:$0xff]
    %v300 = vld [vmem:[#allocation2 + $0x450] sm:$0xff]
    %v301 = vld [vmem:[#allocation2 + $0x458] sm:$0xff]
    %v302 = vld [vmem:[#allocation2 + $0x460] sm:$0xff]
    %v303 = vld [vmem:[#allocation2 + $0x468] sm:$0xff]
    %v304 = vld [vmem:[#allocation2 + $0x470] sm:$0xff]
    %v305 = vld [vmem:[#allocation2 + $0x478] sm:$0xff]
    %v306 = vld [vmem:[#allocation2 + $0x480] sm:$0xff]
    %v307 = vld [vmem:[#allocation2 + $0x488] sm:$0xff]
    %v308 = vld [vmem:[#allocation2 + $0x490] sm:$0xff]
    %v309 = vld [vmem:[#allocation2 + $0x498] sm:$0xff]
    %v310 = vld [vmem:[#allocation2 + $0x4a0] sm:$0xff]
    %v311 = vld [vmem:[#allocation2 + $0x4a8] sm:$0xff]
    %v312 = vld [vmem:[#allocation2 + $0x4b0] sm:$0xff]
    %v313 = vld [vmem:[#allocation2 + $0x4b8] sm:$0xff]
    %v314 = vld [vmem:[#allocation2 + $0x4c0] sm:$0xff]
    %v315 = vld [vmem:[#allocation2 + $0x4c8] sm:$0xff]
    %v316 = vld [vmem:[#allocation2 + $0x4d0] sm:$0xff]
    %v317 = vld [vmem:[#allocation2 + $0x4d8] sm:$0xff]
    %v318 = vld [vmem:[#allocation2 + $0x4e0] sm:$0xff]
    %v319 = vld [vmem:[#allocation2 + $0x4e8] sm:$0xff]
    %v320 = vld [vmem:[#allocation2 + $0x4f0] sm:$0xff]
    %v321 = vld [vmem:[#allocation2 + $0x4f8] sm:$0xff]
    %v322 = vld [vmem:[#allocation2 + $0x500] sm:$0xff]
    %v323 = vld [vmem:[#allocation2 + $0x508] sm:$0xff]
    %v324 = vld [vmem:[#allocation2 + $0x510] sm:$0xff]
    %v325 = vld [vmem:[#allocation2 + $0x518] sm:$0xff]
    %v326 = vld [vmem:[#allocation2 + $0x520] sm:$0xff]
    %v327 = vld [vmem:[#allocation2 + $0x528] sm:$0xff]
    %v328 = vld [vmem:[#allocation2 + $0x530] sm:$0xff]
    %v329 = vld [vmem:[#allocation2 + $0x538] sm:$0xff]
    %v330 = vld [vmem:[#allocation2 + $0x540] sm:$0xff]
    %v331 = vld [vmem:[#allocation2 + $0x548] sm:$0xff]
    %v332 = vld [vmem:[#allocation2 + $0x550] sm:$0xff]
    %v333 = vld [vmem:[#allocation2 + $0x558] sm:$0xff]
    %v334 = vld [vmem:[#allocation2 + $0x560] sm:$0xff]
    %v335 = vld [vmem:[#allocation2 + $0x568] sm:$0xff]
    %v336 = vld [vmem:[#allocation2 + $0x570] sm:$0xff]
    %v337 = vld [vmem:[#allocation2 + $0x578] sm:$0xff]
    %v338 = vld [vmem:[#allocation2 + $0x580] sm:$0xff]
    %v339 = vld [vmem:[#allocation2 + $0x588] sm:$0xff]
    %v340 = vld [vmem:[#allocation2 + $0x590] sm:$0xff]
    %v341 = vld [vmem:[#allocation2 + $0x598] sm:$0xff]
    %v342 = vld [vmem:[#allocation2 + $0x5a0] sm:$0xff]
    %v343 = vld [vmem:[#allocation2 + $0x5a8] sm:$0xff]
    %v344 = vld [vmem:[#allocation2 + $0x5b0] sm:$0xff]
    %v345 = vld [vmem:[#allocation2 + $0x5b8] sm:$0xff]
    %v346 = vld [vmem:[#allocation2 + $0x5c0] sm:$0xff]
    %v347 = vld [vmem:[#allocation2 + $0x5c8] sm:$0xff]
    %v348 = vld [vmem:[#allocation2 + $0x5d0] sm:$0xff]
    %v349 = vld [vmem:[#allocation2 + $0x5d8] sm:$0xff]
    %v350 = vld [vmem:[#allocation2 + $0x5e0] sm:$0xff]
    %v351 = vld [vmem:[#allocation2 + $0x5e8] sm:$0xff]
    %v352 = vld [vmem:[#allocation2 + $0x5f0] sm:$0xff]
    %v353 = vld [vmem:[#allocation2 + $0x5f8] sm:$0xff]
    %v354 = vld [vmem:[#allocation2 + $0x600] sm:$0xff]
    %v355 = vld [vmem:[#allocation2 + $0x608] sm:$0xff]
    %v356 = vld [vmem:[#allocation2 + $0x610] sm:$0xff]
    %v357 = vld [vmem:[#allocation2 + $0x618] sm:$0xff]
    %v358 = vld [vmem:[#allocation2 + $0x620] sm:$0xff]
    %v359 = vld [vmem:[#allocation2 + $0x628] sm:$0xff]
    %v360 = vld [vmem:[#allocation2 + $0x630] sm:$0xff]
    %v361 = vld [vmem:[#allocation2 + $0x638] sm:$0xff]
    %v362 = vld [vmem:[#allocation2 + $0x640] sm:$0xff]
    %v363 = vld [vmem:[#allocation2 + $0x648] sm:$0xff]
    %v364 = vld [vmem:[#allocation2 + $0x650] sm:$0xff]
    %v365 = vld [vmem:[#allocation2 + $0x658] sm:$0xff]
    %v366 = vld [vmem:[#allocation2 + $0x660] sm:$0xff]
    %v367 = vld [vmem:[#allocation2 + $0x668] sm:$0xff]
    %v368 = vld [vmem:[#allocation2 + $0x670] sm:$0xff]
    %v369 = vld [vmem:[#allocation2 + $0x678] sm:$0xff]
    %v370 = vld [vmem:[#allocation2 + $0x680] sm:$0xff]
    %v371 = vld [vmem:[#allocation2 + $0x688] sm:$0xff]
    %v372 = vld [vmem:[#allocation2 + $0x690] sm:$0xff]
    %v373 = vld [vmem:[#allocation2 + $0x698] sm:$0xff]
    %v374 = vld [vmem:[#allocation2 + $0x6a0] sm:$0xff]
    %v375 = vld [vmem:[#allocation2 + $0x6a8] sm:$0xff]
    %v376 = vld [vmem:[#allocation2 + $0x6b0] sm:$0xff]
    %v377 = vld [vmem:[#allocation2 + $0x6b8] sm:$0xff]
    %v378 = vld [vmem:[#allocation2 + $0x6c0] sm:$0xff]
    %v379 = vld [vmem:[#allocation2 + $0x6c8] sm:$0xff]
    %v380 = vld [vmem:[#allocation2 + $0x6d0] sm:$0xff]
    %v381 = vld [vmem:[#allocation2 + $0x6d8] sm:$0xff]
    %v382 = vld [vmem:[#allocation2 + $0x6e0] sm:$0xff]
    %v383 = vld [vmem:[#allocation2 + $0x6e8] sm:$0xff]
    %v384 = vld [vmem:[#allocation2 + $0x6f0] sm:$0xff]
    %v385 = vld [vmem:[#allocation2 + $0x6f8] sm:$0xff]
    %v386 = vld [vmem:[#allocation2 + $0x700] sm:$0xff]
    %v387 = vld [vmem:[#allocation2 + $0x708] sm:$0xff]
    %v388 = vld [vmem:[#allocation2 + $0x710] sm:$0xff]
    %v389 = vld [vmem:[#allocation2 + $0x718] sm:$0xff]
    %v390 = vld [vmem:[#allocation2 + $0x720] sm:$0xff]
    %v391 = vld [vmem:[#allocation2 + $0x728] sm:$0xff]
    %v392 = vld [vmem:[#allocation2 + $0x730] sm:$0xff]
    %v393 = vld [vmem:[#allocation2 + $0x738] sm:$0xff]
    %v394 = vld [vmem:[#allocation2 + $0x740] sm:$0xff]
    %v395 = vld [vmem:[#allocation2 + $0x748] sm:$0xff]
    %v396 = vld [vmem:[#allocation2 + $0x750] sm:$0xff]
    %v397 = vld [vmem:[#allocation2 + $0x758] sm:$0xff]
    %v398 = vld [vmem:[#allocation2 + $0x760] sm:$0xff]
    %v399 = vld [vmem:[#allocation2 + $0x768] sm:$0xff]
    %v400 = vld [vmem:[#allocation2 + $0x770] sm:$0xff]
    %v401 = vld [vmem:[#allocation2 + $0x778] sm:$0xff]
    %v402 = vld [vmem:[#allocation2 + $0x780] sm:$0xff]
    %v403 = vld [vmem:[#allocation2 + $0x788] sm:$0xff]
    %v404 = vld [vmem:[#allocation2 + $0x790] sm:$0xff]
    %v405 = vld [vmem:[#allocation2 + $0x798] sm:$0xff]
    %v406 = vld [vmem:[#allocation2 + $0x7a0] sm:$0xff]
    %v407 = vld [vmem:[#allocation2 + $0x7a8] sm:$0xff]
    %v408 = vld [vmem:[#allocation2 + $0x7b0] sm:$0xff]
    %v409 = vld [vmem:[#allocation2 + $0x7b8] sm:$0xff]
    %v410 = vld [vmem:[#allocation2 + $0x7c0] sm:$0xff]
    %v411 = vld [vmem:[#allocation2 + $0x7c8] sm:$0xff]
    %v412 = vld [vmem:[#allocation2 + $0x7d0] sm:$0xff]
    %v413 = vld [vmem:[#allocation2 + $0x7d8] sm:$0xff]
    %v414 = vld [vmem:[#allocation2 + $0x7e0] sm:$0xff]
    %v415 = vld [vmem:[#allocation2 + $0x7e8] sm:$0xff]
    %v416 = vld [vmem:[#allocation2 + $0x7f0] sm:$0xff]
    %v417 = vld [vmem:[#allocation2 + $0x7f8] sm:$0xff]
    %v418 = vld [vmem:[#allocation2 + $0x800] sm:$0xff]
    %v419 = vld [vmem:[#allocation2 + $0x808] sm:$0xff]
    %v420 = vld [vmem:[#allocation2 + $0x810] sm:$0xff]
    %v421 = vld [vmem:[#allocation2 + $0x818] sm:$0xff]
    %v422 = vld [vmem:[#allocation2 + $0x820] sm:$0xff]
    %v423 = vld [vmem:[#allocation2 + $0x828] sm:$0xff]
    %v424 = vld [vmem:[#allocation2 + $0x830] sm:$0xff]
    %v425 = vld [vmem:[#allocation2 + $0x838] sm:$0xff]
    %v426 = vld [vmem:[#allocation2 + $0x840] sm:$0xff]
    %v427 = vld [vmem:[#allocation2 + $0x848] sm:$0xff]
    %v428 = vld [vmem:[#allocation2 + $0x850] sm:$0xff]
    %v429 = vld [vmem:[#allocation2 + $0x858] sm:$0xff]
    %v430 = vld [vmem:[#allocation2 + $0x860] sm:$0xff]
    %v431 = vld [vmem:[#allocation2 + $0x868] sm:$0xff]
    %v432 = vld [vmem:[#allocation2 + $0x870] sm:$0xff]
    %v433 = vld [vmem:[#allocation2 + $0x878] sm:$0xff]
    %v434 = vld [vmem:[#allocation2 + $0x880] sm:$0xff]
    %v435 = vld [vmem:[#allocation2 + $0x888] sm:$0xff]
    %v436 = vld [vmem:[#allocation2 + $0x890] sm:$0xff]
    %v437 = vld [vmem:[#allocation2 + $0x898] sm:$0xff]
    %v438 = vld [vmem:[#allocation2 + $0x8a0] sm:$0xff]
    %v439 = vld [vmem:[#allocation2 + $0x8a8] sm:$0xff]
    %v440 = vld [vmem:[#allocation2 + $0x8b0] sm:$0xff]
    %v441 = vld [vmem:[#allocation2 + $0x8b8] sm:$0xff]
    %v442 = vld [vmem:[#allocation2 + $0x8c0] sm:$0xff]
    %v443 = vld [vmem:[#allocation2 + $0x8c8] sm:$0xff]
    %v444 = vld [vmem:[#allocation2 + $0x8d0] sm:$0xff]
    %v445 = vld [vmem:[#allocation2 + $0x8d8] sm:$0xff]
    %v446 = vld [vmem:[#allocation2 + $0x8e0] sm:$0xff]
    %v447 = vld [vmem:[#allocation2 + $0x8e8] sm:$0xff]
    %v448 = vld [vmem:[#allocation2 + $0x8f0] sm:$0xff]
    %v449 = vld [vmem:[#allocation2 + $0x8f8] sm:$0xff]
    %v450 = vld [vmem:[#allocation2 + $0x900] sm:$0xff]
    %v451 = vld [vmem:[#allocation2 + $0x908] sm:$0xff]
    %v452 = vld [vmem:[#allocation2 + $0x910] sm:$0xff]
    %v453 = vld [vmem:[#allocation2 + $0x918] sm:$0xff]
    %v454 = vld [vmem:[#allocation2 + $0x920] sm:$0xff]
    %v455 = vld [vmem:[#allocation2 + $0x928] sm:$0xff]
    %v456 = vld [vmem:[#allocation2 + $0x930] sm:$0xff]
    %v457 = vld [vmem:[#allocation2 + $0x938] sm:$0xff]
    %v458 = vld [vmem:[#allocation2 + $0x940] sm:$0xff]
    %v459 = vld [vmem:[#allocation2 + $0x948] sm:$0xff]
    %v460 = vld [vmem:[#allocation2 + $0x950] sm:$0xff]
    %v461 = vld [vmem:[#allocation2 + $0x958] sm:$0xff]
    %v462 = vld [vmem:[#allocation2 + $0x960] sm:$0xff]
    %v463 = vld [vmem:[#allocation2 + $0x968] sm:$0xff]
    %v464 = vld [vmem:[#allocation2 + $0x970] sm:$0xff]
    %v465 = vld [vmem:[#allocation2 + $0x978] sm:$0xff]
    %v466 = vld [vmem:[#allocation2 + $0x980] sm:$0xff]
    %v467 = vld [vmem:[#allocation2 + $0x988] sm:$0xff]
    %v468 = vld [vmem:[#allocation2 + $0x990] sm:$0xff]
    %v469 = vld [vmem:[#allocation2 + $0x998] sm:$0xff]
    %v470 = vld [vmem:[#allocation2 + $0x9a0] sm:$0xff]
    %v471 = vld [vmem:[#allocation2 + $0x9a8] sm:$0xff]
    %v472 = vld [vmem:[#allocation2 + $0x9b0] sm:$0xff]
    %v473 = vld [vmem:[#allocation2 + $0x9b8] sm:$0xff]
    %v474 = vld [vmem:[#allocation2 + $0x9c0] sm:$0xff]
    %v475 = vld [vmem:[#allocation2 + $0x9c8] sm:$0xff]
    %v476 = vld [vmem:[#allocation2 + $0x9d0] sm:$0xff]
    %v477 = vld [vmem:[#allocation2 + $0x9d8] sm:$0xff]
    %v478 = vld [vmem:[#allocation2 + $0x9e0] sm:$0xff]
    %v479 = vld [vmem:[#allocation2 + $0x9e8] sm:$0xff]
    %v480 = vld [vmem:[#allocation2 + $0x9f0] sm:$0xff]
    %v481 = vld [vmem:[#allocation2 + $0x9f8] sm:$0xff]
    %v482 = vld [vmem:[#allocation2 + $0xa00] sm:$0xff]
    %v483 = vld [vmem:[#allocation2 + $0xa08] sm:$0xff]
    %v484 = vld [vmem:[#allocation2 + $0xa10] sm:$0xff]
    %v485 = vld [vmem:[#allocation2 + $0xa18] sm:$0xff]
    %v486 = vld [vmem:[#allocation2 + $0xa20] sm:$0xff]
    %v487 = vld [vmem:[#allocation2 + $0xa28] sm:$0xff]
    %v488 = vld [vmem:[#allocation2 + $0xa30] sm:$0xff]
    %v489 = vld [vmem:[#allocation2 + $0xa38] sm:$0xff]
    %v490 = vld [vmem:[#allocation2 + $0xa40] sm:$0xff]
    %v491 = vld [vmem:[#allocation2 + $0xa48] sm:$0xff]
    %v492 = vld [vmem:[#allocation2 + $0xa50] sm:$0xff]
    %v493 = vld [vmem:[#allocation2 + $0xa58] sm:$0xff]
    %v494 = vld [vmem:[#allocation2 + $0xa60] sm:$0xff]
    %v495 = vld [vmem:[#allocation2 + $0xa68] sm:$0xff]
    %v496 = vld [vmem:[#allocation2 + $0xa70] sm:$0xff]
    %v497 = vld [vmem:[#allocation2 + $0xa78] sm:$0xff]
    %v498 = vld [vmem:[#allocation2 + $0xa80] sm:$0xff]
    %v499 = vld [vmem:[#allocation2 + $0xa88] sm:$0xff]
    %v500 = vld [vmem:[#allocation2 + $0xa90] sm:$0xff]
    %v501 = vld [vmem:[#allocation2 + $0xa98] sm:$0xff]
    %v502 = vld [vmem:[#allocation2 + $0xaa0] sm:$0xff]
    %v503 = vld [vmem:[#allocation2 + $0xaa8] sm:$0xff]
    %v504 = vld [vmem:[#allocation2 + $0xab0] sm:$0xff]
    %v505 = vld [vmem:[#allocation2 + $0xab8] sm:$0xff]
    %v506 = vld [vmem:[#allocation2 + $0xac0] sm:$0xff]
    %v507 = vld [vmem:[#allocation2 + $0xac8] sm:$0xff]
    %v508 = vld [vmem:[#allocation2 + $0xad0] sm:$0xff]
    %v509 = vld [vmem:[#allocation2 + $0xad8] sm:$0xff]
    %v510 = vld [vmem:[#allocation2 + $0xae0] sm:$0xff]
    %v511 = vld [vmem:[#allocation2 + $0xae8] sm:$0xff]
    %v512 = vld [vmem:[#allocation2 + $0xaf0] sm:$0xff]
    %v513 = vld [vmem:[#allocation2 + $0xaf8] sm:$0xff]
    %v514 = vld [vmem:[#allocation2 + $0xb00] sm:$0xff]
    %v515 = vld [vmem:[#allocation2 + $0xb08] sm:$0xff]
    %v516 = vld [vmem:[#allocation2 + $0xb10] sm:$0xff]
    %v517 = vld [vmem:[#allocation2 + $0xb18] sm:$0xff]
    %v518 = vld [vmem:[#allocation2 + $0xb20] sm:$0xff]
    %v519 = vld [vmem:[#allocation2 + $0xb28] sm:$0xff]
    %v520 = vld [vmem:[#allocation2 + $0xb30] sm:$0xff]
    %v521 = vld [vmem:[#allocation2 + $0xb38] sm:$0xff]
    %v522 = vld [vmem:[#allocation2 + $0xb40] sm:$0xff]
    %v523 = vld [vmem:[#allocation2 + $0xb48] sm:$0xff]
    %v524 = vld [vmem:[#allocation2 + $0xb50] sm:$0xff]
    %v525 = vld [vmem:[#allocation2 + $0xb58] sm:$0xff]
    %v526 = vld [vmem:[#allocation2 + $0xb60] sm:$0xff]
    %v527 = vld [vmem:[#allocation2 + $0xb68] sm:$0xff]
    %v528 = vld [vmem:[#allocation2 + $0xb70] sm:$0xff]
    %v529 = vld [vmem:[#allocation2 + $0xb78] sm:$0xff]
    %v530 = vld [vmem:[#allocation2 + $0xb80] sm:$0xff]
    %v531 = vld [vmem:[#allocation2 + $0xb88] sm:$0xff]
    %v532 = vld [vmem:[#allocation2 + $0xb90] sm:$0xff]
    %v533 = vld [vmem:[#allocation2 + $0xb98] sm:$0xff]
    %v534 = vld [vmem:[#allocation2 + $0xba0] sm:$0xff]
    %v535 = vld [vmem:[#allocation2 + $0xba8] sm:$0xff]
    %v536 = vld [vmem:[#allocation2 + $0xbb0] sm:$0xff]
    %v537 = vld [vmem:[#allocation2 + $0xbb8] sm:$0xff]
    %v538 = vld [vmem:[#allocation2 + $0xbc0] sm:$0xff]
    %v539 = vld [vmem:[#allocation2 + $0xbc8] sm:$0xff]
    %v540 = vld [vmem:[#allocation2 + $0xbd0] sm:$0xff]
    %v541 = vld [vmem:[#allocation2 + $0xbd8] sm:$0xff]
    %v542 = vld [vmem:[#allocation2 + $0xbe0] sm:$0xff]
    %v543 = vld [vmem:[#allocation2 + $0xbe8] sm:$0xff]
    %v544 = vld [vmem:[#allocation2 + $0xbf0] sm:$0xff]
    %v545 = vld [vmem:[#allocation2 + $0xbf8] sm:$0xff]
    %v546 = vld [vmem:[#allocation2 + $0xc00] sm:$0xff]
    %v547 = vld [vmem:[#allocation2 + $0xc08] sm:$0xff]
    %v548 = vld [vmem:[#allocation2 + $0xc10] sm:$0xff]
    %v549 = vld [vmem:[#allocation2 + $0xc18] sm:$0xff]
    %v550 = vld [vmem:[#allocation2 + $0xc20] sm:$0xff]
    %v551 = vld [vmem:[#allocation2 + $0xc28] sm:$0xff]
    %v552 = vld [vmem:[#allocation2 + $0xc30] sm:$0xff]
    %v553 = vld [vmem:[#allocation2 + $0xc38] sm:$0xff]
    %v554 = vld [vmem:[#allocation2 + $0xc40] sm:$0xff]
    %v555 = vld [vmem:[#allocation2 + $0xc48] sm:$0xff]
    %v556 = vld [vmem:[#allocation2 + $0xc50] sm:$0xff]
    %v557 = vld [vmem:[#allocation2 + $0xc58] sm:$0xff]
    %v558 = vld [vmem:[#allocation2 + $0xc60] sm:$0xff]
    %v559 = vld [vmem:[#allocation2 + $0xc68] sm:$0xff]
    %v560 = vld [vmem:[#allocation2 + $0xc70] sm:$0xff]
    %v561 = vld [vmem:[#allocation2 + $0xc78] sm:$0xff]
    %v562 = vld [vmem:[#allocation2 + $0xc80] sm:$0xff]
    %v563 = vld [vmem:[#allocation2 + $0xc88] sm:$0xff]
    %v564 = vld [vmem:[#allocation2 + $0xc90] sm:$0xff]
    %v565 = vld [vmem:[#allocation2 + $0xc98] sm:$0xff]
    %v566 = vld [vmem:[#allocation2 + $0xca0] sm:$0xff]
    %v567 = vld [vmem:[#allocation2 + $0xca8] sm:$0xff]
    %v568 = vld [vmem:[#allocation2 + $0xcb0] sm:$0xff]
    %v569 = vld [vmem:[#allocation2 + $0xcb8] sm:$0xff]
    %v570 = vld [vmem:[#allocation2 + $0xcc0] sm:$0xff]
    %v571 = vld [vmem:[#allocation2 + $0xcc8] sm:$0xff]
    %v572 = vld [vmem:[#allocation2 + $0xcd0] sm:$0xff]
    %v573 = vld [vmem:[#allocation2 + $0xcd8] sm:$0xff]
    %v574 = vld [vmem:[#allocation2 + $0xce0] sm:$0xff]
    %v575 = vld [vmem:[#allocation2 + $0xce8] sm:$0xff]
    %v576 = vld [vmem:[#allocation2 + $0xcf0] sm:$0xff]
    %v577 = vld [vmem:[#allocation2 + $0xcf8] sm:$0xff]
    %v578 = vld [vmem:[#allocation2 + $0xd00] sm:$0xff]
    %v579 = vld [vmem:[#allocation2 + $0xd08] sm:$0xff]
    %v580 = vld [vmem:[#allocation2 + $0xd10] sm:$0xff]
    %v581 = vld [vmem:[#allocation2 + $0xd18] sm:$0xff]
    %v582 = vld [vmem:[#allocation2 + $0xd20] sm:$0xff]
    %v583 = vld [vmem:[#allocation2 + $0xd28] sm:$0xff]
    %v584 = vld [vmem:[#allocation2 + $0xd30] sm:$0xff]
    %v585 = vld [vmem:[#allocation2 + $0xd38] sm:$0xff]
    %v586 = vld [vmem:[#allocation2 + $0xd40] sm:$0xff]
    %v587 = vld [vmem:[#allocation2 + $0xd48] sm:$0xff]
    %v588 = vld [vmem:[#allocation2 + $0xd50] sm:$0xff]
    %v589 = vld [vmem:[#allocation2 + $0xd58] sm:$0xff]
    %v590 = vld [vmem:[#allocation2 + $0xd60] sm:$0xff]
    %v591 = vld [vmem:[#allocation2 + $0xd68] sm:$0xff]
    %v592 = vld [vmem:[#allocation2 + $0xd70] sm:$0xff]
    %v593 = vld [vmem:[#allocation2 + $0xd78] sm:$0xff]
    %v594 = vld [vmem:[#allocation2 + $0xd80] sm:$0xff]
    %v595 = vld [vmem:[#allocation2 + $0xd88] sm:$0xff]
    %v596 = vld [vmem:[#allocation2 + $0xd90] sm:$0xff]
    %v597 = vld [vmem:[#allocation2 + $0xd98] sm:$0xff]
    %v598 = vld [vmem:[#allocation2 + $0xda0] sm:$0xff]
    %v599 = vld [vmem:[#allocation2 + $0xda8] sm:$0xff]
    %v600 = vld [vmem:[#allocation2 + $0xdb0] sm:$0xff]
    %v601 = vld [vmem:[#allocation2 + $0xdb8] sm:$0xff]
    %v602 = vld [vmem:[#allocation2 + $0xdc0] sm:$0xff]
    %v603 = vld [vmem:[#allocation2 + $0xdc8] sm:$0xff]
    %v604 = vld [vmem:[#allocation2 + $0xdd0] sm:$0xff]
    %v605 = vld [vmem:[#allocation2 + $0xdd8] sm:$0xff]
    %v606 = vld [vmem:[#allocation2 + $0xde0] sm:$0xff]
    %v607 = vld [vmem:[#allocation2 + $0xde8] sm:$0xff]
    %v608 = vld [vmem:[#allocation2 + $0xdf0] sm:$0xff]
    %v609 = vld [vmem:[#allocation2 + $0xdf8] sm:$0xff]
    %v610 = vld [vmem:[#allocation2 + $0xe00] sm:$0xff]
    %v611 = vld [vmem:[#allocation2 + $0xe08] sm:$0xff]
    %v612 = vld [vmem:[#allocation2 + $0xe10] sm:$0xff]
    %v613 = vld [vmem:[#allocation2 + $0xe18] sm:$0xff]
    %v614 = vld [vmem:[#allocation2 + $0xe20] sm:$0xff]
    %v615 = vld [vmem:[#allocation2 + $0xe28] sm:$0xff]
    %v616 = vld [vmem:[#allocation2 + $0xe30] sm:$0xff]
    %v617 = vld [vmem:[#allocation2 + $0xe38] sm:$0xff]
    %v618 = vld [vmem:[#allocation2 + $0xe40] sm:$0xff]
    %v619 = vld [vmem:[#allocation2 + $0xe48] sm:$0xff]
    %v620 = vld [vmem:[#allocation2 + $0xe50] sm:$0xff]
    %v621 = vld [vmem:[#allocation2 + $0xe58] sm:$0xff]
    %v622 = vld [vmem:[#allocation2 + $0xe60] sm:$0xff]
    %v623 = vld [vmem:[#allocation2 + $0xe68] sm:$0xff]
    %v624 = vld [vmem:[#allocation2 + $0xe70] sm:$0xff]
    %v625 = vld [vmem:[#allocation2 + $0xe78] sm:$0xff]
    %v626 = vld [vmem:[#allocation2 + $0xe80] sm:$0xff]
    %v627 = vld [vmem:[#allocation2 + $0xe88] sm:$0xff]
    %v628 = vld [vmem:[#allocation2 + $0xe90] sm:$0xff]
    %v629 = vld [vmem:[#allocation2 + $0xe98] sm:$0xff]
    %v630 = vld [vmem:[#allocation2 + $0xea0] sm:$0xff]
    %v631 = vld [vmem:[#allocation2 + $0xea8] sm:$0xff]
    %v632 = vld [vmem:[#allocation2 + $0xeb0] sm:$0xff]
    %v633 = vld [vmem:[#allocation2 + $0xeb8] sm:$0xff]
    %v634 = vld [vmem:[#allocation2 + $0xec0] sm:$0xff]
    %v635 = vld [vmem:[#allocation2 + $0xec8] sm:$0xff]
    %v636 = vld [vmem:[#allocation2 + $0xed0] sm:$0xff]
    %v637 = vld [vmem:[#allocation2 + $0xed8] sm:$0xff]
    %v638 = vld [vmem:[#allocation2 + $0xee0] sm:$0xff]
    %v639 = vld [vmem:[#allocation2 + $0xee8] sm:$0xff]
    %v640 = vld [vmem:[#allocation2 + $0xef0] sm:$0xff]
    %v641 = vld [vmem:[#allocation2 + $0xef8] sm:$0xff]
    %v642 = vld [vmem:[#allocation2 + $0xf00] sm:$0xff]
    %v643 = vld [vmem:[#allocation2 + $0xf08] sm:$0xff]
    %v644 = vld [vmem:[#allocation2 + $0xf10] sm:$0xff]
    %v645 = vld [vmem:[#allocation2 + $0xf18] sm:$0xff]
    %v646 = vld [vmem:[#allocation2 + $0xf20] sm:$0xff]
    %v647 = vld [vmem:[#allocation2 + $0xf28] sm:$0xff]
    %v648 = vld [vmem:[#allocation2 + $0xf30] sm:$0xff]
    %v649 = vld [vmem:[#allocation2 + $0xf38] sm:$0xff]
    %v650 = vld [vmem:[#allocation2 + $0xf40] sm:$0xff]
    %v651 = vld [vmem:[#allocation2 + $0xf48] sm:$0xff]
    %v652 = vld [vmem:[#allocation2 + $0xf50] sm:$0xff]
    %v653 = vld [vmem:[#allocation2 + $0xf58] sm:$0xff]
    %v654 = vld [vmem:[#allocation2 + $0xf60] sm:$0xff]
    %v655 = vld [vmem:[#allocation2 + $0xf68] sm:$0xff]
    %v656 = vld [vmem:[#allocation2 + $0xf70] sm:$0xff]
    %v657 = vld [vmem:[#allocation2 + $0xf78] sm:$0xff]
    %v658 = vld [vmem:[#allocation2 + $0xf80] sm:$0xff]
    %v659 = vld [vmem:[#allocation2 + $0xf88] sm:$0xff]
    %v660 = vld [vmem:[#allocation2 + $0xf90] sm:$0xff]
    %v661 = vld [vmem:[#allocation2 + $0xf98] sm:$0xff]
    %v662 = vld [vmem:[#allocation2 + $0xfa0] sm:$0xff]
    %v663 = vld [vmem:[#allocation2 + $0xfa8] sm:$0xff]
    %v664 = vld [vmem:[#allocation2 + $0xfb0] sm:$0xff]
    %v665 = vld [vmem:[#allocation2 + $0xfb8] sm:$0xff]
    %v666 = vld [vmem:[#allocation2 + $0xfc0] sm:$0xff]
    %v667 = vld [vmem:[#allocation2 + $0xfc8] sm:$0xff]
    %v668 = vld [vmem:[#allocation2 + $0xfd0] sm:$0xff]
    %v669 = vld [vmem:[#allocation2 + $0xfd8] sm:$0xff]
    %v670 = vld [vmem:[#allocation2 + $0xfe0] sm:$0xff]
    %v671 = vld [vmem:[#allocation2 + $0xfe8] sm:$0xff]
    %v672 = vld [vmem:[#allocation2 + $0xff0] sm:$0xff]
    %v673 = vld [vmem:[#allocation2 + $0xff8] sm:$0xff]
    %v674 = vadd.f32 %v162, %v178
    %v675 = vrot.slane %v674, 4
    %v676 = vadd.f32 %v674, %v675
    %v677 = vrot.slane %v676, 2
    %v678 = vadd.f32 %v676, %v677
    %v679 = vrot.slane %v678, 1
    %v680 = vadd.f32 %v678, %v679
    %v681 = vadd.f32 %v163, %v179
    %v682 = vrot.slane %v681, 4
    %v683 = vadd.f32 %v681, %v682
    %v684 = vrot.slane %v683, 2
    %v685 = vadd.f32 %v683, %v684
    %v686 = vrot.slane %v685, 1
    %v687 = vadd.f32 %v685, %v686
    %v688 = vadd.f32 %v164, %v180
    %v689 = vrot.slane %v688, 4
    %v690 = vadd.f32 %v688, %v689
    %v691 = vrot.slane %v690, 2
    %v692 = vadd.f32 %v690, %v691
    %v693 = vrot.slane %v692, 1
    %v694 = vadd.f32 %v692, %v693
    %v695 = vadd.f32 %v165, %v181
    %v696 = vrot.slane %v695, 4
    %v697 = vadd.f32 %v695, %v696
    %v698 = vrot.slane %v697, 2
    %v699 = vadd.f32 %v697, %v698
    %v700 = vrot.slane %v699, 1
    %v701 = vadd.f32 %v699, %v700
    %v702 = vadd.f32 %v166, %v182
    %v703 = vrot.slane %v702, 4
    %v704 = vadd.f32 %v702, %v703
    %v705 = vrot.slane %v704, 2
    %v706 = vadd.f32 %v704, %v705
    %v707 = vrot.slane %v706, 1
    %v708 = vadd.f32 %v706, %v707
    %v709 = vadd.f32 %v167, %v183
    %v710 = vrot.slane %v709, 4
    %v711 = vadd.f32 %v709, %v710
    %v712 = vrot.slane %v711, 2
    %v713 = vadd.f32 %v711, %v712
    %v714 = vrot.slane %v713, 1
    %v715 = vadd.f32 %v713, %v714
    %v716 = vadd.f32 %v168, %v184
    %v717 = vrot.slane %v716, 4
    %v718 = vadd.f32 %v716, %v717
    %v719 = vrot.slane %v718, 2
    %v720 = vadd.f32 %v718, %v719
    %v721 = vrot.slane %v720, 1
    %v722 = vadd.f32 %v720, %v721
    %v723 = vadd.f32 %v169, %v185
    %v724 = vrot.slane %v723, 4
    %v725 = vadd.f32 %v723, %v724
    %v726 = vrot.slane %v725, 2
    %v727 = vadd.f32 %v725, %v726
    %v728 = vrot.slane %v727, 1
    %v729 = vadd.f32 %v727, %v728
    %v730 = vadd.f32 %v170, %v186
    %v731 = vrot.slane %v730, 4
    %v732 = vadd.f32 %v730, %v731
    %v733 = vrot.slane %v732, 2
    %v734 = vadd.f32 %v732, %v733
    %v735 = vrot.slane %v734, 1
    %v736 = vadd.f32 %v734, %v735
    %v737 = vadd.f32 %v171, %v187
    %v738 = vrot.slane %v737, 4
    %v739 = vadd.f32 %v737, %v738
    %v740 = vrot.slane %v739, 2
    %v741 = vadd.f32 %v739, %v740
    %v742 = vrot.slane %v741, 1
    %v743 = vadd.f32 %v741, %v742
    %v744 = vadd.f32 %v172, %v188
    %v745 = vrot.slane %v744, 4
    %v746 = vadd.f32 %v744, %v745
    %v747 = vrot.slane %v746, 2
    %v748 = vadd.f32 %v746, %v747
    %v749 = vrot.slane %v748, 1
    %v750 = vadd.f32 %v748, %v749
    %v751 = vadd.f32 %v173, %v189
    %v752 = vrot.slane %v751, 4
    %v753 = vadd.f32 %v751, %v752
    %v754 = vrot.slane %v753, 2
    %v755 = vadd.f32 %v753, %v754
    %v756 = vrot.slane %v755, 1
    %v757 = vadd.f32 %v755, %v756
    %v758 = vadd.f32 %v174, %v190
    %v759 = vrot.slane %v758, 4
    %v760 = vadd.f32 %v758, %v759
    %v761 = vrot.slane %v760, 2
    %v762 = vadd.f32 %v760, %v761
    %v763 = vrot.slane %v762, 1
    %v764 = vadd.f32 %v762, %v763
    %v765 = vadd.f32 %v175, %v191
    %v766 = vrot.slane %v765, 4
    %v767 = vadd.f32 %v765, %v766
    %v768 = vrot.slane %v767, 2
    %v769 = vadd.f32 %v767, %v768
    %v770 = vrot.slane %v769, 1
    %v771 = vadd.f32 %v769, %v770
    %v772 = vadd.f32 %v176, %v192
    %v773 = vrot.slane %v772, 4
    %v774 = vadd.f32 %v772, %v773
    %v775 = vrot.slane %v774, 2
    %v776 = vadd.f32 %v774, %v775
    %v777 = vrot.slane %v776, 1
    %v778 = vadd.f32 %v776, %v777
    %v779 = vadd.f32 %v177, %v193
    %v780 = vrot.slane %v779, 4
    %v781 = vadd.f32 %v779, %v780
    %v782 = vrot.slane %v781, 2
    %v783 = vadd.f32 %v781, %v782
    %v784 = vrot.slane %v783, 1
    %v785 = vadd.f32 %v783, %v784
    %v786 = vadd.f32 %v194, %v210
    %v787 = vrot.slane %v786, 4
    %v788 = vadd.f32 %v786, %v787
    %v789 = vrot.slane %v788, 2
    %v790 = vadd.f32 %v788, %v789
    %v791 = vrot.slane %v790, 1
    %v792 = vadd.f32 %v790, %v791
    %v793 = vadd.f32 %v195, %v211
    %v794 = vrot.slane %v793, 4
    %v795 = vadd.f32 %v793, %v794
    %v796 = vrot.slane %v795, 2
    %v797 = vadd.f32 %v795, %v796
    %v798 = vrot.slane %v797, 1
    %v799 = vadd.f32 %v797, %v798
    %v800 = vadd.f32 %v196, %v212
    %v801 = vrot.slane %v800, 4
    %v802 = vadd.f32 %v800, %v801
    %v803 = vrot.slane %v802, 2
    %v804 = vadd.f32 %v802, %v803
    %v805 = vrot.slane %v804, 1
    %v806 = vadd.f32 %v804, %v805
    %v807 = vadd.f32 %v197, %v213
    %v808 = vrot.slane %v807, 4
    %v809 = vadd.f32 %v807, %v808
    %v810 = vrot.slane %v809, 2
    %v811 = vadd.f32 %v809, %v810
    %v812 = vrot.slane %v811, 1
    %v813 = vadd.f32 %v811, %v812
    %v814 = vadd.f32 %v198, %v214
    %v815 = vrot.slane %v814, 4
    %v816 = vadd.f32 %v814, %v815
    %v817 = vrot.slane %v816, 2
    %v818 = vadd.f32 %v816, %v817
    %v819 = vrot.slane %v818, 1
    %v820 = vadd.f32 %v818, %v819
    %v821 = vadd.f32 %v199, %v215
    %v822 = vrot.slane %v821, 4
    %v823 = vadd.f32 %v821, %v822
    %v824 = vrot.slane %v823, 2
    %v825 = vadd.f32 %v823, %v824
    %v826 = vrot.slane %v825, 1
    %v827 = vadd.f32 %v825, %v826
    %v828 = vadd.f32 %v200, %v216
    %v829 = vrot.slane %v828, 4
    %v830 = vadd.f32 %v828, %v829
    %v831 = vrot.slane %v830, 2
    %v832 = vadd.f32 %v830, %v831
    %v833 = vrot.slane %v832, 1
    %v834 = vadd.f32 %v832, %v833
    %v835 = vadd.f32 %v201, %v217
    %v836 = vrot.slane %v835, 4
    %v837 = vadd.f32 %v835, %v836
    %v838 = vrot.slane %v837, 2
    %v839 = vadd.f32 %v837, %v838
    %v840 = vrot.slane %v839, 1
    %v841 = vadd.f32 %v839, %v840
    %v842 = vadd.f32 %v202, %v218
    %v843 = vrot.slane %v842, 4
    %v844 = vadd.f32 %v842, %v843
    %v845 = vrot.slane %v844, 2
    %v846 = vadd.f32 %v844, %v845
    %v847 = vrot.slane %v846, 1
    %v848 = vadd.f32 %v846, %v847
    %v849 = vadd.f32 %v203, %v219
    %v850 = vrot.slane %v849, 4
    %v851 = vadd.f32 %v849, %v850
    %v852 = vrot.slane %v851, 2
    %v853 = vadd.f32 %v851, %v852
    %v854 = vrot.slane %v853, 1
    %v855 = vadd.f32 %v853, %v854
    %v856 = vadd.f32 %v204, %v220
    %v857 = vrot.slane %v856, 4
    %v858 = vadd.f32 %v856, %v857
    %v859 = vrot.slane %v858, 2
    %v860 = vadd.f32 %v858, %v859
    %v861 = vrot.slane %v860, 1
    %v862 = vadd.f32 %v860, %v861
    %v863 = vadd.f32 %v205, %v221
    %v864 = vrot.slane %v863, 4
    %v865 = vadd.f32 %v863, %v864
    %v866 = vrot.slane %v865, 2
    %v867 = vadd.f32 %v865, %v866
    %v868 = vrot.slane %v867, 1
    %v869 = vadd.f32 %v867, %v868
    %v870 = vadd.f32 %v206, %v222
    %v871 = vrot.slane %v870, 4
    %v872 = vadd.f32 %v870, %v871
    %v873 = vrot.slane %v872, 2
    %v874 = vadd.f32 %v872, %v873
    %v875 = vrot.slane %v874, 1
    %v876 = vadd.f32 %v874, %v875
    %v877 = vadd.f32 %v207, %v223
    %v878 = vrot.slane %v877, 4
    %v879 = vadd.f32 %v877, %v878
    %v880 = vrot.slane %v879, 2
    %v881 = vadd.f32 %v879, %v880
    %v882 = vrot.slane %v881, 1
    %v883 = vadd.f32 %v881, %v882
    %v884 = vadd.f32 %v208, %v224
    %v885 = vrot.slane %v884, 4
    %v886 = vadd.f32 %v884, %v885
    %v887 = vrot.slane %v886, 2
    %v888 = vadd.f32 %v886, %v887
    %v889 = vrot.slane %v888, 1
    %v890 = vadd.f32 %v888, %v889
    %v891 = vadd.f32 %v209, %v225
    %v892 = vrot.slane %v891, 4
    %v893 = vadd.f32 %v891, %v892
    %v894 = vrot.slane %v893, 2
    %v895 = vadd.f32 %v893, %v894
    %v896 = vrot.slane %v895, 1
    %v897 = vadd.f32 %v895, %v896
    %v898 = vadd.f32 %v226, %v242
    %v899 = vrot.slane %v898, 4
    %v900 = vadd.f32 %v898, %v899
    %v901 = vrot.slane %v900, 2
    %v902 = vadd.f32 %v900, %v901
    %v903 = vrot.slane %v902, 1
    %v904 = vadd.f32 %v902, %v903
    %v905 = vadd.f32 %v227, %v243
    %v906 = vrot.slane %v905, 4
    %v907 = vadd.f32 %v905, %v906
    %v908 = vrot.slane %v907, 2
    %v909 = vadd.f32 %v907, %v908
    %v910 = vrot.slane %v909, 1
    %v911 = vadd.f32 %v909, %v910
    %v912 = vadd.f32 %v228, %v244
    %v913 = vrot.slane %v912, 4
    %v914 = vadd.f32 %v912, %v913
    %v915 = vrot.slane %v914, 2
    %v916 = vadd.f32 %v914, %v915
    %v917 = vrot.slane %v916, 1
    %v918 = vadd.f32 %v916, %v917
    %v919 = vadd.f32 %v229, %v245
    %v920 = vrot.slane %v919, 4
    %v921 = vadd.f32 %v919, %v920
    %v922 = vrot.slane %v921, 2
    %v923 = vadd.f32 %v921, %v922
    %v924 = vrot.slane %v923, 1
    %v925 = vadd.f32 %v923, %v924
    %v926 = vadd.f32 %v230, %v246
    %v927 = vrot.slane %v926, 4
    %v928 = vadd.f32 %v926, %v927
    %v929 = vrot.slane %v928, 2
    %v930 = vadd.f32 %v928, %v929
    %v931 = vrot.slane %v930, 1
    %v932 = vadd.f32 %v930, %v931
    %v933 = vadd.f32 %v231, %v247
    %v934 = vrot.slane %v933, 4
    %v935 = vadd.f32 %v933, %v934
    %v936 = vrot.slane %v935, 2
    %v937 = vadd.f32 %v935, %v936
    %v938 = vrot.slane %v937, 1
    %v939 = vadd.f32 %v937, %v938
    %v940 = vadd.f32 %v232, %v248
    %v941 = vrot.slane %v940, 4
    %v942 = vadd.f32 %v940, %v941
    %v943 = vrot.slane %v942, 2
    %v944 = vadd.f32 %v942, %v943
    %v945 = vrot.slane %v944, 1
    %v946 = vadd.f32 %v944, %v945
    %v947 = vadd.f32 %v233, %v249
    %v948 = vrot.slane %v947, 4
    %v949 = vadd.f32 %v947, %v948
    %v950 = vrot.slane %v949, 2
    %v951 = vadd.f32 %v949, %v950
    %v952 = vrot.slane %v951, 1
    %v953 = vadd.f32 %v951, %v952
    %v954 = vadd.f32 %v234, %v250
    %v955 = vrot.slane %v954, 4
    %v956 = vadd.f32 %v954, %v955
    %v957 = vrot.slane %v956, 2
    %v958 = vadd.f32 %v956, %v957
    %v959 = vrot.slane %v958, 1
    %v960 = vadd.f32 %v958, %v959
    %v961 = vadd.f32 %v235, %v251
    %v962 = vrot.slane %v961, 4
    %v963 = vadd.f32 %v961, %v962
    %v964 = vrot.slane %v963, 2
    %v965 = vadd.f32 %v963, %v964
    %v966 = vrot.slane %v965, 1
    %v967 = vadd.f32 %v965, %v966
    %v968 = vadd.f32 %v236, %v252
    %v969 = vrot.slane %v968, 4
    %v970 = vadd.f32 %v968, %v969
    %v971 = vrot.slane %v970, 2
    %v972 = vadd.f32 %v970, %v971
    %v973 = vrot.slane %v972, 1
    %v974 = vadd.f32 %v972, %v973
    %v975 = vadd.f32 %v237, %v253
    %v976 = vrot.slane %v975, 4
    %v977 = vadd.f32 %v975, %v976
    %v978 = vrot.slane %v977, 2
    %v979 = vadd.f32 %v977, %v978
    %v980 = vrot.slane %v979, 1
    %v981 = vadd.f32 %v979, %v980
    %v982 = vadd.f32 %v238, %v254
    %v983 = vrot.slane %v982, 4
    %v984 = vadd.f32 %v982, %v983
    %v985 = vrot.slane %v984, 2
    %v986 = vadd.f32 %v984, %v985
    %v987 = vrot.slane %v986, 1
    %v988 = vadd.f32 %v986, %v987
    %v989 = vadd.f32 %v239, %v255
    %v990 = vrot.slane %v989, 4
    %v991 = vadd.f32 %v989, %v990
    %v992 = vrot.slane %v991, 2
    %v993 = vadd.f32 %v991, %v992
    %v994 = vrot.slane %v993, 1
    %v995 = vadd.f32 %v993, %v994
    %v996 = vadd.f32 %v240, %v256
    %v997 = vrot.slane %v996, 4
    %v998 = vadd.f32 %v996, %v997
    %v999 = vrot.slane %v998, 2
    %v1000 = vadd.f32 %v998, %v999
    %v1001 = vrot.slane %v1000, 1
    %v1002 = vadd.f32 %v1000, %v1001
    %v1003 = vadd.f32 %v241, %v257
    %v1004 = vrot.slane %v1003, 4
    %v1005 = vadd.f32 %v1003, %v1004
    %v1006 = vrot.slane %v1005, 2
    %v1007 = vadd.f32 %v1005, %v1006
    %v1008 = vrot.slane %v1007, 1
    %v1009 = vadd.f32 %v1007, %v1008
    %v1010 = vadd.f32 %v258, %v274
    %v1011 = vrot.slane %v1010, 4
    %v1012 = vadd.f32 %v1010, %v1011
    %v1013 = vrot.slane %v1012, 2
    %v1014 = vadd.f32 %v1012, %v1013
    %v1015 = vrot.slane %v1014, 1
    %v1016 = vadd.f32 %v1014, %v1015
    %v1017 = vadd.f32 %v259, %v275
    %v1018 = vrot.slane %v1017, 4
    %v1019 = vadd.f32 %v1017, %v1018
    %v1020 = vrot.slane %v1019, 2
    %v1021 = vadd.f32 %v1019, %v1020
    %v1022 = vrot.slane %v1021, 1
    %v1023 = vadd.f32 %v1021, %v1022
    %v1024 = vadd.f32 %v260, %v276
    %v1025 = vrot.slane %v1024, 4
    %v1026 = vadd.f32 %v1024, %v1025
    %v1027 = vrot.slane %v1026, 2
    %v1028 = vadd.f32 %v1026, %v1027
    %v1029 = vrot.slane %v1028, 1
    %v1030 = vadd.f32 %v1028, %v1029
    %v1031 = vadd.f32 %v261, %v277
    %v1032 = vrot.slane %v1031, 4
    %v1033 = vadd.f32 %v1031, %v1032
    %v1034 = vrot.slane %v1033, 2
    %v1035 = vadd.f32 %v1033, %v1034
    %v1036 = vrot.slane %v1035, 1
    %v1037 = vadd.f32 %v1035, %v1036
    %v1038 = vadd.f32 %v262, %v278
    %v1039 = vrot.slane %v1038, 4
    %v1040 = vadd.f32 %v1038, %v1039
    %v1041 = vrot.slane %v1040, 2
    %v1042 = vadd.f32 %v1040, %v1041
    %v1043 = vrot.slane %v1042, 1
    %v1044 = vadd.f32 %v1042, %v1043
    %v1045 = vadd.f32 %v263, %v279
    %v1046 = vrot.slane %v1045, 4
    %v1047 = vadd.f32 %v1045, %v1046
    %v1048 = vrot.slane %v1047, 2
    %v1049 = vadd.f32 %v1047, %v1048
    %v1050 = vrot.slane %v1049, 1
    %v1051 = vadd.f32 %v1049, %v1050
    %v1052 = vadd.f32 %v264, %v280
    %v1053 = vrot.slane %v1052, 4
    %v1054 = vadd.f32 %v1052, %v1053
    %v1055 = vrot.slane %v1054, 2
    %v1056 = vadd.f32 %v1054, %v1055
    %v1057 = vrot.slane %v1056, 1
    %v1058 = vadd.f32 %v1056, %v1057
    %v1059 = vadd.f32 %v265, %v281
    %v1060 = vrot.slane %v1059, 4
    %v1061 = vadd.f32 %v1059, %v1060
    %v1062 = vrot.slane %v1061, 2
    %v1063 = vadd.f32 %v1061, %v1062
    %v1064 = vrot.slane %v1063, 1
    %v1065 = vadd.f32 %v1063, %v1064
    %v1066 = vadd.f32 %v266, %v282
    %v1067 = vrot.slane %v1066, 4
    %v1068 = vadd.f32 %v1066, %v1067
    %v1069 = vrot.slane %v1068, 2
    %v1070 = vadd.f32 %v1068, %v1069
    %v1071 = vrot.slane %v1070, 1
    %v1072 = vadd.f32 %v1070, %v1071
    %v1073 = vadd.f32 %v267, %v283
    %v1074 = vrot.slane %v1073, 4
    %v1075 = vadd.f32 %v1073, %v1074
    %v1076 = vrot.slane %v1075, 2
    %v1077 = vadd.f32 %v1075, %v1076
    %v1078 = vrot.slane %v1077, 1
    %v1079 = vadd.f32 %v1077, %v1078
    %v1080 = vadd.f32 %v268, %v284
    %v1081 = vrot.slane %v1080, 4
    %v1082 = vadd.f32 %v1080, %v1081
    %v1083 = vrot.slane %v1082, 2
    %v1084 = vadd.f32 %v1082, %v1083
    %v1085 = vrot.slane %v1084, 1
    %v1086 = vadd.f32 %v1084, %v1085
    %v1087 = vadd.f32 %v269, %v285
    %v1088 = vrot.slane %v1087, 4
    %v1089 = vadd.f32 %v1087, %v1088
    %v1090 = vrot.slane %v1089, 2
    %v1091 = vadd.f32 %v1089, %v1090
    %v1092 = vrot.slane %v1091, 1
    %v1093 = vadd.f32 %v1091, %v1092
    %v1094 = vadd.f32 %v270, %v286
    %v1095 = vrot.slane %v1094, 4
    %v1096 = vadd.f32 %v1094, %v1095
    %v1097 = vrot.slane %v1096, 2
    %v1098 = vadd.f32 %v1096, %v1097
    %v1099 = vrot.slane %v1098, 1
    %v1100 = vadd.f32 %v1098, %v1099
    %v1101 = vadd.f32 %v271, %v287
    %v1102 = vrot.slane %v1101, 4
    %v1103 = vadd.f32 %v1101, %v1102
    %v1104 = vrot.slane %v1103, 2
    %v1105 = vadd.f32 %v1103, %v1104
    %v1106 = vrot.slane %v1105, 1
    %v1107 = vadd.f32 %v1105, %v1106
    %v1108 = vadd.f32 %v272, %v288
    %v1109 = vrot.slane %v1108, 4
    %v1110 = vadd.f32 %v1108, %v1109
    %v1111 = vrot.slane %v1110, 2
    %v1112 = vadd.f32 %v1110, %v1111
    %v1113 = vrot.slane %v1112, 1
    %v1114 = vadd.f32 %v1112, %v1113
    %v1115 = vadd.f32 %v273, %v289
    %v1116 = vrot.slane %v1115, 4
    %v1117 = vadd.f32 %v1115, %v1116
    %v1118 = vrot.slane %v1117, 2
    %v1119 = vadd.f32 %v1117, %v1118
    %v1120 = vrot.slane %v1119, 1
    %v1121 = vadd.f32 %v1119, %v1120
    %v1122 = vadd.f32 %v290, %v306
    %v1123 = vrot.slane %v1122, 4
    %v1124 = vadd.f32 %v1122, %v1123
    %v1125 = vrot.slane %v1124, 2
    %v1126 = vadd.f32 %v1124, %v1125
    %v1127 = vrot.slane %v1126, 1
    %v1128 = vadd.f32 %v1126, %v1127
    %v1129 = vadd.f32 %v291, %v307
    %v1130 = vrot.slane %v1129, 4
    %v1131 = vadd.f32 %v1129, %v1130
    %v1132 = vrot.slane %v1131, 2
    %v1133 = vadd.f32 %v1131, %v1132
    %v1134 = vrot.slane %v1133, 1
    %v1135 = vadd.f32 %v1133, %v1134
    %v1136 = vadd.f32 %v292, %v308
    %v1137 = vrot.slane %v1136, 4
    %v1138 = vadd.f32 %v1136, %v1137
    %v1139 = vrot.slane %v1138, 2
    %v1140 = vadd.f32 %v1138, %v1139
    %v1141 = vrot.slane %v1140, 1
    %v1142 = vadd.f32 %v1140, %v1141
    %v1143 = vadd.f32 %v293, %v309
    %v1144 = vrot.slane %v1143, 4
    %v1145 = vadd.f32 %v1143, %v1144
    %v1146 = vrot.slane %v1145, 2
    %v1147 = vadd.f32 %v1145, %v1146
    %v1148 = vrot.slane %v1147, 1
    %v1149 = vadd.f32 %v1147, %v1148
    %v1150 = vadd.f32 %v294, %v310
    %v1151 = vrot.slane %v1150, 4
    %v1152 = vadd.f32 %v1150, %v1151
    %v1153 = vrot.slane %v1152, 2
    %v1154 = vadd.f32 %v1152, %v1153
    %v1155 = vrot.slane %v1154, 1
    %v1156 = vadd.f32 %v1154, %v1155
    %v1157 = vadd.f32 %v295, %v311
    %v1158 = vrot.slane %v1157, 4
    %v1159 = vadd.f32 %v1157, %v1158
    %v1160 = vrot.slane %v1159, 2
    %v1161 = vadd.f32 %v1159, %v1160
    %v1162 = vrot.slane %v1161, 1
    %v1163 = vadd.f32 %v1161, %v1162
    %v1164 = vadd.f32 %v296, %v312
    %v1165 = vrot.slane %v1164, 4
    %v1166 = vadd.f32 %v1164, %v1165
    %v1167 = vrot.slane %v1166, 2
    %v1168 = vadd.f32 %v1166, %v1167
    %v1169 = vrot.slane %v1168, 1
    %v1170 = vadd.f32 %v1168, %v1169
    %v1171 = vadd.f32 %v297, %v313
    %v1172 = vrot.slane %v1171, 4
    %v1173 = vadd.f32 %v1171, %v1172
    %v1174 = vrot.slane %v1173, 2
    %v1175 = vadd.f32 %v1173, %v1174
    %v1176 = vrot.slane %v1175, 1
    %v1177 = vadd.f32 %v1175, %v1176
    %v1178 = vadd.f32 %v298, %v314
    %v1179 = vrot.slane %v1178, 4
    %v1180 = vadd.f32 %v1178, %v1179
    %v1181 = vrot.slane %v1180, 2
    %v1182 = vadd.f32 %v1180, %v1181
    %v1183 = vrot.slane %v1182, 1
    %v1184 = vadd.f32 %v1182, %v1183
    %v1185 = vadd.f32 %v299, %v315
    %v1186 = vrot.slane %v1185, 4
    %v1187 = vadd.f32 %v1185, %v1186
    %v1188 = vrot.slane %v1187, 2
    %v1189 = vadd.f32 %v1187, %v1188
    %v1190 = vrot.slane %v1189, 1
    %v1191 = vadd.f32 %v1189, %v1190
    %v1192 = vadd.f32 %v300, %v316
    %v1193 = vrot.slane %v1192, 4
    %v1194 = vadd.f32 %v1192, %v1193
    %v1195 = vrot.slane %v1194, 2
    %v1196 = vadd.f32 %v1194, %v1195
    %v1197 = vrot.slane %v1196, 1
    %v1198 = vadd.f32 %v1196, %v1197
    %v1199 = vadd.f32 %v301, %v317
    %v1200 = vrot.slane %v1199, 4
    %v1201 = vadd.f32 %v1199, %v1200
    %v1202 = vrot.slane %v1201, 2
    %v1203 = vadd.f32 %v1201, %v1202
    %v1204 = vrot.slane %v1203, 1
    %v1205 = vadd.f32 %v1203, %v1204
    %v1206 = vadd.f32 %v302, %v318
    %v1207 = vrot.slane %v1206, 4
    %v1208 = vadd.f32 %v1206, %v1207
    %v1209 = vrot.slane %v1208, 2
    %v1210 = vadd.f32 %v1208, %v1209
    %v1211 = vrot.slane %v1210, 1
    %v1212 = vadd.f32 %v1210, %v1211
    %v1213 = vadd.f32 %v303, %v319
    %v1214 = vrot.slane %v1213, 4
    %v1215 = vadd.f32 %v1213, %v1214
    %v1216 = vrot.slane %v1215, 2
    %v1217 = vadd.f32 %v1215, %v1216
    %v1218 = vrot.slane %v1217, 1
    %v1219 = vadd.f32 %v1217, %v1218
    %v1220 = vadd.f32 %v304, %v320
    %v1221 = vrot.slane %v1220, 4
    %v1222 = vadd.f32 %v1220, %v1221
    %v1223 = vrot.slane %v1222, 2
    %v1224 = vadd.f32 %v1222, %v1223
    %v1225 = vrot.slane %v1224, 1
    %v1226 = vadd.f32 %v1224, %v1225
    %v1227 = vadd.f32 %v305, %v321
    %v1228 = vrot.slane %v1227, 4
    %v1229 = vadd.f32 %v1227, %v1228
    %v1230 = vrot.slane %v1229, 2
    %v1231 = vadd.f32 %v1229, %v1230
    %v1232 = vrot.slane %v1231, 1
    %v1233 = vadd.f32 %v1231, %v1232
    %v1234 = vadd.f32 %v322, %v338
    %v1235 = vrot.slane %v1234, 4
    %v1236 = vadd.f32 %v1234, %v1235
    %v1237 = vrot.slane %v1236, 2
    %v1238 = vadd.f32 %v1236, %v1237
    %v1239 = vrot.slane %v1238, 1
    %v1240 = vadd.f32 %v1238, %v1239
    %v1241 = vadd.f32 %v323, %v339
    %v1242 = vrot.slane %v1241, 4
    %v1243 = vadd.f32 %v1241, %v1242
    %v1244 = vrot.slane %v1243, 2
    %v1245 = vadd.f32 %v1243, %v1244
    %v1246 = vrot.slane %v1245, 1
    %v1247 = vadd.f32 %v1245, %v1246
    %v1248 = vadd.f32 %v324, %v340
    %v1249 = vrot.slane %v1248, 4
    %v1250 = vadd.f32 %v1248, %v1249
    %v1251 = vrot.slane %v1250, 2
    %v1252 = vadd.f32 %v1250, %v1251
    %v1253 = vrot.slane %v1252, 1
    %v1254 = vadd.f32 %v1252, %v1253
    %v1255 = vadd.f32 %v325, %v341
    %v1256 = vrot.slane %v1255, 4
    %v1257 = vadd.f32 %v1255, %v1256
    %v1258 = vrot.slane %v1257, 2
    %v1259 = vadd.f32 %v1257, %v1258
    %v1260 = vrot.slane %v1259, 1
    %v1261 = vadd.f32 %v1259, %v1260
    %v1262 = vadd.f32 %v326, %v342
    %v1263 = vrot.slane %v1262, 4
    %v1264 = vadd.f32 %v1262, %v1263
    %v1265 = vrot.slane %v1264, 2
    %v1266 = vadd.f32 %v1264, %v1265
    %v1267 = vrot.slane %v1266, 1
    %v1268 = vadd.f32 %v1266, %v1267
    %v1269 = vadd.f32 %v327, %v343
    %v1270 = vrot.slane %v1269, 4
    %v1271 = vadd.f32 %v1269, %v1270
    %v1272 = vrot.slane %v1271, 2
    %v1273 = vadd.f32 %v1271, %v1272
    %v1274 = vrot.slane %v1273, 1
    %v1275 = vadd.f32 %v1273, %v1274
    %v1276 = vadd.f32 %v328, %v344
    %v1277 = vrot.slane %v1276, 4
    %v1278 = vadd.f32 %v1276, %v1277
    %v1279 = vrot.slane %v1278, 2
    %v1280 = vadd.f32 %v1278, %v1279
    %v1281 = vrot.slane %v1280, 1
    %v1282 = vadd.f32 %v1280, %v1281
    %v1283 = vadd.f32 %v329, %v345
    %v1284 = vrot.slane %v1283, 4
    %v1285 = vadd.f32 %v1283, %v1284
    %v1286 = vrot.slane %v1285, 2
    %v1287 = vadd.f32 %v1285, %v1286
    %v1288 = vrot.slane %v1287, 1
    %v1289 = vadd.f32 %v1287, %v1288
    %v1290 = vadd.f32 %v330, %v346
    %v1291 = vrot.slane %v1290, 4
    %v1292 = vadd.f32 %v1290, %v1291
    %v1293 = vrot.slane %v1292, 2
    %v1294 = vadd.f32 %v1292, %v1293
    %v1295 = vrot.slane %v1294, 1
    %v1296 = vadd.f32 %v1294, %v1295
    %v1297 = vadd.f32 %v331, %v347
    %v1298 = vrot.slane %v1297, 4
    %v1299 = vadd.f32 %v1297, %v1298
    %v1300 = vrot.slane %v1299, 2
    %v1301 = vadd.f32 %v1299, %v1300
    %v1302 = vrot.slane %v1301, 1
    %v1303 = vadd.f32 %v1301, %v1302
    %v1304 = vadd.f32 %v332, %v348
    %v1305 = vrot.slane %v1304, 4
    %v1306 = vadd.f32 %v1304, %v1305
    %v1307 = vrot.slane %v1306, 2
    %v1308 = vadd.f32 %v1306, %v1307
    %v1309 = vrot.slane %v1308, 1
    %v1310 = vadd.f32 %v1308, %v1309
    %v1311 = vadd.f32 %v333, %v349
    %v1312 = vrot.slane %v1311, 4
    %v1313 = vadd.f32 %v1311, %v1312
    %v1314 = vrot.slane %v1313, 2
    %v1315 = vadd.f32 %v1313, %v1314
    %v1316 = vrot.slane %v1315, 1
    %v1317 = vadd.f32 %v1315, %v1316
    %v1318 = vadd.f32 %v334, %v350
    %v1319 = vrot.slane %v1318, 4
    %v1320 = vadd.f32 %v1318, %v1319
    %v1321 = vrot.slane %v1320, 2
    %v1322 = vadd.f32 %v1320, %v1321
    %v1323 = vrot.slane %v1322, 1
    %v1324 = vadd.f32 %v1322, %v1323
    %v1325 = vadd.f32 %v335, %v351
    %v1326 = vrot.slane %v1325, 4
    %v1327 = vadd.f32 %v1325, %v1326
    %v1328 = vrot.slane %v1327, 2
    %v1329 = vadd.f32 %v1327, %v1328
    %v1330 = vrot.slane %v1329, 1
    %v1331 = vadd.f32 %v1329, %v1330
    %v1332 = vadd.f32 %v336, %v352
    %v1333 = vrot.slane %v1332, 4
    %v1334 = vadd.f32 %v1332, %v1333
    %v1335 = vrot.slane %v1334, 2
    %v1336 = vadd.f32 %v1334, %v1335
    %v1337 = vrot.slane %v1336, 1
    %v1338 = vadd.f32 %v1336, %v1337
    %v1339 = vadd.f32 %v337, %v353
    %v1340 = vrot.slane %v1339, 4
    %v1341 = vadd.f32 %v1339, %v1340
    %v1342 = vrot.slane %v1341, 2
    %v1343 = vadd.f32 %v1341, %v1342
    %v1344 = vrot.slane %v1343, 1
    %v1345 = vadd.f32 %v1343, %v1344
    %v1346 = vadd.f32 %v354, %v370
    %v1347 = vrot.slane %v1346, 4
    %v1348 = vadd.f32 %v1346, %v1347
    %v1349 = vrot.slane %v1348, 2
    %v1350 = vadd.f32 %v1348, %v1349
    %v1351 = vrot.slane %v1350, 1
    %v1352 = vadd.f32 %v1350, %v1351
    %v1353 = vadd.f32 %v355, %v371
    %v1354 = vrot.slane %v1353, 4
    %v1355 = vadd.f32 %v1353, %v1354
    %v1356 = vrot.slane %v1355, 2
    %v1357 = vadd.f32 %v1355, %v1356
    %v1358 = vrot.slane %v1357, 1
    %v1359 = vadd.f32 %v1357, %v1358
    %v1360 = vadd.f32 %v356, %v372
    %v1361 = vrot.slane %v1360, 4
    %v1362 = vadd.f32 %v1360, %v1361
    %v1363 = vrot.slane %v1362, 2
    %v1364 = vadd.f32 %v1362, %v1363
    %v1365 = vrot.slane %v1364, 1
    %v1366 = vadd.f32 %v1364, %v1365
    %v1367 = vadd.f32 %v357, %v373
    %v1368 = vrot.slane %v1367, 4
    %v1369 = vadd.f32 %v1367, %v1368
    %v1370 = vrot.slane %v1369, 2
    %v1371 = vadd.f32 %v1369, %v1370
    %v1372 = vrot.slane %v1371, 1
    %v1373 = vadd.f32 %v1371, %v1372
    %v1374 = vadd.f32 %v358, %v374
    %v1375 = vrot.slane %v1374, 4
    %v1376 = vadd.f32 %v1374, %v1375
    %v1377 = vrot.slane %v1376, 2
    %v1378 = vadd.f32 %v1376, %v1377
    %v1379 = vrot.slane %v1378, 1
    %v1380 = vadd.f32 %v1378, %v1379
    %v1381 = vadd.f32 %v359, %v375
    %v1382 = vrot.slane %v1381, 4
    %v1383 = vadd.f32 %v1381, %v1382
    %v1384 = vrot.slane %v1383, 2
    %v1385 = vadd.f32 %v1383, %v1384
    %v1386 = vrot.slane %v1385, 1
    %v1387 = vadd.f32 %v1385, %v1386
    %v1388 = vadd.f32 %v360, %v376
    %v1389 = vrot.slane %v1388, 4
    %v1390 = vadd.f32 %v1388, %v1389
    %v1391 = vrot.slane %v1390, 2
    %v1392 = vadd.f32 %v1390, %v1391
    %v1393 = vrot.slane %v1392, 1
    %v1394 = vadd.f32 %v1392, %v1393
    %v1395 = vadd.f32 %v361, %v377
    %v1396 = vrot.slane %v1395, 4
    %v1397 = vadd.f32 %v1395, %v1396
    %v1398 = vrot.slane %v1397, 2
    %v1399 = vadd.f32 %v1397, %v1398
    %v1400 = vrot.slane %v1399, 1
    %v1401 = vadd.f32 %v1399, %v1400
    %v1402 = vadd.f32 %v362, %v378
    %v1403 = vrot.slane %v1402, 4
    %v1404 = vadd.f32 %v1402, %v1403
    %v1405 = vrot.slane %v1404, 2
    %v1406 = vadd.f32 %v1404, %v1405
    %v1407 = vrot.slane %v1406, 1
    %v1408 = vadd.f32 %v1406, %v1407
    %v1409 = vadd.f32 %v363, %v379
    %v1410 = vrot.slane %v1409, 4
    %v1411 = vadd.f32 %v1409, %v1410
    %v1412 = vrot.slane %v1411, 2
    %v1413 = vadd.f32 %v1411, %v1412
    %v1414 = vrot.slane %v1413, 1
    %v1415 = vadd.f32 %v1413, %v1414
    %v1416 = vadd.f32 %v364, %v380
    %v1417 = vrot.slane %v1416, 4
    %v1418 = vadd.f32 %v1416, %v1417
    %v1419 = vrot.slane %v1418, 2
    %v1420 = vadd.f32 %v1418, %v1419
    %v1421 = vrot.slane %v1420, 1
    %v1422 = vadd.f32 %v1420, %v1421
    %v1423 = vadd.f32 %v365, %v381
    %v1424 = vrot.slane %v1423, 4
    %v1425 = vadd.f32 %v1423, %v1424
    %v1426 = vrot.slane %v1425, 2
    %v1427 = vadd.f32 %v1425, %v1426
    %v1428 = vrot.slane %v1427, 1
    %v1429 = vadd.f32 %v1427, %v1428
    %v1430 = vadd.f32 %v366, %v382
    %v1431 = vrot.slane %v1430, 4
    %v1432 = vadd.f32 %v1430, %v1431
    %v1433 = vrot.slane %v1432, 2
    %v1434 = vadd.f32 %v1432, %v1433
    %v1435 = vrot.slane %v1434, 1
    %v1436 = vadd.f32 %v1434, %v1435
    %v1437 = vadd.f32 %v367, %v383
    %v1438 = vrot.slane %v1437, 4
    %v1439 = vadd.f32 %v1437, %v1438
    %v1440 = vrot.slane %v1439, 2
    %v1441 = vadd.f32 %v1439, %v1440
    %v1442 = vrot.slane %v1441, 1
    %v1443 = vadd.f32 %v1441, %v1442
    %v1444 = vadd.f32 %v368, %v384
    %v1445 = vrot.slane %v1444, 4
    %v1446 = vadd.f32 %v1444, %v1445
    %v1447 = vrot.slane %v1446, 2
    %v1448 = vadd.f32 %v1446, %v1447
    %v1449 = vrot.slane %v1448, 1
    %v1450 = vadd.f32 %v1448, %v1449
    %v1451 = vadd.f32 %v369, %v385
    %v1452 = vrot.slane %v1451, 4
    %v1453 = vadd.f32 %v1451, %v1452
    %v1454 = vrot.slane %v1453, 2
    %v1455 = vadd.f32 %v1453, %v1454
    %v1456 = vrot.slane %v1455, 1
    %v1457 = vadd.f32 %v1455, %v1456
    %v1458 = vadd.f32 %v386, %v402
    %v1459 = vrot.slane %v1458, 4
    %v1460 = vadd.f32 %v1458, %v1459
    %v1461 = vrot.slane %v1460, 2
    %v1462 = vadd.f32 %v1460, %v1461
    %v1463 = vrot.slane %v1462, 1
    %v1464 = vadd.f32 %v1462, %v1463
    %v1465 = vadd.f32 %v387, %v403
    %v1466 = vrot.slane %v1465, 4
    %v1467 = vadd.f32 %v1465, %v1466
    %v1468 = vrot.slane %v1467, 2
    %v1469 = vadd.f32 %v1467, %v1468
    %v1470 = vrot.slane %v1469, 1
    %v1471 = vadd.f32 %v1469, %v1470
    %v1472 = vadd.f32 %v388, %v404
    %v1473 = vrot.slane %v1472, 4
    %v1474 = vadd.f32 %v1472, %v1473
    %v1475 = vrot.slane %v1474, 2
    %v1476 = vadd.f32 %v1474, %v1475
    %v1477 = vrot.slane %v1476, 1
    %v1478 = vadd.f32 %v1476, %v1477
    %v1479 = vadd.f32 %v389, %v405
    %v1480 = vrot.slane %v1479, 4
    %v1481 = vadd.f32 %v1479, %v1480
    %v1482 = vrot.slane %v1481, 2
    %v1483 = vadd.f32 %v1481, %v1482
    %v1484 = vrot.slane %v1483, 1
    %v1485 = vadd.f32 %v1483, %v1484
    %v1486 = vadd.f32 %v390, %v406
    %v1487 = vrot.slane %v1486, 4
    %v1488 = vadd.f32 %v1486, %v1487
    %v1489 = vrot.slane %v1488, 2
    %v1490 = vadd.f32 %v1488, %v1489
    %v1491 = vrot.slane %v1490, 1
    %v1492 = vadd.f32 %v1490, %v1491
    %v1493 = vadd.f32 %v391, %v407
    %v1494 = vrot.slane %v1493, 4
    %v1495 = vadd.f32 %v1493, %v1494
    %v1496 = vrot.slane %v1495, 2
    %v1497 = vadd.f32 %v1495, %v1496
    %v1498 = vrot.slane %v1497, 1
    %v1499 = vadd.f32 %v1497, %v1498
    %v1500 = vadd.f32 %v392, %v408
    %v1501 = vrot.slane %v1500, 4
    %v1502 = vadd.f32 %v1500, %v1501
    %v1503 = vrot.slane %v1502, 2
    %v1504 = vadd.f32 %v1502, %v1503
    %v1505 = vrot.slane %v1504, 1
    %v1506 = vadd.f32 %v1504, %v1505
    %v1507 = vadd.f32 %v393, %v409
    %v1508 = vrot.slane %v1507, 4
    %v1509 = vadd.f32 %v1507, %v1508
    %v1510 = vrot.slane %v1509, 2
    %v1511 = vadd.f32 %v1509, %v1510
    %v1512 = vrot.slane %v1511, 1
    %v1513 = vadd.f32 %v1511, %v1512
    %v1514 = vadd.f32 %v394, %v410
    %v1515 = vrot.slane %v1514, 4
    %v1516 = vadd.f32 %v1514, %v1515
    %v1517 = vrot.slane %v1516, 2
    %v1518 = vadd.f32 %v1516, %v1517
    %v1519 = vrot.slane %v1518, 1
    %v1520 = vadd.f32 %v1518, %v1519
    %v1521 = vadd.f32 %v395, %v411
    %v1522 = vrot.slane %v1521, 4
    %v1523 = vadd.f32 %v1521, %v1522
    %v1524 = vrot.slane %v1523, 2
    %v1525 = vadd.f32 %v1523, %v1524
    %v1526 = vrot.slane %v1525, 1
    %v1527 = vadd.f32 %v1525, %v1526
    %v1528 = vadd.f32 %v396, %v412
    %v1529 = vrot.slane %v1528, 4
    %v1530 = vadd.f32 %v1528, %v1529
    %v1531 = vrot.slane %v1530, 2
    %v1532 = vadd.f32 %v1530, %v1531
    %v1533 = vrot.slane %v1532, 1
    %v1534 = vadd.f32 %v1532, %v1533
    %v1535 = vadd.f32 %v397, %v413
    %v1536 = vrot.slane %v1535, 4
    %v1537 = vadd.f32 %v1535, %v1536
    %v1538 = vrot.slane %v1537, 2
    %v1539 = vadd.f32 %v1537, %v1538
    %v1540 = vrot.slane %v1539, 1
    %v1541 = vadd.f32 %v1539, %v1540
    %v1542 = vadd.f32 %v398, %v414
    %v1543 = vrot.slane %v1542, 4
    %v1544 = vadd.f32 %v1542, %v1543
    %v1545 = vrot.slane %v1544, 2
    %v1546 = vadd.f32 %v1544, %v1545
    %v1547 = vrot.slane %v1546, 1
    %v1548 = vadd.f32 %v1546, %v1547
    %v1549 = vadd.f32 %v399, %v415
    %v1550 = vrot.slane %v1549, 4
    %v1551 = vadd.f32 %v1549, %v1550
    %v1552 = vrot.slane %v1551, 2
    %v1553 = vadd.f32 %v1551, %v1552
    %v1554 = vrot.slane %v1553, 1
    %v1555 = vadd.f32 %v1553, %v1554
    %v1556 = vadd.f32 %v400, %v416
    %v1557 = vrot.slane %v1556, 4
    %v1558 = vadd.f32 %v1556, %v1557
    %v1559 = vrot.slane %v1558, 2
    %v1560 = vadd.f32 %v1558, %v1559
    %v1561 = vrot.slane %v1560, 1
    %v1562 = vadd.f32 %v1560, %v1561
    %v1563 = vadd.f32 %v401, %v417
    %v1564 = vrot.slane %v1563, 4
    %v1565 = vadd.f32 %v1563, %v1564
    %v1566 = vrot.slane %v1565, 2
    %v1567 = vadd.f32 %v1565, %v1566
    %v1568 = vrot.slane %v1567, 1
    %v1569 = vadd.f32 %v1567, %v1568
    %v1570 = vadd.f32 %v418, %v434
    %v1571 = vrot.slane %v1570, 4
    %v1572 = vadd.f32 %v1570, %v1571
    %v1573 = vrot.slane %v1572, 2
    %v1574 = vadd.f32 %v1572, %v1573
    %v1575 = vrot.slane %v1574, 1
    %v1576 = vadd.f32 %v1574, %v1575
    %v1577 = vadd.f32 %v419, %v435
    %v1578 = vrot.slane %v1577, 4
    %v1579 = vadd.f32 %v1577, %v1578
    %v1580 = vrot.slane %v1579, 2
    %v1581 = vadd.f32 %v1579, %v1580
    %v1582 = vrot.slane %v1581, 1
    %v1583 = vadd.f32 %v1581, %v1582
    %v1584 = vadd.f32 %v420, %v436
    %v1585 = vrot.slane %v1584, 4
    %v1586 = vadd.f32 %v1584, %v1585
    %v1587 = vrot.slane %v1586, 2
    %v1588 = vadd.f32 %v1586, %v1587
    %v1589 = vrot.slane %v1588, 1
    %v1590 = vadd.f32 %v1588, %v1589
    %v1591 = vadd.f32 %v421, %v437
    %v1592 = vrot.slane %v1591, 4
    %v1593 = vadd.f32 %v1591, %v1592
    %v1594 = vrot.slane %v1593, 2
    %v1595 = vadd.f32 %v1593, %v1594
    %v1596 = vrot.slane %v1595, 1
    %v1597 = vadd.f32 %v1595, %v1596
    %v1598 = vadd.f32 %v422, %v438
    %v1599 = vrot.slane %v1598, 4
    %v1600 = vadd.f32 %v1598, %v1599
    %v1601 = vrot.slane %v1600, 2
    %v1602 = vadd.f32 %v1600, %v1601
    %v1603 = vrot.slane %v1602, 1
    %v1604 = vadd.f32 %v1602, %v1603
    %v1605 = vadd.f32 %v423, %v439
    %v1606 = vrot.slane %v1605, 4
    %v1607 = vadd.f32 %v1605, %v1606
    %v1608 = vrot.slane %v1607, 2
    %v1609 = vadd.f32 %v1607, %v1608
    %v1610 = vrot.slane %v1609, 1
    %v1611 = vadd.f32 %v1609, %v1610
    %v1612 = vadd.f32 %v424, %v440
    %v1613 = vrot.slane %v1612, 4
    %v1614 = vadd.f32 %v1612, %v1613
    %v1615 = vrot.slane %v1614, 2
    %v1616 = vadd.f32 %v1614, %v1615
    %v1617 = vrot.slane %v1616, 1
    %v1618 = vadd.f32 %v1616, %v1617
    %v1619 = vadd.f32 %v425, %v441
    %v1620 = vrot.slane %v1619, 4
    %v1621 = vadd.f32 %v1619, %v1620
    %v1622 = vrot.slane %v1621, 2
    %v1623 = vadd.f32 %v1621, %v1622
    %v1624 = vrot.slane %v1623, 1
    %v1625 = vadd.f32 %v1623, %v1624
    %v1626 = vadd.f32 %v426, %v442
    %v1627 = vrot.slane %v1626, 4
    %v1628 = vadd.f32 %v1626, %v1627
    %v1629 = vrot.slane %v1628, 2
    %v1630 = vadd.f32 %v1628, %v1629
    %v1631 = vrot.slane %v1630, 1
    %v1632 = vadd.f32 %v1630, %v1631
    %v1633 = vadd.f32 %v427, %v443
    %v1634 = vrot.slane %v1633, 4
    %v1635 = vadd.f32 %v1633, %v1634
    %v1636 = vrot.slane %v1635, 2
    %v1637 = vadd.f32 %v1635, %v1636
    %v1638 = vrot.slane %v1637, 1
    %v1639 = vadd.f32 %v1637, %v1638
    %v1640 = vadd.f32 %v428, %v444
    %v1641 = vrot.slane %v1640, 4
    %v1642 = vadd.f32 %v1640, %v1641
    %v1643 = vrot.slane %v1642, 2
    %v1644 = vadd.f32 %v1642, %v1643
    %v1645 = vrot.slane %v1644, 1
    %v1646 = vadd.f32 %v1644, %v1645
    %v1647 = vadd.f32 %v429, %v445
    %v1648 = vrot.slane %v1647, 4
    %v1649 = vadd.f32 %v1647, %v1648
    %v1650 = vrot.slane %v1649, 2
    %v1651 = vadd.f32 %v1649, %v1650
    %v1652 = vrot.slane %v1651, 1
    %v1653 = vadd.f32 %v1651, %v1652
    %v1654 = vadd.f32 %v430, %v446
    %v1655 = vrot.slane %v1654, 4
    %v1656 = vadd.f32 %v1654, %v1655
    %v1657 = vrot.slane %v1656, 2
    %v1658 = vadd.f32 %v1656, %v1657
    %v1659 = vrot.slane %v1658, 1
    %v1660 = vadd.f32 %v1658, %v1659
    %v1661 = vadd.f32 %v431, %v447
    %v1662 = vrot.slane %v1661, 4
    %v1663 = vadd.f32 %v1661, %v1662
    %v1664 = vrot.slane %v1663, 2
    %v1665 = vadd.f32 %v1663, %v1664
    %v1666 = vrot.slane %v1665, 1
    %v1667 = vadd.f32 %v1665, %v1666
    %v1668 = vadd.f32 %v432, %v448
    %v1669 = vrot.slane %v1668, 4
    %v1670 = vadd.f32 %v1668, %v1669
    %v1671 = vrot.slane %v1670, 2
    %v1672 = vadd.f32 %v1670, %v1671
    %v1673 = vrot.slane %v1672, 1
    %v1674 = vadd.f32 %v1672, %v1673
    %v1675 = vadd.f32 %v433, %v449
    %v1676 = vrot.slane %v1675, 4
    %v1677 = vadd.f32 %v1675, %v1676
    %v1678 = vrot.slane %v1677, 2
    %v1679 = vadd.f32 %v1677, %v1678
    %v1680 = vrot.slane %v1679, 1
    %v1681 = vadd.f32 %v1679, %v1680
    %v1682 = vadd.f32 %v450, %v466
    %v1683 = vrot.slane %v1682, 4
    %v1684 = vadd.f32 %v1682, %v1683
    %v1685 = vrot.slane %v1684, 2
    %v1686 = vadd.f32 %v1684, %v1685
    %v1687 = vrot.slane %v1686, 1
    %v1688 = vadd.f32 %v1686, %v1687
    %v1689 = vadd.f32 %v451, %v467
    %v1690 = vrot.slane %v1689, 4
    %v1691 = vadd.f32 %v1689, %v1690
    %v1692 = vrot.slane %v1691, 2
    %v1693 = vadd.f32 %v1691, %v1692
    %v1694 = vrot.slane %v1693, 1
    %v1695 = vadd.f32 %v1693, %v1694
    %v1696 = vadd.f32 %v452, %v468
    %v1697 = vrot.slane %v1696, 4
    %v1698 = vadd.f32 %v1696, %v1697
    %v1699 = vrot.slane %v1698, 2
    %v1700 = vadd.f32 %v1698, %v1699
    %v1701 = vrot.slane %v1700, 1
    %v1702 = vadd.f32 %v1700, %v1701
    %v1703 = vadd.f32 %v453, %v469
    %v1704 = vrot.slane %v1703, 4
    %v1705 = vadd.f32 %v1703, %v1704
    %v1706 = vrot.slane %v1705, 2
    %v1707 = vadd.f32 %v1705, %v1706
    %v1708 = vrot.slane %v1707, 1
    %v1709 = vadd.f32 %v1707, %v1708
    %v1710 = vadd.f32 %v454, %v470
    %v1711 = vrot.slane %v1710, 4
    %v1712 = vadd.f32 %v1710, %v1711
    %v1713 = vrot.slane %v1712, 2
    %v1714 = vadd.f32 %v1712, %v1713
    %v1715 = vrot.slane %v1714, 1
    %v1716 = vadd.f32 %v1714, %v1715
    %v1717 = vadd.f32 %v455, %v471
    %v1718 = vrot.slane %v1717, 4
    %v1719 = vadd.f32 %v1717, %v1718
    %v1720 = vrot.slane %v1719, 2
    %v1721 = vadd.f32 %v1719, %v1720
    %v1722 = vrot.slane %v1721, 1
    %v1723 = vadd.f32 %v1721, %v1722
    %v1724 = vadd.f32 %v456, %v472
    %v1725 = vrot.slane %v1724, 4
    %v1726 = vadd.f32 %v1724, %v1725
    %v1727 = vrot.slane %v1726, 2
    %v1728 = vadd.f32 %v1726, %v1727
    %v1729 = vrot.slane %v1728, 1
    %v1730 = vadd.f32 %v1728, %v1729
    %v1731 = vadd.f32 %v457, %v473
    %v1732 = vrot.slane %v1731, 4
    %v1733 = vadd.f32 %v1731, %v1732
    %v1734 = vrot.slane %v1733, 2
    %v1735 = vadd.f32 %v1733, %v1734
    %v1736 = vrot.slane %v1735, 1
    %v1737 = vadd.f32 %v1735, %v1736
    %v1738 = vadd.f32 %v458, %v474
    %v1739 = vrot.slane %v1738, 4
    %v1740 = vadd.f32 %v1738, %v1739
    %v1741 = vrot.slane %v1740, 2
    %v1742 = vadd.f32 %v1740, %v1741
    %v1743 = vrot.slane %v1742, 1
    %v1744 = vadd.f32 %v1742, %v1743
    %v1745 = vadd.f32 %v459, %v475
    %v1746 = vrot.slane %v1745, 4
    %v1747 = vadd.f32 %v1745, %v1746
    %v1748 = vrot.slane %v1747, 2
    %v1749 = vadd.f32 %v1747, %v1748
    %v1750 = vrot.slane %v1749, 1
    %v1751 = vadd.f32 %v1749, %v1750
    %v1752 = vadd.f32 %v460, %v476
    %v1753 = vrot.slane %v1752, 4
    %v1754 = vadd.f32 %v1752, %v1753
    %v1755 = vrot.slane %v1754, 2
    %v1756 = vadd.f32 %v1754, %v1755
    %v1757 = vrot.slane %v1756, 1
    %v1758 = vadd.f32 %v1756, %v1757
    %v1759 = vadd.f32 %v461, %v477
    %v1760 = vrot.slane %v1759, 4
    %v1761 = vadd.f32 %v1759, %v1760
    %v1762 = vrot.slane %v1761, 2
    %v1763 = vadd.f32 %v1761, %v1762
    %v1764 = vrot.slane %v1763, 1
    %v1765 = vadd.f32 %v1763, %v1764
    %v1766 = vadd.f32 %v462, %v478
    %v1767 = vrot.slane %v1766, 4
    %v1768 = vadd.f32 %v1766, %v1767
    %v1769 = vrot.slane %v1768, 2
    %v1770 = vadd.f32 %v1768, %v1769
    %v1771 = vrot.slane %v1770, 1
    %v1772 = vadd.f32 %v1770, %v1771
    %v1773 = vadd.f32 %v463, %v479
    %v1774 = vrot.slane %v1773, 4
    %v1775 = vadd.f32 %v1773, %v1774
    %v1776 = vrot.slane %v1775, 2
    %v1777 = vadd.f32 %v1775, %v1776
    %v1778 = vrot.slane %v1777, 1
    %v1779 = vadd.f32 %v1777, %v1778
    %v1780 = vadd.f32 %v464, %v480
    %v1781 = vrot.slane %v1780, 4
    %v1782 = vadd.f32 %v1780, %v1781
    %v1783 = vrot.slane %v1782, 2
    %v1784 = vadd.f32 %v1782, %v1783
    %v1785 = vrot.slane %v1784, 1
    %v1786 = vadd.f32 %v1784, %v1785
    %v1787 = vadd.f32 %v465, %v481
    %v1788 = vrot.slane %v1787, 4
    %v1789 = vadd.f32 %v1787, %v1788
    %v1790 = vrot.slane %v1789, 2
    %v1791 = vadd.f32 %v1789, %v1790
    %v1792 = vrot.slane %v1791, 1
    %v1793 = vadd.f32 %v1791, %v1792
    %v1794 = vadd.f32 %v482, %v498
    %v1795 = vrot.slane %v1794, 4
    %v1796 = vadd.f32 %v1794, %v1795
    %v1797 = vrot.slane %v1796, 2
    %v1798 = vadd.f32 %v1796, %v1797
    %v1799 = vrot.slane %v1798, 1
    %v1800 = vadd.f32 %v1798, %v1799
    %v1801 = vadd.f32 %v483, %v499
    %v1802 = vrot.slane %v1801, 4
    %v1803 = vadd.f32 %v1801, %v1802
    %v1804 = vrot.slane %v1803, 2
    %v1805 = vadd.f32 %v1803, %v1804
    %v1806 = vrot.slane %v1805, 1
    %v1807 = vadd.f32 %v1805, %v1806
    %v1808 = vadd.f32 %v484, %v500
    %v1809 = vrot.slane %v1808, 4
    %v1810 = vadd.f32 %v1808, %v1809
    %v1811 = vrot.slane %v1810, 2
    %v1812 = vadd.f32 %v1810, %v1811
    %v1813 = vrot.slane %v1812, 1
    %v1814 = vadd.f32 %v1812, %v1813
    %v1815 = vadd.f32 %v485, %v501
    %v1816 = vrot.slane %v1815, 4
    %v1817 = vadd.f32 %v1815, %v1816
    %v1818 = vrot.slane %v1817, 2
    %v1819 = vadd.f32 %v1817, %v1818
    %v1820 = vrot.slane %v1819, 1
    %v1821 = vadd.f32 %v1819, %v1820
    %v1822 = vadd.f32 %v486, %v502
    %v1823 = vrot.slane %v1822, 4
    %v1824 = vadd.f32 %v1822, %v1823
    %v1825 = vrot.slane %v1824, 2
    %v1826 = vadd.f32 %v1824, %v1825
    %v1827 = vrot.slane %v1826, 1
    %v1828 = vadd.f32 %v1826, %v1827
    %v1829 = vadd.f32 %v487, %v503
    %v1830 = vrot.slane %v1829, 4
    %v1831 = vadd.f32 %v1829, %v1830
    %v1832 = vrot.slane %v1831, 2
    %v1833 = vadd.f32 %v1831, %v1832
    %v1834 = vrot.slane %v1833, 1
    %v1835 = vadd.f32 %v1833, %v1834
    %v1836 = vadd.f32 %v488, %v504
    %v1837 = vrot.slane %v1836, 4
    %v1838 = vadd.f32 %v1836, %v1837
    %v1839 = vrot.slane %v1838, 2
    %v1840 = vadd.f32 %v1838, %v1839
    %v1841 = vrot.slane %v1840, 1
    %v1842 = vadd.f32 %v1840, %v1841
    %v1843 = vadd.f32 %v489, %v505
    %v1844 = vrot.slane %v1843, 4
    %v1845 = vadd.f32 %v1843, %v1844
    %v1846 = vrot.slane %v1845, 2
    %v1847 = vadd.f32 %v1845, %v1846
    %v1848 = vrot.slane %v1847, 1
    %v1849 = vadd.f32 %v1847, %v1848
    %v1850 = vadd.f32 %v490, %v506
    %v1851 = vrot.slane %v1850, 4
    %v1852 = vadd.f32 %v1850, %v1851
    %v1853 = vrot.slane %v1852, 2
    %v1854 = vadd.f32 %v1852, %v1853
    %v1855 = vrot.slane %v1854, 1
    %v1856 = vadd.f32 %v1854, %v1855
    %v1857 = vadd.f32 %v491, %v507
    %v1858 = vrot.slane %v1857, 4
    %v1859 = vadd.f32 %v1857, %v1858
    %v1860 = vrot.slane %v1859, 2
    %v1861 = vadd.f32 %v1859, %v1860
    %v1862 = vrot.slane %v1861, 1
    %v1863 = vadd.f32 %v1861, %v1862
    %v1864 = vadd.f32 %v492, %v508
    %v1865 = vrot.slane %v1864, 4
    %v1866 = vadd.f32 %v1864, %v1865
    %v1867 = vrot.slane %v1866, 2
    %v1868 = vadd.f32 %v1866, %v1867
    %v1869 = vrot.slane %v1868, 1
    %v1870 = vadd.f32 %v1868, %v1869
    %v1871 = vadd.f32 %v493, %v509
    %v1872 = vrot.slane %v1871, 4
    %v1873 = vadd.f32 %v1871, %v1872
    %v1874 = vrot.slane %v1873, 2
    %v1875 = vadd.f32 %v1873, %v1874
    %v1876 = vrot.slane %v1875, 1
    %v1877 = vadd.f32 %v1875, %v1876
    %v1878 = vadd.f32 %v494, %v510
    %v1879 = vrot.slane %v1878, 4
    %v1880 = vadd.f32 %v1878, %v1879
    %v1881 = vrot.slane %v1880, 2
    %v1882 = vadd.f32 %v1880, %v1881
    %v1883 = vrot.slane %v1882, 1
    %v1884 = vadd.f32 %v1882, %v1883
    %v1885 = vadd.f32 %v495, %v511
    %v1886 = vrot.slane %v1885, 4
    %v1887 = vadd.f32 %v1885, %v1886
    %v1888 = vrot.slane %v1887, 2
    %v1889 = vadd.f32 %v1887, %v1888
    %v1890 = vrot.slane %v1889, 1
    %v1891 = vadd.f32 %v1889, %v1890
    %v1892 = vadd.f32 %v496, %v512
    %v1893 = vrot.slane %v1892, 4
    %v1894 = vadd.f32 %v1892, %v1893
    %v1895 = vrot.slane %v1894, 2
    %v1896 = vadd.f32 %v1894, %v1895
    %v1897 = vrot.slane %v1896, 1
    %v1898 = vadd.f32 %v1896, %v1897
    %v1899 = vadd.f32 %v497, %v513
    %v1900 = vrot.slane %v1899, 4
    %v1901 = vadd.f32 %v1899, %v1900
    %v1902 = vrot.slane %v1901, 2
    %v1903 = vadd.f32 %v1901, %v1902
    %v1904 = vrot.slane %v1903, 1
    %v1905 = vadd.f32 %v1903, %v1904
    %v1906 = vadd.f32 %v514, %v530
    %v1907 = vrot.slane %v1906, 4
    %v1908 = vadd.f32 %v1906, %v1907
    %v1909 = vrot.slane %v1908, 2
    %v1910 = vadd.f32 %v1908, %v1909
    %v1911 = vrot.slane %v1910, 1
    %v1912 = vadd.f32 %v1910, %v1911
    %v1913 = vadd.f32 %v515, %v531
    %v1914 = vrot.slane %v1913, 4
    %v1915 = vadd.f32 %v1913, %v1914
    %v1916 = vrot.slane %v1915, 2
    %v1917 = vadd.f32 %v1915, %v1916
    %v1918 = vrot.slane %v1917, 1
    %v1919 = vadd.f32 %v1917, %v1918
    %v1920 = vadd.f32 %v516, %v532
    %v1921 = vrot.slane %v1920, 4
    %v1922 = vadd.f32 %v1920, %v1921
    %v1923 = vrot.slane %v1922, 2
    %v1924 = vadd.f32 %v1922, %v1923
    %v1925 = vrot.slane %v1924, 1
    %v1926 = vadd.f32 %v1924, %v1925
    %v1927 = vadd.f32 %v517, %v533
    %v1928 = vrot.slane %v1927, 4
    %v1929 = vadd.f32 %v1927, %v1928
    %v1930 = vrot.slane %v1929, 2
    %v1931 = vadd.f32 %v1929, %v1930
    %v1932 = vrot.slane %v1931, 1
    %v1933 = vadd.f32 %v1931, %v1932
    %v1934 = vadd.f32 %v518, %v534
    %v1935 = vrot.slane %v1934, 4
    %v1936 = vadd.f32 %v1934, %v1935
    %v1937 = vrot.slane %v1936, 2
    %v1938 = vadd.f32 %v1936, %v1937
    %v1939 = vrot.slane %v1938, 1
    %v1940 = vadd.f32 %v1938, %v1939
    %v1941 = vadd.f32 %v519, %v535
    %v1942 = vrot.slane %v1941, 4
    %v1943 = vadd.f32 %v1941, %v1942
    %v1944 = vrot.slane %v1943, 2
    %v1945 = vadd.f32 %v1943, %v1944
    %v1946 = vrot.slane %v1945, 1
    %v1947 = vadd.f32 %v1945, %v1946
    %v1948 = vadd.f32 %v520, %v536
    %v1949 = vrot.slane %v1948, 4
    %v1950 = vadd.f32 %v1948, %v1949
    %v1951 = vrot.slane %v1950, 2
    %v1952 = vadd.f32 %v1950, %v1951
    %v1953 = vrot.slane %v1952, 1
    %v1954 = vadd.f32 %v1952, %v1953
    %v1955 = vadd.f32 %v521, %v537
    %v1956 = vrot.slane %v1955, 4
    %v1957 = vadd.f32 %v1955, %v1956
    %v1958 = vrot.slane %v1957, 2
    %v1959 = vadd.f32 %v1957, %v1958
    %v1960 = vrot.slane %v1959, 1
    %v1961 = vadd.f32 %v1959, %v1960
    %v1962 = vadd.f32 %v522, %v538
    %v1963 = vrot.slane %v1962, 4
    %v1964 = vadd.f32 %v1962, %v1963
    %v1965 = vrot.slane %v1964, 2
    %v1966 = vadd.f32 %v1964, %v1965
    %v1967 = vrot.slane %v1966, 1
    %v1968 = vadd.f32 %v1966, %v1967
    %v1969 = vadd.f32 %v523, %v539
    %v1970 = vrot.slane %v1969, 4
    %v1971 = vadd.f32 %v1969, %v1970
    %v1972 = vrot.slane %v1971, 2
    %v1973 = vadd.f32 %v1971, %v1972
    %v1974 = vrot.slane %v1973, 1
    %v1975 = vadd.f32 %v1973, %v1974
    %v1976 = vadd.f32 %v524, %v540
    %v1977 = vrot.slane %v1976, 4
    %v1978 = vadd.f32 %v1976, %v1977
    %v1979 = vrot.slane %v1978, 2
    %v1980 = vadd.f32 %v1978, %v1979
    %v1981 = vrot.slane %v1980, 1
    %v1982 = vadd.f32 %v1980, %v1981
    %v1983 = vadd.f32 %v525, %v541
    %v1984 = vrot.slane %v1983, 4
    %v1985 = vadd.f32 %v1983, %v1984
    %v1986 = vrot.slane %v1985, 2
    %v1987 = vadd.f32 %v1985, %v1986
    %v1988 = vrot.slane %v1987, 1
    %v1989 = vadd.f32 %v1987, %v1988
    %v1990 = vadd.f32 %v526, %v542
    %v1991 = vrot.slane %v1990, 4
    %v1992 = vadd.f32 %v1990, %v1991
    %v1993 = vrot.slane %v1992, 2
    %v1994 = vadd.f32 %v1992, %v1993
    %v1995 = vrot.slane %v1994, 1
    %v1996 = vadd.f32 %v1994, %v1995
    %v1997 = vadd.f32 %v527, %v543
    %v1998 = vrot.slane %v1997, 4
    %v1999 = vadd.f32 %v1997, %v1998
    %v2000 = vrot.slane %v1999, 2
    %v2001 = vadd.f32 %v1999, %v2000
    %v2002 = vrot.slane %v2001, 1
    %v2003 = vadd.f32 %v2001, %v2002
    %v2004 = vadd.f32 %v528, %v544
    %v2005 = vrot.slane %v2004, 4
    %v2006 = vadd.f32 %v2004, %v2005
    %v2007 = vrot.slane %v2006, 2
    %v2008 = vadd.f32 %v2006, %v2007
    %v2009 = vrot.slane %v2008, 1
    %v2010 = vadd.f32 %v2008, %v2009
    %v2011 = vadd.f32 %v529, %v545
    %v2012 = vrot.slane %v2011, 4
    %v2013 = vadd.f32 %v2011, %v2012
    %v2014 = vrot.slane %v2013, 2
    %v2015 = vadd.f32 %v2013, %v2014
    %v2016 = vrot.slane %v2015, 1
    %v2017 = vadd.f32 %v2015, %v2016
    %v2018 = vadd.f32 %v546, %v562
    %v2019 = vrot.slane %v2018, 4
    %v2020 = vadd.f32 %v2018, %v2019
    %v2021 = vrot.slane %v2020, 2
    %v2022 = vadd.f32 %v2020, %v2021
    %v2023 = vrot.slane %v2022, 1
    %v2024 = vadd.f32 %v2022, %v2023
    %v2025 = vadd.f32 %v547, %v563
    %v2026 = vrot.slane %v2025, 4
    %v2027 = vadd.f32 %v2025, %v2026
    %v2028 = vrot.slane %v2027, 2
    %v2029 = vadd.f32 %v2027, %v2028
    %v2030 = vrot.slane %v2029, 1
    %v2031 = vadd.f32 %v2029, %v2030
    %v2032 = vadd.f32 %v548, %v564
    %v2033 = vrot.slane %v2032, 4
    %v2034 = vadd.f32 %v2032, %v2033
    %v2035 = vrot.slane %v2034, 2
    %v2036 = vadd.f32 %v2034, %v2035
    %v2037 = vrot.slane %v2036, 1
    %v2038 = vadd.f32 %v2036, %v2037
    %v2039 = vadd.f32 %v549, %v565
    %v2040 = vrot.slane %v2039, 4
    %v2041 = vadd.f32 %v2039, %v2040
    %v2042 = vrot.slane %v2041, 2
    %v2043 = vadd.f32 %v2041, %v2042
    %v2044 = vrot.slane %v2043, 1
    %v2045 = vadd.f32 %v2043, %v2044
    %v2046 = vadd.f32 %v550, %v566
    %v2047 = vrot.slane %v2046, 4
    %v2048 = vadd.f32 %v2046, %v2047
    %v2049 = vrot.slane %v2048, 2
    %v2050 = vadd.f32 %v2048, %v2049
    %v2051 = vrot.slane %v2050, 1
    %v2052 = vadd.f32 %v2050, %v2051
    %v2053 = vadd.f32 %v551, %v567
    %v2054 = vrot.slane %v2053, 4
    %v2055 = vadd.f32 %v2053, %v2054
    %v2056 = vrot.slane %v2055, 2
    %v2057 = vadd.f32 %v2055, %v2056
    %v2058 = vrot.slane %v2057, 1
    %v2059 = vadd.f32 %v2057, %v2058
    %v2060 = vadd.f32 %v552, %v568
    %v2061 = vrot.slane %v2060, 4
    %v2062 = vadd.f32 %v2060, %v2061
    %v2063 = vrot.slane %v2062, 2
    %v2064 = vadd.f32 %v2062, %v2063
    %v2065 = vrot.slane %v2064, 1
    %v2066 = vadd.f32 %v2064, %v2065
    %v2067 = vadd.f32 %v553, %v569
    %v2068 = vrot.slane %v2067, 4
    %v2069 = vadd.f32 %v2067, %v2068
    %v2070 = vrot.slane %v2069, 2
    %v2071 = vadd.f32 %v2069, %v2070
    %v2072 = vrot.slane %v2071, 1
    %v2073 = vadd.f32 %v2071, %v2072
    %v2074 = vadd.f32 %v554, %v570
    %v2075 = vrot.slane %v2074, 4
    %v2076 = vadd.f32 %v2074, %v2075
    %v2077 = vrot.slane %v2076, 2
    %v2078 = vadd.f32 %v2076, %v2077
    %v2079 = vrot.slane %v2078, 1
    %v2080 = vadd.f32 %v2078, %v2079
    %v2081 = vadd.f32 %v555, %v571
    %v2082 = vrot.slane %v2081, 4
    %v2083 = vadd.f32 %v2081, %v2082
    %v2084 = vrot.slane %v2083, 2
    %v2085 = vadd.f32 %v2083, %v2084
    %v2086 = vrot.slane %v2085, 1
    %v2087 = vadd.f32 %v2085, %v2086
    %v2088 = vadd.f32 %v556, %v572
    %v2089 = vrot.slane %v2088, 4
    %v2090 = vadd.f32 %v2088, %v2089
    %v2091 = vrot.slane %v2090, 2
    %v2092 = vadd.f32 %v2090, %v2091
    %v2093 = vrot.slane %v2092, 1
    %v2094 = vadd.f32 %v2092, %v2093
    %v2095 = vadd.f32 %v557, %v573
    %v2096 = vrot.slane %v2095, 4
    %v2097 = vadd.f32 %v2095, %v2096
    %v2098 = vrot.slane %v2097, 2
    %v2099 = vadd.f32 %v2097, %v2098
    %v2100 = vrot.slane %v2099, 1
    %v2101 = vadd.f32 %v2099, %v2100
    %v2102 = vadd.f32 %v558, %v574
    %v2103 = vrot.slane %v2102, 4
    %v2104 = vadd.f32 %v2102, %v2103
    %v2105 = vrot.slane %v2104, 2
    %v2106 = vadd.f32 %v2104, %v2105
    %v2107 = vrot.slane %v2106, 1
    %v2108 = vadd.f32 %v2106, %v2107
    %v2109 = vadd.f32 %v559, %v575
    %v2110 = vrot.slane %v2109, 4
    %v2111 = vadd.f32 %v2109, %v2110
    %v2112 = vrot.slane %v2111, 2
    %v2113 = vadd.f32 %v2111, %v2112
    %v2114 = vrot.slane %v2113, 1
    %v2115 = vadd.f32 %v2113, %v2114
    %v2116 = vadd.f32 %v560, %v576
    %v2117 = vrot.slane %v2116, 4
    %v2118 = vadd.f32 %v2116, %v2117
    %v2119 = vrot.slane %v2118, 2
    %v2120 = vadd.f32 %v2118, %v2119
    %v2121 = vrot.slane %v2120, 1
    %v2122 = vadd.f32 %v2120, %v2121
    %v2123 = vadd.f32 %v561, %v577
    %v2124 = vrot.slane %v2123, 4
    %v2125 = vadd.f32 %v2123, %v2124
    %v2126 = vrot.slane %v2125, 2
    %v2127 = vadd.f32 %v2125, %v2126
    %v2128 = vrot.slane %v2127, 1
    %v2129 = vadd.f32 %v2127, %v2128
    %v2130 = vadd.f32 %v578, %v594
    %v2131 = vrot.slane %v2130, 4
    %v2132 = vadd.f32 %v2130, %v2131
    %v2133 = vrot.slane %v2132, 2
    %v2134 = vadd.f32 %v2132, %v2133
    %v2135 = vrot.slane %v2134, 1
    %v2136 = vadd.f32 %v2134, %v2135
    %v2137 = vadd.f32 %v579, %v595
    %v2138 = vrot.slane %v2137, 4
    %v2139 = vadd.f32 %v2137, %v2138
    %v2140 = vrot.slane %v2139, 2
    %v2141 = vadd.f32 %v2139, %v2140
    %v2142 = vrot.slane %v2141, 1
    %v2143 = vadd.f32 %v2141, %v2142
    %v2144 = vadd.f32 %v580, %v596
    %v2145 = vrot.slane %v2144, 4
    %v2146 = vadd.f32 %v2144, %v2145
    %v2147 = vrot.slane %v2146, 2
    %v2148 = vadd.f32 %v2146, %v2147
    %v2149 = vrot.slane %v2148, 1
    %v2150 = vadd.f32 %v2148, %v2149
    %v2151 = vadd.f32 %v581, %v597
    %v2152 = vrot.slane %v2151, 4
    %v2153 = vadd.f32 %v2151, %v2152
    %v2154 = vrot.slane %v2153, 2
    %v2155 = vadd.f32 %v2153, %v2154
    %v2156 = vrot.slane %v2155, 1
    %v2157 = vadd.f32 %v2155, %v2156
    %v2158 = vadd.f32 %v582, %v598
    %v2159 = vrot.slane %v2158, 4
    %v2160 = vadd.f32 %v2158, %v2159
    %v2161 = vrot.slane %v2160, 2
    %v2162 = vadd.f32 %v2160, %v2161
    %v2163 = vrot.slane %v2162, 1
    %v2164 = vadd.f32 %v2162, %v2163
    %v2165 = vadd.f32 %v583, %v599
    %v2166 = vrot.slane %v2165, 4
    %v2167 = vadd.f32 %v2165, %v2166
    %v2168 = vrot.slane %v2167, 2
    %v2169 = vadd.f32 %v2167, %v2168
    %v2170 = vrot.slane %v2169, 1
    %v2171 = vadd.f32 %v2169, %v2170
    %v2172 = vadd.f32 %v584, %v600
    %v2173 = vrot.slane %v2172, 4
    %v2174 = vadd.f32 %v2172, %v2173
    %v2175 = vrot.slane %v2174, 2
    %v2176 = vadd.f32 %v2174, %v2175
    %v2177 = vrot.slane %v2176, 1
    %v2178 = vadd.f32 %v2176, %v2177
    %v2179 = vadd.f32 %v585, %v601
    %v2180 = vrot.slane %v2179, 4
    %v2181 = vadd.f32 %v2179, %v2180
    %v2182 = vrot.slane %v2181, 2
    %v2183 = vadd.f32 %v2181, %v2182
    %v2184 = vrot.slane %v2183, 1
    %v2185 = vadd.f32 %v2183, %v2184
    %v2186 = vadd.f32 %v586, %v602
    %v2187 = vrot.slane %v2186, 4
    %v2188 = vadd.f32 %v2186, %v2187
    %v2189 = vrot.slane %v2188, 2
    %v2190 = vadd.f32 %v2188, %v2189
    %v2191 = vrot.slane %v2190, 1
    %v2192 = vadd.f32 %v2190, %v2191
    %v2193 = vadd.f32 %v587, %v603
    %v2194 = vrot.slane %v2193, 4
    %v2195 = vadd.f32 %v2193, %v2194
    %v2196 = vrot.slane %v2195, 2
    %v2197 = vadd.f32 %v2195, %v2196
    %v2198 = vrot.slane %v2197, 1
    %v2199 = vadd.f32 %v2197, %v2198
    %v2200 = vadd.f32 %v588, %v604
    %v2201 = vrot.slane %v2200, 4
    %v2202 = vadd.f32 %v2200, %v2201
    %v2203 = vrot.slane %v2202, 2
    %v2204 = vadd.f32 %v2202, %v2203
    %v2205 = vrot.slane %v2204, 1
    %v2206 = vadd.f32 %v2204, %v2205
    %v2207 = vadd.f32 %v589, %v605
    %v2208 = vrot.slane %v2207, 4
    %v2209 = vadd.f32 %v2207, %v2208
    %v2210 = vrot.slane %v2209, 2
    %v2211 = vadd.f32 %v2209, %v2210
    %v2212 = vrot.slane %v2211, 1
    %v2213 = vadd.f32 %v2211, %v2212
    %v2214 = vadd.f32 %v590, %v606
    %v2215 = vrot.slane %v2214, 4
    %v2216 = vadd.f32 %v2214, %v2215
    %v2217 = vrot.slane %v2216, 2
    %v2218 = vadd.f32 %v2216, %v2217
    %v2219 = vrot.slane %v2218, 1
    %v2220 = vadd.f32 %v2218, %v2219
    %v2221 = vadd.f32 %v591, %v607
    %v2222 = vrot.slane %v2221, 4
    %v2223 = vadd.f32 %v2221, %v2222
    %v2224 = vrot.slane %v2223, 2
    %v2225 = vadd.f32 %v2223, %v2224
    %v2226 = vrot.slane %v2225, 1
    %v2227 = vadd.f32 %v2225, %v2226
    %v2228 = vadd.f32 %v592, %v608
    %v2229 = vrot.slane %v2228, 4
    %v2230 = vadd.f32 %v2228, %v2229
    %v2231 = vrot.slane %v2230, 2
    %v2232 = vadd.f32 %v2230, %v2231
    %v2233 = vrot.slane %v2232, 1
    %v2234 = vadd.f32 %v2232, %v2233
    %v2235 = vadd.f32 %v593, %v609
    %v2236 = vrot.slane %v2235, 4
    %v2237 = vadd.f32 %v2235, %v2236
    %v2238 = vrot.slane %v2237, 2
    %v2239 = vadd.f32 %v2237, %v2238
    %v2240 = vrot.slane %v2239, 1
    %v2241 = vadd.f32 %v2239, %v2240
    %v2242 = vadd.f32 %v610, %v626
    %v2243 = vrot.slane %v2242, 4
    %v2244 = vadd.f32 %v2242, %v2243
    %v2245 = vrot.slane %v2244, 2
    %v2246 = vadd.f32 %v2244, %v2245
    %v2247 = vrot.slane %v2246, 1
    %v2248 = vadd.f32 %v2246, %v2247
    %v2249 = vadd.f32 %v611, %v627
    %v2250 = vrot.slane %v2249, 4
    %v2251 = vadd.f32 %v2249, %v2250
    %v2252 = vrot.slane %v2251, 2
    %v2253 = vadd.f32 %v2251, %v2252
    %v2254 = vrot.slane %v2253, 1
    %v2255 = vadd.f32 %v2253, %v2254
    %v2256 = vadd.f32 %v612, %v628
    %v2257 = vrot.slane %v2256, 4
    %v2258 = vadd.f32 %v2256, %v2257
    %v2259 = vrot.slane %v2258, 2
    %v2260 = vadd.f32 %v2258, %v2259
    %v2261 = vrot.slane %v2260, 1
    %v2262 = vadd.f32 %v2260, %v2261
    %v2263 = vadd.f32 %v613, %v629
    %v2264 = vrot.slane %v2263, 4
    %v2265 = vadd.f32 %v2263, %v2264
    %v2266 = vrot.slane %v2265, 2
    %v2267 = vadd.f32 %v2265, %v2266
    %v2268 = vrot.slane %v2267, 1
    %v2269 = vadd.f32 %v2267, %v2268
    %v2270 = vadd.f32 %v614, %v630
    %v2271 = vrot.slane %v2270, 4
    %v2272 = vadd.f32 %v2270, %v2271
    %v2273 = vrot.slane %v2272, 2
    %v2274 = vadd.f32 %v2272, %v2273
    %v2275 = vrot.slane %v2274, 1
    %v2276 = vadd.f32 %v2274, %v2275
    %v2277 = vadd.f32 %v615, %v631
    %v2278 = vrot.slane %v2277, 4
    %v2279 = vadd.f32 %v2277, %v2278
    %v2280 = vrot.slane %v2279, 2
    %v2281 = vadd.f32 %v2279, %v2280
    %v2282 = vrot.slane %v2281, 1
    %v2283 = vadd.f32 %v2281, %v2282
    %v2284 = vadd.f32 %v616, %v632
    %v2285 = vrot.slane %v2284, 4
    %v2286 = vadd.f32 %v2284, %v2285
    %v2287 = vrot.slane %v2286, 2
    %v2288 = vadd.f32 %v2286, %v2287
    %v2289 = vrot.slane %v2288, 1
    %v2290 = vadd.f32 %v2288, %v2289
    %v2291 = vadd.f32 %v617, %v633
    %v2292 = vrot.slane %v2291, 4
    %v2293 = vadd.f32 %v2291, %v2292
    %v2294 = vrot.slane %v2293, 2
    %v2295 = vadd.f32 %v2293, %v2294
    %v2296 = vrot.slane %v2295, 1
    %v2297 = vadd.f32 %v2295, %v2296
    %v2298 = vadd.f32 %v618, %v634
    %v2299 = vrot.slane %v2298, 4
    %v2300 = vadd.f32 %v2298, %v2299
    %v2301 = vrot.slane %v2300, 2
    %v2302 = vadd.f32 %v2300, %v2301
    %v2303 = vrot.slane %v2302, 1
    %v2304 = vadd.f32 %v2302, %v2303
    %v2305 = vadd.f32 %v619, %v635
    %v2306 = vrot.slane %v2305, 4
    %v2307 = vadd.f32 %v2305, %v2306
    %v2308 = vrot.slane %v2307, 2
    %v2309 = vadd.f32 %v2307, %v2308
    %v2310 = vrot.slane %v2309, 1
    %v2311 = vadd.f32 %v2309, %v2310
    %v2312 = vadd.f32 %v620, %v636
    %v2313 = vrot.slane %v2312, 4
    %v2314 = vadd.f32 %v2312, %v2313
    %v2315 = vrot.slane %v2314, 2
    %v2316 = vadd.f32 %v2314, %v2315
    %v2317 = vrot.slane %v2316, 1
    %v2318 = vadd.f32 %v2316, %v2317
    %v2319 = vadd.f32 %v621, %v637
    %v2320 = vrot.slane %v2319, 4
    %v2321 = vadd.f32 %v2319, %v2320
    %v2322 = vrot.slane %v2321, 2
    %v2323 = vadd.f32 %v2321, %v2322
    %v2324 = vrot.slane %v2323, 1
    %v2325 = vadd.f32 %v2323, %v2324
    %v2326 = vadd.f32 %v622, %v638
    %v2327 = vrot.slane %v2326, 4
    %v2328 = vadd.f32 %v2326, %v2327
    %v2329 = vrot.slane %v2328, 2
    %v2330 = vadd.f32 %v2328, %v2329
    %v2331 = vrot.slane %v2330, 1
    %v2332 = vadd.f32 %v2330, %v2331
    %v2333 = vadd.f32 %v623, %v639
    %v2334 = vrot.slane %v2333, 4
    %v2335 = vadd.f32 %v2333, %v2334
    %v2336 = vrot.slane %v2335, 2
    %v2337 = vadd.f32 %v2335, %v2336
    %v2338 = vrot.slane %v2337, 1
    %v2339 = vadd.f32 %v2337, %v2338
    %v2340 = vadd.f32 %v624, %v640
    %v2341 = vrot.slane %v2340, 4
    %v2342 = vadd.f32 %v2340, %v2341
    %v2343 = vrot.slane %v2342, 2
    %v2344 = vadd.f32 %v2342, %v2343
    %v2345 = vrot.slane %v2344, 1
    %v2346 = vadd.f32 %v2344, %v2345
    %v2347 = vadd.f32 %v625, %v641
    %v2348 = vrot.slane %v2347, 4
    %v2349 = vadd.f32 %v2347, %v2348
    %v2350 = vrot.slane %v2349, 2
    %v2351 = vadd.f32 %v2349, %v2350
    %v2352 = vrot.slane %v2351, 1
    %v2353 = vadd.f32 %v2351, %v2352
    %v2354 = vadd.f32 %v642, %v658
    %v2355 = vrot.slane %v2354, 4
    %v2356 = vadd.f32 %v2354, %v2355
    %v2357 = vrot.slane %v2356, 2
    %v2358 = vadd.f32 %v2356, %v2357
    %v2359 = vrot.slane %v2358, 1
    %v2360 = vadd.f32 %v2358, %v2359
    %v2361 = vadd.f32 %v643, %v659
    %v2362 = vrot.slane %v2361, 4
    %v2363 = vadd.f32 %v2361, %v2362
    %v2364 = vrot.slane %v2363, 2
    %v2365 = vadd.f32 %v2363, %v2364
    %v2366 = vrot.slane %v2365, 1
    %v2367 = vadd.f32 %v2365, %v2366
    %v2368 = vadd.f32 %v644, %v660
    %v2369 = vrot.slane %v2368, 4
    %v2370 = vadd.f32 %v2368, %v2369
    %v2371 = vrot.slane %v2370, 2
    %v2372 = vadd.f32 %v2370, %v2371
    %v2373 = vrot.slane %v2372, 1
    %v2374 = vadd.f32 %v2372, %v2373
    %v2375 = vadd.f32 %v645, %v661
    %v2376 = vrot.slane %v2375, 4
    %v2377 = vadd.f32 %v2375, %v2376
    %v2378 = vrot.slane %v2377, 2
    %v2379 = vadd.f32 %v2377, %v2378
    %v2380 = vrot.slane %v2379, 1
    %v2381 = vadd.f32 %v2379, %v2380
    %v2382 = vadd.f32 %v646, %v662
    %v2383 = vrot.slane %v2382, 4
    %v2384 = vadd.f32 %v2382, %v2383
    %v2385 = vrot.slane %v2384, 2
    %v2386 = vadd.f32 %v2384, %v2385
    %v2387 = vrot.slane %v2386, 1
    %v2388 = vadd.f32 %v2386, %v2387
    %v2389 = vadd.f32 %v647, %v663
    %v2390 = vrot.slane %v2389, 4
    %v2391 = vadd.f32 %v2389, %v2390
    %v2392 = vrot.slane %v2391, 2
    %v2393 = vadd.f32 %v2391, %v2392
    %v2394 = vrot.slane %v2393, 1
    %v2395 = vadd.f32 %v2393, %v2394
    %v2396 = vadd.f32 %v648, %v664
    %v2397 = vrot.slane %v2396, 4
    %v2398 = vadd.f32 %v2396, %v2397
    %v2399 = vrot.slane %v2398, 2
    %v2400 = vadd.f32 %v2398, %v2399
    %v2401 = vrot.slane %v2400, 1
    %v2402 = vadd.f32 %v2400, %v2401
    %v2403 = vadd.f32 %v649, %v665
    %v2404 = vrot.slane %v2403, 4
    %v2405 = vadd.f32 %v2403, %v2404
    %v2406 = vrot.slane %v2405, 2
    %v2407 = vadd.f32 %v2405, %v2406
    %v2408 = vrot.slane %v2407, 1
    %v2409 = vadd.f32 %v2407, %v2408
    %v2410 = vadd.f32 %v650, %v666
    %v2411 = vrot.slane %v2410, 4
    %v2412 = vadd.f32 %v2410, %v2411
    %v2413 = vrot.slane %v2412, 2
    %v2414 = vadd.f32 %v2412, %v2413
    %v2415 = vrot.slane %v2414, 1
    %v2416 = vadd.f32 %v2414, %v2415
    %v2417 = vadd.f32 %v651, %v667
    %v2418 = vrot.slane %v2417, 4
    %v2419 = vadd.f32 %v2417, %v2418
    %v2420 = vrot.slane %v2419, 2
    %v2421 = vadd.f32 %v2419, %v2420
    %v2422 = vrot.slane %v2421, 1
    %v2423 = vadd.f32 %v2421, %v2422
    %v2424 = vadd.f32 %v652, %v668
    %v2425 = vrot.slane %v2424, 4
    %v2426 = vadd.f32 %v2424, %v2425
    %v2427 = vrot.slane %v2426, 2
    %v2428 = vadd.f32 %v2426, %v2427
    %v2429 = vrot.slane %v2428, 1
    %v2430 = vadd.f32 %v2428, %v2429
    %v2431 = vadd.f32 %v653, %v669
    %v2432 = vrot.slane %v2431, 4
    %v2433 = vadd.f32 %v2431, %v2432
    %v2434 = vrot.slane %v2433, 2
    %v2435 = vadd.f32 %v2433, %v2434
    %v2436 = vrot.slane %v2435, 1
    %v2437 = vadd.f32 %v2435, %v2436
    %v2438 = vadd.f32 %v654, %v670
    %v2439 = vrot.slane %v2438, 4
    %v2440 = vadd.f32 %v2438, %v2439
    %v2441 = vrot.slane %v2440, 2
    %v2442 = vadd.f32 %v2440, %v2441
    %v2443 = vrot.slane %v2442, 1
    %v2444 = vadd.f32 %v2442, %v2443
    %v2445 = vadd.f32 %v655, %v671
    %v2446 = vrot.slane %v2445, 4
    %v2447 = vadd.f32 %v2445, %v2446
    %v2448 = vrot.slane %v2447, 2
    %v2449 = vadd.f32 %v2447, %v2448
    %v2450 = vrot.slane %v2449, 1
    %v2451 = vadd.f32 %v2449, %v2450
    %v2452 = vadd.f32 %v656, %v672
    %v2453 = vrot.slane %v2452, 4
    %v2454 = vadd.f32 %v2452, %v2453
    %v2455 = vrot.slane %v2454, 2
    %v2456 = vadd.f32 %v2454, %v2455
    %v2457 = vrot.slane %v2456, 1
    %v2458 = vadd.f32 %v2456, %v2457
    %v2459 = vadd.f32 %v657, %v673
    %v2460 = vrot.slane %v2459, 4
    %v2461 = vadd.f32 %v2459, %v2460
    %v2462 = vrot.slane %v2461, 2
    %v2463 = vadd.f32 %v2461, %v2462
    %v2464 = vrot.slane %v2463, 1
    %v2465 = vadd.f32 %v2463, %v2464
    %v2466 = vmul.f32 %v680, 0.0625
    %v2467 = vmul.f32 %v687, 0.0625
    %v2468 = vmul.f32 %v694, 0.0625
    %v2469 = vmul.f32 %v701, 0.0625
    %v2470 = vmul.f32 %v708, 0.0625
    %v2471 = vmul.f32 %v715, 0.0625
    %v2472 = vmul.f32 %v722, 0.0625
    %v2473 = vmul.f32 %v729, 0.0625
    %v2474 = vmul.f32 %v736, 0.0625
    %v2475 = vmul.f32 %v743, 0.0625
    %v2476 = vmul.f32 %v750, 0.0625
    %v2477 = vmul.f32 %v757, 0.0625
    %v2478 = vmul.f32 %v764, 0.0625
    %v2479 = vmul.f32 %v771, 0.0625
    %v2480 = vmul.f32 %v778, 0.0625
    %v2481 = vmul.f32 %v785, 0.0625
    %v2482 = vmul.f32 %v792, 0.0625
    %v2483 = vmul.f32 %v799, 0.0625
    %v2484 = vmul.f32 %v806, 0.0625
    %v2485 = vmul.f32 %v813, 0.0625
    %v2486 = vmul.f32 %v820, 0.0625
    %v2487 = vmul.f32 %v827, 0.0625
    %v2488 = vmul.f32 %v834, 0.0625
    %v2489 = vmul.f32 %v841, 0.0625
    %v2490 = vmul.f32 %v848, 0.0625
    %v2491 = vmul.f32 %v855, 0.0625
    %v2492 = vmul.f32 %v862, 0.0625
    %v2493 = vmul.f32 %v869, 0.0625
    %v2494 = vmul.f32 %v876, 0.0625
    %v2495 = vmul.f32 %v883, 0.0625
    %v2496 = vmul.f32 %v890, 0.0625
    %v2497 = vmul.f32 %v897, 0.0625
    %v2498 = vmul.f32 %v904, 0.0625
    %v2499 = vmul.f32 %v911, 0.0625
    %v2500 = vmul.f32 %v918, 0.0625
    %v2501 = vmul.f32 %v925, 0.0625
    %v2502 = vmul.f32 %v932, 0.0625
    %v2503 = vmul.f32 %v939, 0.0625
    %v2504 = vmul.f32 %v946, 0.0625
    %v2505 = vmul.f32 %v953, 0.0625
    %v2506 = vmul.f32 %v960, 0.0625
    %v2507 = vmul.f32 %v967, 0.0625
    %v2508 = vmul.f32 %v974, 0.0625
    %v2509 = vmul.f32 %v981, 0.0625
    %v2510 = vmul.f32 %v988, 0.0625
    %v2511 = vmul.f32 %v995, 0.0625
    %v2512 = vmul.f32 %v1002, 0.0625
    %v2513 = vmul.f32 %v1009, 0.0625
    %v2514 = vmul.f32 %v1016, 0.0625
    %v2515 = vmul.f32 %v1023, 0.0625
    %v2516 = vmul.f32 %v1030, 0.0625
    %v2517 = vmul.f32 %v1037, 0.0625
    %v2518 = vmul.f32 %v1044, 0.0625
    %v2519 = vmul.f32 %v1051, 0.0625
    %v2520 = vmul.f32 %v1058, 0.0625
    %v2521 = vmul.f32 %v1065, 0.0625
    %v2522 = vmul.f32 %v1072, 0.0625
    %v2523 = vmul.f32 %v1079, 0.0625
    %v2524 = vmul.f32 %v1086, 0.0625
    %v2525 = vmul.f32 %v1093, 0.0625
    %v2526 = vmul.f32 %v1100, 0.0625
    %v2527 = vmul.f32 %v1107, 0.0625
    %v2528 = vmul.f32 %v1114, 0.0625
    %v2529 = vmul.f32 %v1121, 0.0625
    %v2530 = vmul.f32 %v1128, 0.0625
    %v2531 = vmul.f32 %v1135, 0.0625
    %v2532 = vmul.f32 %v1142, 0.0625
    %v2533 = vmul.f32 %v1149, 0.0625
    %v2534 = vmul.f32 %v1156, 0.0625
    %v2535 = vmul.f32 %v1163, 0.0625
    %v2536 = vmul.f32 %v1170, 0.0625
    %v2537 = vmul.f32 %v1177, 0.0625
    %v2538 = vmul.f32 %v1184, 0.0625
    %v2539 = vmul.f32 %v1191, 0.0625
    %v2540 = vmul.f32 %v1198, 0.0625
    %v2541 = vmul.f32 %v1205, 0.0625
    %v2542 = vmul.f32 %v1212, 0.0625
    %v2543 = vmul.f32 %v1219, 0.0625
    %v2544 = vmul.f32 %v1226, 0.0625
    %v2545 = vmul.f32 %v1233, 0.0625
    %v2546 = vmul.f32 %v1240, 0.0625
    %v2547 = vmul.f32 %v1247, 0.0625
    %v2548 = vmul.f32 %v1254, 0.0625
    %v2549 = vmul.f32 %v1261, 0.0625
    %v2550 = vmul.f32 %v1268, 0.0625
    %v2551 = vmul.f32 %v1275, 0.0625
    %v2552 = vmul.f32 %v1282, 0.0625
    %v2553 = vmul.f32 %v1289, 0.0625
    %v2554 = vmul.f32 %v1296, 0.0625
    %v2555 = vmul.f32 %v1303, 0.0625
    %v2556 = vmul.f32 %v1310, 0.0625
    %v2557 = vmul.f32 %v1317, 0.0625
    %v2558 = vmul.f32 %v1324, 0.0625
    %v2559 = vmul.f32 %v1331, 0.0625
    %v2560 = vmul.f32 %v1338, 0.0625
    %v2561 = vmul.f32 %v1345, 0.0625
    %v2562 = vmul.f32 %v1352, 0.0625
    %v2563 = vmul.f32 %v1359, 0.0625
    %v2564 = vmul.f32 %v1366, 0.0625
    %v2565 = vmul.f32 %v1373, 0.0625
    %v2566 = vmul.f32 %v1380, 0.0625
    %v2567 = vmul.f32 %v1387, 0.0625
    %v2568 = vmul.f32 %v1394, 0.0625
    %v2569 = vmul.f32 %v1401, 0.0625
    %v2570 = vmul.f32 %v1408, 0.0625
    %v2571 = vmul.f32 %v1415, 0.0625
    %v2572 = vmul.f32 %v1422, 0.0625
    %v2573 = vmul.f32 %v1429, 0.0625
    %v2574 = vmul.f32 %v1436, 0.0625
    %v2575 = vmul.f32 %v1443, 0.0625
    %v2576 = vmul.f32 %v1450, 0.0625
    %v2577 = vmul.f32 %v1457, 0.0625
    %v2578 = vmul.f32 %v1464, 0.0625
    %v2579 = vmul.f32 %v1471, 0.0625
    %v2580 = vmul.f32 %v1478, 0.0625
    %v2581 = vmul.f32 %v1485, 0.0625
    %v2582 = vmul.f32 %v1492, 0.0625
    %v2583 = vmul.f32 %v1499, 0.0625
    %v2584 = vmul.f32 %v1506, 0.0625
    %v2585 = vmul.f32 %v1513, 0.0625
    %v2586 = vmul.f32 %v1520, 0.0625
    %v2587 = vmul.f32 %v1527, 0.0625
    %v2588 = vmul.f32 %v1534, 0.0625
    %v2589 = vmul.f32 %v1541, 0.0625
    %v2590 = vmul.f32 %v1548, 0.0625
    %v2591 = vmul.f32 %v1555, 0.0625
    %v2592 = vmul.f32 %v1562, 0.0625
    %v2593 = vmul.f32 %v1569, 0.0625
    %v2594 = vmul.f32 %v1576, 0.0625
    %v2595 = vmul.f32 %v1583, 0.0625
    %v2596 = vmul.f32 %v1590, 0.0625
    %v2597 = vmul.f32 %v1597, 0.0625
    %v2598 = vmul.f32 %v1604, 0.0625
    %v2599 = vmul.f32 %v1611, 0.0625
    %v2600 = vmul.f32 %v1618, 0.0625
    %v2601 = vmul.f32 %v1625, 0.0625
    %v2602 = vmul.f32 %v1632, 0.0625
    %v2603 = vmul.f32 %v1639, 0.0625
    %v2604 = vmul.f32 %v1646, 0.0625
    %v2605 = vmul.f32 %v1653, 0.0625
    %v2606 = vmul.f32 %v1660, 0.0625
    %v2607 = vmul.f32 %v1667, 0.0625
    %v2608 = vmul.f32 %v1674, 0.0625
    %v2609 = vmul.f32 %v1681, 0.0625
    %v2610 = vmul.f32 %v1688, 0.0625
    %v2611 = vmul.f32 %v1695, 0.0625
    %v2612 = vmul.f32 %v1702, 0.0625
    %v2613 = vmul.f32 %v1709, 0.0625
    %v2614 = vmul.f32 %v1716, 0.0625
    %v2615 = vmul.f32 %v1723, 0.0625
    %v2616 = vmul.f32 %v1730, 0.0625
    %v2617 = vmul.f32 %v1737, 0.0625
    %v2618 = vmul.f32 %v1744, 0.0625
    %v2619 = vmul.f32 %v1751, 0.0625
    %v2620 = vmul.f32 %v1758, 0.0625
    %v2621 = vmul.f32 %v1765, 0.0625
    %v2622 = vmul.f32 %v1772, 0.0625
    %v2623 = vmul.f32 %v1779, 0.0625
    %v2624 = vmul.f32 %v1786, 0.0625
    %v2625 = vmul.f32 %v1793, 0.0625
    %v2626 = vmul.f32 %v1800, 0.0625
    %v2627 = vmul.f32 %v1807, 0.0625
    %v2628 = vmul.f32 %v1814, 0.0625
    %v2629 = vmul.f32 %v1821, 0.0625
    %v2630 = vmul.f32 %v1828, 0.0625
    %v2631 = vmul.f32 %v1835, 0.0625
    %v2632 = vmul.f32 %v1842, 0.0625
    %v2633 = vmul.f32 %v1849, 0.0625
    %v2634 = vmul.f32 %v1856, 0.0625
    %v2635 = vmul.f32 %v1863, 0.0625
    %v2636 = vmul.f32 %v1870, 0.0625
    %v2637 = vmul.f32 %v1877, 0.0625
    %v2638 = vmul.f32 %v1884, 0.0625
    %v2639 = vmul.f32 %v1891, 0.0625
    %v2640 = vmul.f32 %v1898, 0.0625
    %v2641 = vmul.f32 %v1905, 0.0625
    %v2642 = vmul.f32 %v1912, 0.0625
    %v2643 = vmul.f32 %v1919, 0.0625
    %v2644 = vmul.f32 %v1926, 0.0625
    %v2645 = vmul.f32 %v1933, 0.0625
    %v2646 = vmul.f32 %v1940, 0.0625
    %v2647 = vmul.f32 %v1947, 0.0625
    %v2648 = vmul.f32 %v1954, 0.0625
    %v2649 = vmul.f32 %v1961, 0.0625
    %v2650 = vmul.f32 %v1968, 0.0625
    %v2651 = vmul.f32 %v1975, 0.0625
    %v2652 = vmul.f32 %v1982, 0.0625
    %v2653 = vmul.f32 %v1989, 0.0625
    %v2654 = vmul.f32 %v1996, 0.0625
    %v2655 = vmul.f32 %v2003, 0.0625
    %v2656 = vmul.f32 %v2010, 0.0625
    %v2657 = vmul.f32 %v2017, 0.0625
    %v2658 = vmul.f32 %v2024, 0.0625
    %v2659 = vmul.f32 %v2031, 0.0625
    %v2660 = vmul.f32 %v2038, 0.0625
    %v2661 = vmul.f32 %v2045, 0.0625
    %v2662 = vmul.f32 %v2052, 0.0625
    %v2663 = vmul.f32 %v2059, 0.0625
    %v2664 = vmul.f32 %v2066, 0.0625
    %v2665 = vmul.f32 %v2073, 0.0625
    %v2666 = vmul.f32 %v2080, 0.0625
    %v2667 = vmul.f32 %v2087, 0.0625
    %v2668 = vmul.f32 %v2094, 0.0625
    %v2669 = vmul.f32 %v2101, 0.0625
    %v2670 = vmul.f32 %v2108, 0.0625
    %v2671 = vmul.f32 %v2115, 0.0625
    %v2672 = vmul.f32 %v2122, 0.0625
    %v2673 = vmul.f32 %v2129, 0.0625
    %v2674 = vmul.f32 %v2136, 0.0625
    %v2675 = vmul.f32 %v2143, 0.0625
    %v2676 = vmul.f32 %v2150, 0.0625
    %v2677 = vmul.f32 %v2157, 0.0625
    %v2678 = vmul.f32 %v2164, 0.0625
    %v2679 = vmul.f32 %v2171, 0.0625
    %v2680 = vmul.f32 %v2178, 0.0625
    %v2681 = vmul.f32 %v2185, 0.0625
    %v2682 = vmul.f32 %v2192, 0.0625
    %v2683 = vmul.f32 %v2199, 0.0625
    %v2684 = vmul.f32 %v2206, 0.0625
    %v2685 = vmul.f32 %v2213, 0.0625
    %v2686 = vmul.f32 %v2220, 0.0625
    %v2687 = vmul.f32 %v2227, 0.0625
    %v2688 = vmul.f32 %v2234, 0.0625
    %v2689 = vmul.f32 %v2241, 0.0625
    %v2690 = vmul.f32 %v2248, 0.0625
    %v2691 = vmul.f32 %v2255, 0.0625
    %v2692 = vmul.f32 %v2262, 0.0625
    %v2693 = vmul.f32 %v2269, 0.0625
    %v2694 = vmul.f32 %v2276, 0.0625
    %v2695 = vmul.f32 %v2283, 0.0625
    %v2696 = vmul.f32 %v2290, 0.0625
    %v2697 = vmul.f32 %v2297, 0.0625
    %v2698 = vmul.f32 %v2304, 0.0625
    %v2699 = vmul.f32 %v2311, 0.0625
    %v2700 = vmul.f32 %v2318, 0.0625
    %v2701 = vmul.f32 %v2325, 0.0625
    %v2702 = vmul.f32 %v2332, 0.0625
    %v2703 = vmul.f32 %v2339, 0.0625
    %v2704 = vmul.f32 %v2346, 0.0625
    %v2705 = vmul.f32 %v2353, 0.0625
    %v2706 = vmul.f32 %v2360, 0.0625
    %v2707 = vmul.f32 %v2367, 0.0625
    %v2708 = vmul.f32 %v2374, 0.0625
    %v2709 = vmul.f32 %v2381, 0.0625
    %v2710 = vmul.f32 %v2388, 0.0625
    %v2711 = vmul.f32 %v2395, 0.0625
    %v2712 = vmul.f32 %v2402, 0.0625
    %v2713 = vmul.f32 %v2409, 0.0625
    %v2714 = vmul.f32 %v2416, 0.0625
    %v2715 = vmul.f32 %v2423, 0.0625
    %v2716 = vmul.f32 %v2430, 0.0625
    %v2717 = vmul.f32 %v2437, 0.0625
    %v2718 = vmul.f32 %v2444, 0.0625
    %v2719 = vmul.f32 %v2451, 0.0625
    %v2720 = vmul.f32 %v2458, 0.0625
    %v2721 = vmul.f32 %v2465, 0.0625
    %v2722 = vpack.c.bf16 %v2466, %v2466
    %v2723 = vpack.c.bf16 %v2467, %v2467
    %v2724 = vpack.c.bf16 %v2468, %v2468
    %v2725 = vpack.c.bf16 %v2469, %v2469
    %v2726 = vpack.c.bf16 %v2470, %v2470
    %v2727 = vpack.c.bf16 %v2471, %v2471
    %v2728 = vpack.c.bf16 %v2472, %v2472
    %v2729 = vpack.c.bf16 %v2473, %v2473
    %v2730 = vpack.c.bf16 %v2474, %v2474
    %v2731 = vpack.c.bf16 %v2475, %v2475
    %v2732 = vpack.c.bf16 %v2476, %v2476
    %v2733 = vpack.c.bf16 %v2477, %v2477
    %v2734 = vpack.c.bf16 %v2478, %v2478
    %v2735 = vpack.c.bf16 %v2479, %v2479
    %v2736 = vpack.c.bf16 %v2480, %v2480
    %v2737 = vpack.c.bf16 %v2481, %v2481
    %v2738 = vpack.c.bf16 %v2482, %v2482
    %v2739 = vpack.c.bf16 %v2483, %v2483
    %v2740 = vpack.c.bf16 %v2484, %v2484
    %v2741 = vpack.c.bf16 %v2485, %v2485
    %v2742 = vpack.c.bf16 %v2486, %v2486
    %v2743 = vpack.c.bf16 %v2487, %v2487
    %v2744 = vpack.c.bf16 %v2488, %v2488
    %v2745 = vpack.c.bf16 %v2489, %v2489
    %v2746 = vpack.c.bf16 %v2490, %v2490
    %v2747 = vpack.c.bf16 %v2491, %v2491
    %v2748 = vpack.c.bf16 %v2492, %v2492
    %v2749 = vpack.c.bf16 %v2493, %v2493
    %v2750 = vpack.c.bf16 %v2494, %v2494
    %v2751 = vpack.c.bf16 %v2495, %v2495
    %v2752 = vpack.c.bf16 %v2496, %v2496
    %v2753 = vpack.c.bf16 %v2497, %v2497
    %v2754 = vpack.c.bf16 %v2498, %v2498
    %v2755 = vpack.c.bf16 %v2499, %v2499
    %v2756 = vpack.c.bf16 %v2500, %v2500
    %v2757 = vpack.c.bf16 %v2501, %v2501
    %v2758 = vpack.c.bf16 %v2502, %v2502
    %v2759 = vpack.c.bf16 %v2503, %v2503
    %v2760 = vpack.c.bf16 %v2504, %v2504
    %v2761 = vpack.c.bf16 %v2505, %v2505
    %v2762 = vpack.c.bf16 %v2506, %v2506
    %v2763 = vpack.c.bf16 %v2507, %v2507
    %v2764 = vpack.c.bf16 %v2508, %v2508
    %v2765 = vpack.c.bf16 %v2509, %v2509
    %v2766 = vpack.c.bf16 %v2510, %v2510
    %v2767 = vpack.c.bf16 %v2511, %v2511
    %v2768 = vpack.c.bf16 %v2512, %v2512
    %v2769 = vpack.c.bf16 %v2513, %v2513
    %v2770 = vpack.c.bf16 %v2514, %v2514
    %v2771 = vpack.c.bf16 %v2515, %v2515
    %v2772 = vpack.c.bf16 %v2516, %v2516
    %v2773 = vpack.c.bf16 %v2517, %v2517
    %v2774 = vpack.c.bf16 %v2518, %v2518
    %v2775 = vpack.c.bf16 %v2519, %v2519
    %v2776 = vpack.c.bf16 %v2520, %v2520
    %v2777 = vpack.c.bf16 %v2521, %v2521
    %v2778 = vpack.c.bf16 %v2522, %v2522
    %v2779 = vpack.c.bf16 %v2523, %v2523
    %v2780 = vpack.c.bf16 %v2524, %v2524
    %v2781 = vpack.c.bf16 %v2525, %v2525
    %v2782 = vpack.c.bf16 %v2526, %v2526
    %v2783 = vpack.c.bf16 %v2527, %v2527
    %v2784 = vpack.c.bf16 %v2528, %v2528
    %v2785 = vpack.c.bf16 %v2529, %v2529
    %v2786 = vpack.c.bf16 %v2530, %v2530
    %v2787 = vpack.c.bf16 %v2531, %v2531
    %v2788 = vpack.c.bf16 %v2532, %v2532
    %v2789 = vpack.c.bf16 %v2533, %v2533
    %v2790 = vpack.c.bf16 %v2534, %v2534
    %v2791 = vpack.c.bf16 %v2535, %v2535
    %v2792 = vpack.c.bf16 %v2536, %v2536
    %v2793 = vpack.c.bf16 %v2537, %v2537
    %v2794 = vpack.c.bf16 %v2538, %v2538
    %v2795 = vpack.c.bf16 %v2539, %v2539
    %v2796 = vpack.c.bf16 %v2540, %v2540
    %v2797 = vpack.c.bf16 %v2541, %v2541
    %v2798 = vpack.c.bf16 %v2542, %v2542
    %v2799 = vpack.c.bf16 %v2543, %v2543
    %v2800 = vpack.c.bf16 %v2544, %v2544
    %v2801 = vpack.c.bf16 %v2545, %v2545
    %v2802 = vpack.c.bf16 %v2546, %v2546
    %v2803 = vpack.c.bf16 %v2547, %v2547
    %v2804 = vpack.c.bf16 %v2548, %v2548
    %v2805 = vpack.c.bf16 %v2549, %v2549
    %v2806 = vpack.c.bf16 %v2550, %v2550
    %v2807 = vpack.c.bf16 %v2551, %v2551
    %v2808 = vpack.c.bf16 %v2552, %v2552
    %v2809 = vpack.c.bf16 %v2553, %v2553
    %v2810 = vpack.c.bf16 %v2554, %v2554
    %v2811 = vpack.c.bf16 %v2555, %v2555
    %v2812 = vpack.c.bf16 %v2556, %v2556
    %v2813 = vpack.c.bf16 %v2557, %v2557
    %v2814 = vpack.c.bf16 %v2558, %v2558
    %v2815 = vpack.c.bf16 %v2559, %v2559
    %v2816 = vpack.c.bf16 %v2560, %v2560
    %v2817 = vpack.c.bf16 %v2561, %v2561
    %v2818 = vpack.c.bf16 %v2562, %v2562
    %v2819 = vpack.c.bf16 %v2563, %v2563
    %v2820 = vpack.c.bf16 %v2564, %v2564
    %v2821 = vpack.c.bf16 %v2565, %v2565
    %v2822 = vpack.c.bf16 %v2566, %v2566
    %v2823 = vpack.c.bf16 %v2567, %v2567
    %v2824 = vpack.c.bf16 %v2568, %v2568
    %v2825 = vpack.c.bf16 %v2569, %v2569
    %v2826 = vpack.c.bf16 %v2570, %v2570
    %v2827 = vpack.c.bf16 %v2571, %v2571
    %v2828 = vpack.c.bf16 %v2572, %v2572
    %v2829 = vpack.c.bf16 %v2573, %v2573
    %v2830 = vpack.c.bf16 %v2574, %v2574
    %v2831 = vpack.c.bf16 %v2575, %v2575
    %v2832 = vpack.c.bf16 %v2576, %v2576
    %v2833 = vpack.c.bf16 %v2577, %v2577
    %v2834 = vpack.c.bf16 %v2578, %v2578
    %v2835 = vpack.c.bf16 %v2579, %v2579
    %v2836 = vpack.c.bf16 %v2580, %v2580
    %v2837 = vpack.c.bf16 %v2581, %v2581
    %v2838 = vpack.c.bf16 %v2582, %v2582
    %v2839 = vpack.c.bf16 %v2583, %v2583
    %v2840 = vpack.c.bf16 %v2584, %v2584
    %v2841 = vpack.c.bf16 %v2585, %v2585
    %v2842 = vpack.c.bf16 %v2586, %v2586
    %v2843 = vpack.c.bf16 %v2587, %v2587
    %v2844 = vpack.c.bf16 %v2588, %v2588
    %v2845 = vpack.c.bf16 %v2589, %v2589
    %v2846 = vpack.c.bf16 %v2590, %v2590
    %v2847 = vpack.c.bf16 %v2591, %v2591
    %v2848 = vpack.c.bf16 %v2592, %v2592
    %v2849 = vpack.c.bf16 %v2593, %v2593
    %v2850 = vpack.c.bf16 %v2594, %v2594
    %v2851 = vpack.c.bf16 %v2595, %v2595
    %v2852 = vpack.c.bf16 %v2596, %v2596
    %v2853 = vpack.c.bf16 %v2597, %v2597
    %v2854 = vpack.c.bf16 %v2598, %v2598
    %v2855 = vpack.c.bf16 %v2599, %v2599
    %v2856 = vpack.c.bf16 %v2600, %v2600
    %v2857 = vpack.c.bf16 %v2601, %v2601
    %v2858 = vpack.c.bf16 %v2602, %v2602
    %v2859 = vpack.c.bf16 %v2603, %v2603
    %v2860 = vpack.c.bf16 %v2604, %v2604
    %v2861 = vpack.c.bf16 %v2605, %v2605
    %v2862 = vpack.c.bf16 %v2606, %v2606
    %v2863 = vpack.c.bf16 %v2607, %v2607
    %v2864 = vpack.c.bf16 %v2608, %v2608
    %v2865 = vpack.c.bf16 %v2609, %v2609
    %v2866 = vpack.c.bf16 %v2610, %v2610
    %v2867 = vpack.c.bf16 %v2611, %v2611
    %v2868 = vpack.c.bf16 %v2612, %v2612
    %v2869 = vpack.c.bf16 %v2613, %v2613
    %v2870 = vpack.c.bf16 %v2614, %v2614
    %v2871 = vpack.c.bf16 %v2615, %v2615
    %v2872 = vpack.c.bf16 %v2616, %v2616
    %v2873 = vpack.c.bf16 %v2617, %v2617
    %v2874 = vpack.c.bf16 %v2618, %v2618
    %v2875 = vpack.c.bf16 %v2619, %v2619
    %v2876 = vpack.c.bf16 %v2620, %v2620
    %v2877 = vpack.c.bf16 %v2621, %v2621
    %v2878 = vpack.c.bf16 %v2622, %v2622
    %v2879 = vpack.c.bf16 %v2623, %v2623
    %v2880 = vpack.c.bf16 %v2624, %v2624
    %v2881 = vpack.c.bf16 %v2625, %v2625
    %v2882 = vpack.c.bf16 %v2626, %v2626
    %v2883 = vpack.c.bf16 %v2627, %v2627
    %v2884 = vpack.c.bf16 %v2628, %v2628
    %v2885 = vpack.c.bf16 %v2629, %v2629
    %v2886 = vpack.c.bf16 %v2630, %v2630
    %v2887 = vpack.c.bf16 %v2631, %v2631
    %v2888 = vpack.c.bf16 %v2632, %v2632
    %v2889 = vpack.c.bf16 %v2633, %v2633
    %v2890 = vpack.c.bf16 %v2634, %v2634
    %v2891 = vpack.c.bf16 %v2635, %v2635
    %v2892 = vpack.c.bf16 %v2636, %v2636
    %v2893 = vpack.c.bf16 %v2637, %v2637
    %v2894 = vpack.c.bf16 %v2638, %v2638
    %v2895 = vpack.c.bf16 %v2639, %v2639
    %v2896 = vpack.c.bf16 %v2640, %v2640
    %v2897 = vpack.c.bf16 %v2641, %v2641
    %v2898 = vpack.c.bf16 %v2642, %v2642
    %v2899 = vpack.c.bf16 %v2643, %v2643
    %v2900 = vpack.c.bf16 %v2644, %v2644
    %v2901 = vpack.c.bf16 %v2645, %v2645
    %v2902 = vpack.c.bf16 %v2646, %v2646
    %v2903 = vpack.c.bf16 %v2647, %v2647
    %v2904 = vpack.c.bf16 %v2648, %v2648
    %v2905 = vpack.c.bf16 %v2649, %v2649
    %v2906 = vpack.c.bf16 %v2650, %v2650
    %v2907 = vpack.c.bf16 %v2651, %v2651
    %v2908 = vpack.c.bf16 %v2652, %v2652
    %v2909 = vpack.c.bf16 %v2653, %v2653
    %v2910 = vpack.c.bf16 %v2654, %v2654
    %v2911 = vpack.c.bf16 %v2655, %v2655
    %v2912 = vpack.c.bf16 %v2656, %v2656
    %v2913 = vpack.c.bf16 %v2657, %v2657
    %v2914 = vpack.c.bf16 %v2658, %v2658
    %v2915 = vpack.c.bf16 %v2659, %v2659
    %v2916 = vpack.c.bf16 %v2660, %v2660
    %v2917 = vpack.c.bf16 %v2661, %v2661
    %v2918 = vpack.c.bf16 %v2662, %v2662
    %v2919 = vpack.c.bf16 %v2663, %v2663
    %v2920 = vpack.c.bf16 %v2664, %v2664
    %v2921 = vpack.c.bf16 %v2665, %v2665
    %v2922 = vpack.c.bf16 %v2666, %v2666
    %v2923 = vpack.c.bf16 %v2667, %v2667
    %v2924 = vpack.c.bf16 %v2668, %v2668
    %v2925 = vpack.c.bf16 %v2669, %v2669
    %v2926 = vpack.c.bf16 %v2670, %v2670
    %v2927 = vpack.c.bf16 %v2671, %v2671
    %v2928 = vpack.c.bf16 %v2672, %v2672
    %v2929 = vpack.c.bf16 %v2673, %v2673
    %v2930 = vpack.c.bf16 %v2674, %v2674
    %v2931 = vpack.c.bf16 %v2675, %v2675
    %v2932 = vpack.c.bf16 %v2676, %v2676
    %v2933 = vpack.c.bf16 %v2677, %v2677
    %v2934 = vpack.c.bf16 %v2678, %v2678
    %v2935 = vpack.c.bf16 %v2679, %v2679
    %v2936 = vpack.c.bf16 %v2680, %v2680
    %v2937 = vpack.c.bf16 %v2681, %v2681
    %v2938 = vpack.c.bf16 %v2682, %v2682
    %v2939 = vpack.c.bf16 %v2683, %v2683
    %v2940 = vpack.c.bf16 %v2684, %v2684
    %v2941 = vpack.c.bf16 %v2685, %v2685
    %v2942 = vpack.c.bf16 %v2686, %v2686
    %v2943 = vpack.c.bf16 %v2687, %v2687
    %v2944 = vpack.c.bf16 %v2688, %v2688
    %v2945 = vpack.c.bf16 %v2689, %v2689
    %v2946 = vpack.c.bf16 %v2690, %v2690
    %v2947 = vpack.c.bf16 %v2691, %v2691
    %v2948 = vpack.c.bf16 %v2692, %v2692
    %v2949 = vpack.c.bf16 %v2693, %v2693
    %v2950 = vpack.c.bf16 %v2694, %v2694
    %v2951 = vpack.c.bf16 %v2695, %v2695
    %v2952 = vpack.c.bf16 %v2696, %v2696
    %v2953 = vpack.c.bf16 %v2697, %v2697
    %v2954 = vpack.c.bf16 %v2698, %v2698
    %v2955 = vpack.c.bf16 %v2699, %v2699
    %v2956 = vpack.c.bf16 %v2700, %v2700
    %v2957 = vpack.c.bf16 %v2701, %v2701
    %v2958 = vpack.c.bf16 %v2702, %v2702
    %v2959 = vpack.c.bf16 %v2703, %v2703
    %v2960 = vpack.c.bf16 %v2704, %v2704
    %v2961 = vpack.c.bf16 %v2705, %v2705
    %v2962 = vpack.c.bf16 %v2706, %v2706
    %v2963 = vpack.c.bf16 %v2707, %v2707
    %v2964 = vpack.c.bf16 %v2708, %v2708
    %v2965 = vpack.c.bf16 %v2709, %v2709
    %v2966 = vpack.c.bf16 %v2710, %v2710
    %v2967 = vpack.c.bf16 %v2711, %v2711
    %v2968 = vpack.c.bf16 %v2712, %v2712
    %v2969 = vpack.c.bf16 %v2713, %v2713
    %v2970 = vpack.c.bf16 %v2714, %v2714
    %v2971 = vpack.c.bf16 %v2715, %v2715
    %v2972 = vpack.c.bf16 %v2716, %v2716
    %v2973 = vpack.c.bf16 %v2717, %v2717
    %v2974 = vpack.c.bf16 %v2718, %v2718
    %v2975 = vpack.c.bf16 %v2719, %v2719
    %v2976 = vpack.c.bf16 %v2720, %v2720
    %v2977 = vpack.c.bf16 %v2721, %v2721
    %v2978 = vld [vmem:[#allocation4] sm:$0xff]
    %v2979 = vld [vmem:[#allocation4 + $0x8] sm:$0xff]
    %v2980 = vld [vmem:[#allocation4 + $0x10] sm:$0xff]
    %v2981 = vld [vmem:[#allocation4 + $0x18] sm:$0xff]
    %v2982 = vld [vmem:[#allocation4 + $0x20] sm:$0xff]
    %v2983 = vld [vmem:[#allocation4 + $0x28] sm:$0xff]
    %v2984 = vld [vmem:[#allocation4 + $0x30] sm:$0xff]
    %v2985 = vld [vmem:[#allocation4 + $0x38] sm:$0xff]
    %v2986 = vld [vmem:[#allocation4 + $0x40] sm:$0xff]
    %v2987 = vld [vmem:[#allocation4 + $0x48] sm:$0xff]
    %v2988 = vld [vmem:[#allocation4 + $0x50] sm:$0xff]
    %v2989 = vld [vmem:[#allocation4 + $0x58] sm:$0xff]
    %v2990 = vld [vmem:[#allocation4 + $0x60] sm:$0xff]
    %v2991 = vld [vmem:[#allocation4 + $0x68] sm:$0xff]
    %v2992 = vld [vmem:[#allocation4 + $0x70] sm:$0xff]
    %v2993 = vld [vmem:[#allocation4 + $0x78] sm:$0xff]
    %v2994 = vld [vmem:[#allocation4 + $0x80] sm:$0xff]
    %v2995 = vld [vmem:[#allocation4 + $0x88] sm:$0xff]
    %v2996 = vld [vmem:[#allocation4 + $0x90] sm:$0xff]
    %v2997 = vld [vmem:[#allocation4 + $0x98] sm:$0xff]
    %v2998 = vld [vmem:[#allocation4 + $0xa0] sm:$0xff]
    %v2999 = vld [vmem:[#allocation4 + $0xa8] sm:$0xff]
    %v3000 = vld [vmem:[#allocation4 + $0xb0] sm:$0xff]
    %v3001 = vld [vmem:[#allocation4 + $0xb8] sm:$0xff]
    %v3002 = vld [vmem:[#allocation4 + $0xc0] sm:$0xff]
    %v3003 = vld [vmem:[#allocation4 + $0xc8] sm:$0xff]
    %v3004 = vld [vmem:[#allocation4 + $0xd0] sm:$0xff]
    %v3005 = vld [vmem:[#allocation4 + $0xd8] sm:$0xff]
    %v3006 = vld [vmem:[#allocation4 + $0xe0] sm:$0xff]
    %v3007 = vld [vmem:[#allocation4 + $0xe8] sm:$0xff]
    %v3008 = vld [vmem:[#allocation4 + $0xf0] sm:$0xff]
    %v3009 = vld [vmem:[#allocation4 + $0xf8] sm:$0xff]
    %v3010 = vld [vmem:[#allocation4 + $0x100] sm:$0xff]
    %v3011 = vld [vmem:[#allocation4 + $0x108] sm:$0xff]
    %v3012 = vld [vmem:[#allocation4 + $0x110] sm:$0xff]
    %v3013 = vld [vmem:[#allocation4 + $0x118] sm:$0xff]
    %v3014 = vld [vmem:[#allocation4 + $0x120] sm:$0xff]
    %v3015 = vld [vmem:[#allocation4 + $0x128] sm:$0xff]
    %v3016 = vld [vmem:[#allocation4 + $0x130] sm:$0xff]
    %v3017 = vld [vmem:[#allocation4 + $0x138] sm:$0xff]
    %v3018 = vld [vmem:[#allocation4 + $0x140] sm:$0xff]
    %v3019 = vld [vmem:[#allocation4 + $0x148] sm:$0xff]
    %v3020 = vld [vmem:[#allocation4 + $0x150] sm:$0xff]
    %v3021 = vld [vmem:[#allocation4 + $0x158] sm:$0xff]
    %v3022 = vld [vmem:[#allocation4 + $0x160] sm:$0xff]
    %v3023 = vld [vmem:[#allocation4 + $0x168] sm:$0xff]
    %v3024 = vld [vmem:[#allocation4 + $0x170] sm:$0xff]
    %v3025 = vld [vmem:[#allocation4 + $0x178] sm:$0xff]
    %v3026 = vld [vmem:[#allocation4 + $0x180] sm:$0xff]
    %v3027 = vld [vmem:[#allocation4 + $0x188] sm:$0xff]
    %v3028 = vld [vmem:[#allocation4 + $0x190] sm:$0xff]
    %v3029 = vld [vmem:[#allocation4 + $0x198] sm:$0xff]
    %v3030 = vld [vmem:[#allocation4 + $0x1a0] sm:$0xff]
    %v3031 = vld [vmem:[#allocation4 + $0x1a8] sm:$0xff]
    %v3032 = vld [vmem:[#allocation4 + $0x1b0] sm:$0xff]
    %v3033 = vld [vmem:[#allocation4 + $0x1b8] sm:$0xff]
    %v3034 = vld [vmem:[#allocation4 + $0x1c0] sm:$0xff]
    %v3035 = vld [vmem:[#allocation4 + $0x1c8] sm:$0xff]
    %v3036 = vld [vmem:[#allocation4 + $0x1d0] sm:$0xff]
    %v3037 = vld [vmem:[#allocation4 + $0x1d8] sm:$0xff]
    %v3038 = vld [vmem:[#allocation4 + $0x1e0] sm:$0xff]
    %v3039 = vld [vmem:[#allocation4 + $0x1e8] sm:$0xff]
    %v3040 = vld [vmem:[#allocation4 + $0x1f0] sm:$0xff]
    %v3041 = vld [vmem:[#allocation4 + $0x1f8] sm:$0xff]
    %v3042 = vld [vmem:[#allocation4 + $0x200] sm:$0xff]
    %v3043 = vld [vmem:[#allocation4 + $0x208] sm:$0xff]
    %v3044 = vld [vmem:[#allocation4 + $0x210] sm:$0xff]
    %v3045 = vld [vmem:[#allocation4 + $0x218] sm:$0xff]
    %v3046 = vld [vmem:[#allocation4 + $0x220] sm:$0xff]
    %v3047 = vld [vmem:[#allocation4 + $0x228] sm:$0xff]
    %v3048 = vld [vmem:[#allocation4 + $0x230] sm:$0xff]
    %v3049 = vld [vmem:[#allocation4 + $0x238] sm:$0xff]
    %v3050 = vld [vmem:[#allocation4 + $0x240] sm:$0xff]
    %v3051 = vld [vmem:[#allocation4 + $0x248] sm:$0xff]
    %v3052 = vld [vmem:[#allocation4 + $0x250] sm:$0xff]
    %v3053 = vld [vmem:[#allocation4 + $0x258] sm:$0xff]
    %v3054 = vld [vmem:[#allocation4 + $0x260] sm:$0xff]
    %v3055 = vld [vmem:[#allocation4 + $0x268] sm:$0xff]
    %v3056 = vld [vmem:[#allocation4 + $0x270] sm:$0xff]
    %v3057 = vld [vmem:[#allocation4 + $0x278] sm:$0xff]
    %v3058 = vld [vmem:[#allocation4 + $0x280] sm:$0xff]
    %v3059 = vld [vmem:[#allocation4 + $0x288] sm:$0xff]
    %v3060 = vld [vmem:[#allocation4 + $0x290] sm:$0xff]
    %v3061 = vld [vmem:[#allocation4 + $0x298] sm:$0xff]
    %v3062 = vld [vmem:[#allocation4 + $0x2a0] sm:$0xff]
    %v3063 = vld [vmem:[#allocation4 + $0x2a8] sm:$0xff]
    %v3064 = vld [vmem:[#allocation4 + $0x2b0] sm:$0xff]
    %v3065 = vld [vmem:[#allocation4 + $0x2b8] sm:$0xff]
    %v3066 = vld [vmem:[#allocation4 + $0x2c0] sm:$0xff]
    %v3067 = vld [vmem:[#allocation4 + $0x2c8] sm:$0xff]
    %v3068 = vld [vmem:[#allocation4 + $0x2d0] sm:$0xff]
    %v3069 = vld [vmem:[#allocation4 + $0x2d8] sm:$0xff]
    %v3070 = vld [vmem:[#allocation4 + $0x2e0] sm:$0xff]
    %v3071 = vld [vmem:[#allocation4 + $0x2e8] sm:$0xff]
    %v3072 = vld [vmem:[#allocation4 + $0x2f0] sm:$0xff]
    %v3073 = vld [vmem:[#allocation4 + $0x2f8] sm:$0xff]
    %v3074 = vld [vmem:[#allocation4 + $0x300] sm:$0xff]
    %v3075 = vld [vmem:[#allocation4 + $0x308] sm:$0xff]
    %v3076 = vld [vmem:[#allocation4 + $0x310] sm:$0xff]
    %v3077 = vld [vmem:[#allocation4 + $0x318] sm:$0xff]
    %v3078 = vld [vmem:[#allocation4 + $0x320] sm:$0xff]
    %v3079 = vld [vmem:[#allocation4 + $0x328] sm:$0xff]
    %v3080 = vld [vmem:[#allocation4 + $0x330] sm:$0xff]
    %v3081 = vld [vmem:[#allocation4 + $0x338] sm:$0xff]
    %v3082 = vld [vmem:[#allocation4 + $0x340] sm:$0xff]
    %v3083 = vld [vmem:[#allocation4 + $0x348] sm:$0xff]
    %v3084 = vld [vmem:[#allocation4 + $0x350] sm:$0xff]
    %v3085 = vld [vmem:[#allocation4 + $0x358] sm:$0xff]
    %v3086 = vld [vmem:[#allocation4 + $0x360] sm:$0xff]
    %v3087 = vld [vmem:[#allocation4 + $0x368] sm:$0xff]
    %v3088 = vld [vmem:[#allocation4 + $0x370] sm:$0xff]
    %v3089 = vld [vmem:[#allocation4 + $0x378] sm:$0xff]
    %v3090 = vld [vmem:[#allocation4 + $0x380] sm:$0xff]
    %v3091 = vld [vmem:[#allocation4 + $0x388] sm:$0xff]
    %v3092 = vld [vmem:[#allocation4 + $0x390] sm:$0xff]
    %v3093 = vld [vmem:[#allocation4 + $0x398] sm:$0xff]
    %v3094 = vld [vmem:[#allocation4 + $0x3a0] sm:$0xff]
    %v3095 = vld [vmem:[#allocation4 + $0x3a8] sm:$0xff]
    %v3096 = vld [vmem:[#allocation4 + $0x3b0] sm:$0xff]
    %v3097 = vld [vmem:[#allocation4 + $0x3b8] sm:$0xff]
    %v3098 = vld [vmem:[#allocation4 + $0x3c0] sm:$0xff]
    %v3099 = vld [vmem:[#allocation4 + $0x3c8] sm:$0xff]
    %v3100 = vld [vmem:[#allocation4 + $0x3d0] sm:$0xff]
    %v3101 = vld [vmem:[#allocation4 + $0x3d8] sm:$0xff]
    %v3102 = vld [vmem:[#allocation4 + $0x3e0] sm:$0xff]
    %v3103 = vld [vmem:[#allocation4 + $0x3e8] sm:$0xff]
    %v3104 = vld [vmem:[#allocation4 + $0x3f0] sm:$0xff]
    %v3105 = vld [vmem:[#allocation4 + $0x3f8] sm:$0xff]
    %v3106 = vld [vmem:[#allocation4 + $0x400] sm:$0xff]
    %v3107 = vld [vmem:[#allocation4 + $0x408] sm:$0xff]
    %v3108 = vld [vmem:[#allocation4 + $0x410] sm:$0xff]
    %v3109 = vld [vmem:[#allocation4 + $0x418] sm:$0xff]
    %v3110 = vld [vmem:[#allocation4 + $0x420] sm:$0xff]
    %v3111 = vld [vmem:[#allocation4 + $0x428] sm:$0xff]
    %v3112 = vld [vmem:[#allocation4 + $0x430] sm:$0xff]
    %v3113 = vld [vmem:[#allocation4 + $0x438] sm:$0xff]
    %v3114 = vld [vmem:[#allocation4 + $0x440] sm:$0xff]
    %v3115 = vld [vmem:[#allocation4 + $0x448] sm:$0xff]
    %v3116 = vld [vmem:[#allocation4 + $0x450] sm:$0xff]
    %v3117 = vld [vmem:[#allocation4 + $0x458] sm:$0xff]
    %v3118 = vld [vmem:[#allocation4 + $0x460] sm:$0xff]
    %v3119 = vld [vmem:[#allocation4 + $0x468] sm:$0xff]
    %v3120 = vld [vmem:[#allocation4 + $0x470] sm:$0xff]
    %v3121 = vld [vmem:[#allocation4 + $0x478] sm:$0xff]
    %v3122 = vld [vmem:[#allocation4 + $0x480] sm:$0xff]
    %v3123 = vld [vmem:[#allocation4 + $0x488] sm:$0xff]
    %v3124 = vld [vmem:[#allocation4 + $0x490] sm:$0xff]
    %v3125 = vld [vmem:[#allocation4 + $0x498] sm:$0xff]
    %v3126 = vld [vmem:[#allocation4 + $0x4a0] sm:$0xff]
    %v3127 = vld [vmem:[#allocation4 + $0x4a8] sm:$0xff]
    %v3128 = vld [vmem:[#allocation4 + $0x4b0] sm:$0xff]
    %v3129 = vld [vmem:[#allocation4 + $0x4b8] sm:$0xff]
    %v3130 = vld [vmem:[#allocation4 + $0x4c0] sm:$0xff]
    %v3131 = vld [vmem:[#allocation4 + $0x4c8] sm:$0xff]
    %v3132 = vld [vmem:[#allocation4 + $0x4d0] sm:$0xff]
    %v3133 = vld [vmem:[#allocation4 + $0x4d8] sm:$0xff]
    %v3134 = vld [vmem:[#allocation4 + $0x4e0] sm:$0xff]
    %v3135 = vld [vmem:[#allocation4 + $0x4e8] sm:$0xff]
    %v3136 = vld [vmem:[#allocation4 + $0x4f0] sm:$0xff]
    %v3137 = vld [vmem:[#allocation4 + $0x4f8] sm:$0xff]
    %v3138 = vld [vmem:[#allocation4 + $0x500] sm:$0xff]
    %v3139 = vld [vmem:[#allocation4 + $0x508] sm:$0xff]
    %v3140 = vld [vmem:[#allocation4 + $0x510] sm:$0xff]
    %v3141 = vld [vmem:[#allocation4 + $0x518] sm:$0xff]
    %v3142 = vld [vmem:[#allocation4 + $0x520] sm:$0xff]
    %v3143 = vld [vmem:[#allocation4 + $0x528] sm:$0xff]
    %v3144 = vld [vmem:[#allocation4 + $0x530] sm:$0xff]
    %v3145 = vld [vmem:[#allocation4 + $0x538] sm:$0xff]
    %v3146 = vld [vmem:[#allocation4 + $0x540] sm:$0xff]
    %v3147 = vld [vmem:[#allocation4 + $0x548] sm:$0xff]
    %v3148 = vld [vmem:[#allocation4 + $0x550] sm:$0xff]
    %v3149 = vld [vmem:[#allocation4 + $0x558] sm:$0xff]
    %v3150 = vld [vmem:[#allocation4 + $0x560] sm:$0xff]
    %v3151 = vld [vmem:[#allocation4 + $0x568] sm:$0xff]
    %v3152 = vld [vmem:[#allocation4 + $0x570] sm:$0xff]
    %v3153 = vld [vmem:[#allocation4 + $0x578] sm:$0xff]
    %v3154 = vld [vmem:[#allocation4 + $0x580] sm:$0xff]
    %v3155 = vld [vmem:[#allocation4 + $0x588] sm:$0xff]
    %v3156 = vld [vmem:[#allocation4 + $0x590] sm:$0xff]
    %v3157 = vld [vmem:[#allocation4 + $0x598] sm:$0xff]
    %v3158 = vld [vmem:[#allocation4 + $0x5a0] sm:$0xff]
    %v3159 = vld [vmem:[#allocation4 + $0x5a8] sm:$0xff]
    %v3160 = vld [vmem:[#allocation4 + $0x5b0] sm:$0xff]
    %v3161 = vld [vmem:[#allocation4 + $0x5b8] sm:$0xff]
    %v3162 = vld [vmem:[#allocation4 + $0x5c0] sm:$0xff]
    %v3163 = vld [vmem:[#allocation4 + $0x5c8] sm:$0xff]
    %v3164 = vld [vmem:[#allocation4 + $0x5d0] sm:$0xff]
    %v3165 = vld [vmem:[#allocation4 + $0x5d8] sm:$0xff]
    %v3166 = vld [vmem:[#allocation4 + $0x5e0] sm:$0xff]
    %v3167 = vld [vmem:[#allocation4 + $0x5e8] sm:$0xff]
    %v3168 = vld [vmem:[#allocation4 + $0x5f0] sm:$0xff]
    %v3169 = vld [vmem:[#allocation4 + $0x5f8] sm:$0xff]
    %v3170 = vld [vmem:[#allocation4 + $0x600] sm:$0xff]
    %v3171 = vld [vmem:[#allocation4 + $0x608] sm:$0xff]
    %v3172 = vld [vmem:[#allocation4 + $0x610] sm:$0xff]
    %v3173 = vld [vmem:[#allocation4 + $0x618] sm:$0xff]
    %v3174 = vld [vmem:[#allocation4 + $0x620] sm:$0xff]
    %v3175 = vld [vmem:[#allocation4 + $0x628] sm:$0xff]
    %v3176 = vld [vmem:[#allocation4 + $0x630] sm:$0xff]
    %v3177 = vld [vmem:[#allocation4 + $0x638] sm:$0xff]
    %v3178 = vld [vmem:[#allocation4 + $0x640] sm:$0xff]
    %v3179 = vld [vmem:[#allocation4 + $0x648] sm:$0xff]
    %v3180 = vld [vmem:[#allocation4 + $0x650] sm:$0xff]
    %v3181 = vld [vmem:[#allocation4 + $0x658] sm:$0xff]
    %v3182 = vld [vmem:[#allocation4 + $0x660] sm:$0xff]
    %v3183 = vld [vmem:[#allocation4 + $0x668] sm:$0xff]
    %v3184 = vld [vmem:[#allocation4 + $0x670] sm:$0xff]
    %v3185 = vld [vmem:[#allocation4 + $0x678] sm:$0xff]
    %v3186 = vld [vmem:[#allocation4 + $0x680] sm:$0xff]
    %v3187 = vld [vmem:[#allocation4 + $0x688] sm:$0xff]
    %v3188 = vld [vmem:[#allocation4 + $0x690] sm:$0xff]
    %v3189 = vld [vmem:[#allocation4 + $0x698] sm:$0xff]
    %v3190 = vld [vmem:[#allocation4 + $0x6a0] sm:$0xff]
    %v3191 = vld [vmem:[#allocation4 + $0x6a8] sm:$0xff]
    %v3192 = vld [vmem:[#allocation4 + $0x6b0] sm:$0xff]
    %v3193 = vld [vmem:[#allocation4 + $0x6b8] sm:$0xff]
    %v3194 = vld [vmem:[#allocation4 + $0x6c0] sm:$0xff]
    %v3195 = vld [vmem:[#allocation4 + $0x6c8] sm:$0xff]
    %v3196 = vld [vmem:[#allocation4 + $0x6d0] sm:$0xff]
    %v3197 = vld [vmem:[#allocation4 + $0x6d8] sm:$0xff]
    %v3198 = vld [vmem:[#allocation4 + $0x6e0] sm:$0xff]
    %v3199 = vld [vmem:[#allocation4 + $0x6e8] sm:$0xff]
    %v3200 = vld [vmem:[#allocation4 + $0x6f0] sm:$0xff]
    %v3201 = vld [vmem:[#allocation4 + $0x6f8] sm:$0xff]
    %v3202 = vld [vmem:[#allocation4 + $0x700] sm:$0xff]
    %v3203 = vld [vmem:[#allocation4 + $0x708] sm:$0xff]
    %v3204 = vld [vmem:[#allocation4 + $0x710] sm:$0xff]
    %v3205 = vld [vmem:[#allocation4 + $0x718] sm:$0xff]
    %v3206 = vld [vmem:[#allocation4 + $0x720] sm:$0xff]
    %v3207 = vld [vmem:[#allocation4 + $0x728] sm:$0xff]
    %v3208 = vld [vmem:[#allocation4 + $0x730] sm:$0xff]
    %v3209 = vld [vmem:[#allocation4 + $0x738] sm:$0xff]
    %v3210 = vld [vmem:[#allocation4 + $0x740] sm:$0xff]
    %v3211 = vld [vmem:[#allocation4 + $0x748] sm:$0xff]
    %v3212 = vld [vmem:[#allocation4 + $0x750] sm:$0xff]
    %v3213 = vld [vmem:[#allocation4 + $0x758] sm:$0xff]
    %v3214 = vld [vmem:[#allocation4 + $0x760] sm:$0xff]
    %v3215 = vld [vmem:[#allocation4 + $0x768] sm:$0xff]
    %v3216 = vld [vmem:[#allocation4 + $0x770] sm:$0xff]
    %v3217 = vld [vmem:[#allocation4 + $0x778] sm:$0xff]
    %v3218 = vld [vmem:[#allocation4 + $0x780] sm:$0xff]
    %v3219 = vld [vmem:[#allocation4 + $0x788] sm:$0xff]
    %v3220 = vld [vmem:[#allocation4 + $0x790] sm:$0xff]
    %v3221 = vld [vmem:[#allocation4 + $0x798] sm:$0xff]
    %v3222 = vld [vmem:[#allocation4 + $0x7a0] sm:$0xff]
    %v3223 = vld [vmem:[#allocation4 + $0x7a8] sm:$0xff]
    %v3224 = vld [vmem:[#allocation4 + $0x7b0] sm:$0xff]
    %v3225 = vld [vmem:[#allocation4 + $0x7b8] sm:$0xff]
    %v3226 = vld [vmem:[#allocation4 + $0x7c0] sm:$0xff]
    %v3227 = vld [vmem:[#allocation4 + $0x7c8] sm:$0xff]
    %v3228 = vld [vmem:[#allocation4 + $0x7d0] sm:$0xff]
    %v3229 = vld [vmem:[#allocation4 + $0x7d8] sm:$0xff]
    %v3230 = vld [vmem:[#allocation4 + $0x7e0] sm:$0xff]
    %v3231 = vld [vmem:[#allocation4 + $0x7e8] sm:$0xff]
    %v3232 = vld [vmem:[#allocation4 + $0x7f0] sm:$0xff]
    %v3233 = vld [vmem:[#allocation4 + $0x7f8] sm:$0xff]
    %v3234 = vld [vmem:[#allocation4 + $0x800] sm:$0xff]
    %v3235 = vld [vmem:[#allocation4 + $0x808] sm:$0xff]
    %v3236 = vld [vmem:[#allocation4 + $0x810] sm:$0xff]
    %v3237 = vld [vmem:[#allocation4 + $0x818] sm:$0xff]
    %v3238 = vld [vmem:[#allocation4 + $0x820] sm:$0xff]
    %v3239 = vld [vmem:[#allocation4 + $0x828] sm:$0xff]
    %v3240 = vld [vmem:[#allocation4 + $0x830] sm:$0xff]
    %v3241 = vld [vmem:[#allocation4 + $0x838] sm:$0xff]
    %v3242 = vld [vmem:[#allocation4 + $0x840] sm:$0xff]
    %v3243 = vld [vmem:[#allocation4 + $0x848] sm:$0xff]
    %v3244 = vld [vmem:[#allocation4 + $0x850] sm:$0xff]
    %v3245 = vld [vmem:[#allocation4 + $0x858] sm:$0xff]
    %v3246 = vld [vmem:[#allocation4 + $0x860] sm:$0xff]
    %v3247 = vld [vmem:[#allocation4 + $0x868] sm:$0xff]
    %v3248 = vld [vmem:[#allocation4 + $0x870] sm:$0xff]
    %v3249 = vld [vmem:[#allocation4 + $0x878] sm:$0xff]
    %v3250 = vld [vmem:[#allocation4 + $0x880] sm:$0xff]
    %v3251 = vld [vmem:[#allocation4 + $0x888] sm:$0xff]
    %v3252 = vld [vmem:[#allocation4 + $0x890] sm:$0xff]
    %v3253 = vld [vmem:[#allocation4 + $0x898] sm:$0xff]
    %v3254 = vld [vmem:[#allocation4 + $0x8a0] sm:$0xff]
    %v3255 = vld [vmem:[#allocation4 + $0x8a8] sm:$0xff]
    %v3256 = vld [vmem:[#allocation4 + $0x8b0] sm:$0xff]
    %v3257 = vld [vmem:[#allocation4 + $0x8b8] sm:$0xff]
    %v3258 = vld [vmem:[#allocation4 + $0x8c0] sm:$0xff]
    %v3259 = vld [vmem:[#allocation4 + $0x8c8] sm:$0xff]
    %v3260 = vld [vmem:[#allocation4 + $0x8d0] sm:$0xff]
    %v3261 = vld [vmem:[#allocation4 + $0x8d8] sm:$0xff]
    %v3262 = vld [vmem:[#allocation4 + $0x8e0] sm:$0xff]
    %v3263 = vld [vmem:[#allocation4 + $0x8e8] sm:$0xff]
    %v3264 = vld [vmem:[#allocation4 + $0x8f0] sm:$0xff]
    %v3265 = vld [vmem:[#allocation4 + $0x8f8] sm:$0xff]
    %v3266 = vld [vmem:[#allocation4 + $0x900] sm:$0xff]
    %v3267 = vld [vmem:[#allocation4 + $0x908] sm:$0xff]
    %v3268 = vld [vmem:[#allocation4 + $0x910] sm:$0xff]
    %v3269 = vld [vmem:[#allocation4 + $0x918] sm:$0xff]
    %v3270 = vld [vmem:[#allocation4 + $0x920] sm:$0xff]
    %v3271 = vld [vmem:[#allocation4 + $0x928] sm:$0xff]
    %v3272 = vld [vmem:[#allocation4 + $0x930] sm:$0xff]
    %v3273 = vld [vmem:[#allocation4 + $0x938] sm:$0xff]
    %v3274 = vld [vmem:[#allocation4 + $0x940] sm:$0xff]
    %v3275 = vld [vmem:[#allocation4 + $0x948] sm:$0xff]
    %v3276 = vld [vmem:[#allocation4 + $0x950] sm:$0xff]
    %v3277 = vld [vmem:[#allocation4 + $0x958] sm:$0xff]
    %v3278 = vld [vmem:[#allocation4 + $0x960] sm:$0xff]
    %v3279 = vld [vmem:[#allocation4 + $0x968] sm:$0xff]
    %v3280 = vld [vmem:[#allocation4 + $0x970] sm:$0xff]
    %v3281 = vld [vmem:[#allocation4 + $0x978] sm:$0xff]
    %v3282 = vld [vmem:[#allocation4 + $0x980] sm:$0xff]
    %v3283 = vld [vmem:[#allocation4 + $0x988] sm:$0xff]
    %v3284 = vld [vmem:[#allocation4 + $0x990] sm:$0xff]
    %v3285 = vld [vmem:[#allocation4 + $0x998] sm:$0xff]
    %v3286 = vld [vmem:[#allocation4 + $0x9a0] sm:$0xff]
    %v3287 = vld [vmem:[#allocation4 + $0x9a8] sm:$0xff]
    %v3288 = vld [vmem:[#allocation4 + $0x9b0] sm:$0xff]
    %v3289 = vld [vmem:[#allocation4 + $0x9b8] sm:$0xff]
    %v3290 = vld [vmem:[#allocation4 + $0x9c0] sm:$0xff]
    %v3291 = vld [vmem:[#allocation4 + $0x9c8] sm:$0xff]
    %v3292 = vld [vmem:[#allocation4 + $0x9d0] sm:$0xff]
    %v3293 = vld [vmem:[#allocation4 + $0x9d8] sm:$0xff]
    %v3294 = vld [vmem:[#allocation4 + $0x9e0] sm:$0xff]
    %v3295 = vld [vmem:[#allocation4 + $0x9e8] sm:$0xff]
    %v3296 = vld [vmem:[#allocation4 + $0x9f0] sm:$0xff]
    %v3297 = vld [vmem:[#allocation4 + $0x9f8] sm:$0xff]
    %v3298 = vld [vmem:[#allocation4 + $0xa00] sm:$0xff]
    %v3299 = vld [vmem:[#allocation4 + $0xa08] sm:$0xff]
    %v3300 = vld [vmem:[#allocation4 + $0xa10] sm:$0xff]
    %v3301 = vld [vmem:[#allocation4 + $0xa18] sm:$0xff]
    %v3302 = vld [vmem:[#allocation4 + $0xa20] sm:$0xff]
    %v3303 = vld [vmem:[#allocation4 + $0xa28] sm:$0xff]
    %v3304 = vld [vmem:[#allocation4 + $0xa30] sm:$0xff]
    %v3305 = vld [vmem:[#allocation4 + $0xa38] sm:$0xff]
    %v3306 = vld [vmem:[#allocation4 + $0xa40] sm:$0xff]
    %v3307 = vld [vmem:[#allocation4 + $0xa48] sm:$0xff]
    %v3308 = vld [vmem:[#allocation4 + $0xa50] sm:$0xff]
    %v3309 = vld [vmem:[#allocation4 + $0xa58] sm:$0xff]
    %v3310 = vld [vmem:[#allocation4 + $0xa60] sm:$0xff]
    %v3311 = vld [vmem:[#allocation4 + $0xa68] sm:$0xff]
    %v3312 = vld [vmem:[#allocation4 + $0xa70] sm:$0xff]
    %v3313 = vld [vmem:[#allocation4 + $0xa78] sm:$0xff]
    %v3314 = vld [vmem:[#allocation4 + $0xa80] sm:$0xff]
    %v3315 = vld [vmem:[#allocation4 + $0xa88] sm:$0xff]
    %v3316 = vld [vmem:[#allocation4 + $0xa90] sm:$0xff]
    %v3317 = vld [vmem:[#allocation4 + $0xa98] sm:$0xff]
    %v3318 = vld [vmem:[#allocation4 + $0xaa0] sm:$0xff]
    %v3319 = vld [vmem:[#allocation4 + $0xaa8] sm:$0xff]
    %v3320 = vld [vmem:[#allocation4 + $0xab0] sm:$0xff]
    %v3321 = vld [vmem:[#allocation4 + $0xab8] sm:$0xff]
    %v3322 = vld [vmem:[#allocation4 + $0xac0] sm:$0xff]
    %v3323 = vld [vmem:[#allocation4 + $0xac8] sm:$0xff]
    %v3324 = vld [vmem:[#allocation4 + $0xad0] sm:$0xff]
    %v3325 = vld [vmem:[#allocation4 + $0xad8] sm:$0xff]
    %v3326 = vld [vmem:[#allocation4 + $0xae0] sm:$0xff]
    %v3327 = vld [vmem:[#allocation4 + $0xae8] sm:$0xff]
    %v3328 = vld [vmem:[#allocation4 + $0xaf0] sm:$0xff]
    %v3329 = vld [vmem:[#allocation4 + $0xaf8] sm:$0xff]
    %v3330 = vld [vmem:[#allocation4 + $0xb00] sm:$0xff]
    %v3331 = vld [vmem:[#allocation4 + $0xb08] sm:$0xff]
    %v3332 = vld [vmem:[#allocation4 + $0xb10] sm:$0xff]
    %v3333 = vld [vmem:[#allocation4 + $0xb18] sm:$0xff]
    %v3334 = vld [vmem:[#allocation4 + $0xb20] sm:$0xff]
    %v3335 = vld [vmem:[#allocation4 + $0xb28] sm:$0xff]
    %v3336 = vld [vmem:[#allocation4 + $0xb30] sm:$0xff]
    %v3337 = vld [vmem:[#allocation4 + $0xb38] sm:$0xff]
    %v3338 = vld [vmem:[#allocation4 + $0xb40] sm:$0xff]
    %v3339 = vld [vmem:[#allocation4 + $0xb48] sm:$0xff]
    %v3340 = vld [vmem:[#allocation4 + $0xb50] sm:$0xff]
    %v3341 = vld [vmem:[#allocation4 + $0xb58] sm:$0xff]
    %v3342 = vld [vmem:[#allocation4 + $0xb60] sm:$0xff]
    %v3343 = vld [vmem:[#allocation4 + $0xb68] sm:$0xff]
    %v3344 = vld [vmem:[#allocation4 + $0xb70] sm:$0xff]
    %v3345 = vld [vmem:[#allocation4 + $0xb78] sm:$0xff]
    %v3346 = vld [vmem:[#allocation4 + $0xb80] sm:$0xff]
    %v3347 = vld [vmem:[#allocation4 + $0xb88] sm:$0xff]
    %v3348 = vld [vmem:[#allocation4 + $0xb90] sm:$0xff]
    %v3349 = vld [vmem:[#allocation4 + $0xb98] sm:$0xff]
    %v3350 = vld [vmem:[#allocation4 + $0xba0] sm:$0xff]
    %v3351 = vld [vmem:[#allocation4 + $0xba8] sm:$0xff]
    %v3352 = vld [vmem:[#allocation4 + $0xbb0] sm:$0xff]
    %v3353 = vld [vmem:[#allocation4 + $0xbb8] sm:$0xff]
    %v3354 = vld [vmem:[#allocation4 + $0xbc0] sm:$0xff]
    %v3355 = vld [vmem:[#allocation4 + $0xbc8] sm:$0xff]
    %v3356 = vld [vmem:[#allocation4 + $0xbd0] sm:$0xff]
    %v3357 = vld [vmem:[#allocation4 + $0xbd8] sm:$0xff]
    %v3358 = vld [vmem:[#allocation4 + $0xbe0] sm:$0xff]
    %v3359 = vld [vmem:[#allocation4 + $0xbe8] sm:$0xff]
    %v3360 = vld [vmem:[#allocation4 + $0xbf0] sm:$0xff]
    %v3361 = vld [vmem:[#allocation4 + $0xbf8] sm:$0xff]
    %v3362 = vld [vmem:[#allocation4 + $0xc00] sm:$0xff]
    %v3363 = vld [vmem:[#allocation4 + $0xc08] sm:$0xff]
    %v3364 = vld [vmem:[#allocation4 + $0xc10] sm:$0xff]
    %v3365 = vld [vmem:[#allocation4 + $0xc18] sm:$0xff]
    %v3366 = vld [vmem:[#allocation4 + $0xc20] sm:$0xff]
    %v3367 = vld [vmem:[#allocation4 + $0xc28] sm:$0xff]
    %v3368 = vld [vmem:[#allocation4 + $0xc30] sm:$0xff]
    %v3369 = vld [vmem:[#allocation4 + $0xc38] sm:$0xff]
    %v3370 = vld [vmem:[#allocation4 + $0xc40] sm:$0xff]
    %v3371 = vld [vmem:[#allocation4 + $0xc48] sm:$0xff]
    %v3372 = vld [vmem:[#allocation4 + $0xc50] sm:$0xff]
    %v3373 = vld [vmem:[#allocation4 + $0xc58] sm:$0xff]
    %v3374 = vld [vmem:[#allocation4 + $0xc60] sm:$0xff]
    %v3375 = vld [vmem:[#allocation4 + $0xc68] sm:$0xff]
    %v3376 = vld [vmem:[#allocation4 + $0xc70] sm:$0xff]
    %v3377 = vld [vmem:[#allocation4 + $0xc78] sm:$0xff]
    %v3378 = vld [vmem:[#allocation4 + $0xc80] sm:$0xff]
    %v3379 = vld [vmem:[#allocation4 + $0xc88] sm:$0xff]
    %v3380 = vld [vmem:[#allocation4 + $0xc90] sm:$0xff]
    %v3381 = vld [vmem:[#allocation4 + $0xc98] sm:$0xff]
    %v3382 = vld [vmem:[#allocation4 + $0xca0] sm:$0xff]
    %v3383 = vld [vmem:[#allocation4 + $0xca8] sm:$0xff]
    %v3384 = vld [vmem:[#allocation4 + $0xcb0] sm:$0xff]
    %v3385 = vld [vmem:[#allocation4 + $0xcb8] sm:$0xff]
    %v3386 = vld [vmem:[#allocation4 + $0xcc0] sm:$0xff]
    %v3387 = vld [vmem:[#allocation4 + $0xcc8] sm:$0xff]
    %v3388 = vld [vmem:[#allocation4 + $0xcd0] sm:$0xff]
    %v3389 = vld [vmem:[#allocation4 + $0xcd8] sm:$0xff]
    %v3390 = vld [vmem:[#allocation4 + $0xce0] sm:$0xff]
    %v3391 = vld [vmem:[#allocation4 + $0xce8] sm:$0xff]
    %v3392 = vld [vmem:[#allocation4 + $0xcf0] sm:$0xff]
    %v3393 = vld [vmem:[#allocation4 + $0xcf8] sm:$0xff]
    %v3394 = vld [vmem:[#allocation4 + $0xd00] sm:$0xff]
    %v3395 = vld [vmem:[#allocation4 + $0xd08] sm:$0xff]
    %v3396 = vld [vmem:[#allocation4 + $0xd10] sm:$0xff]
    %v3397 = vld [vmem:[#allocation4 + $0xd18] sm:$0xff]
    %v3398 = vld [vmem:[#allocation4 + $0xd20] sm:$0xff]
    %v3399 = vld [vmem:[#allocation4 + $0xd28] sm:$0xff]
    %v3400 = vld [vmem:[#allocation4 + $0xd30] sm:$0xff]
    %v3401 = vld [vmem:[#allocation4 + $0xd38] sm:$0xff]
    %v3402 = vld [vmem:[#allocation4 + $0xd40] sm:$0xff]
    %v3403 = vld [vmem:[#allocation4 + $0xd48] sm:$0xff]
    %v3404 = vld [vmem:[#allocation4 + $0xd50] sm:$0xff]
    %v3405 = vld [vmem:[#allocation4 + $0xd58] sm:$0xff]
    %v3406 = vld [vmem:[#allocation4 + $0xd60] sm:$0xff]
    %v3407 = vld [vmem:[#allocation4 + $0xd68] sm:$0xff]
    %v3408 = vld [vmem:[#allocation4 + $0xd70] sm:$0xff]
    %v3409 = vld [vmem:[#allocation4 + $0xd78] sm:$0xff]
    %v3410 = vld [vmem:[#allocation4 + $0xd80] sm:$0xff]
    %v3411 = vld [vmem:[#allocation4 + $0xd88] sm:$0xff]
    %v3412 = vld [vmem:[#allocation4 + $0xd90] sm:$0xff]
    %v3413 = vld [vmem:[#allocation4 + $0xd98] sm:$0xff]
    %v3414 = vld [vmem:[#allocation4 + $0xda0] sm:$0xff]
    %v3415 = vld [vmem:[#allocation4 + $0xda8] sm:$0xff]
    %v3416 = vld [vmem:[#allocation4 + $0xdb0] sm:$0xff]
    %v3417 = vld [vmem:[#allocation4 + $0xdb8] sm:$0xff]
    %v3418 = vld [vmem:[#allocation4 + $0xdc0] sm:$0xff]
    %v3419 = vld [vmem:[#allocation4 + $0xdc8] sm:$0xff]
    %v3420 = vld [vmem:[#allocation4 + $0xdd0] sm:$0xff]
    %v3421 = vld [vmem:[#allocation4 + $0xdd8] sm:$0xff]
    %v3422 = vld [vmem:[#allocation4 + $0xde0] sm:$0xff]
    %v3423 = vld [vmem:[#allocation4 + $0xde8] sm:$0xff]
    %v3424 = vld [vmem:[#allocation4 + $0xdf0] sm:$0xff]
    %v3425 = vld [vmem:[#allocation4 + $0xdf8] sm:$0xff]
    %v3426 = vld [vmem:[#allocation4 + $0xe00] sm:$0xff]
    %v3427 = vld [vmem:[#allocation4 + $0xe08] sm:$0xff]
    %v3428 = vld [vmem:[#allocation4 + $0xe10] sm:$0xff]
    %v3429 = vld [vmem:[#allocation4 + $0xe18] sm:$0xff]
    %v3430 = vld [vmem:[#allocation4 + $0xe20] sm:$0xff]
    %v3431 = vld [vmem:[#allocation4 + $0xe28] sm:$0xff]
    %v3432 = vld [vmem:[#allocation4 + $0xe30] sm:$0xff]
    %v3433 = vld [vmem:[#allocation4 + $0xe38] sm:$0xff]
    %v3434 = vld [vmem:[#allocation4 + $0xe40] sm:$0xff]
    %v3435 = vld [vmem:[#allocation4 + $0xe48] sm:$0xff]
    %v3436 = vld [vmem:[#allocation4 + $0xe50] sm:$0xff]
    %v3437 = vld [vmem:[#allocation4 + $0xe58] sm:$0xff]
    %v3438 = vld [vmem:[#allocation4 + $0xe60] sm:$0xff]
    %v3439 = vld [vmem:[#allocation4 + $0xe68] sm:$0xff]
    %v3440 = vld [vmem:[#allocation4 + $0xe70] sm:$0xff]
    %v3441 = vld [vmem:[#allocation4 + $0xe78] sm:$0xff]
    %v3442 = vld [vmem:[#allocation4 + $0xe80] sm:$0xff]
    %v3443 = vld [vmem:[#allocation4 + $0xe88] sm:$0xff]
    %v3444 = vld [vmem:[#allocation4 + $0xe90] sm:$0xff]
    %v3445 = vld [vmem:[#allocation4 + $0xe98] sm:$0xff]
    %v3446 = vld [vmem:[#allocation4 + $0xea0] sm:$0xff]
    %v3447 = vld [vmem:[#allocation4 + $0xea8] sm:$0xff]
    %v3448 = vld [vmem:[#allocation4 + $0xeb0] sm:$0xff]
    %v3449 = vld [vmem:[#allocation4 + $0xeb8] sm:$0xff]
    %v3450 = vld [vmem:[#allocation4 + $0xec0] sm:$0xff]
    %v3451 = vld [vmem:[#allocation4 + $0xec8] sm:$0xff]
    %v3452 = vld [vmem:[#allocation4 + $0xed0] sm:$0xff]
    %v3453 = vld [vmem:[#allocation4 + $0xed8] sm:$0xff]
    %v3454 = vld [vmem:[#allocation4 + $0xee0] sm:$0xff]
    %v3455 = vld [vmem:[#allocation4 + $0xee8] sm:$0xff]
    %v3456 = vld [vmem:[#allocation4 + $0xef0] sm:$0xff]
    %v3457 = vld [vmem:[#allocation4 + $0xef8] sm:$0xff]
    %v3458 = vld [vmem:[#allocation4 + $0xf00] sm:$0xff]
    %v3459 = vld [vmem:[#allocation4 + $0xf08] sm:$0xff]
    %v3460 = vld [vmem:[#allocation4 + $0xf10] sm:$0xff]
    %v3461 = vld [vmem:[#allocation4 + $0xf18] sm:$0xff]
    %v3462 = vld [vmem:[#allocation4 + $0xf20] sm:$0xff]
    %v3463 = vld [vmem:[#allocation4 + $0xf28] sm:$0xff]
    %v3464 = vld [vmem:[#allocation4 + $0xf30] sm:$0xff]
    %v3465 = vld [vmem:[#allocation4 + $0xf38] sm:$0xff]
    %v3466 = vld [vmem:[#allocation4 + $0xf40] sm:$0xff]
    %v3467 = vld [vmem:[#allocation4 + $0xf48] sm:$0xff]
    %v3468 = vld [vmem:[#allocation4 + $0xf50] sm:$0xff]
    %v3469 = vld [vmem:[#allocation4 + $0xf58] sm:$0xff]
    %v3470 = vld [vmem:[#allocation4 + $0xf60] sm:$0xff]
    %v3471 = vld [vmem:[#allocation4 + $0xf68] sm:$0xff]
    %v3472 = vld [vmem:[#allocation4 + $0xf70] sm:$0xff]
    %v3473 = vld [vmem:[#allocation4 + $0xf78] sm:$0xff]
    %v3474 = vld [vmem:[#allocation4 + $0xf80] sm:$0xff]
    %v3475 = vld [vmem:[#allocation4 + $0xf88] sm:$0xff]
    %v3476 = vld [vmem:[#allocation4 + $0xf90] sm:$0xff]
    %v3477 = vld [vmem:[#allocation4 + $0xf98] sm:$0xff]
    %v3478 = vld [vmem:[#allocation4 + $0xfa0] sm:$0xff]
    %v3479 = vld [vmem:[#allocation4 + $0xfa8] sm:$0xff]
    %v3480 = vld [vmem:[#allocation4 + $0xfb0] sm:$0xff]
    %v3481 = vld [vmem:[#allocation4 + $0xfb8] sm:$0xff]
    %v3482 = vld [vmem:[#allocation4 + $0xfc0] sm:$0xff]
    %v3483 = vld [vmem:[#allocation4 + $0xfc8] sm:$0xff]
    %v3484 = vld [vmem:[#allocation4 + $0xfd0] sm:$0xff]
    %v3485 = vld [vmem:[#allocation4 + $0xfd8] sm:$0xff]
    %v3486 = vld [vmem:[#allocation4 + $0xfe0] sm:$0xff]
    %v3487 = vld [vmem:[#allocation4 + $0xfe8] sm:$0xff]
    %v3488 = vld [vmem:[#allocation4 + $0xff0] sm:$0xff]
    %v3489 = vld [vmem:[#allocation4 + $0xff8] sm:$0xff]
    %v3490 = vld [vmem:[#allocation4 + $0x1000] sm:$0xff]
    %v3491 = vld [vmem:[#allocation4 + $0x1008] sm:$0xff]
    %v3492 = vld [vmem:[#allocation4 + $0x1010] sm:$0xff]
    %v3493 = vld [vmem:[#allocation4 + $0x1018] sm:$0xff]
    %v3494 = vld [vmem:[#allocation4 + $0x1020] sm:$0xff]
    %v3495 = vld [vmem:[#allocation4 + $0x1028] sm:$0xff]
    %v3496 = vld [vmem:[#allocation4 + $0x1030] sm:$0xff]
    %v3497 = vld [vmem:[#allocation4 + $0x1038] sm:$0xff]
    %v3498 = vld [vmem:[#allocation4 + $0x1040] sm:$0xff]
    %v3499 = vld [vmem:[#allocation4 + $0x1048] sm:$0xff]
    %v3500 = vld [vmem:[#allocation4 + $0x1050] sm:$0xff]
    %v3501 = vld [vmem:[#allocation4 + $0x1058] sm:$0xff]
    %v3502 = vld [vmem:[#allocation4 + $0x1060] sm:$0xff]
    %v3503 = vld [vmem:[#allocation4 + $0x1068] sm:$0xff]
    %v3504 = vld [vmem:[#allocation4 + $0x1070] sm:$0xff]
    %v3505 = vld [vmem:[#allocation4 + $0x1078] sm:$0xff]
    %v3506 = vld [vmem:[#allocation4 + $0x1080] sm:$0xff]
    %v3507 = vld [vmem:[#allocation4 + $0x1088] sm:$0xff]
    %v3508 = vld [vmem:[#allocation4 + $0x1090] sm:$0xff]
    %v3509 = vld [vmem:[#allocation4 + $0x1098] sm:$0xff]
    %v3510 = vld [vmem:[#allocation4 + $0x10a0] sm:$0xff]
    %v3511 = vld [vmem:[#allocation4 + $0x10a8] sm:$0xff]
    %v3512 = vld [vmem:[#allocation4 + $0x10b0] sm:$0xff]
    %v3513 = vld [vmem:[#allocation4 + $0x10b8] sm:$0xff]
    %v3514 = vld [vmem:[#allocation4 + $0x10c0] sm:$0xff]
    %v3515 = vld [vmem:[#allocation4 + $0x10c8] sm:$0xff]
    %v3516 = vld [vmem:[#allocation4 + $0x10d0] sm:$0xff]
    %v3517 = vld [vmem:[#allocation4 + $0x10d8] sm:$0xff]
    %v3518 = vld [vmem:[#allocation4 + $0x10e0] sm:$0xff]
    %v3519 = vld [vmem:[#allocation4 + $0x10e8] sm:$0xff]
    %v3520 = vld [vmem:[#allocation4 + $0x10f0] sm:$0xff]
    %v3521 = vld [vmem:[#allocation4 + $0x10f8] sm:$0xff]
    %v3522 = vld [vmem:[#allocation4 + $0x1100] sm:$0xff]
    %v3523 = vld [vmem:[#allocation4 + $0x1108] sm:$0xff]
    %v3524 = vld [vmem:[#allocation4 + $0x1110] sm:$0xff]
    %v3525 = vld [vmem:[#allocation4 + $0x1118] sm:$0xff]
    %v3526 = vld [vmem:[#allocation4 + $0x1120] sm:$0xff]
    %v3527 = vld [vmem:[#allocation4 + $0x1128] sm:$0xff]
    %v3528 = vld [vmem:[#allocation4 + $0x1130] sm:$0xff]
    %v3529 = vld [vmem:[#allocation4 + $0x1138] sm:$0xff]
    %v3530 = vld [vmem:[#allocation4 + $0x1140] sm:$0xff]
    %v3531 = vld [vmem:[#allocation4 + $0x1148] sm:$0xff]
    %v3532 = vld [vmem:[#allocation4 + $0x1150] sm:$0xff]
    %v3533 = vld [vmem:[#allocation4 + $0x1158] sm:$0xff]
    %v3534 = vld [vmem:[#allocation4 + $0x1160] sm:$0xff]
    %v3535 = vld [vmem:[#allocation4 + $0x1168] sm:$0xff]
    %v3536 = vld [vmem:[#allocation4 + $0x1170] sm:$0xff]
    %v3537 = vld [vmem:[#allocation4 + $0x1178] sm:$0xff]
    %v3538 = vld [vmem:[#allocation4 + $0x1180] sm:$0xff]
    %v3539 = vld [vmem:[#allocation4 + $0x1188] sm:$0xff]
    %v3540 = vld [vmem:[#allocation4 + $0x1190] sm:$0xff]
    %v3541 = vld [vmem:[#allocation4 + $0x1198] sm:$0xff]
    %v3542 = vld [vmem:[#allocation4 + $0x11a0] sm:$0xff]
    %v3543 = vld [vmem:[#allocation4 + $0x11a8] sm:$0xff]
    %v3544 = vld [vmem:[#allocation4 + $0x11b0] sm:$0xff]
    %v3545 = vld [vmem:[#allocation4 + $0x11b8] sm:$0xff]
    %v3546 = vld [vmem:[#allocation4 + $0x11c0] sm:$0xff]
    %v3547 = vld [vmem:[#allocation4 + $0x11c8] sm:$0xff]
    %v3548 = vld [vmem:[#allocation4 + $0x11d0] sm:$0xff]
    %v3549 = vld [vmem:[#allocation4 + $0x11d8] sm:$0xff]
    %v3550 = vld [vmem:[#allocation4 + $0x11e0] sm:$0xff]
    %v3551 = vld [vmem:[#allocation4 + $0x11e8] sm:$0xff]
    %v3552 = vld [vmem:[#allocation4 + $0x11f0] sm:$0xff]
    %v3553 = vld [vmem:[#allocation4 + $0x11f8] sm:$0xff]
    %v3554 = vld [vmem:[#allocation4 + $0x1200] sm:$0xff]
    %v3555 = vld [vmem:[#allocation4 + $0x1208] sm:$0xff]
    %v3556 = vld [vmem:[#allocation4 + $0x1210] sm:$0xff]
    %v3557 = vld [vmem:[#allocation4 + $0x1218] sm:$0xff]
    %v3558 = vld [vmem:[#allocation4 + $0x1220] sm:$0xff]
    %v3559 = vld [vmem:[#allocation4 + $0x1228] sm:$0xff]
    %v3560 = vld [vmem:[#allocation4 + $0x1230] sm:$0xff]
    %v3561 = vld [vmem:[#allocation4 + $0x1238] sm:$0xff]
    %v3562 = vld [vmem:[#allocation4 + $0x1240] sm:$0xff]
    %v3563 = vld [vmem:[#allocation4 + $0x1248] sm:$0xff]
    %v3564 = vld [vmem:[#allocation4 + $0x1250] sm:$0xff]
    %v3565 = vld [vmem:[#allocation4 + $0x1258] sm:$0xff]
    %v3566 = vld [vmem:[#allocation4 + $0x1260] sm:$0xff]
    %v3567 = vld [vmem:[#allocation4 + $0x1268] sm:$0xff]
    %v3568 = vld [vmem:[#allocation4 + $0x1270] sm:$0xff]
    %v3569 = vld [vmem:[#allocation4 + $0x1278] sm:$0xff]
    %v3570 = vld [vmem:[#allocation4 + $0x1280] sm:$0xff]
    %v3571 = vld [vmem:[#allocation4 + $0x1288] sm:$0xff]
    %v3572 = vld [vmem:[#allocation4 + $0x1290] sm:$0xff]
    %v3573 = vld [vmem:[#allocation4 + $0x1298] sm:$0xff]
    %v3574 = vld [vmem:[#allocation4 + $0x12a0] sm:$0xff]
    %v3575 = vld [vmem:[#allocation4 + $0x12a8] sm:$0xff]
    %v3576 = vld [vmem:[#allocation4 + $0x12b0] sm:$0xff]
    %v3577 = vld [vmem:[#allocation4 + $0x12b8] sm:$0xff]
    %v3578 = vld [vmem:[#allocation4 + $0x12c0] sm:$0xff]
    %v3579 = vld [vmem:[#allocation4 + $0x12c8] sm:$0xff]
    %v3580 = vld [vmem:[#allocation4 + $0x12d0] sm:$0xff]
    %v3581 = vld [vmem:[#allocation4 + $0x12d8] sm:$0xff]
    %v3582 = vld [vmem:[#allocation4 + $0x12e0] sm:$0xff]
    %v3583 = vld [vmem:[#allocation4 + $0x12e8] sm:$0xff]
    %v3584 = vld [vmem:[#allocation4 + $0x12f0] sm:$0xff]
    %v3585 = vld [vmem:[#allocation4 + $0x12f8] sm:$0xff]
    %v3586 = vld [vmem:[#allocation4 + $0x1300] sm:$0xff]
    %v3587 = vld [vmem:[#allocation4 + $0x1308] sm:$0xff]
    %v3588 = vld [vmem:[#allocation4 + $0x1310] sm:$0xff]
    %v3589 = vld [vmem:[#allocation4 + $0x1318] sm:$0xff]
    %v3590 = vld [vmem:[#allocation4 + $0x1320] sm:$0xff]
    %v3591 = vld [vmem:[#allocation4 + $0x1328] sm:$0xff]
    %v3592 = vld [vmem:[#allocation4 + $0x1330] sm:$0xff]
    %v3593 = vld [vmem:[#allocation4 + $0x1338] sm:$0xff]
    %v3594 = vld [vmem:[#allocation4 + $0x1340] sm:$0xff]
    %v3595 = vld [vmem:[#allocation4 + $0x1348] sm:$0xff]
    %v3596 = vld [vmem:[#allocation4 + $0x1350] sm:$0xff]
    %v3597 = vld [vmem:[#allocation4 + $0x1358] sm:$0xff]
    %v3598 = vld [vmem:[#allocation4 + $0x1360] sm:$0xff]
    %v3599 = vld [vmem:[#allocation4 + $0x1368] sm:$0xff]
    %v3600 = vld [vmem:[#allocation4 + $0x1370] sm:$0xff]
    %v3601 = vld [vmem:[#allocation4 + $0x1378] sm:$0xff]
    %v3602 = vld [vmem:[#allocation4 + $0x1380] sm:$0xff]
    %v3603 = vld [vmem:[#allocation4 + $0x1388] sm:$0xff]
    %v3604 = vld [vmem:[#allocation4 + $0x1390] sm:$0xff]
    %v3605 = vld [vmem:[#allocation4 + $0x1398] sm:$0xff]
    %v3606 = vld [vmem:[#allocation4 + $0x13a0] sm:$0xff]
    %v3607 = vld [vmem:[#allocation4 + $0x13a8] sm:$0xff]
    %v3608 = vld [vmem:[#allocation4 + $0x13b0] sm:$0xff]
    %v3609 = vld [vmem:[#allocation4 + $0x13b8] sm:$0xff]
    %v3610 = vld [vmem:[#allocation4 + $0x13c0] sm:$0xff]
    %v3611 = vld [vmem:[#allocation4 + $0x13c8] sm:$0xff]
    %v3612 = vld [vmem:[#allocation4 + $0x13d0] sm:$0xff]
    %v3613 = vld [vmem:[#allocation4 + $0x13d8] sm:$0xff]
    %v3614 = vld [vmem:[#allocation4 + $0x13e0] sm:$0xff]
    %v3615 = vld [vmem:[#allocation4 + $0x13e8] sm:$0xff]
    %v3616 = vld [vmem:[#allocation4 + $0x13f0] sm:$0xff]
    %v3617 = vld [vmem:[#allocation4 + $0x13f8] sm:$0xff]
    %v3618 = vld [vmem:[#allocation4 + $0x1400] sm:$0xff]
    %v3619 = vld [vmem:[#allocation4 + $0x1408] sm:$0xff]
    %v3620 = vld [vmem:[#allocation4 + $0x1410] sm:$0xff]
    %v3621 = vld [vmem:[#allocation4 + $0x1418] sm:$0xff]
    %v3622 = vld [vmem:[#allocation4 + $0x1420] sm:$0xff]
    %v3623 = vld [vmem:[#allocation4 + $0x1428] sm:$0xff]
    %v3624 = vld [vmem:[#allocation4 + $0x1430] sm:$0xff]
    %v3625 = vld [vmem:[#allocation4 + $0x1438] sm:$0xff]
    %v3626 = vld [vmem:[#allocation4 + $0x1440] sm:$0xff]
    %v3627 = vld [vmem:[#allocation4 + $0x1448] sm:$0xff]
    %v3628 = vld [vmem:[#allocation4 + $0x1450] sm:$0xff]
    %v3629 = vld [vmem:[#allocation4 + $0x1458] sm:$0xff]
    %v3630 = vld [vmem:[#allocation4 + $0x1460] sm:$0xff]
    %v3631 = vld [vmem:[#allocation4 + $0x1468] sm:$0xff]
    %v3632 = vld [vmem:[#allocation4 + $0x1470] sm:$0xff]
    %v3633 = vld [vmem:[#allocation4 + $0x1478] sm:$0xff]
    %v3634 = vld [vmem:[#allocation4 + $0x1480] sm:$0xff]
    %v3635 = vld [vmem:[#allocation4 + $0x1488] sm:$0xff]
    %v3636 = vld [vmem:[#allocation4 + $0x1490] sm:$0xff]
    %v3637 = vld [vmem:[#allocation4 + $0x1498] sm:$0xff]
    %v3638 = vld [vmem:[#allocation4 + $0x14a0] sm:$0xff]
    %v3639 = vld [vmem:[#allocation4 + $0x14a8] sm:$0xff]
    %v3640 = vld [vmem:[#allocation4 + $0x14b0] sm:$0xff]
    %v3641 = vld [vmem:[#allocation4 + $0x14b8] sm:$0xff]
    %v3642 = vld [vmem:[#allocation4 + $0x14c0] sm:$0xff]
    %v3643 = vld [vmem:[#allocation4 + $0x14c8] sm:$0xff]
    %v3644 = vld [vmem:[#allocation4 + $0x14d0] sm:$0xff]
    %v3645 = vld [vmem:[#allocation4 + $0x14d8] sm:$0xff]
    %v3646 = vld [vmem:[#allocation4 + $0x14e0] sm:$0xff]
    %v3647 = vld [vmem:[#allocation4 + $0x14e8] sm:$0xff]
    %v3648 = vld [vmem:[#allocation4 + $0x14f0] sm:$0xff]
    %v3649 = vld [vmem:[#allocation4 + $0x14f8] sm:$0xff]
    %v3650 = vld [vmem:[#allocation4 + $0x1500] sm:$0xff]
    %v3651 = vld [vmem:[#allocation4 + $0x1508] sm:$0xff]
    %v3652 = vld [vmem:[#allocation4 + $0x1510] sm:$0xff]
    %v3653 = vld [vmem:[#allocation4 + $0x1518] sm:$0xff]
    %v3654 = vld [vmem:[#allocation4 + $0x1520] sm:$0xff]
    %v3655 = vld [vmem:[#allocation4 + $0x1528] sm:$0xff]
    %v3656 = vld [vmem:[#allocation4 + $0x1530] sm:$0xff]
    %v3657 = vld [vmem:[#allocation4 + $0x1538] sm:$0xff]
    %v3658 = vld [vmem:[#allocation4 + $0x1540] sm:$0xff]
    %v3659 = vld [vmem:[#allocation4 + $0x1548] sm:$0xff]
    %v3660 = vld [vmem:[#allocation4 + $0x1550] sm:$0xff]
    %v3661 = vld [vmem:[#allocation4 + $0x1558] sm:$0xff]
    %v3662 = vld [vmem:[#allocation4 + $0x1560] sm:$0xff]
    %v3663 = vld [vmem:[#allocation4 + $0x1568] sm:$0xff]
    %v3664 = vld [vmem:[#allocation4 + $0x1570] sm:$0xff]
    %v3665 = vld [vmem:[#allocation4 + $0x1578] sm:$0xff]
    %v3666 = vld [vmem:[#allocation4 + $0x1580] sm:$0xff]
    %v3667 = vld [vmem:[#allocation4 + $0x1588] sm:$0xff]
    %v3668 = vld [vmem:[#allocation4 + $0x1590] sm:$0xff]
    %v3669 = vld [vmem:[#allocation4 + $0x1598] sm:$0xff]
    %v3670 = vld [vmem:[#allocation4 + $0x15a0] sm:$0xff]
    %v3671 = vld [vmem:[#allocation4 + $0x15a8] sm:$0xff]
    %v3672 = vld [vmem:[#allocation4 + $0x15b0] sm:$0xff]
    %v3673 = vld [vmem:[#allocation4 + $0x15b8] sm:$0xff]
    %v3674 = vld [vmem:[#allocation4 + $0x15c0] sm:$0xff]
    %v3675 = vld [vmem:[#allocation4 + $0x15c8] sm:$0xff]
    %v3676 = vld [vmem:[#allocation4 + $0x15d0] sm:$0xff]
    %v3677 = vld [vmem:[#allocation4 + $0x15d8] sm:$0xff]
    %v3678 = vld [vmem:[#allocation4 + $0x15e0] sm:$0xff]
    %v3679 = vld [vmem:[#allocation4 + $0x15e8] sm:$0xff]
    %v3680 = vld [vmem:[#allocation4 + $0x15f0] sm:$0xff]
    %v3681 = vld [vmem:[#allocation4 + $0x15f8] sm:$0xff]
    %v3682 = vld [vmem:[#allocation4 + $0x1600] sm:$0xff]
    %v3683 = vld [vmem:[#allocation4 + $0x1608] sm:$0xff]
    %v3684 = vld [vmem:[#allocation4 + $0x1610] sm:$0xff]
    %v3685 = vld [vmem:[#allocation4 + $0x1618] sm:$0xff]
    %v3686 = vld [vmem:[#allocation4 + $0x1620] sm:$0xff]
    %v3687 = vld [vmem:[#allocation4 + $0x1628] sm:$0xff]
    %v3688 = vld [vmem:[#allocation4 + $0x1630] sm:$0xff]
    %v3689 = vld [vmem:[#allocation4 + $0x1638] sm:$0xff]
    %v3690 = vld [vmem:[#allocation4 + $0x1640] sm:$0xff]
    %v3691 = vld [vmem:[#allocation4 + $0x1648] sm:$0xff]
    %v3692 = vld [vmem:[#allocation4 + $0x1650] sm:$0xff]
    %v3693 = vld [vmem:[#allocation4 + $0x1658] sm:$0xff]
    %v3694 = vld [vmem:[#allocation4 + $0x1660] sm:$0xff]
    %v3695 = vld [vmem:[#allocation4 + $0x1668] sm:$0xff]
    %v3696 = vld [vmem:[#allocation4 + $0x1670] sm:$0xff]
    %v3697 = vld [vmem:[#allocation4 + $0x1678] sm:$0xff]
    %v3698 = vld [vmem:[#allocation4 + $0x1680] sm:$0xff]
    %v3699 = vld [vmem:[#allocation4 + $0x1688] sm:$0xff]
    %v3700 = vld [vmem:[#allocation4 + $0x1690] sm:$0xff]
    %v3701 = vld [vmem:[#allocation4 + $0x1698] sm:$0xff]
    %v3702 = vld [vmem:[#allocation4 + $0x16a0] sm:$0xff]
    %v3703 = vld [vmem:[#allocation4 + $0x16a8] sm:$0xff]
    %v3704 = vld [vmem:[#allocation4 + $0x16b0] sm:$0xff]
    %v3705 = vld [vmem:[#allocation4 + $0x16b8] sm:$0xff]
    %v3706 = vld [vmem:[#allocation4 + $0x16c0] sm:$0xff]
    %v3707 = vld [vmem:[#allocation4 + $0x16c8] sm:$0xff]
    %v3708 = vld [vmem:[#allocation4 + $0x16d0] sm:$0xff]
    %v3709 = vld [vmem:[#allocation4 + $0x16d8] sm:$0xff]
    %v3710 = vld [vmem:[#allocation4 + $0x16e0] sm:$0xff]
    %v3711 = vld [vmem:[#allocation4 + $0x16e8] sm:$0xff]
    %v3712 = vld [vmem:[#allocation4 + $0x16f0] sm:$0xff]
    %v3713 = vld [vmem:[#allocation4 + $0x16f8] sm:$0xff]
    %v3714 = vld [vmem:[#allocation4 + $0x1700] sm:$0xff]
    %v3715 = vld [vmem:[#allocation4 + $0x1708] sm:$0xff]
    %v3716 = vld [vmem:[#allocation4 + $0x1710] sm:$0xff]
    %v3717 = vld [vmem:[#allocation4 + $0x1718] sm:$0xff]
    %v3718 = vld [vmem:[#allocation4 + $0x1720] sm:$0xff]
    %v3719 = vld [vmem:[#allocation4 + $0x1728] sm:$0xff]
    %v3720 = vld [vmem:[#allocation4 + $0x1730] sm:$0xff]
    %v3721 = vld [vmem:[#allocation4 + $0x1738] sm:$0xff]
    %v3722 = vld [vmem:[#allocation4 + $0x1740] sm:$0xff]
    %v3723 = vld [vmem:[#allocation4 + $0x1748] sm:$0xff]
    %v3724 = vld [vmem:[#allocation4 + $0x1750] sm:$0xff]
    %v3725 = vld [vmem:[#allocation4 + $0x1758] sm:$0xff]
    %v3726 = vld [vmem:[#allocation4 + $0x1760] sm:$0xff]
    %v3727 = vld [vmem:[#allocation4 + $0x1768] sm:$0xff]
    %v3728 = vld [vmem:[#allocation4 + $0x1770] sm:$0xff]
    %v3729 = vld [vmem:[#allocation4 + $0x1778] sm:$0xff]
    %v3730 = vld [vmem:[#allocation4 + $0x1780] sm:$0xff]
    %v3731 = vld [vmem:[#allocation4 + $0x1788] sm:$0xff]
    %v3732 = vld [vmem:[#allocation4 + $0x1790] sm:$0xff]
    %v3733 = vld [vmem:[#allocation4 + $0x1798] sm:$0xff]
    %v3734 = vld [vmem:[#allocation4 + $0x17a0] sm:$0xff]
    %v3735 = vld [vmem:[#allocation4 + $0x17a8] sm:$0xff]
    %v3736 = vld [vmem:[#allocation4 + $0x17b0] sm:$0xff]
    %v3737 = vld [vmem:[#allocation4 + $0x17b8] sm:$0xff]
    %v3738 = vld [vmem:[#allocation4 + $0x17c0] sm:$0xff]
    %v3739 = vld [vmem:[#allocation4 + $0x17c8] sm:$0xff]
    %v3740 = vld [vmem:[#allocation4 + $0x17d0] sm:$0xff]
    %v3741 = vld [vmem:[#allocation4 + $0x17d8] sm:$0xff]
    %v3742 = vld [vmem:[#allocation4 + $0x17e0] sm:$0xff]
    %v3743 = vld [vmem:[#allocation4 + $0x17e8] sm:$0xff]
    %v3744 = vld [vmem:[#allocation4 + $0x17f0] sm:$0xff]
    %v3745 = vld [vmem:[#allocation4 + $0x17f8] sm:$0xff]
    %v3746 = vld [vmem:[#allocation4 + $0x1800] sm:$0xff]
    %v3747 = vld [vmem:[#allocation4 + $0x1808] sm:$0xff]
    %v3748 = vld [vmem:[#allocation4 + $0x1810] sm:$0xff]
    %v3749 = vld [vmem:[#allocation4 + $0x1818] sm:$0xff]
    %v3750 = vld [vmem:[#allocation4 + $0x1820] sm:$0xff]
    %v3751 = vld [vmem:[#allocation4 + $0x1828] sm:$0xff]
    %v3752 = vld [vmem:[#allocation4 + $0x1830] sm:$0xff]
    %v3753 = vld [vmem:[#allocation4 + $0x1838] sm:$0xff]
    %v3754 = vld [vmem:[#allocation4 + $0x1840] sm:$0xff]
    %v3755 = vld [vmem:[#allocation4 + $0x1848] sm:$0xff]
    %v3756 = vld [vmem:[#allocation4 + $0x1850] sm:$0xff]
    %v3757 = vld [vmem:[#allocation4 + $0x1858] sm:$0xff]
    %v3758 = vld [vmem:[#allocation4 + $0x1860] sm:$0xff]
    %v3759 = vld [vmem:[#allocation4 + $0x1868] sm:$0xff]
    %v3760 = vld [vmem:[#allocation4 + $0x1870] sm:$0xff]
    %v3761 = vld [vmem:[#allocation4 + $0x1878] sm:$0xff]
    %v3762 = vld [vmem:[#allocation4 + $0x1880] sm:$0xff]
    %v3763 = vld [vmem:[#allocation4 + $0x1888] sm:$0xff]
    %v3764 = vld [vmem:[#allocation4 + $0x1890] sm:$0xff]
    %v3765 = vld [vmem:[#allocation4 + $0x1898] sm:$0xff]
    %v3766 = vld [vmem:[#allocation4 + $0x18a0] sm:$0xff]
    %v3767 = vld [vmem:[#allocation4 + $0x18a8] sm:$0xff]
    %v3768 = vld [vmem:[#allocation4 + $0x18b0] sm:$0xff]
    %v3769 = vld [vmem:[#allocation4 + $0x18b8] sm:$0xff]
    %v3770 = vld [vmem:[#allocation4 + $0x18c0] sm:$0xff]
    %v3771 = vld [vmem:[#allocation4 + $0x18c8] sm:$0xff]
    %v3772 = vld [vmem:[#allocation4 + $0x18d0] sm:$0xff]
    %v3773 = vld [vmem:[#allocation4 + $0x18d8] sm:$0xff]
    %v3774 = vld [vmem:[#allocation4 + $0x18e0] sm:$0xff]
    %v3775 = vld [vmem:[#allocation4 + $0x18e8] sm:$0xff]
    %v3776 = vld [vmem:[#allocation4 + $0x18f0] sm:$0xff]
    %v3777 = vld [vmem:[#allocation4 + $0x18f8] sm:$0xff]
    %v3778 = vld [vmem:[#allocation4 + $0x1900] sm:$0xff]
    %v3779 = vld [vmem:[#allocation4 + $0x1908] sm:$0xff]
    %v3780 = vld [vmem:[#allocation4 + $0x1910] sm:$0xff]
    %v3781 = vld [vmem:[#allocation4 + $0x1918] sm:$0xff]
    %v3782 = vld [vmem:[#allocation4 + $0x1920] sm:$0xff]
    %v3783 = vld [vmem:[#allocation4 + $0x1928] sm:$0xff]
    %v3784 = vld [vmem:[#allocation4 + $0x1930] sm:$0xff]
    %v3785 = vld [vmem:[#allocation4 + $0x1938] sm:$0xff]
    %v3786 = vld [vmem:[#allocation4 + $0x1940] sm:$0xff]
    %v3787 = vld [vmem:[#allocation4 + $0x1948] sm:$0xff]
    %v3788 = vld [vmem:[#allocation4 + $0x1950] sm:$0xff]
    %v3789 = vld [vmem:[#allocation4 + $0x1958] sm:$0xff]
    %v3790 = vld [vmem:[#allocation4 + $0x1960] sm:$0xff]
    %v3791 = vld [vmem:[#allocation4 + $0x1968] sm:$0xff]
    %v3792 = vld [vmem:[#allocation4 + $0x1970] sm:$0xff]
    %v3793 = vld [vmem:[#allocation4 + $0x1978] sm:$0xff]
    %v3794 = vld [vmem:[#allocation4 + $0x1980] sm:$0xff]
    %v3795 = vld [vmem:[#allocation4 + $0x1988] sm:$0xff]
    %v3796 = vld [vmem:[#allocation4 + $0x1990] sm:$0xff]
    %v3797 = vld [vmem:[#allocation4 + $0x1998] sm:$0xff]
    %v3798 = vld [vmem:[#allocation4 + $0x19a0] sm:$0xff]
    %v3799 = vld [vmem:[#allocation4 + $0x19a8] sm:$0xff]
    %v3800 = vld [vmem:[#allocation4 + $0x19b0] sm:$0xff]
    %v3801 = vld [vmem:[#allocation4 + $0x19b8] sm:$0xff]
    %v3802 = vld [vmem:[#allocation4 + $0x19c0] sm:$0xff]
    %v3803 = vld [vmem:[#allocation4 + $0x19c8] sm:$0xff]
    %v3804 = vld [vmem:[#allocation4 + $0x19d0] sm:$0xff]
    %v3805 = vld [vmem:[#allocation4 + $0x19d8] sm:$0xff]
    %v3806 = vld [vmem:[#allocation4 + $0x19e0] sm:$0xff]
    %v3807 = vld [vmem:[#allocation4 + $0x19e8] sm:$0xff]
    %v3808 = vld [vmem:[#allocation4 + $0x19f0] sm:$0xff]
    %v3809 = vld [vmem:[#allocation4 + $0x19f8] sm:$0xff]
    %v3810 = vld [vmem:[#allocation4 + $0x1a00] sm:$0xff]
    %v3811 = vld [vmem:[#allocation4 + $0x1a08] sm:$0xff]
    %v3812 = vld [vmem:[#allocation4 + $0x1a10] sm:$0xff]
    %v3813 = vld [vmem:[#allocation4 + $0x1a18] sm:$0xff]
    %v3814 = vld [vmem:[#allocation4 + $0x1a20] sm:$0xff]
    %v3815 = vld [vmem:[#allocation4 + $0x1a28] sm:$0xff]
    %v3816 = vld [vmem:[#allocation4 + $0x1a30] sm:$0xff]
    %v3817 = vld [vmem:[#allocation4 + $0x1a38] sm:$0xff]
    %v3818 = vld [vmem:[#allocation4 + $0x1a40] sm:$0xff]
    %v3819 = vld [vmem:[#allocation4 + $0x1a48] sm:$0xff]
    %v3820 = vld [vmem:[#allocation4 + $0x1a50] sm:$0xff]
    %v3821 = vld [vmem:[#allocation4 + $0x1a58] sm:$0xff]
    %v3822 = vld [vmem:[#allocation4 + $0x1a60] sm:$0xff]
    %v3823 = vld [vmem:[#allocation4 + $0x1a68] sm:$0xff]
    %v3824 = vld [vmem:[#allocation4 + $0x1a70] sm:$0xff]
    %v3825 = vld [vmem:[#allocation4 + $0x1a78] sm:$0xff]
    %v3826 = vld [vmem:[#allocation4 + $0x1a80] sm:$0xff]
    %v3827 = vld [vmem:[#allocation4 + $0x1a88] sm:$0xff]
    %v3828 = vld [vmem:[#allocation4 + $0x1a90] sm:$0xff]
    %v3829 = vld [vmem:[#allocation4 + $0x1a98] sm:$0xff]
    %v3830 = vld [vmem:[#allocation4 + $0x1aa0] sm:$0xff]
    %v3831 = vld [vmem:[#allocation4 + $0x1aa8] sm:$0xff]
    %v3832 = vld [vmem:[#allocation4 + $0x1ab0] sm:$0xff]
    %v3833 = vld [vmem:[#allocation4 + $0x1ab8] sm:$0xff]
    %v3834 = vld [vmem:[#allocation4 + $0x1ac0] sm:$0xff]
    %v3835 = vld [vmem:[#allocation4 + $0x1ac8] sm:$0xff]
    %v3836 = vld [vmem:[#allocation4 + $0x1ad0] sm:$0xff]
    %v3837 = vld [vmem:[#allocation4 + $0x1ad8] sm:$0xff]
    %v3838 = vld [vmem:[#allocation4 + $0x1ae0] sm:$0xff]
    %v3839 = vld [vmem:[#allocation4 + $0x1ae8] sm:$0xff]
    %v3840 = vld [vmem:[#allocation4 + $0x1af0] sm:$0xff]
    %v3841 = vld [vmem:[#allocation4 + $0x1af8] sm:$0xff]
    %v3842 = vld [vmem:[#allocation4 + $0x1b00] sm:$0xff]
    %v3843 = vld [vmem:[#allocation4 + $0x1b08] sm:$0xff]
    %v3844 = vld [vmem:[#allocation4 + $0x1b10] sm:$0xff]
    %v3845 = vld [vmem:[#allocation4 + $0x1b18] sm:$0xff]
    %v3846 = vld [vmem:[#allocation4 + $0x1b20] sm:$0xff]
    %v3847 = vld [vmem:[#allocation4 + $0x1b28] sm:$0xff]
    %v3848 = vld [vmem:[#allocation4 + $0x1b30] sm:$0xff]
    %v3849 = vld [vmem:[#allocation4 + $0x1b38] sm:$0xff]
    %v3850 = vld [vmem:[#allocation4 + $0x1b40] sm:$0xff]
    %v3851 = vld [vmem:[#allocation4 + $0x1b48] sm:$0xff]
    %v3852 = vld [vmem:[#allocation4 + $0x1b50] sm:$0xff]
    %v3853 = vld [vmem:[#allocation4 + $0x1b58] sm:$0xff]
    %v3854 = vld [vmem:[#allocation4 + $0x1b60] sm:$0xff]
    %v3855 = vld [vmem:[#allocation4 + $0x1b68] sm:$0xff]
    %v3856 = vld [vmem:[#allocation4 + $0x1b70] sm:$0xff]
    %v3857 = vld [vmem:[#allocation4 + $0x1b78] sm:$0xff]
    %v3858 = vld [vmem:[#allocation4 + $0x1b80] sm:$0xff]
    %v3859 = vld [vmem:[#allocation4 + $0x1b88] sm:$0xff]
    %v3860 = vld [vmem:[#allocation4 + $0x1b90] sm:$0xff]
    %v3861 = vld [vmem:[#allocation4 + $0x1b98] sm:$0xff]
    %v3862 = vld [vmem:[#allocation4 + $0x1ba0] sm:$0xff]
    %v3863 = vld [vmem:[#allocation4 + $0x1ba8] sm:$0xff]
    %v3864 = vld [vmem:[#allocation4 + $0x1bb0] sm:$0xff]
    %v3865 = vld [vmem:[#allocation4 + $0x1bb8] sm:$0xff]
    %v3866 = vld [vmem:[#allocation4 + $0x1bc0] sm:$0xff]
    %v3867 = vld [vmem:[#allocation4 + $0x1bc8] sm:$0xff]
    %v3868 = vld [vmem:[#allocation4 + $0x1bd0] sm:$0xff]
    %v3869 = vld [vmem:[#allocation4 + $0x1bd8] sm:$0xff]
    %v3870 = vld [vmem:[#allocation4 + $0x1be0] sm:$0xff]
    %v3871 = vld [vmem:[#allocation4 + $0x1be8] sm:$0xff]
    %v3872 = vld [vmem:[#allocation4 + $0x1bf0] sm:$0xff]
    %v3873 = vld [vmem:[#allocation4 + $0x1bf8] sm:$0xff]
    %v3874 = vld [vmem:[#allocation4 + $0x1c00] sm:$0xff]
    %v3875 = vld [vmem:[#allocation4 + $0x1c08] sm:$0xff]
    %v3876 = vld [vmem:[#allocation4 + $0x1c10] sm:$0xff]
    %v3877 = vld [vmem:[#allocation4 + $0x1c18] sm:$0xff]
    %v3878 = vld [vmem:[#allocation4 + $0x1c20] sm:$0xff]
    %v3879 = vld [vmem:[#allocation4 + $0x1c28] sm:$0xff]
    %v3880 = vld [vmem:[#allocation4 + $0x1c30] sm:$0xff]
    %v3881 = vld [vmem:[#allocation4 + $0x1c38] sm:$0xff]
    %v3882 = vld [vmem:[#allocation4 + $0x1c40] sm:$0xff]
    %v3883 = vld [vmem:[#allocation4 + $0x1c48] sm:$0xff]
    %v3884 = vld [vmem:[#allocation4 + $0x1c50] sm:$0xff]
    %v3885 = vld [vmem:[#allocation4 + $0x1c58] sm:$0xff]
    %v3886 = vld [vmem:[#allocation4 + $0x1c60] sm:$0xff]
    %v3887 = vld [vmem:[#allocation4 + $0x1c68] sm:$0xff]
    %v3888 = vld [vmem:[#allocation4 + $0x1c70] sm:$0xff]
    %v3889 = vld [vmem:[#allocation4 + $0x1c78] sm:$0xff]
    %v3890 = vld [vmem:[#allocation4 + $0x1c80] sm:$0xff]
    %v3891 = vld [vmem:[#allocation4 + $0x1c88] sm:$0xff]
    %v3892 = vld [vmem:[#allocation4 + $0x1c90] sm:$0xff]
    %v3893 = vld [vmem:[#allocation4 + $0x1c98] sm:$0xff]
    %v3894 = vld [vmem:[#allocation4 + $0x1ca0] sm:$0xff]
    %v3895 = vld [vmem:[#allocation4 + $0x1ca8] sm:$0xff]
    %v3896 = vld [vmem:[#allocation4 + $0x1cb0] sm:$0xff]
    %v3897 = vld [vmem:[#allocation4 + $0x1cb8] sm:$0xff]
    %v3898 = vld [vmem:[#allocation4 + $0x1cc0] sm:$0xff]
    %v3899 = vld [vmem:[#allocation4 + $0x1cc8] sm:$0xff]
    %v3900 = vld [vmem:[#allocation4 + $0x1cd0] sm:$0xff]
    %v3901 = vld [vmem:[#allocation4 + $0x1cd8] sm:$0xff]
    %v3902 = vld [vmem:[#allocation4 + $0x1ce0] sm:$0xff]
    %v3903 = vld [vmem:[#allocation4 + $0x1ce8] sm:$0xff]
    %v3904 = vld [vmem:[#allocation4 + $0x1cf0] sm:$0xff]
    %v3905 = vld [vmem:[#allocation4 + $0x1cf8] sm:$0xff]
    %v3906 = vld [vmem:[#allocation4 + $0x1d00] sm:$0xff]
    %v3907 = vld [vmem:[#allocation4 + $0x1d08] sm:$0xff]
    %v3908 = vld [vmem:[#allocation4 + $0x1d10] sm:$0xff]
    %v3909 = vld [vmem:[#allocation4 + $0x1d18] sm:$0xff]
    %v3910 = vld [vmem:[#allocation4 + $0x1d20] sm:$0xff]
    %v3911 = vld [vmem:[#allocation4 + $0x1d28] sm:$0xff]
    %v3912 = vld [vmem:[#allocation4 + $0x1d30] sm:$0xff]
    %v3913 = vld [vmem:[#allocation4 + $0x1d38] sm:$0xff]
    %v3914 = vld [vmem:[#allocation4 + $0x1d40] sm:$0xff]
    %v3915 = vld [vmem:[#allocation4 + $0x1d48] sm:$0xff]
    %v3916 = vld [vmem:[#allocation4 + $0x1d50] sm:$0xff]
    %v3917 = vld [vmem:[#allocation4 + $0x1d58] sm:$0xff]
    %v3918 = vld [vmem:[#allocation4 + $0x1d60] sm:$0xff]
    %v3919 = vld [vmem:[#allocation4 + $0x1d68] sm:$0xff]
    %v3920 = vld [vmem:[#allocation4 + $0x1d70] sm:$0xff]
    %v3921 = vld [vmem:[#allocation4 + $0x1d78] sm:$0xff]
    %v3922 = vld [vmem:[#allocation4 + $0x1d80] sm:$0xff]
    %v3923 = vld [vmem:[#allocation4 + $0x1d88] sm:$0xff]
    %v3924 = vld [vmem:[#allocation4 + $0x1d90] sm:$0xff]
    %v3925 = vld [vmem:[#allocation4 + $0x1d98] sm:$0xff]
    %v3926 = vld [vmem:[#allocation4 + $0x1da0] sm:$0xff]
    %v3927 = vld [vmem:[#allocation4 + $0x1da8] sm:$0xff]
    %v3928 = vld [vmem:[#allocation4 + $0x1db0] sm:$0xff]
    %v3929 = vld [vmem:[#allocation4 + $0x1db8] sm:$0xff]
    %v3930 = vld [vmem:[#allocation4 + $0x1dc0] sm:$0xff]
    %v3931 = vld [vmem:[#allocation4 + $0x1dc8] sm:$0xff]
    %v3932 = vld [vmem:[#allocation4 + $0x1dd0] sm:$0xff]
    %v3933 = vld [vmem:[#allocation4 + $0x1dd8] sm:$0xff]
    %v3934 = vld [vmem:[#allocation4 + $0x1de0] sm:$0xff]
    %v3935 = vld [vmem:[#allocation4 + $0x1de8] sm:$0xff]
    %v3936 = vld [vmem:[#allocation4 + $0x1df0] sm:$0xff]
    %v3937 = vld [vmem:[#allocation4 + $0x1df8] sm:$0xff]
    %v3938 = vld [vmem:[#allocation4 + $0x1e00] sm:$0xff]
    %v3939 = vld [vmem:[#allocation4 + $0x1e08] sm:$0xff]
    %v3940 = vld [vmem:[#allocation4 + $0x1e10] sm:$0xff]
    %v3941 = vld [vmem:[#allocation4 + $0x1e18] sm:$0xff]
    %v3942 = vld [vmem:[#allocation4 + $0x1e20] sm:$0xff]
    %v3943 = vld [vmem:[#allocation4 + $0x1e28] sm:$0xff]
    %v3944 = vld [vmem:[#allocation4 + $0x1e30] sm:$0xff]
    %v3945 = vld [vmem:[#allocation4 + $0x1e38] sm:$0xff]
    %v3946 = vld [vmem:[#allocation4 + $0x1e40] sm:$0xff]
    %v3947 = vld [vmem:[#allocation4 + $0x1e48] sm:$0xff]
    %v3948 = vld [vmem:[#allocation4 + $0x1e50] sm:$0xff]
    %v3949 = vld [vmem:[#allocation4 + $0x1e58] sm:$0xff]
    %v3950 = vld [vmem:[#allocation4 + $0x1e60] sm:$0xff]
    %v3951 = vld [vmem:[#allocation4 + $0x1e68] sm:$0xff]
    %v3952 = vld [vmem:[#allocation4 + $0x1e70] sm:$0xff]
    %v3953 = vld [vmem:[#allocation4 + $0x1e78] sm:$0xff]
    %v3954 = vld [vmem:[#allocation4 + $0x1e80] sm:$0xff]
    %v3955 = vld [vmem:[#allocation4 + $0x1e88] sm:$0xff]
    %v3956 = vld [vmem:[#allocation4 + $0x1e90] sm:$0xff]
    %v3957 = vld [vmem:[#allocation4 + $0x1e98] sm:$0xff]
    %v3958 = vld [vmem:[#allocation4 + $0x1ea0] sm:$0xff]
    %v3959 = vld [vmem:[#allocation4 + $0x1ea8] sm:$0xff]
    %v3960 = vld [vmem:[#allocation4 + $0x1eb0] sm:$0xff]
    %v3961 = vld [vmem:[#allocation4 + $0x1eb8] sm:$0xff]
    %v3962 = vld [vmem:[#allocation4 + $0x1ec0] sm:$0xff]
    %v3963 = vld [vmem:[#allocation4 + $0x1ec8] sm:$0xff]
    %v3964 = vld [vmem:[#allocation4 + $0x1ed0] sm:$0xff]
    %v3965 = vld [vmem:[#allocation4 + $0x1ed8] sm:$0xff]
    %v3966 = vld [vmem:[#allocation4 + $0x1ee0] sm:$0xff]
    %v3967 = vld [vmem:[#allocation4 + $0x1ee8] sm:$0xff]
    %v3968 = vld [vmem:[#allocation4 + $0x1ef0] sm:$0xff]
    %v3969 = vld [vmem:[#allocation4 + $0x1ef8] sm:$0xff]
    %v3970 = vld [vmem:[#allocation4 + $0x1f00] sm:$0xff]
    %v3971 = vld [vmem:[#allocation4 + $0x1f08] sm:$0xff]
    %v3972 = vld [vmem:[#allocation4 + $0x1f10] sm:$0xff]
    %v3973 = vld [vmem:[#allocation4 + $0x1f18] sm:$0xff]
    %v3974 = vld [vmem:[#allocation4 + $0x1f20] sm:$0xff]
    %v3975 = vld [vmem:[#allocation4 + $0x1f28] sm:$0xff]
    %v3976 = vld [vmem:[#allocation4 + $0x1f30] sm:$0xff]
    %v3977 = vld [vmem:[#allocation4 + $0x1f38] sm:$0xff]
    %v3978 = vld [vmem:[#allocation4 + $0x1f40] sm:$0xff]
    %v3979 = vld [vmem:[#allocation4 + $0x1f48] sm:$0xff]
    %v3980 = vld [vmem:[#allocation4 + $0x1f50] sm:$0xff]
    %v3981 = vld [vmem:[#allocation4 + $0x1f58] sm:$0xff]
    %v3982 = vld [vmem:[#allocation4 + $0x1f60] sm:$0xff]
    %v3983 = vld [vmem:[#allocation4 + $0x1f68] sm:$0xff]
    %v3984 = vld [vmem:[#allocation4 + $0x1f70] sm:$0xff]
    %v3985 = vld [vmem:[#allocation4 + $0x1f78] sm:$0xff]
    %v3986 = vld [vmem:[#allocation4 + $0x1f80] sm:$0xff]
    %v3987 = vld [vmem:[#allocation4 + $0x1f88] sm:$0xff]
    %v3988 = vld [vmem:[#allocation4 + $0x1f90] sm:$0xff]
    %v3989 = vld [vmem:[#allocation4 + $0x1f98] sm:$0xff]
    %v3990 = vld [vmem:[#allocation4 + $0x1fa0] sm:$0xff]
    %v3991 = vld [vmem:[#allocation4 + $0x1fa8] sm:$0xff]
    %v3992 = vld [vmem:[#allocation4 + $0x1fb0] sm:$0xff]
    %v3993 = vld [vmem:[#allocation4 + $0x1fb8] sm:$0xff]
    %v3994 = vld [vmem:[#allocation4 + $0x1fc0] sm:$0xff]
    %v3995 = vld [vmem:[#allocation4 + $0x1fc8] sm:$0xff]
    %v3996 = vld [vmem:[#allocation4 + $0x1fd0] sm:$0xff]
    %v3997 = vld [vmem:[#allocation4 + $0x1fd8] sm:$0xff]
    %v3998 = vld [vmem:[#allocation4 + $0x1fe0] sm:$0xff]
    %v3999 = vld [vmem:[#allocation4 + $0x1fe8] sm:$0xff]
    %v4000 = vld [vmem:[#allocation4 + $0x1ff0] sm:$0xff]
    %v4001 = vld [vmem:[#allocation4 + $0x1ff8] sm:$0xff]
    %v4002 = vld [vmem:[#allocation6] sm:$0xff]
    %v4004 = vlaneseq
    %v4005 = vshrl.u32 %v4004, 7
    %v4006 = vsub.s32 0, %v4005
    %v4007 = vrot.slane %v4002, %v4006
    %v4008 = vlaneseq
    %v4009 = vshrl.u32 %v4008, 7
    %v4010 = vsub.s32 1, %v4009
    %v4011 = vrot.slane %v4002, %v4010
    %v4012 = vlaneseq
    %v4013 = vshrl.u32 %v4012, 7
    %v4014 = vsub.s32 2, %v4013
    %v4015 = vrot.slane %v4002, %v4014
    %v4016 = vlaneseq
    %v4017 = vshrl.u32 %v4016, 7
    %v4018 = vsub.s32 3, %v4017
    %v4019 = vrot.slane %v4002, %v4018
    %v4020 = vlaneseq
    %v4021 = vshrl.u32 %v4020, 7
    %v4022 = vsub.s32 4, %v4021
    %v4023 = vrot.slane %v4002, %v4022
    %v4024 = vlaneseq
    %v4025 = vshrl.u32 %v4024, 7
    %v4026 = vsub.s32 5, %v4025
    %v4027 = vrot.slane %v4002, %v4026
    %v4028 = vlaneseq
    %v4029 = vshrl.u32 %v4028, 7
    %v4030 = vsub.s32 6, %v4029
    %v4031 = vrot.slane %v4002, %v4030
    %v4032 = vlaneseq
    %v4033 = vshrl.u32 %v4032, 7
    %v4034 = vsub.s32 7, %v4033
    %v4035 = vrot.slane %v4002, %v4034
    %v4300 = vunpack.c.l.b16 %v2722
    %v4301 = vunpack.c.l.b16 %v2723
    %v4302 = vunpack.c.l.b16 %v2724
    %v4303 = vunpack.c.l.b16 %v2725
    %v4304 = vunpack.c.l.b16 %v2726
    %v4305 = vunpack.c.l.b16 %v2727
    %v4306 = vunpack.c.l.b16 %v2728
    %v4307 = vunpack.c.l.b16 %v2729
    %v4308 = vunpack.c.l.b16 %v2730
    %v4309 = vunpack.c.l.b16 %v2731
    %v4310 = vunpack.c.l.b16 %v2732
    %v4311 = vunpack.c.l.b16 %v2733
    %v4312 = vunpack.c.l.b16 %v2734
    %v4313 = vunpack.c.l.b16 %v2735
    %v4314 = vunpack.c.l.b16 %v2736
    %v4315 = vunpack.c.l.b16 %v2737
    %v4316 = vunpack.c.l.b16 %v2738
    %v4317 = vunpack.c.l.b16 %v2739
    %v4318 = vunpack.c.l.b16 %v2740
    %v4319 = vunpack.c.l.b16 %v2741
    %v4320 = vunpack.c.l.b16 %v2742
    %v4321 = vunpack.c.l.b16 %v2743
    %v4322 = vunpack.c.l.b16 %v2744
    %v4323 = vunpack.c.l.b16 %v2745
    %v4324 = vunpack.c.l.b16 %v2746
    %v4325 = vunpack.c.l.b16 %v2747
    %v4326 = vunpack.c.l.b16 %v2748
    %v4327 = vunpack.c.l.b16 %v2749
    %v4328 = vunpack.c.l.b16 %v2750
    %v4329 = vunpack.c.l.b16 %v2751
    %v4330 = vunpack.c.l.b16 %v2752
    %v4331 = vunpack.c.l.b16 %v2753
    %v4332 = vunpack.c.l.b16 %v2754
    %v4333 = vunpack.c.l.b16 %v2755
    %v4334 = vunpack.c.l.b16 %v2756
    %v4335 = vunpack.c.l.b16 %v2757
    %v4336 = vunpack.c.l.b16 %v2758
    %v4337 = vunpack.c.l.b16 %v2759
    %v4338 = vunpack.c.l.b16 %v2760
    %v4339 = vunpack.c.l.b16 %v2761
    %v4340 = vunpack.c.l.b16 %v2762
    %v4341 = vunpack.c.l.b16 %v2763
    %v4342 = vunpack.c.l.b16 %v2764
    %v4343 = vunpack.c.l.b16 %v2765
    %v4344 = vunpack.c.l.b16 %v2766
    %v4345 = vunpack.c.l.b16 %v2767
    %v4346 = vunpack.c.l.b16 %v2768
    %v4347 = vunpack.c.l.b16 %v2769
    %v4348 = vunpack.c.l.b16 %v2770
    %v4349 = vunpack.c.l.b16 %v2771
    %v4350 = vunpack.c.l.b16 %v2772
    %v4351 = vunpack.c.l.b16 %v2773
    %v4352 = vunpack.c.l.b16 %v2774
    %v4353 = vunpack.c.l.b16 %v2775
    %v4354 = vunpack.c.l.b16 %v2776
    %v4355 = vunpack.c.l.b16 %v2777
    %v4356 = vunpack.c.l.b16 %v2778
    %v4357 = vunpack.c.l.b16 %v2779
    %v4358 = vunpack.c.l.b16 %v2780
    %v4359 = vunpack.c.l.b16 %v2781
    %v4360 = vunpack.c.l.b16 %v2782
    %v4361 = vunpack.c.l.b16 %v2783
    %v4362 = vunpack.c.l.b16 %v2784
    %v4363 = vunpack.c.l.b16 %v2785
    %v4364 = vunpack.c.l.b16 %v2786
    %v4365 = vunpack.c.l.b16 %v2787
    %v4366 = vunpack.c.l.b16 %v2788
    %v4367 = vunpack.c.l.b16 %v2789
    %v4368 = vunpack.c.l.b16 %v2790
    %v4369 = vunpack.c.l.b16 %v2791
    %v4370 = vunpack.c.l.b16 %v2792
    %v4371 = vunpack.c.l.b16 %v2793
    %v4372 = vunpack.c.l.b16 %v2794
    %v4373 = vunpack.c.l.b16 %v2795
    %v4374 = vunpack.c.l.b16 %v2796
    %v4375 = vunpack.c.l.b16 %v2797
    %v4376 = vunpack.c.l.b16 %v2798
    %v4377 = vunpack.c.l.b16 %v2799
    %v4378 = vunpack.c.l.b16 %v2800
    %v4379 = vunpack.c.l.b16 %v2801
    %v4380 = vunpack.c.l.b16 %v2802
    %v4381 = vunpack.c.l.b16 %v2803
    %v4382 = vunpack.c.l.b16 %v2804
    %v4383 = vunpack.c.l.b16 %v2805
    %v4384 = vunpack.c.l.b16 %v2806
    %v4385 = vunpack.c.l.b16 %v2807
    %v4386 = vunpack.c.l.b16 %v2808
    %v4387 = vunpack.c.l.b16 %v2809
    %v4388 = vunpack.c.l.b16 %v2810
    %v4389 = vunpack.c.l.b16 %v2811
    %v4390 = vunpack.c.l.b16 %v2812
    %v4391 = vunpack.c.l.b16 %v2813
    %v4392 = vunpack.c.l.b16 %v2814
    %v4393 = vunpack.c.l.b16 %v2815
    %v4394 = vunpack.c.l.b16 %v2816
    %v4395 = vunpack.c.l.b16 %v2817
    %v4396 = vunpack.c.l.b16 %v2818
    %v4397 = vunpack.c.l.b16 %v2819
    %v4398 = vunpack.c.l.b16 %v2820
    %v4399 = vunpack.c.l.b16 %v2821
    %v4400 = vunpack.c.l.b16 %v2822
    %v4401 = vunpack.c.l.b16 %v2823
    %v4402 = vunpack.c.l.b16 %v2824
    %v4403 = vunpack.c.l.b16 %v2825
    %v4404 = vunpack.c.l.b16 %v2826
    %v4405 = vunpack.c.l.b16 %v2827
    %v4406 = vunpack.c.l.b16 %v2828
    %v4407 = vunpack.c.l.b16 %v2829
    %v4408 = vunpack.c.l.b16 %v2830
    %v4409 = vunpack.c.l.b16 %v2831
    %v4410 = vunpack.c.l.b16 %v2832
    %v4411 = vunpack.c.l.b16 %v2833
    %v4412 = vunpack.c.l.b16 %v2834
    %v4413 = vunpack.c.l.b16 %v2835
    %v4414 = vunpack.c.l.b16 %v2836
    %v4415 = vunpack.c.l.b16 %v2837
    %v4416 = vunpack.c.l.b16 %v2838
    %v4417 = vunpack.c.l.b16 %v2839
    %v4418 = vunpack.c.l.b16 %v2840
    %v4419 = vunpack.c.l.b16 %v2841
    %v4420 = vunpack.c.l.b16 %v2842
    %v4421 = vunpack.c.l.b16 %v2843
    %v4422 = vunpack.c.l.b16 %v2844
    %v4423 = vunpack.c.l.b16 %v2845
    %v4424 = vunpack.c.l.b16 %v2846
    %v4425 = vunpack.c.l.b16 %v2847
    %v4426 = vunpack.c.l.b16 %v2848
    %v4427 = vunpack.c.l.b16 %v2849
    %v4428 = vunpack.c.l.b16 %v2850
    %v4429 = vunpack.c.l.b16 %v2851
    %v4430 = vunpack.c.l.b16 %v2852
    %v4431 = vunpack.c.l.b16 %v2853
    %v4432 = vunpack.c.l.b16 %v2854
    %v4433 = vunpack.c.l.b16 %v2855
    %v4434 = vunpack.c.l.b16 %v2856
    %v4435 = vunpack.c.l.b16 %v2857
    %v4436 = vunpack.c.l.b16 %v2858
    %v4437 = vunpack.c.l.b16 %v2859
    %v4438 = vunpack.c.l.b16 %v2860
    %v4439 = vunpack.c.l.b16 %v2861
    %v4440 = vunpack.c.l.b16 %v2862
    %v4441 = vunpack.c.l.b16 %v2863
    %v4442 = vunpack.c.l.b16 %v2864
    %v4443 = vunpack.c.l.b16 %v2865
    %v4444 = vunpack.c.l.b16 %v2866
    %v4445 = vunpack.c.l.b16 %v2867
    %v4446 = vunpack.c.l.b16 %v2868
    %v4447 = vunpack.c.l.b16 %v2869
    %v4448 = vunpack.c.l.b16 %v2870
    %v4449 = vunpack.c.l.b16 %v2871
    %v4450 = vunpack.c.l.b16 %v2872
    %v4451 = vunpack.c.l.b16 %v2873
    %v4452 = vunpack.c.l.b16 %v2874
    %v4453 = vunpack.c.l.b16 %v2875
    %v4454 = vunpack.c.l.b16 %v2876
    %v4455 = vunpack.c.l.b16 %v2877
    %v4456 = vunpack.c.l.b16 %v2878
    %v4457 = vunpack.c.l.b16 %v2879
    %v4458 = vunpack.c.l.b16 %v2880
    %v4459 = vunpack.c.l.b16 %v2881
    %v4460 = vunpack.c.l.b16 %v2882
    %v4461 = vunpack.c.l.b16 %v2883
    %v4462 = vunpack.c.l.b16 %v2884
    %v4463 = vunpack.c.l.b16 %v2885
    %v4464 = vunpack.c.l.b16 %v2886
    %v4465 = vunpack.c.l.b16 %v2887
    %v4466 = vunpack.c.l.b16 %v2888
    %v4467 = vunpack.c.l.b16 %v2889
    %v4468 = vunpack.c.l.b16 %v2890
    %v4469 = vunpack.c.l.b16 %v2891
    %v4470 = vunpack.c.l.b16 %v2892
    %v4471 = vunpack.c.l.b16 %v2893
    %v4472 = vunpack.c.l.b16 %v2894
    %v4473 = vunpack.c.l.b16 %v2895
    %v4474 = vunpack.c.l.b16 %v2896
    %v4475 = vunpack.c.l.b16 %v2897
    %v4476 = vunpack.c.l.b16 %v2898
    %v4477 = vunpack.c.l.b16 %v2899
    %v4478 = vunpack.c.l.b16 %v2900
    %v4479 = vunpack.c.l.b16 %v2901
    %v4480 = vunpack.c.l.b16 %v2902
    %v4481 = vunpack.c.l.b16 %v2903
    %v4482 = vunpack.c.l.b16 %v2904
    %v4483 = vunpack.c.l.b16 %v2905
    %v4484 = vunpack.c.l.b16 %v2906
    %v4485 = vunpack.c.l.b16 %v2907
    %v4486 = vunpack.c.l.b16 %v2908
    %v4487 = vunpack.c.l.b16 %v2909
    %v4488 = vunpack.c.l.b16 %v2910
    %v4489 = vunpack.c.l.b16 %v2911
    %v4490 = vunpack.c.l.b16 %v2912
    %v4491 = vunpack.c.l.b16 %v2913
    %v4492 = vunpack.c.l.b16 %v2914
    %v4493 = vunpack.c.l.b16 %v2915
    %v4494 = vunpack.c.l.b16 %v2916
    %v4495 = vunpack.c.l.b16 %v2917
    %v4496 = vunpack.c.l.b16 %v2918
    %v4497 = vunpack.c.l.b16 %v2919
    %v4498 = vunpack.c.l.b16 %v2920
    %v4499 = vunpack.c.l.b16 %v2921
    %v4500 = vunpack.c.l.b16 %v2922
    %v4501 = vunpack.c.l.b16 %v2923
    %v4502 = vunpack.c.l.b16 %v2924
    %v4503 = vunpack.c.l.b16 %v2925
    %v4504 = vunpack.c.l.b16 %v2926
    %v4505 = vunpack.c.l.b16 %v2927
    %v4506 = vunpack.c.l.b16 %v2928
    %v4507 = vunpack.c.l.b16 %v2929
    %v4508 = vunpack.c.l.b16 %v2930
    %v4509 = vunpack.c.l.b16 %v2931
    %v4510 = vunpack.c.l.b16 %v2932
    %v4511 = vunpack.c.l.b16 %v2933
    %v4512 = vunpack.c.l.b16 %v2934
    %v4513 = vunpack.c.l.b16 %v2935
    %v4514 = vunpack.c.l.b16 %v2936
    %v4515 = vunpack.c.l.b16 %v2937
    %v4516 = vunpack.c.l.b16 %v2938
    %v4517 = vunpack.c.l.b16 %v2939
    %v4518 = vunpack.c.l.b16 %v2940
    %v4519 = vunpack.c.l.b16 %v2941
    %v4520 = vunpack.c.l.b16 %v2942
    %v4521 = vunpack.c.l.b16 %v2943
    %v4522 = vunpack.c.l.b16 %v2944
    %v4523 = vunpack.c.l.b16 %v2945
    %v4524 = vunpack.c.l.b16 %v2946
    %v4525 = vunpack.c.l.b16 %v2947
    %v4526 = vunpack.c.l.b16 %v2948
    %v4527 = vunpack.c.l.b16 %v2949
    %v4528 = vunpack.c.l.b16 %v2950
    %v4529 = vunpack.c.l.b16 %v2951
    %v4530 = vunpack.c.l.b16 %v2952
    %v4531 = vunpack.c.l.b16 %v2953
    %v4532 = vunpack.c.l.b16 %v2954
    %v4533 = vunpack.c.l.b16 %v2955
    %v4534 = vunpack.c.l.b16 %v2956
    %v4535 = vunpack.c.l.b16 %v2957
    %v4536 = vunpack.c.l.b16 %v2958
    %v4537 = vunpack.c.l.b16 %v2959
    %v4538 = vunpack.c.l.b16 %v2960
    %v4539 = vunpack.c.l.b16 %v2961
    %v4540 = vunpack.c.l.b16 %v2962
    %v4541 = vunpack.c.l.b16 %v2963
    %v4542 = vunpack.c.l.b16 %v2964
    %v4543 = vunpack.c.l.b16 %v2965
    %v4544 = vunpack.c.l.b16 %v2966
    %v4545 = vunpack.c.l.b16 %v2967
    %v4546 = vunpack.c.l.b16 %v2968
    %v4547 = vunpack.c.l.b16 %v2969
    %v4548 = vunpack.c.l.b16 %v2970
    %v4549 = vunpack.c.l.b16 %v2971
    %v4550 = vunpack.c.l.b16 %v2972
    %v4551 = vunpack.c.l.b16 %v2973
    %v4552 = vunpack.c.l.b16 %v2974
    %v4553 = vunpack.c.l.b16 %v2975
    %v4554 = vunpack.c.l.b16 %v2976
    %v4555 = vunpack.c.l.b16 %v2977
    %vm4556 = vcmask 1041409
    %v4557 = vsel %vm4556, %v4316, %v4300
    %vm4558 = vcmask 1042434
    %v4559 = vsel %vm4558, %v4332, %v4557
    %vm4560 = vcmask 1043459
    %v4561 = vsel %vm4560, %v4348, %v4559
    %vm4562 = vcmask 1044484
    %v4563 = vsel %vm4562, %v4364, %v4561
    %vm4564 = vcmask 1045509
    %v4565 = vsel %vm4564, %v4380, %v4563
    %vm4566 = vcmask 1046534
    %v4567 = vsel %vm4566, %v4396, %v4565
    %vm4568 = vcmask 1047559
    %v4569 = vsel %vm4568, %v4412, %v4567
    %v4570 = vsel %vm4556, %v4317, %v4301
    %v4571 = vsel %vm4558, %v4333, %v4570
    %v4572 = vsel %vm4560, %v4349, %v4571
    %v4573 = vsel %vm4562, %v4365, %v4572
    %v4574 = vsel %vm4564, %v4381, %v4573
    %v4575 = vsel %vm4566, %v4397, %v4574
    %v4576 = vsel %vm4568, %v4413, %v4575
    %v4577 = vsel %vm4556, %v4318, %v4302
    %v4578 = vsel %vm4558, %v4334, %v4577
    %v4579 = vsel %vm4560, %v4350, %v4578
    %v4580 = vsel %vm4562, %v4366, %v4579
    %v4581 = vsel %vm4564, %v4382, %v4580
    %v4582 = vsel %vm4566, %v4398, %v4581
    %v4583 = vsel %vm4568, %v4414, %v4582
    %v4584 = vsel %vm4556, %v4319, %v4303
    %v4585 = vsel %vm4558, %v4335, %v4584
    %v4586 = vsel %vm4560, %v4351, %v4585
    %v4587 = vsel %vm4562, %v4367, %v4586
    %v4588 = vsel %vm4564, %v4383, %v4587
    %v4589 = vsel %vm4566, %v4399, %v4588
    %v4590 = vsel %vm4568, %v4415, %v4589
    %v4591 = vsel %vm4556, %v4320, %v4304
    %v4592 = vsel %vm4558, %v4336, %v4591
    %v4593 = vsel %vm4560, %v4352, %v4592
    %v4594 = vsel %vm4562, %v4368, %v4593
    %v4595 = vsel %vm4564, %v4384, %v4594
    %v4596 = vsel %vm4566, %v4400, %v4595
    %v4597 = vsel %vm4568, %v4416, %v4596
    %v4598 = vsel %vm4556, %v4321, %v4305
    %v4599 = vsel %vm4558, %v4337, %v4598
    %v4600 = vsel %vm4560, %v4353, %v4599
    %v4601 = vsel %vm4562, %v4369, %v4600
    %v4602 = vsel %vm4564, %v4385, %v4601
    %v4603 = vsel %vm4566, %v4401, %v4602
    %v4604 = vsel %vm4568, %v4417, %v4603
    %v4605 = vsel %vm4556, %v4322, %v4306
    %v4606 = vsel %vm4558, %v4338, %v4605
    %v4607 = vsel %vm4560, %v4354, %v4606
    %v4608 = vsel %vm4562, %v4370, %v4607
    %v4609 = vsel %vm4564, %v4386, %v4608
    %v4610 = vsel %vm4566, %v4402, %v4609
    %v4611 = vsel %vm4568, %v4418, %v4610
    %v4612 = vsel %vm4556, %v4323, %v4307
    %v4613 = vsel %vm4558, %v4339, %v4612
    %v4614 = vsel %vm4560, %v4355, %v4613
    %v4615 = vsel %vm4562, %v4371, %v4614
    %v4616 = vsel %vm4564, %v4387, %v4615
    %v4617 = vsel %vm4566, %v4403, %v4616
    %v4618 = vsel %vm4568, %v4419, %v4617
    %v4619 = vsel %vm4556, %v4324, %v4308
    %v4620 = vsel %vm4558, %v4340, %v4619
    %v4621 = vsel %vm4560, %v4356, %v4620
    %v4622 = vsel %vm4562, %v4372, %v4621
    %v4623 = vsel %vm4564, %v4388, %v4622
    %v4624 = vsel %vm4566, %v4404, %v4623
    %v4625 = vsel %vm4568, %v4420, %v4624
    %v4626 = vsel %vm4556, %v4325, %v4309
    %v4627 = vsel %vm4558, %v4341, %v4626
    %v4628 = vsel %vm4560, %v4357, %v4627
    %v4629 = vsel %vm4562, %v4373, %v4628
    %v4630 = vsel %vm4564, %v4389, %v4629
    %v4631 = vsel %vm4566, %v4405, %v4630
    %v4632 = vsel %vm4568, %v4421, %v4631
    %v4633 = vsel %vm4556, %v4326, %v4310
    %v4634 = vsel %vm4558, %v4342, %v4633
    %v4635 = vsel %vm4560, %v4358, %v4634
    %v4636 = vsel %vm4562, %v4374, %v4635
    %v4637 = vsel %vm4564, %v4390, %v4636
    %v4638 = vsel %vm4566, %v4406, %v4637
    %v4639 = vsel %vm4568, %v4422, %v4638
    %v4640 = vsel %vm4556, %v4327, %v4311
    %v4641 = vsel %vm4558, %v4343, %v4640
    %v4642 = vsel %vm4560, %v4359, %v4641
    %v4643 = vsel %vm4562, %v4375, %v4642
    %v4644 = vsel %vm4564, %v4391, %v4643
    %v4645 = vsel %vm4566, %v4407, %v4644
    %v4646 = vsel %vm4568, %v4423, %v4645
    %v4647 = vsel %vm4556, %v4328, %v4312
    %v4648 = vsel %vm4558, %v4344, %v4647
    %v4649 = vsel %vm4560, %v4360, %v4648
    %v4650 = vsel %vm4562, %v4376, %v4649
    %v4651 = vsel %vm4564, %v4392, %v4650
    %v4652 = vsel %vm4566, %v4408, %v4651
    %v4653 = vsel %vm4568, %v4424, %v4652
    %v4654 = vsel %vm4556, %v4329, %v4313
    %v4655 = vsel %vm4558, %v4345, %v4654
    %v4656 = vsel %vm4560, %v4361, %v4655
    %v4657 = vsel %vm4562, %v4377, %v4656
    %v4658 = vsel %vm4564, %v4393, %v4657
    %v4659 = vsel %vm4566, %v4409, %v4658
    %v4660 = vsel %vm4568, %v4425, %v4659
    %v4661 = vsel %vm4556, %v4330, %v4314
    %v4662 = vsel %vm4558, %v4346, %v4661
    %v4663 = vsel %vm4560, %v4362, %v4662
    %v4664 = vsel %vm4562, %v4378, %v4663
    %v4665 = vsel %vm4564, %v4394, %v4664
    %v4666 = vsel %vm4566, %v4410, %v4665
    %v4667 = vsel %vm4568, %v4426, %v4666
    %v4668 = vsel %vm4556, %v4331, %v4315
    %v4669 = vsel %vm4558, %v4347, %v4668
    %v4670 = vsel %vm4560, %v4363, %v4669
    %v4671 = vsel %vm4562, %v4379, %v4670
    %v4672 = vsel %vm4564, %v4395, %v4671
    %v4673 = vsel %vm4566, %v4411, %v4672
    %v4674 = vsel %vm4568, %v4427, %v4673
    %v4675 = vsel %vm4556, %v4444, %v4428
    %v4676 = vsel %vm4558, %v4460, %v4675
    %v4677 = vsel %vm4560, %v4476, %v4676
    %v4678 = vsel %vm4562, %v4492, %v4677
    %v4679 = vsel %vm4564, %v4508, %v4678
    %v4680 = vsel %vm4566, %v4524, %v4679
    %v4681 = vsel %vm4568, %v4540, %v4680
    %v4682 = vsel %vm4556, %v4445, %v4429
    %v4683 = vsel %vm4558, %v4461, %v4682
    %v4684 = vsel %vm4560, %v4477, %v4683
    %v4685 = vsel %vm4562, %v4493, %v4684
    %v4686 = vsel %vm4564, %v4509, %v4685
    %v4687 = vsel %vm4566, %v4525, %v4686
    %v4688 = vsel %vm4568, %v4541, %v4687
    %v4689 = vsel %vm4556, %v4446, %v4430
    %v4690 = vsel %vm4558, %v4462, %v4689
    %v4691 = vsel %vm4560, %v4478, %v4690
    %v4692 = vsel %vm4562, %v4494, %v4691
    %v4693 = vsel %vm4564, %v4510, %v4692
    %v4694 = vsel %vm4566, %v4526, %v4693
    %v4695 = vsel %vm4568, %v4542, %v4694
    %v4696 = vsel %vm4556, %v4447, %v4431
    %v4697 = vsel %vm4558, %v4463, %v4696
    %v4698 = vsel %vm4560, %v4479, %v4697
    %v4699 = vsel %vm4562, %v4495, %v4698
    %v4700 = vsel %vm4564, %v4511, %v4699
    %v4701 = vsel %vm4566, %v4527, %v4700
    %v4702 = vsel %vm4568, %v4543, %v4701
    %v4703 = vsel %vm4556, %v4448, %v4432
    %v4704 = vsel %vm4558, %v4464, %v4703
    %v4705 = vsel %vm4560, %v4480, %v4704
    %v4706 = vsel %vm4562, %v4496, %v4705
    %v4707 = vsel %vm4564, %v4512, %v4706
    %v4708 = vsel %vm4566, %v4528, %v4707
    %v4709 = vsel %vm4568, %v4544, %v4708
    %v4710 = vsel %vm4556, %v4449, %v4433
    %v4711 = vsel %vm4558, %v4465, %v4710
    %v4712 = vsel %vm4560, %v4481, %v4711
    %v4713 = vsel %vm4562, %v4497, %v4712
    %v4714 = vsel %vm4564, %v4513, %v4713
    %v4715 = vsel %vm4566, %v4529, %v4714
    %v4716 = vsel %vm4568, %v4545, %v4715
    %v4717 = vsel %vm4556, %v4450, %v4434
    %v4718 = vsel %vm4558, %v4466, %v4717
    %v4719 = vsel %vm4560, %v4482, %v4718
    %v4720 = vsel %vm4562, %v4498, %v4719
    %v4721 = vsel %vm4564, %v4514, %v4720
    %v4722 = vsel %vm4566, %v4530, %v4721
    %v4723 = vsel %vm4568, %v4546, %v4722
    %v4724 = vsel %vm4556, %v4451, %v4435
    %v4725 = vsel %vm4558, %v4467, %v4724
    %v4726 = vsel %vm4560, %v4483, %v4725
    %v4727 = vsel %vm4562, %v4499, %v4726
    %v4728 = vsel %vm4564, %v4515, %v4727
    %v4729 = vsel %vm4566, %v4531, %v4728
    %v4730 = vsel %vm4568, %v4547, %v4729
    %v4731 = vsel %vm4556, %v4452, %v4436
    %v4732 = vsel %vm4558, %v4468, %v4731
    %v4733 = vsel %vm4560, %v4484, %v4732
    %v4734 = vsel %vm4562, %v4500, %v4733
    %v4735 = vsel %vm4564, %v4516, %v4734
    %v4736 = vsel %vm4566, %v4532, %v4735
    %v4737 = vsel %vm4568, %v4548, %v4736
    %v4738 = vsel %vm4556, %v4453, %v4437
    %v4739 = vsel %vm4558, %v4469, %v4738
    %v4740 = vsel %vm4560, %v4485, %v4739
    %v4741 = vsel %vm4562, %v4501, %v4740
    %v4742 = vsel %vm4564, %v4517, %v4741
    %v4743 = vsel %vm4566, %v4533, %v4742
    %v4744 = vsel %vm4568, %v4549, %v4743
    %v4745 = vsel %vm4556, %v4454, %v4438
    %v4746 = vsel %vm4558, %v4470, %v4745
    %v4747 = vsel %vm4560, %v4486, %v4746
    %v4748 = vsel %vm4562, %v4502, %v4747
    %v4749 = vsel %vm4564, %v4518, %v4748
    %v4750 = vsel %vm4566, %v4534, %v4749
    %v4751 = vsel %vm4568, %v4550, %v4750
    %v4752 = vsel %vm4556, %v4455, %v4439
    %v4753 = vsel %vm4558, %v4471, %v4752
    %v4754 = vsel %vm4560, %v4487, %v4753
    %v4755 = vsel %vm4562, %v4503, %v4754
    %v4756 = vsel %vm4564, %v4519, %v4755
    %v4757 = vsel %vm4566, %v4535, %v4756
    %v4758 = vsel %vm4568, %v4551, %v4757
    %v4759 = vsel %vm4556, %v4456, %v4440
    %v4760 = vsel %vm4558, %v4472, %v4759
    %v4761 = vsel %vm4560, %v4488, %v4760
    %v4762 = vsel %vm4562, %v4504, %v4761
    %v4763 = vsel %vm4564, %v4520, %v4762
    %v4764 = vsel %vm4566, %v4536, %v4763
    %v4765 = vsel %vm4568, %v4552, %v4764
    %v4766 = vsel %vm4556, %v4457, %v4441
    %v4767 = vsel %vm4558, %v4473, %v4766
    %v4768 = vsel %vm4560, %v4489, %v4767
    %v4769 = vsel %vm4562, %v4505, %v4768
    %v4770 = vsel %vm4564, %v4521, %v4769
    %v4771 = vsel %vm4566, %v4537, %v4770
    %v4772 = vsel %vm4568, %v4553, %v4771
    %v4773 = vsel %vm4556, %v4458, %v4442
    %v4774 = vsel %vm4558, %v4474, %v4773
    %v4775 = vsel %vm4560, %v4490, %v4774
    %v4776 = vsel %vm4562, %v4506, %v4775
    %v4777 = vsel %vm4564, %v4522, %v4776
    %v4778 = vsel %vm4566, %v4538, %v4777
    %v4779 = vsel %vm4568, %v4554, %v4778
    %v4780 = vsel %vm4556, %v4459, %v4443
    %v4781 = vsel %vm4558, %v4475, %v4780
    %v4782 = vsel %vm4560, %v4491, %v4781
    %v4783 = vsel %vm4562, %v4507, %v4782
    %v4784 = vsel %vm4564, %v4523, %v4783
    %v4785 = vsel %vm4566, %v4539, %v4784
    %v4786 = vsel %vm4568, %v4555, %v4785
    %v4787 = vpack.c.b16 %v4681, %v4569
    %v4788 = vpack.c.b16 %v4688, %v4576
    %v4789 = vpack.c.b16 %v4695, %v4583
    %v4790 = vpack.c.b16 %v4702, %v4590
    %v4791 = vpack.c.b16 %v4709, %v4597
    %v4792 = vpack.c.b16 %v4716, %v4604
    %v4793 = vpack.c.b16 %v4723, %v4611
    %v4794 = vpack.c.b16 %v4730, %v4618
    %v4795 = vpack.c.b16 %v4737, %v4625
    %v4796 = vpack.c.b16 %v4744, %v4632
    %v4797 = vpack.c.b16 %v4751, %v4639
    %v4798 = vpack.c.b16 %v4758, %v4646
    %v4799 = vpack.c.b16 %v4765, %v4653
    %v4800 = vpack.c.b16 %v4772, %v4660
    %v4801 = vpack.c.b16 %v4779, %v4667
    %v4802 = vpack.c.b16 %v4786, %v4674
    %v5843 = vunpack.c.l.b16 %v2978
    %v5844 = vunpack.c.h.b16 %v2978
    %v5845 = vunpack.c.l.b16 %v2979
    %v5846 = vunpack.c.h.b16 %v2979
    %v5847 = vunpack.c.l.b16 %v2980
    %v5848 = vunpack.c.h.b16 %v2980
    %v5849 = vunpack.c.l.b16 %v2981
    %v5850 = vunpack.c.h.b16 %v2981
    %v5851 = vunpack.c.l.b16 %v2982
    %v5852 = vunpack.c.h.b16 %v2982
    %v5853 = vunpack.c.l.b16 %v2983
    %v5854 = vunpack.c.h.b16 %v2983
    %v5855 = vunpack.c.l.b16 %v2984
    %v5856 = vunpack.c.h.b16 %v2984
    %v5857 = vunpack.c.l.b16 %v2985
    %v5858 = vunpack.c.h.b16 %v2985
    %v5859 = vunpack.c.l.b16 %v2986
    %v5860 = vunpack.c.h.b16 %v2986
    %v5861 = vunpack.c.l.b16 %v2987
    %v5862 = vunpack.c.h.b16 %v2987
    %v5863 = vunpack.c.l.b16 %v2988
    %v5864 = vunpack.c.h.b16 %v2988
    %v5865 = vunpack.c.l.b16 %v2989
    %v5866 = vunpack.c.h.b16 %v2989
    %v5867 = vunpack.c.l.b16 %v2990
    %v5868 = vunpack.c.h.b16 %v2990
    %v5869 = vunpack.c.l.b16 %v2991
    %v5870 = vunpack.c.h.b16 %v2991
    %v5871 = vunpack.c.l.b16 %v2992
    %v5872 = vunpack.c.h.b16 %v2992
    %v5873 = vunpack.c.l.b16 %v2993
    %v5874 = vunpack.c.h.b16 %v2993
    %v5875 = vunpack.c.l.b16 %v2994
    %v5876 = vunpack.c.h.b16 %v2994
    %v5877 = vunpack.c.l.b16 %v2995
    %v5878 = vunpack.c.h.b16 %v2995
    %v5879 = vunpack.c.l.b16 %v2996
    %v5880 = vunpack.c.h.b16 %v2996
    %v5881 = vunpack.c.l.b16 %v2997
    %v5882 = vunpack.c.h.b16 %v2997
    %v5883 = vunpack.c.l.b16 %v2998
    %v5884 = vunpack.c.h.b16 %v2998
    %v5885 = vunpack.c.l.b16 %v2999
    %v5886 = vunpack.c.h.b16 %v2999
    %v5887 = vunpack.c.l.b16 %v3000
    %v5888 = vunpack.c.h.b16 %v3000
    %v5889 = vunpack.c.l.b16 %v3001
    %v5890 = vunpack.c.h.b16 %v3001
    %v5891 = vunpack.c.l.b16 %v3002
    %v5892 = vunpack.c.h.b16 %v3002
    %v5893 = vunpack.c.l.b16 %v3003
    %v5894 = vunpack.c.h.b16 %v3003
    %v5895 = vunpack.c.l.b16 %v3004
    %v5896 = vunpack.c.h.b16 %v3004
    %v5897 = vunpack.c.l.b16 %v3005
    %v5898 = vunpack.c.h.b16 %v3005
    %v5899 = vunpack.c.l.b16 %v3006
    %v5900 = vunpack.c.h.b16 %v3006
    %v5901 = vunpack.c.l.b16 %v3007
    %v5902 = vunpack.c.h.b16 %v3007
    %v5903 = vunpack.c.l.b16 %v3008
    %v5904 = vunpack.c.h.b16 %v3008
    %v5905 = vunpack.c.l.b16 %v3009
    %v5906 = vunpack.c.h.b16 %v3009
    %v5907 = vunpack.c.l.b16 %v3010
    %v5908 = vunpack.c.h.b16 %v3010
    %v5909 = vunpack.c.l.b16 %v3011
    %v5910 = vunpack.c.h.b16 %v3011
    %v5911 = vunpack.c.l.b16 %v3012
    %v5912 = vunpack.c.h.b16 %v3012
    %v5913 = vunpack.c.l.b16 %v3013
    %v5914 = vunpack.c.h.b16 %v3013
    %v5915 = vunpack.c.l.b16 %v3014
    %v5916 = vunpack.c.h.b16 %v3014
    %v5917 = vunpack.c.l.b16 %v3015
    %v5918 = vunpack.c.h.b16 %v3015
    %v5919 = vunpack.c.l.b16 %v3016
    %v5920 = vunpack.c.h.b16 %v3016
    %v5921 = vunpack.c.l.b16 %v3017
    %v5922 = vunpack.c.h.b16 %v3017
    %v5923 = vunpack.c.l.b16 %v3018
    %v5924 = vunpack.c.h.b16 %v3018
    %v5925 = vunpack.c.l.b16 %v3019
    %v5926 = vunpack.c.h.b16 %v3019
    %v5927 = vunpack.c.l.b16 %v3020
    %v5928 = vunpack.c.h.b16 %v3020
    %v5929 = vunpack.c.l.b16 %v3021
    %v5930 = vunpack.c.h.b16 %v3021
    %v5931 = vunpack.c.l.b16 %v3022
    %v5932 = vunpack.c.h.b16 %v3022
    %v5933 = vunpack.c.l.b16 %v3023
    %v5934 = vunpack.c.h.b16 %v3023
    %v5935 = vunpack.c.l.b16 %v3024
    %v5936 = vunpack.c.h.b16 %v3024
    %v5937 = vunpack.c.l.b16 %v3025
    %v5938 = vunpack.c.h.b16 %v3025
    %v5939 = vunpack.c.l.b16 %v3026
    %v5940 = vunpack.c.h.b16 %v3026
    %v5941 = vunpack.c.l.b16 %v3027
    %v5942 = vunpack.c.h.b16 %v3027
    %v5943 = vunpack.c.l.b16 %v3028
    %v5944 = vunpack.c.h.b16 %v3028
    %v5945 = vunpack.c.l.b16 %v3029
    %v5946 = vunpack.c.h.b16 %v3029
    %v5947 = vunpack.c.l.b16 %v3030
    %v5948 = vunpack.c.h.b16 %v3030
    %v5949 = vunpack.c.l.b16 %v3031
    %v5950 = vunpack.c.h.b16 %v3031
    %v5951 = vunpack.c.l.b16 %v3032
    %v5952 = vunpack.c.h.b16 %v3032
    %v5953 = vunpack.c.l.b16 %v3033
    %v5954 = vunpack.c.h.b16 %v3033
    %v5955 = vunpack.c.l.b16 %v3034
    %v5956 = vunpack.c.h.b16 %v3034
    %v5957 = vunpack.c.l.b16 %v3035
    %v5958 = vunpack.c.h.b16 %v3035
    %v5959 = vunpack.c.l.b16 %v3036
    %v5960 = vunpack.c.h.b16 %v3036
    %v5961 = vunpack.c.l.b16 %v3037
    %v5962 = vunpack.c.h.b16 %v3037
    %v5963 = vunpack.c.l.b16 %v3038
    %v5964 = vunpack.c.h.b16 %v3038
    %v5965 = vunpack.c.l.b16 %v3039
    %v5966 = vunpack.c.h.b16 %v3039
    %v5967 = vunpack.c.l.b16 %v3040
    %v5968 = vunpack.c.h.b16 %v3040
    %v5969 = vunpack.c.l.b16 %v3041
    %v5970 = vunpack.c.h.b16 %v3041
    %v5971 = vunpack.c.l.b16 %v3042
    %v5972 = vunpack.c.h.b16 %v3042
    %v5973 = vunpack.c.l.b16 %v3043
    %v5974 = vunpack.c.h.b16 %v3043
    %v5975 = vunpack.c.l.b16 %v3044
    %v5976 = vunpack.c.h.b16 %v3044
    %v5977 = vunpack.c.l.b16 %v3045
    %v5978 = vunpack.c.h.b16 %v3045
    %v5979 = vunpack.c.l.b16 %v3046
    %v5980 = vunpack.c.h.b16 %v3046
    %v5981 = vunpack.c.l.b16 %v3047
    %v5982 = vunpack.c.h.b16 %v3047
    %v5983 = vunpack.c.l.b16 %v3048
    %v5984 = vunpack.c.h.b16 %v3048
    %v5985 = vunpack.c.l.b16 %v3049
    %v5986 = vunpack.c.h.b16 %v3049
    %v5987 = vunpack.c.l.b16 %v3050
    %v5988 = vunpack.c.h.b16 %v3050
    %v5989 = vunpack.c.l.b16 %v3051
    %v5990 = vunpack.c.h.b16 %v3051
    %v5991 = vunpack.c.l.b16 %v3052
    %v5992 = vunpack.c.h.b16 %v3052
    %v5993 = vunpack.c.l.b16 %v3053
    %v5994 = vunpack.c.h.b16 %v3053
    %v5995 = vunpack.c.l.b16 %v3054
    %v5996 = vunpack.c.h.b16 %v3054
    %v5997 = vunpack.c.l.b16 %v3055
    %v5998 = vunpack.c.h.b16 %v3055
    %v5999 = vunpack.c.l.b16 %v3056
    %v6000 = vunpack.c.h.b16 %v3056
    %v6001 = vunpack.c.l.b16 %v3057
    %v6002 = vunpack.c.h.b16 %v3057
    %v6003 = vunpack.c.l.b16 %v3058
    %v6004 = vunpack.c.h.b16 %v3058
    %v6005 = vunpack.c.l.b16 %v3059
    %v6006 = vunpack.c.h.b16 %v3059
    %v6007 = vunpack.c.l.b16 %v3060
    %v6008 = vunpack.c.h.b16 %v3060
    %v6009 = vunpack.c.l.b16 %v3061
    %v6010 = vunpack.c.h.b16 %v3061
    %v6011 = vunpack.c.l.b16 %v3062
    %v6012 = vunpack.c.h.b16 %v3062
    %v6013 = vunpack.c.l.b16 %v3063
    %v6014 = vunpack.c.h.b16 %v3063
    %v6015 = vunpack.c.l.b16 %v3064
    %v6016 = vunpack.c.h.b16 %v3064
    %v6017 = vunpack.c.l.b16 %v3065
    %v6018 = vunpack.c.h.b16 %v3065
    %v6019 = vunpack.c.l.b16 %v3066
    %v6020 = vunpack.c.h.b16 %v3066
    %v6021 = vunpack.c.l.b16 %v3067
    %v6022 = vunpack.c.h.b16 %v3067
    %v6023 = vunpack.c.l.b16 %v3068
    %v6024 = vunpack.c.h.b16 %v3068
    %v6025 = vunpack.c.l.b16 %v3069
    %v6026 = vunpack.c.h.b16 %v3069
    %v6027 = vunpack.c.l.b16 %v3070
    %v6028 = vunpack.c.h.b16 %v3070
    %v6029 = vunpack.c.l.b16 %v3071
    %v6030 = vunpack.c.h.b16 %v3071
    %v6031 = vunpack.c.l.b16 %v3072
    %v6032 = vunpack.c.h.b16 %v3072
    %v6033 = vunpack.c.l.b16 %v3073
    %v6034 = vunpack.c.h.b16 %v3073
    %v6035 = vunpack.c.l.b16 %v3074
    %v6036 = vunpack.c.h.b16 %v3074
    %v6037 = vunpack.c.l.b16 %v3075
    %v6038 = vunpack.c.h.b16 %v3075
    %v6039 = vunpack.c.l.b16 %v3076
    %v6040 = vunpack.c.h.b16 %v3076
    %v6041 = vunpack.c.l.b16 %v3077
    %v6042 = vunpack.c.h.b16 %v3077
    %v6043 = vunpack.c.l.b16 %v3078
    %v6044 = vunpack.c.h.b16 %v3078
    %v6045 = vunpack.c.l.b16 %v3079
    %v6046 = vunpack.c.h.b16 %v3079
    %v6047 = vunpack.c.l.b16 %v3080
    %v6048 = vunpack.c.h.b16 %v3080
    %v6049 = vunpack.c.l.b16 %v3081
    %v6050 = vunpack.c.h.b16 %v3081
    %v6051 = vunpack.c.l.b16 %v3082
    %v6052 = vunpack.c.h.b16 %v3082
    %v6053 = vunpack.c.l.b16 %v3083
    %v6054 = vunpack.c.h.b16 %v3083
    %v6055 = vunpack.c.l.b16 %v3084
    %v6056 = vunpack.c.h.b16 %v3084
    %v6057 = vunpack.c.l.b16 %v3085
    %v6058 = vunpack.c.h.b16 %v3085
    %v6059 = vunpack.c.l.b16 %v3086
    %v6060 = vunpack.c.h.b16 %v3086
    %v6061 = vunpack.c.l.b16 %v3087
    %v6062 = vunpack.c.h.b16 %v3087
    %v6063 = vunpack.c.l.b16 %v3088
    %v6064 = vunpack.c.h.b16 %v3088
    %v6065 = vunpack.c.l.b16 %v3089
    %v6066 = vunpack.c.h.b16 %v3089
    %v6067 = vunpack.c.l.b16 %v3090
    %v6068 = vunpack.c.h.b16 %v3090
    %v6069 = vunpack.c.l.b16 %v3091
    %v6070 = vunpack.c.h.b16 %v3091
    %v6071 = vunpack.c.l.b16 %v3092
    %v6072 = vunpack.c.h.b16 %v3092
    %v6073 = vunpack.c.l.b16 %v3093
    %v6074 = vunpack.c.h.b16 %v3093
    %v6075 = vunpack.c.l.b16 %v3094
    %v6076 = vunpack.c.h.b16 %v3094
    %v6077 = vunpack.c.l.b16 %v3095
    %v6078 = vunpack.c.h.b16 %v3095
    %v6079 = vunpack.c.l.b16 %v3096
    %v6080 = vunpack.c.h.b16 %v3096
    %v6081 = vunpack.c.l.b16 %v3097
    %v6082 = vunpack.c.h.b16 %v3097
    %v6083 = vunpack.c.l.b16 %v3098
    %v6084 = vunpack.c.h.b16 %v3098
    %v6085 = vunpack.c.l.b16 %v3099
    %v6086 = vunpack.c.h.b16 %v3099
    %v6087 = vunpack.c.l.b16 %v3100
    %v6088 = vunpack.c.h.b16 %v3100
    %v6089 = vunpack.c.l.b16 %v3101
    %v6090 = vunpack.c.h.b16 %v3101
    %v6091 = vunpack.c.l.b16 %v3102
    %v6092 = vunpack.c.h.b16 %v3102
    %v6093 = vunpack.c.l.b16 %v3103
    %v6094 = vunpack.c.h.b16 %v3103
    %v6095 = vunpack.c.l.b16 %v3104
    %v6096 = vunpack.c.h.b16 %v3104
    %v6097 = vunpack.c.l.b16 %v3105
    %v6098 = vunpack.c.h.b16 %v3105
    %v6099 = vunpack.c.l.b16 %v3106
    %v6100 = vunpack.c.h.b16 %v3106
    %v6101 = vunpack.c.l.b16 %v3107
    %v6102 = vunpack.c.h.b16 %v3107
    %v6103 = vunpack.c.l.b16 %v3108
    %v6104 = vunpack.c.h.b16 %v3108
    %v6105 = vunpack.c.l.b16 %v3109
    %v6106 = vunpack.c.h.b16 %v3109
    %v6107 = vunpack.c.l.b16 %v3110
    %v6108 = vunpack.c.h.b16 %v3110
    %v6109 = vunpack.c.l.b16 %v3111
    %v6110 = vunpack.c.h.b16 %v3111
    %v6111 = vunpack.c.l.b16 %v3112
    %v6112 = vunpack.c.h.b16 %v3112
    %v6113 = vunpack.c.l.b16 %v3113
    %v6114 = vunpack.c.h.b16 %v3113
    %v6115 = vunpack.c.l.b16 %v3114
    %v6116 = vunpack.c.h.b16 %v3114
    %v6117 = vunpack.c.l.b16 %v3115
    %v6118 = vunpack.c.h.b16 %v3115
    %v6119 = vunpack.c.l.b16 %v3116
    %v6120 = vunpack.c.h.b16 %v3116
    %v6121 = vunpack.c.l.b16 %v3117
    %v6122 = vunpack.c.h.b16 %v3117
    %v6123 = vunpack.c.l.b16 %v3118
    %v6124 = vunpack.c.h.b16 %v3118
    %v6125 = vunpack.c.l.b16 %v3119
    %v6126 = vunpack.c.h.b16 %v3119
    %v6127 = vunpack.c.l.b16 %v3120
    %v6128 = vunpack.c.h.b16 %v3120
    %v6129 = vunpack.c.l.b16 %v3121
    %v6130 = vunpack.c.h.b16 %v3121
    %v6131 = vunpack.c.l.b16 %v3122
    %v6132 = vunpack.c.h.b16 %v3122
    %v6133 = vunpack.c.l.b16 %v3123
    %v6134 = vunpack.c.h.b16 %v3123
    %v6135 = vunpack.c.l.b16 %v3124
    %v6136 = vunpack.c.h.b16 %v3124
    %v6137 = vunpack.c.l.b16 %v3125
    %v6138 = vunpack.c.h.b16 %v3125
    %v6139 = vunpack.c.l.b16 %v3126
    %v6140 = vunpack.c.h.b16 %v3126
    %v6141 = vunpack.c.l.b16 %v3127
    %v6142 = vunpack.c.h.b16 %v3127
    %v6143 = vunpack.c.l.b16 %v3128
    %v6144 = vunpack.c.h.b16 %v3128
    %v6145 = vunpack.c.l.b16 %v3129
    %v6146 = vunpack.c.h.b16 %v3129
    %v6147 = vunpack.c.l.b16 %v3130
    %v6148 = vunpack.c.h.b16 %v3130
    %v6149 = vunpack.c.l.b16 %v3131
    %v6150 = vunpack.c.h.b16 %v3131
    %v6151 = vunpack.c.l.b16 %v3132
    %v6152 = vunpack.c.h.b16 %v3132
    %v6153 = vunpack.c.l.b16 %v3133
    %v6154 = vunpack.c.h.b16 %v3133
    %v6155 = vunpack.c.l.b16 %v3134
    %v6156 = vunpack.c.h.b16 %v3134
    %v6157 = vunpack.c.l.b16 %v3135
    %v6158 = vunpack.c.h.b16 %v3135
    %v6159 = vunpack.c.l.b16 %v3136
    %v6160 = vunpack.c.h.b16 %v3136
    %v6161 = vunpack.c.l.b16 %v3137
    %v6162 = vunpack.c.h.b16 %v3137
    %v6163 = vunpack.c.l.b16 %v3138
    %v6164 = vunpack.c.h.b16 %v3138
    %v6165 = vunpack.c.l.b16 %v3139
    %v6166 = vunpack.c.h.b16 %v3139
    %v6167 = vunpack.c.l.b16 %v3140
    %v6168 = vunpack.c.h.b16 %v3140
    %v6169 = vunpack.c.l.b16 %v3141
    %v6170 = vunpack.c.h.b16 %v3141
    %v6171 = vunpack.c.l.b16 %v3142
    %v6172 = vunpack.c.h.b16 %v3142
    %v6173 = vunpack.c.l.b16 %v3143
    %v6174 = vunpack.c.h.b16 %v3143
    %v6175 = vunpack.c.l.b16 %v3144
    %v6176 = vunpack.c.h.b16 %v3144
    %v6177 = vunpack.c.l.b16 %v3145
    %v6178 = vunpack.c.h.b16 %v3145
    %v6179 = vunpack.c.l.b16 %v3146
    %v6180 = vunpack.c.h.b16 %v3146
    %v6181 = vunpack.c.l.b16 %v3147
    %v6182 = vunpack.c.h.b16 %v3147
    %v6183 = vunpack.c.l.b16 %v3148
    %v6184 = vunpack.c.h.b16 %v3148
    %v6185 = vunpack.c.l.b16 %v3149
    %v6186 = vunpack.c.h.b16 %v3149
    %v6187 = vunpack.c.l.b16 %v3150
    %v6188 = vunpack.c.h.b16 %v3150
    %v6189 = vunpack.c.l.b16 %v3151
    %v6190 = vunpack.c.h.b16 %v3151
    %v6191 = vunpack.c.l.b16 %v3152
    %v6192 = vunpack.c.h.b16 %v3152
    %v6193 = vunpack.c.l.b16 %v3153
    %v6194 = vunpack.c.h.b16 %v3153
    %v6195 = vunpack.c.l.b16 %v3154
    %v6196 = vunpack.c.h.b16 %v3154
    %v6197 = vunpack.c.l.b16 %v3155
    %v6198 = vunpack.c.h.b16 %v3155
    %v6199 = vunpack.c.l.b16 %v3156
    %v6200 = vunpack.c.h.b16 %v3156
    %v6201 = vunpack.c.l.b16 %v3157
    %v6202 = vunpack.c.h.b16 %v3157
    %v6203 = vunpack.c.l.b16 %v3158
    %v6204 = vunpack.c.h.b16 %v3158
    %v6205 = vunpack.c.l.b16 %v3159
    %v6206 = vunpack.c.h.b16 %v3159
    %v6207 = vunpack.c.l.b16 %v3160
    %v6208 = vunpack.c.h.b16 %v3160
    %v6209 = vunpack.c.l.b16 %v3161
    %v6210 = vunpack.c.h.b16 %v3161
    %v6211 = vunpack.c.l.b16 %v3162
    %v6212 = vunpack.c.h.b16 %v3162
    %v6213 = vunpack.c.l.b16 %v3163
    %v6214 = vunpack.c.h.b16 %v3163
    %v6215 = vunpack.c.l.b16 %v3164
    %v6216 = vunpack.c.h.b16 %v3164
    %v6217 = vunpack.c.l.b16 %v3165
    %v6218 = vunpack.c.h.b16 %v3165
    %v6219 = vunpack.c.l.b16 %v3166
    %v6220 = vunpack.c.h.b16 %v3166
    %v6221 = vunpack.c.l.b16 %v3167
    %v6222 = vunpack.c.h.b16 %v3167
    %v6223 = vunpack.c.l.b16 %v3168
    %v6224 = vunpack.c.h.b16 %v3168
    %v6225 = vunpack.c.l.b16 %v3169
    %v6226 = vunpack.c.h.b16 %v3169
    %v6227 = vunpack.c.l.b16 %v3170
    %v6228 = vunpack.c.h.b16 %v3170
    %v6229 = vunpack.c.l.b16 %v3171
    %v6230 = vunpack.c.h.b16 %v3171
    %v6231 = vunpack.c.l.b16 %v3172
    %v6232 = vunpack.c.h.b16 %v3172
    %v6233 = vunpack.c.l.b16 %v3173
    %v6234 = vunpack.c.h.b16 %v3173
    %v6235 = vunpack.c.l.b16 %v3174
    %v6236 = vunpack.c.h.b16 %v3174
    %v6237 = vunpack.c.l.b16 %v3175
    %v6238 = vunpack.c.h.b16 %v3175
    %v6239 = vunpack.c.l.b16 %v3176
    %v6240 = vunpack.c.h.b16 %v3176
    %v6241 = vunpack.c.l.b16 %v3177
    %v6242 = vunpack.c.h.b16 %v3177
    %v6243 = vunpack.c.l.b16 %v3178
    %v6244 = vunpack.c.h.b16 %v3178
    %v6245 = vunpack.c.l.b16 %v3179
    %v6246 = vunpack.c.h.b16 %v3179
    %v6247 = vunpack.c.l.b16 %v3180
    %v6248 = vunpack.c.h.b16 %v3180
    %v6249 = vunpack.c.l.b16 %v3181
    %v6250 = vunpack.c.h.b16 %v3181
    %v6251 = vunpack.c.l.b16 %v3182
    %v6252 = vunpack.c.h.b16 %v3182
    %v6253 = vunpack.c.l.b16 %v3183
    %v6254 = vunpack.c.h.b16 %v3183
    %v6255 = vunpack.c.l.b16 %v3184
    %v6256 = vunpack.c.h.b16 %v3184
    %v6257 = vunpack.c.l.b16 %v3185
    %v6258 = vunpack.c.h.b16 %v3185
    %v6259 = vunpack.c.l.b16 %v3186
    %v6260 = vunpack.c.h.b16 %v3186
    %v6261 = vunpack.c.l.b16 %v3187
    %v6262 = vunpack.c.h.b16 %v3187
    %v6263 = vunpack.c.l.b16 %v3188
    %v6264 = vunpack.c.h.b16 %v3188
    %v6265 = vunpack.c.l.b16 %v3189
    %v6266 = vunpack.c.h.b16 %v3189
    %v6267 = vunpack.c.l.b16 %v3190
    %v6268 = vunpack.c.h.b16 %v3190
    %v6269 = vunpack.c.l.b16 %v3191
    %v6270 = vunpack.c.h.b16 %v3191
    %v6271 = vunpack.c.l.b16 %v3192
    %v6272 = vunpack.c.h.b16 %v3192
    %v6273 = vunpack.c.l.b16 %v3193
    %v6274 = vunpack.c.h.b16 %v3193
    %v6275 = vunpack.c.l.b16 %v3194
    %v6276 = vunpack.c.h.b16 %v3194
    %v6277 = vunpack.c.l.b16 %v3195
    %v6278 = vunpack.c.h.b16 %v3195
    %v6279 = vunpack.c.l.b16 %v3196
    %v6280 = vunpack.c.h.b16 %v3196
    %v6281 = vunpack.c.l.b16 %v3197
    %v6282 = vunpack.c.h.b16 %v3197
    %v6283 = vunpack.c.l.b16 %v3198
    %v6284 = vunpack.c.h.b16 %v3198
    %v6285 = vunpack.c.l.b16 %v3199
    %v6286 = vunpack.c.h.b16 %v3199
    %v6287 = vunpack.c.l.b16 %v3200
    %v6288 = vunpack.c.h.b16 %v3200
    %v6289 = vunpack.c.l.b16 %v3201
    %v6290 = vunpack.c.h.b16 %v3201
    %v6291 = vunpack.c.l.b16 %v3202
    %v6292 = vunpack.c.h.b16 %v3202
    %v6293 = vunpack.c.l.b16 %v3203
    %v6294 = vunpack.c.h.b16 %v3203
    %v6295 = vunpack.c.l.b16 %v3204
    %v6296 = vunpack.c.h.b16 %v3204
    %v6297 = vunpack.c.l.b16 %v3205
    %v6298 = vunpack.c.h.b16 %v3205
    %v6299 = vunpack.c.l.b16 %v3206
    %v6300 = vunpack.c.h.b16 %v3206
    %v6301 = vunpack.c.l.b16 %v3207
    %v6302 = vunpack.c.h.b16 %v3207
    %v6303 = vunpack.c.l.b16 %v3208
    %v6304 = vunpack.c.h.b16 %v3208
    %v6305 = vunpack.c.l.b16 %v3209
    %v6306 = vunpack.c.h.b16 %v3209
    %v6307 = vunpack.c.l.b16 %v3210
    %v6308 = vunpack.c.h.b16 %v3210
    %v6309 = vunpack.c.l.b16 %v3211
    %v6310 = vunpack.c.h.b16 %v3211
    %v6311 = vunpack.c.l.b16 %v3212
    %v6312 = vunpack.c.h.b16 %v3212
    %v6313 = vunpack.c.l.b16 %v3213
    %v6314 = vunpack.c.h.b16 %v3213
    %v6315 = vunpack.c.l.b16 %v3214
    %v6316 = vunpack.c.h.b16 %v3214
    %v6317 = vunpack.c.l.b16 %v3215
    %v6318 = vunpack.c.h.b16 %v3215
    %v6319 = vunpack.c.l.b16 %v3216
    %v6320 = vunpack.c.h.b16 %v3216
    %v6321 = vunpack.c.l.b16 %v3217
    %v6322 = vunpack.c.h.b16 %v3217
    %v6323 = vunpack.c.l.b16 %v3218
    %v6324 = vunpack.c.h.b16 %v3218
    %v6325 = vunpack.c.l.b16 %v3219
    %v6326 = vunpack.c.h.b16 %v3219
    %v6327 = vunpack.c.l.b16 %v3220
    %v6328 = vunpack.c.h.b16 %v3220
    %v6329 = vunpack.c.l.b16 %v3221
    %v6330 = vunpack.c.h.b16 %v3221
    %v6331 = vunpack.c.l.b16 %v3222
    %v6332 = vunpack.c.h.b16 %v3222
    %v6333 = vunpack.c.l.b16 %v3223
    %v6334 = vunpack.c.h.b16 %v3223
    %v6335 = vunpack.c.l.b16 %v3224
    %v6336 = vunpack.c.h.b16 %v3224
    %v6337 = vunpack.c.l.b16 %v3225
    %v6338 = vunpack.c.h.b16 %v3225
    %v6339 = vunpack.c.l.b16 %v3226
    %v6340 = vunpack.c.h.b16 %v3226
    %v6341 = vunpack.c.l.b16 %v3227
    %v6342 = vunpack.c.h.b16 %v3227
    %v6343 = vunpack.c.l.b16 %v3228
    %v6344 = vunpack.c.h.b16 %v3228
    %v6345 = vunpack.c.l.b16 %v3229
    %v6346 = vunpack.c.h.b16 %v3229
    %v6347 = vunpack.c.l.b16 %v3230
    %v6348 = vunpack.c.h.b16 %v3230
    %v6349 = vunpack.c.l.b16 %v3231
    %v6350 = vunpack.c.h.b16 %v3231
    %v6351 = vunpack.c.l.b16 %v3232
    %v6352 = vunpack.c.h.b16 %v3232
    %v6353 = vunpack.c.l.b16 %v3233
    %v6354 = vunpack.c.h.b16 %v3233
    %v6355 = vunpack.c.l.b16 %v3234
    %v6356 = vunpack.c.h.b16 %v3234
    %v6357 = vunpack.c.l.b16 %v3235
    %v6358 = vunpack.c.h.b16 %v3235
    %v6359 = vunpack.c.l.b16 %v3236
    %v6360 = vunpack.c.h.b16 %v3236
    %v6361 = vunpack.c.l.b16 %v3237
    %v6362 = vunpack.c.h.b16 %v3237
    %v6363 = vunpack.c.l.b16 %v3238
    %v6364 = vunpack.c.h.b16 %v3238
    %v6365 = vunpack.c.l.b16 %v3239
    %v6366 = vunpack.c.h.b16 %v3239
    %v6367 = vunpack.c.l.b16 %v3240
    %v6368 = vunpack.c.h.b16 %v3240
    %v6369 = vunpack.c.l.b16 %v3241
    %v6370 = vunpack.c.h.b16 %v3241
    %v6371 = vunpack.c.l.b16 %v3242
    %v6372 = vunpack.c.h.b16 %v3242
    %v6373 = vunpack.c.l.b16 %v3243
    %v6374 = vunpack.c.h.b16 %v3243
    %v6375 = vunpack.c.l.b16 %v3244
    %v6376 = vunpack.c.h.b16 %v3244
    %v6377 = vunpack.c.l.b16 %v3245
    %v6378 = vunpack.c.h.b16 %v3245
    %v6379 = vunpack.c.l.b16 %v3246
    %v6380 = vunpack.c.h.b16 %v3246
    %v6381 = vunpack.c.l.b16 %v3247
    %v6382 = vunpack.c.h.b16 %v3247
    %v6383 = vunpack.c.l.b16 %v3248
    %v6384 = vunpack.c.h.b16 %v3248
    %v6385 = vunpack.c.l.b16 %v3249
    %v6386 = vunpack.c.h.b16 %v3249
    %v6387 = vunpack.c.l.b16 %v3250
    %v6388 = vunpack.c.h.b16 %v3250
    %v6389 = vunpack.c.l.b16 %v3251
    %v6390 = vunpack.c.h.b16 %v3251
    %v6391 = vunpack.c.l.b16 %v3252
    %v6392 = vunpack.c.h.b16 %v3252
    %v6393 = vunpack.c.l.b16 %v3253
    %v6394 = vunpack.c.h.b16 %v3253
    %v6395 = vunpack.c.l.b16 %v3254
    %v6396 = vunpack.c.h.b16 %v3254
    %v6397 = vunpack.c.l.b16 %v3255
    %v6398 = vunpack.c.h.b16 %v3255
    %v6399 = vunpack.c.l.b16 %v3256
    %v6400 = vunpack.c.h.b16 %v3256
    %v6401 = vunpack.c.l.b16 %v3257
    %v6402 = vunpack.c.h.b16 %v3257
    %v6403 = vunpack.c.l.b16 %v3258
    %v6404 = vunpack.c.h.b16 %v3258
    %v6405 = vunpack.c.l.b16 %v3259
    %v6406 = vunpack.c.h.b16 %v3259
    %v6407 = vunpack.c.l.b16 %v3260
    %v6408 = vunpack.c.h.b16 %v3260
    %v6409 = vunpack.c.l.b16 %v3261
    %v6410 = vunpack.c.h.b16 %v3261
    %v6411 = vunpack.c.l.b16 %v3262
    %v6412 = vunpack.c.h.b16 %v3262
    %v6413 = vunpack.c.l.b16 %v3263
    %v6414 = vunpack.c.h.b16 %v3263
    %v6415 = vunpack.c.l.b16 %v3264
    %v6416 = vunpack.c.h.b16 %v3264
    %v6417 = vunpack.c.l.b16 %v3265
    %v6418 = vunpack.c.h.b16 %v3265
    %v6419 = vunpack.c.l.b16 %v3266
    %v6420 = vunpack.c.h.b16 %v3266
    %v6421 = vunpack.c.l.b16 %v3267
    %v6422 = vunpack.c.h.b16 %v3267
    %v6423 = vunpack.c.l.b16 %v3268
    %v6424 = vunpack.c.h.b16 %v3268
    %v6425 = vunpack.c.l.b16 %v3269
    %v6426 = vunpack.c.h.b16 %v3269
    %v6427 = vunpack.c.l.b16 %v3270
    %v6428 = vunpack.c.h.b16 %v3270
    %v6429 = vunpack.c.l.b16 %v3271
    %v6430 = vunpack.c.h.b16 %v3271
    %v6431 = vunpack.c.l.b16 %v3272
    %v6432 = vunpack.c.h.b16 %v3272
    %v6433 = vunpack.c.l.b16 %v3273
    %v6434 = vunpack.c.h.b16 %v3273
    %v6435 = vunpack.c.l.b16 %v3274
    %v6436 = vunpack.c.h.b16 %v3274
    %v6437 = vunpack.c.l.b16 %v3275
    %v6438 = vunpack.c.h.b16 %v3275
    %v6439 = vunpack.c.l.b16 %v3276
    %v6440 = vunpack.c.h.b16 %v3276
    %v6441 = vunpack.c.l.b16 %v3277
    %v6442 = vunpack.c.h.b16 %v3277
    %v6443 = vunpack.c.l.b16 %v3278
    %v6444 = vunpack.c.h.b16 %v3278
    %v6445 = vunpack.c.l.b16 %v3279
    %v6446 = vunpack.c.h.b16 %v3279
    %v6447 = vunpack.c.l.b16 %v3280
    %v6448 = vunpack.c.h.b16 %v3280
    %v6449 = vunpack.c.l.b16 %v3281
    %v6450 = vunpack.c.h.b16 %v3281
    %v6451 = vunpack.c.l.b16 %v3282
    %v6452 = vunpack.c.h.b16 %v3282
    %v6453 = vunpack.c.l.b16 %v3283
    %v6454 = vunpack.c.h.b16 %v3283
    %v6455 = vunpack.c.l.b16 %v3284
    %v6456 = vunpack.c.h.b16 %v3284
    %v6457 = vunpack.c.l.b16 %v3285
    %v6458 = vunpack.c.h.b16 %v3285
    %v6459 = vunpack.c.l.b16 %v3286
    %v6460 = vunpack.c.h.b16 %v3286
    %v6461 = vunpack.c.l.b16 %v3287
    %v6462 = vunpack.c.h.b16 %v3287
    %v6463 = vunpack.c.l.b16 %v3288
    %v6464 = vunpack.c.h.b16 %v3288
    %v6465 = vunpack.c.l.b16 %v3289
    %v6466 = vunpack.c.h.b16 %v3289
    %v6467 = vunpack.c.l.b16 %v3290
    %v6468 = vunpack.c.h.b16 %v3290
    %v6469 = vunpack.c.l.b16 %v3291
    %v6470 = vunpack.c.h.b16 %v3291
    %v6471 = vunpack.c.l.b16 %v3292
    %v6472 = vunpack.c.h.b16 %v3292
    %v6473 = vunpack.c.l.b16 %v3293
    %v6474 = vunpack.c.h.b16 %v3293
    %v6475 = vunpack.c.l.b16 %v3294
    %v6476 = vunpack.c.h.b16 %v3294
    %v6477 = vunpack.c.l.b16 %v3295
    %v6478 = vunpack.c.h.b16 %v3295
    %v6479 = vunpack.c.l.b16 %v3296
    %v6480 = vunpack.c.h.b16 %v3296
    %v6481 = vunpack.c.l.b16 %v3297
    %v6482 = vunpack.c.h.b16 %v3297
    %v6483 = vunpack.c.l.b16 %v3298
    %v6484 = vunpack.c.h.b16 %v3298
    %v6485 = vunpack.c.l.b16 %v3299
    %v6486 = vunpack.c.h.b16 %v3299
    %v6487 = vunpack.c.l.b16 %v3300
    %v6488 = vunpack.c.h.b16 %v3300
    %v6489 = vunpack.c.l.b16 %v3301
    %v6490 = vunpack.c.h.b16 %v3301
    %v6491 = vunpack.c.l.b16 %v3302
    %v6492 = vunpack.c.h.b16 %v3302
    %v6493 = vunpack.c.l.b16 %v3303
    %v6494 = vunpack.c.h.b16 %v3303
    %v6495 = vunpack.c.l.b16 %v3304
    %v6496 = vunpack.c.h.b16 %v3304
    %v6497 = vunpack.c.l.b16 %v3305
    %v6498 = vunpack.c.h.b16 %v3305
    %v6499 = vunpack.c.l.b16 %v3306
    %v6500 = vunpack.c.h.b16 %v3306
    %v6501 = vunpack.c.l.b16 %v3307
    %v6502 = vunpack.c.h.b16 %v3307
    %v6503 = vunpack.c.l.b16 %v3308
    %v6504 = vunpack.c.h.b16 %v3308
    %v6505 = vunpack.c.l.b16 %v3309
    %v6506 = vunpack.c.h.b16 %v3309
    %v6507 = vunpack.c.l.b16 %v3310
    %v6508 = vunpack.c.h.b16 %v3310
    %v6509 = vunpack.c.l.b16 %v3311
    %v6510 = vunpack.c.h.b16 %v3311
    %v6511 = vunpack.c.l.b16 %v3312
    %v6512 = vunpack.c.h.b16 %v3312
    %v6513 = vunpack.c.l.b16 %v3313
    %v6514 = vunpack.c.h.b16 %v3313
    %v6515 = vunpack.c.l.b16 %v3314
    %v6516 = vunpack.c.h.b16 %v3314
    %v6517 = vunpack.c.l.b16 %v3315
    %v6518 = vunpack.c.h.b16 %v3315
    %v6519 = vunpack.c.l.b16 %v3316
    %v6520 = vunpack.c.h.b16 %v3316
    %v6521 = vunpack.c.l.b16 %v3317
    %v6522 = vunpack.c.h.b16 %v3317
    %v6523 = vunpack.c.l.b16 %v3318
    %v6524 = vunpack.c.h.b16 %v3318
    %v6525 = vunpack.c.l.b16 %v3319
    %v6526 = vunpack.c.h.b16 %v3319
    %v6527 = vunpack.c.l.b16 %v3320
    %v6528 = vunpack.c.h.b16 %v3320
    %v6529 = vunpack.c.l.b16 %v3321
    %v6530 = vunpack.c.h.b16 %v3321
    %v6531 = vunpack.c.l.b16 %v3322
    %v6532 = vunpack.c.h.b16 %v3322
    %v6533 = vunpack.c.l.b16 %v3323
    %v6534 = vunpack.c.h.b16 %v3323
    %v6535 = vunpack.c.l.b16 %v3324
    %v6536 = vunpack.c.h.b16 %v3324
    %v6537 = vunpack.c.l.b16 %v3325
    %v6538 = vunpack.c.h.b16 %v3325
    %v6539 = vunpack.c.l.b16 %v3326
    %v6540 = vunpack.c.h.b16 %v3326
    %v6541 = vunpack.c.l.b16 %v3327
    %v6542 = vunpack.c.h.b16 %v3327
    %v6543 = vunpack.c.l.b16 %v3328
    %v6544 = vunpack.c.h.b16 %v3328
    %v6545 = vunpack.c.l.b16 %v3329
    %v6546 = vunpack.c.h.b16 %v3329
    %v6547 = vunpack.c.l.b16 %v3330
    %v6548 = vunpack.c.h.b16 %v3330
    %v6549 = vunpack.c.l.b16 %v3331
    %v6550 = vunpack.c.h.b16 %v3331
    %v6551 = vunpack.c.l.b16 %v3332
    %v6552 = vunpack.c.h.b16 %v3332
    %v6553 = vunpack.c.l.b16 %v3333
    %v6554 = vunpack.c.h.b16 %v3333
    %v6555 = vunpack.c.l.b16 %v3334
    %v6556 = vunpack.c.h.b16 %v3334
    %v6557 = vunpack.c.l.b16 %v3335
    %v6558 = vunpack.c.h.b16 %v3335
    %v6559 = vunpack.c.l.b16 %v3336
    %v6560 = vunpack.c.h.b16 %v3336
    %v6561 = vunpack.c.l.b16 %v3337
    %v6562 = vunpack.c.h.b16 %v3337
    %v6563 = vunpack.c.l.b16 %v3338
    %v6564 = vunpack.c.h.b16 %v3338
    %v6565 = vunpack.c.l.b16 %v3339
    %v6566 = vunpack.c.h.b16 %v3339
    %v6567 = vunpack.c.l.b16 %v3340
    %v6568 = vunpack.c.h.b16 %v3340
    %v6569 = vunpack.c.l.b16 %v3341
    %v6570 = vunpack.c.h.b16 %v3341
    %v6571 = vunpack.c.l.b16 %v3342
    %v6572 = vunpack.c.h.b16 %v3342
    %v6573 = vunpack.c.l.b16 %v3343
    %v6574 = vunpack.c.h.b16 %v3343
    %v6575 = vunpack.c.l.b16 %v3344
    %v6576 = vunpack.c.h.b16 %v3344
    %v6577 = vunpack.c.l.b16 %v3345
    %v6578 = vunpack.c.h.b16 %v3345
    %v6579 = vunpack.c.l.b16 %v3346
    %v6580 = vunpack.c.h.b16 %v3346
    %v6581 = vunpack.c.l.b16 %v3347
    %v6582 = vunpack.c.h.b16 %v3347
    %v6583 = vunpack.c.l.b16 %v3348
    %v6584 = vunpack.c.h.b16 %v3348
    %v6585 = vunpack.c.l.b16 %v3349
    %v6586 = vunpack.c.h.b16 %v3349
    %v6587 = vunpack.c.l.b16 %v3350
    %v6588 = vunpack.c.h.b16 %v3350
    %v6589 = vunpack.c.l.b16 %v3351
    %v6590 = vunpack.c.h.b16 %v3351
    %v6591 = vunpack.c.l.b16 %v3352
    %v6592 = vunpack.c.h.b16 %v3352
    %v6593 = vunpack.c.l.b16 %v3353
    %v6594 = vunpack.c.h.b16 %v3353
    %v6595 = vunpack.c.l.b16 %v3354
    %v6596 = vunpack.c.h.b16 %v3354
    %v6597 = vunpack.c.l.b16 %v3355
    %v6598 = vunpack.c.h.b16 %v3355
    %v6599 = vunpack.c.l.b16 %v3356
    %v6600 = vunpack.c.h.b16 %v3356
    %v6601 = vunpack.c.l.b16 %v3357
    %v6602 = vunpack.c.h.b16 %v3357
    %v6603 = vunpack.c.l.b16 %v3358
    %v6604 = vunpack.c.h.b16 %v3358
    %v6605 = vunpack.c.l.b16 %v3359
    %v6606 = vunpack.c.h.b16 %v3359
    %v6607 = vunpack.c.l.b16 %v3360
    %v6608 = vunpack.c.h.b16 %v3360
    %v6609 = vunpack.c.l.b16 %v3361
    %v6610 = vunpack.c.h.b16 %v3361
    %v6611 = vunpack.c.l.b16 %v3362
    %v6612 = vunpack.c.h.b16 %v3362
    %v6613 = vunpack.c.l.b16 %v3363
    %v6614 = vunpack.c.h.b16 %v3363
    %v6615 = vunpack.c.l.b16 %v3364
    %v6616 = vunpack.c.h.b16 %v3364
    %v6617 = vunpack.c.l.b16 %v3365
    %v6618 = vunpack.c.h.b16 %v3365
    %v6619 = vunpack.c.l.b16 %v3366
    %v6620 = vunpack.c.h.b16 %v3366
    %v6621 = vunpack.c.l.b16 %v3367
    %v6622 = vunpack.c.h.b16 %v3367
    %v6623 = vunpack.c.l.b16 %v3368
    %v6624 = vunpack.c.h.b16 %v3368
    %v6625 = vunpack.c.l.b16 %v3369
    %v6626 = vunpack.c.h.b16 %v3369
    %v6627 = vunpack.c.l.b16 %v3370
    %v6628 = vunpack.c.h.b16 %v3370
    %v6629 = vunpack.c.l.b16 %v3371
    %v6630 = vunpack.c.h.b16 %v3371
    %v6631 = vunpack.c.l.b16 %v3372
    %v6632 = vunpack.c.h.b16 %v3372
    %v6633 = vunpack.c.l.b16 %v3373
    %v6634 = vunpack.c.h.b16 %v3373
    %v6635 = vunpack.c.l.b16 %v3374
    %v6636 = vunpack.c.h.b16 %v3374
    %v6637 = vunpack.c.l.b16 %v3375
    %v6638 = vunpack.c.h.b16 %v3375
    %v6639 = vunpack.c.l.b16 %v3376
    %v6640 = vunpack.c.h.b16 %v3376
    %v6641 = vunpack.c.l.b16 %v3377
    %v6642 = vunpack.c.h.b16 %v3377
    %v6643 = vunpack.c.l.b16 %v3378
    %v6644 = vunpack.c.h.b16 %v3378
    %v6645 = vunpack.c.l.b16 %v3379
    %v6646 = vunpack.c.h.b16 %v3379
    %v6647 = vunpack.c.l.b16 %v3380
    %v6648 = vunpack.c.h.b16 %v3380
    %v6649 = vunpack.c.l.b16 %v3381
    %v6650 = vunpack.c.h.b16 %v3381
    %v6651 = vunpack.c.l.b16 %v3382
    %v6652 = vunpack.c.h.b16 %v3382
    %v6653 = vunpack.c.l.b16 %v3383
    %v6654 = vunpack.c.h.b16 %v3383
    %v6655 = vunpack.c.l.b16 %v3384
    %v6656 = vunpack.c.h.b16 %v3384
    %v6657 = vunpack.c.l.b16 %v3385
    %v6658 = vunpack.c.h.b16 %v3385
    %v6659 = vunpack.c.l.b16 %v3386
    %v6660 = vunpack.c.h.b16 %v3386
    %v6661 = vunpack.c.l.b16 %v3387
    %v6662 = vunpack.c.h.b16 %v3387
    %v6663 = vunpack.c.l.b16 %v3388
    %v6664 = vunpack.c.h.b16 %v3388
    %v6665 = vunpack.c.l.b16 %v3389
    %v6666 = vunpack.c.h.b16 %v3389
    %v6667 = vunpack.c.l.b16 %v3390
    %v6668 = vunpack.c.h.b16 %v3390
    %v6669 = vunpack.c.l.b16 %v3391
    %v6670 = vunpack.c.h.b16 %v3391
    %v6671 = vunpack.c.l.b16 %v3392
    %v6672 = vunpack.c.h.b16 %v3392
    %v6673 = vunpack.c.l.b16 %v3393
    %v6674 = vunpack.c.h.b16 %v3393
    %v6675 = vunpack.c.l.b16 %v3394
    %v6676 = vunpack.c.h.b16 %v3394
    %v6677 = vunpack.c.l.b16 %v3395
    %v6678 = vunpack.c.h.b16 %v3395
    %v6679 = vunpack.c.l.b16 %v3396
    %v6680 = vunpack.c.h.b16 %v3396
    %v6681 = vunpack.c.l.b16 %v3397
    %v6682 = vunpack.c.h.b16 %v3397
    %v6683 = vunpack.c.l.b16 %v3398
    %v6684 = vunpack.c.h.b16 %v3398
    %v6685 = vunpack.c.l.b16 %v3399
    %v6686 = vunpack.c.h.b16 %v3399
    %v6687 = vunpack.c.l.b16 %v3400
    %v6688 = vunpack.c.h.b16 %v3400
    %v6689 = vunpack.c.l.b16 %v3401
    %v6690 = vunpack.c.h.b16 %v3401
    %v6691 = vunpack.c.l.b16 %v3402
    %v6692 = vunpack.c.h.b16 %v3402
    %v6693 = vunpack.c.l.b16 %v3403
    %v6694 = vunpack.c.h.b16 %v3403
    %v6695 = vunpack.c.l.b16 %v3404
    %v6696 = vunpack.c.h.b16 %v3404
    %v6697 = vunpack.c.l.b16 %v3405
    %v6698 = vunpack.c.h.b16 %v3405
    %v6699 = vunpack.c.l.b16 %v3406
    %v6700 = vunpack.c.h.b16 %v3406
    %v6701 = vunpack.c.l.b16 %v3407
    %v6702 = vunpack.c.h.b16 %v3407
    %v6703 = vunpack.c.l.b16 %v3408
    %v6704 = vunpack.c.h.b16 %v3408
    %v6705 = vunpack.c.l.b16 %v3409
    %v6706 = vunpack.c.h.b16 %v3409
    %v6707 = vunpack.c.l.b16 %v3410
    %v6708 = vunpack.c.h.b16 %v3410
    %v6709 = vunpack.c.l.b16 %v3411
    %v6710 = vunpack.c.h.b16 %v3411
    %v6711 = vunpack.c.l.b16 %v3412
    %v6712 = vunpack.c.h.b16 %v3412
    %v6713 = vunpack.c.l.b16 %v3413
    %v6714 = vunpack.c.h.b16 %v3413
    %v6715 = vunpack.c.l.b16 %v3414
    %v6716 = vunpack.c.h.b16 %v3414
    %v6717 = vunpack.c.l.b16 %v3415
    %v6718 = vunpack.c.h.b16 %v3415
    %v6719 = vunpack.c.l.b16 %v3416
    %v6720 = vunpack.c.h.b16 %v3416
    %v6721 = vunpack.c.l.b16 %v3417
    %v6722 = vunpack.c.h.b16 %v3417
    %v6723 = vunpack.c.l.b16 %v3418
    %v6724 = vunpack.c.h.b16 %v3418
    %v6725 = vunpack.c.l.b16 %v3419
    %v6726 = vunpack.c.h.b16 %v3419
    %v6727 = vunpack.c.l.b16 %v3420
    %v6728 = vunpack.c.h.b16 %v3420
    %v6729 = vunpack.c.l.b16 %v3421
    %v6730 = vunpack.c.h.b16 %v3421
    %v6731 = vunpack.c.l.b16 %v3422
    %v6732 = vunpack.c.h.b16 %v3422
    %v6733 = vunpack.c.l.b16 %v3423
    %v6734 = vunpack.c.h.b16 %v3423
    %v6735 = vunpack.c.l.b16 %v3424
    %v6736 = vunpack.c.h.b16 %v3424
    %v6737 = vunpack.c.l.b16 %v3425
    %v6738 = vunpack.c.h.b16 %v3425
    %v6739 = vunpack.c.l.b16 %v3426
    %v6740 = vunpack.c.h.b16 %v3426
    %v6741 = vunpack.c.l.b16 %v3427
    %v6742 = vunpack.c.h.b16 %v3427
    %v6743 = vunpack.c.l.b16 %v3428
    %v6744 = vunpack.c.h.b16 %v3428
    %v6745 = vunpack.c.l.b16 %v3429
    %v6746 = vunpack.c.h.b16 %v3429
    %v6747 = vunpack.c.l.b16 %v3430
    %v6748 = vunpack.c.h.b16 %v3430
    %v6749 = vunpack.c.l.b16 %v3431
    %v6750 = vunpack.c.h.b16 %v3431
    %v6751 = vunpack.c.l.b16 %v3432
    %v6752 = vunpack.c.h.b16 %v3432
    %v6753 = vunpack.c.l.b16 %v3433
    %v6754 = vunpack.c.h.b16 %v3433
    %v6755 = vunpack.c.l.b16 %v3434
    %v6756 = vunpack.c.h.b16 %v3434
    %v6757 = vunpack.c.l.b16 %v3435
    %v6758 = vunpack.c.h.b16 %v3435
    %v6759 = vunpack.c.l.b16 %v3436
    %v6760 = vunpack.c.h.b16 %v3436
    %v6761 = vunpack.c.l.b16 %v3437
    %v6762 = vunpack.c.h.b16 %v3437
    %v6763 = vunpack.c.l.b16 %v3438
    %v6764 = vunpack.c.h.b16 %v3438
    %v6765 = vunpack.c.l.b16 %v3439
    %v6766 = vunpack.c.h.b16 %v3439
    %v6767 = vunpack.c.l.b16 %v3440
    %v6768 = vunpack.c.h.b16 %v3440
    %v6769 = vunpack.c.l.b16 %v3441
    %v6770 = vunpack.c.h.b16 %v3441
    %v6771 = vunpack.c.l.b16 %v3442
    %v6772 = vunpack.c.h.b16 %v3442
    %v6773 = vunpack.c.l.b16 %v3443
    %v6774 = vunpack.c.h.b16 %v3443
    %v6775 = vunpack.c.l.b16 %v3444
    %v6776 = vunpack.c.h.b16 %v3444
    %v6777 = vunpack.c.l.b16 %v3445
    %v6778 = vunpack.c.h.b16 %v3445
    %v6779 = vunpack.c.l.b16 %v3446
    %v6780 = vunpack.c.h.b16 %v3446
    %v6781 = vunpack.c.l.b16 %v3447
    %v6782 = vunpack.c.h.b16 %v3447
    %v6783 = vunpack.c.l.b16 %v3448
    %v6784 = vunpack.c.h.b16 %v3448
    %v6785 = vunpack.c.l.b16 %v3449
    %v6786 = vunpack.c.h.b16 %v3449
    %v6787 = vunpack.c.l.b16 %v3450
    %v6788 = vunpack.c.h.b16 %v3450
    %v6789 = vunpack.c.l.b16 %v3451
    %v6790 = vunpack.c.h.b16 %v3451
    %v6791 = vunpack.c.l.b16 %v3452
    %v6792 = vunpack.c.h.b16 %v3452
    %v6793 = vunpack.c.l.b16 %v3453
    %v6794 = vunpack.c.h.b16 %v3453
    %v6795 = vunpack.c.l.b16 %v3454
    %v6796 = vunpack.c.h.b16 %v3454
    %v6797 = vunpack.c.l.b16 %v3455
    %v6798 = vunpack.c.h.b16 %v3455
    %v6799 = vunpack.c.l.b16 %v3456
    %v6800 = vunpack.c.h.b16 %v3456
    %v6801 = vunpack.c.l.b16 %v3457
    %v6802 = vunpack.c.h.b16 %v3457
    %v6803 = vunpack.c.l.b16 %v3458
    %v6804 = vunpack.c.h.b16 %v3458
    %v6805 = vunpack.c.l.b16 %v3459
    %v6806 = vunpack.c.h.b16 %v3459
    %v6807 = vunpack.c.l.b16 %v3460
    %v6808 = vunpack.c.h.b16 %v3460
    %v6809 = vunpack.c.l.b16 %v3461
    %v6810 = vunpack.c.h.b16 %v3461
    %v6811 = vunpack.c.l.b16 %v3462
    %v6812 = vunpack.c.h.b16 %v3462
    %v6813 = vunpack.c.l.b16 %v3463
    %v6814 = vunpack.c.h.b16 %v3463
    %v6815 = vunpack.c.l.b16 %v3464
    %v6816 = vunpack.c.h.b16 %v3464
    %v6817 = vunpack.c.l.b16 %v3465
    %v6818 = vunpack.c.h.b16 %v3465
    %v6819 = vunpack.c.l.b16 %v3466
    %v6820 = vunpack.c.h.b16 %v3466
    %v6821 = vunpack.c.l.b16 %v3467
    %v6822 = vunpack.c.h.b16 %v3467
    %v6823 = vunpack.c.l.b16 %v3468
    %v6824 = vunpack.c.h.b16 %v3468
    %v6825 = vunpack.c.l.b16 %v3469
    %v6826 = vunpack.c.h.b16 %v3469
    %v6827 = vunpack.c.l.b16 %v3470
    %v6828 = vunpack.c.h.b16 %v3470
    %v6829 = vunpack.c.l.b16 %v3471
    %v6830 = vunpack.c.h.b16 %v3471
    %v6831 = vunpack.c.l.b16 %v3472
    %v6832 = vunpack.c.h.b16 %v3472
    %v6833 = vunpack.c.l.b16 %v3473
    %v6834 = vunpack.c.h.b16 %v3473
    %v6835 = vunpack.c.l.b16 %v3474
    %v6836 = vunpack.c.h.b16 %v3474
    %v6837 = vunpack.c.l.b16 %v3475
    %v6838 = vunpack.c.h.b16 %v3475
    %v6839 = vunpack.c.l.b16 %v3476
    %v6840 = vunpack.c.h.b16 %v3476
    %v6841 = vunpack.c.l.b16 %v3477
    %v6842 = vunpack.c.h.b16 %v3477
    %v6843 = vunpack.c.l.b16 %v3478
    %v6844 = vunpack.c.h.b16 %v3478
    %v6845 = vunpack.c.l.b16 %v3479
    %v6846 = vunpack.c.h.b16 %v3479
    %v6847 = vunpack.c.l.b16 %v3480
    %v6848 = vunpack.c.h.b16 %v3480
    %v6849 = vunpack.c.l.b16 %v3481
    %v6850 = vunpack.c.h.b16 %v3481
    %v6851 = vunpack.c.l.b16 %v3482
    %v6852 = vunpack.c.h.b16 %v3482
    %v6853 = vunpack.c.l.b16 %v3483
    %v6854 = vunpack.c.h.b16 %v3483
    %v6855 = vunpack.c.l.b16 %v3484
    %v6856 = vunpack.c.h.b16 %v3484
    %v6857 = vunpack.c.l.b16 %v3485
    %v6858 = vunpack.c.h.b16 %v3485
    %v6859 = vunpack.c.l.b16 %v3486
    %v6860 = vunpack.c.h.b16 %v3486
    %v6861 = vunpack.c.l.b16 %v3487
    %v6862 = vunpack.c.h.b16 %v3487
    %v6863 = vunpack.c.l.b16 %v3488
    %v6864 = vunpack.c.h.b16 %v3488
    %v6865 = vunpack.c.l.b16 %v3489
    %v6866 = vunpack.c.h.b16 %v3489
    %v6867 = vunpack.c.l.b16 %v3490
    %v6868 = vunpack.c.h.b16 %v3490
    %v6869 = vunpack.c.l.b16 %v3491
    %v6870 = vunpack.c.h.b16 %v3491
    %v6871 = vunpack.c.l.b16 %v3492
    %v6872 = vunpack.c.h.b16 %v3492
    %v6873 = vunpack.c.l.b16 %v3493
    %v6874 = vunpack.c.h.b16 %v3493
    %v6875 = vunpack.c.l.b16 %v3494
    %v6876 = vunpack.c.h.b16 %v3494
    %v6877 = vunpack.c.l.b16 %v3495
    %v6878 = vunpack.c.h.b16 %v3495
    %v6879 = vunpack.c.l.b16 %v3496
    %v6880 = vunpack.c.h.b16 %v3496
    %v6881 = vunpack.c.l.b16 %v3497
    %v6882 = vunpack.c.h.b16 %v3497
    %v6883 = vunpack.c.l.b16 %v3498
    %v6884 = vunpack.c.h.b16 %v3498
    %v6885 = vunpack.c.l.b16 %v3499
    %v6886 = vunpack.c.h.b16 %v3499
    %v6887 = vunpack.c.l.b16 %v3500
    %v6888 = vunpack.c.h.b16 %v3500
    %v6889 = vunpack.c.l.b16 %v3501
    %v6890 = vunpack.c.h.b16 %v3501
    %v6891 = vunpack.c.l.b16 %v3502
    %v6892 = vunpack.c.h.b16 %v3502
    %v6893 = vunpack.c.l.b16 %v3503
    %v6894 = vunpack.c.h.b16 %v3503
    %v6895 = vunpack.c.l.b16 %v3504
    %v6896 = vunpack.c.h.b16 %v3504
    %v6897 = vunpack.c.l.b16 %v3505
    %v6898 = vunpack.c.h.b16 %v3505
    %v6899 = vunpack.c.l.b16 %v3506
    %v6900 = vunpack.c.h.b16 %v3506
    %v6901 = vunpack.c.l.b16 %v3507
    %v6902 = vunpack.c.h.b16 %v3507
    %v6903 = vunpack.c.l.b16 %v3508
    %v6904 = vunpack.c.h.b16 %v3508
    %v6905 = vunpack.c.l.b16 %v3509
    %v6906 = vunpack.c.h.b16 %v3509
    %v6907 = vunpack.c.l.b16 %v3510
    %v6908 = vunpack.c.h.b16 %v3510
    %v6909 = vunpack.c.l.b16 %v3511
    %v6910 = vunpack.c.h.b16 %v3511
    %v6911 = vunpack.c.l.b16 %v3512
    %v6912 = vunpack.c.h.b16 %v3512
    %v6913 = vunpack.c.l.b16 %v3513
    %v6914 = vunpack.c.h.b16 %v3513
    %v6915 = vunpack.c.l.b16 %v3514
    %v6916 = vunpack.c.h.b16 %v3514
    %v6917 = vunpack.c.l.b16 %v3515
    %v6918 = vunpack.c.h.b16 %v3515
    %v6919 = vunpack.c.l.b16 %v3516
    %v6920 = vunpack.c.h.b16 %v3516
    %v6921 = vunpack.c.l.b16 %v3517
    %v6922 = vunpack.c.h.b16 %v3517
    %v6923 = vunpack.c.l.b16 %v3518
    %v6924 = vunpack.c.h.b16 %v3518
    %v6925 = vunpack.c.l.b16 %v3519
    %v6926 = vunpack.c.h.b16 %v3519
    %v6927 = vunpack.c.l.b16 %v3520
    %v6928 = vunpack.c.h.b16 %v3520
    %v6929 = vunpack.c.l.b16 %v3521
    %v6930 = vunpack.c.h.b16 %v3521
    %v6931 = vunpack.c.l.b16 %v3522
    %v6932 = vunpack.c.h.b16 %v3522
    %v6933 = vunpack.c.l.b16 %v3523
    %v6934 = vunpack.c.h.b16 %v3523
    %v6935 = vunpack.c.l.b16 %v3524
    %v6936 = vunpack.c.h.b16 %v3524
    %v6937 = vunpack.c.l.b16 %v3525
    %v6938 = vunpack.c.h.b16 %v3525
    %v6939 = vunpack.c.l.b16 %v3526
    %v6940 = vunpack.c.h.b16 %v3526
    %v6941 = vunpack.c.l.b16 %v3527
    %v6942 = vunpack.c.h.b16 %v3527
    %v6943 = vunpack.c.l.b16 %v3528
    %v6944 = vunpack.c.h.b16 %v3528
    %v6945 = vunpack.c.l.b16 %v3529
    %v6946 = vunpack.c.h.b16 %v3529
    %v6947 = vunpack.c.l.b16 %v3530
    %v6948 = vunpack.c.h.b16 %v3530
    %v6949 = vunpack.c.l.b16 %v3531
    %v6950 = vunpack.c.h.b16 %v3531
    %v6951 = vunpack.c.l.b16 %v3532
    %v6952 = vunpack.c.h.b16 %v3532
    %v6953 = vunpack.c.l.b16 %v3533
    %v6954 = vunpack.c.h.b16 %v3533
    %v6955 = vunpack.c.l.b16 %v3534
    %v6956 = vunpack.c.h.b16 %v3534
    %v6957 = vunpack.c.l.b16 %v3535
    %v6958 = vunpack.c.h.b16 %v3535
    %v6959 = vunpack.c.l.b16 %v3536
    %v6960 = vunpack.c.h.b16 %v3536
    %v6961 = vunpack.c.l.b16 %v3537
    %v6962 = vunpack.c.h.b16 %v3537
    %v6963 = vunpack.c.l.b16 %v3538
    %v6964 = vunpack.c.h.b16 %v3538
    %v6965 = vunpack.c.l.b16 %v3539
    %v6966 = vunpack.c.h.b16 %v3539
    %v6967 = vunpack.c.l.b16 %v3540
    %v6968 = vunpack.c.h.b16 %v3540
    %v6969 = vunpack.c.l.b16 %v3541
    %v6970 = vunpack.c.h.b16 %v3541
    %v6971 = vunpack.c.l.b16 %v3542
    %v6972 = vunpack.c.h.b16 %v3542
    %v6973 = vunpack.c.l.b16 %v3543
    %v6974 = vunpack.c.h.b16 %v3543
    %v6975 = vunpack.c.l.b16 %v3544
    %v6976 = vunpack.c.h.b16 %v3544
    %v6977 = vunpack.c.l.b16 %v3545
    %v6978 = vunpack.c.h.b16 %v3545
    %v6979 = vunpack.c.l.b16 %v3546
    %v6980 = vunpack.c.h.b16 %v3546
    %v6981 = vunpack.c.l.b16 %v3547
    %v6982 = vunpack.c.h.b16 %v3547
    %v6983 = vunpack.c.l.b16 %v3548
    %v6984 = vunpack.c.h.b16 %v3548
    %v6985 = vunpack.c.l.b16 %v3549
    %v6986 = vunpack.c.h.b16 %v3549
    %v6987 = vunpack.c.l.b16 %v3550
    %v6988 = vunpack.c.h.b16 %v3550
    %v6989 = vunpack.c.l.b16 %v3551
    %v6990 = vunpack.c.h.b16 %v3551
    %v6991 = vunpack.c.l.b16 %v3552
    %v6992 = vunpack.c.h.b16 %v3552
    %v6993 = vunpack.c.l.b16 %v3553
    %v6994 = vunpack.c.h.b16 %v3553
    %v6995 = vunpack.c.l.b16 %v3554
    %v6996 = vunpack.c.h.b16 %v3554
    %v6997 = vunpack.c.l.b16 %v3555
    %v6998 = vunpack.c.h.b16 %v3555
    %v6999 = vunpack.c.l.b16 %v3556
    %v7000 = vunpack.c.h.b16 %v3556
    %v7001 = vunpack.c.l.b16 %v3557
    %v7002 = vunpack.c.h.b16 %v3557
    %v7003 = vunpack.c.l.b16 %v3558
    %v7004 = vunpack.c.h.b16 %v3558
    %v7005 = vunpack.c.l.b16 %v3559
    %v7006 = vunpack.c.h.b16 %v3559
    %v7007 = vunpack.c.l.b16 %v3560
    %v7008 = vunpack.c.h.b16 %v3560
    %v7009 = vunpack.c.l.b16 %v3561
    %v7010 = vunpack.c.h.b16 %v3561
    %v7011 = vunpack.c.l.b16 %v3562
    %v7012 = vunpack.c.h.b16 %v3562
    %v7013 = vunpack.c.l.b16 %v3563
    %v7014 = vunpack.c.h.b16 %v3563
    %v7015 = vunpack.c.l.b16 %v3564
    %v7016 = vunpack.c.h.b16 %v3564
    %v7017 = vunpack.c.l.b16 %v3565
    %v7018 = vunpack.c.h.b16 %v3565
    %v7019 = vunpack.c.l.b16 %v3566
    %v7020 = vunpack.c.h.b16 %v3566
    %v7021 = vunpack.c.l.b16 %v3567
    %v7022 = vunpack.c.h.b16 %v3567
    %v7023 = vunpack.c.l.b16 %v3568
    %v7024 = vunpack.c.h.b16 %v3568
    %v7025 = vunpack.c.l.b16 %v3569
    %v7026 = vunpack.c.h.b16 %v3569
    %v7027 = vunpack.c.l.b16 %v3570
    %v7028 = vunpack.c.h.b16 %v3570
    %v7029 = vunpack.c.l.b16 %v3571
    %v7030 = vunpack.c.h.b16 %v3571
    %v7031 = vunpack.c.l.b16 %v3572
    %v7032 = vunpack.c.h.b16 %v3572
    %v7033 = vunpack.c.l.b16 %v3573
    %v7034 = vunpack.c.h.b16 %v3573
    %v7035 = vunpack.c.l.b16 %v3574
    %v7036 = vunpack.c.h.b16 %v3574
    %v7037 = vunpack.c.l.b16 %v3575
    %v7038 = vunpack.c.h.b16 %v3575
    %v7039 = vunpack.c.l.b16 %v3576
    %v7040 = vunpack.c.h.b16 %v3576
    %v7041 = vunpack.c.l.b16 %v3577
    %v7042 = vunpack.c.h.b16 %v3577
    %v7043 = vunpack.c.l.b16 %v3578
    %v7044 = vunpack.c.h.b16 %v3578
    %v7045 = vunpack.c.l.b16 %v3579
    %v7046 = vunpack.c.h.b16 %v3579
    %v7047 = vunpack.c.l.b16 %v3580
    %v7048 = vunpack.c.h.b16 %v3580
    %v7049 = vunpack.c.l.b16 %v3581
    %v7050 = vunpack.c.h.b16 %v3581
    %v7051 = vunpack.c.l.b16 %v3582
    %v7052 = vunpack.c.h.b16 %v3582
    %v7053 = vunpack.c.l.b16 %v3583
    %v7054 = vunpack.c.h.b16 %v3583
    %v7055 = vunpack.c.l.b16 %v3584
    %v7056 = vunpack.c.h.b16 %v3584
    %v7057 = vunpack.c.l.b16 %v3585
    %v7058 = vunpack.c.h.b16 %v3585
    %v7059 = vunpack.c.l.b16 %v3586
    %v7060 = vunpack.c.h.b16 %v3586
    %v7061 = vunpack.c.l.b16 %v3587
    %v7062 = vunpack.c.h.b16 %v3587
    %v7063 = vunpack.c.l.b16 %v3588
    %v7064 = vunpack.c.h.b16 %v3588
    %v7065 = vunpack.c.l.b16 %v3589
    %v7066 = vunpack.c.h.b16 %v3589
    %v7067 = vunpack.c.l.b16 %v3590
    %v7068 = vunpack.c.h.b16 %v3590
    %v7069 = vunpack.c.l.b16 %v3591
    %v7070 = vunpack.c.h.b16 %v3591
    %v7071 = vunpack.c.l.b16 %v3592
    %v7072 = vunpack.c.h.b16 %v3592
    %v7073 = vunpack.c.l.b16 %v3593
    %v7074 = vunpack.c.h.b16 %v3593
    %v7075 = vunpack.c.l.b16 %v3594
    %v7076 = vunpack.c.h.b16 %v3594
    %v7077 = vunpack.c.l.b16 %v3595
    %v7078 = vunpack.c.h.b16 %v3595
    %v7079 = vunpack.c.l.b16 %v3596
    %v7080 = vunpack.c.h.b16 %v3596
    %v7081 = vunpack.c.l.b16 %v3597
    %v7082 = vunpack.c.h.b16 %v3597
    %v7083 = vunpack.c.l.b16 %v3598
    %v7084 = vunpack.c.h.b16 %v3598
    %v7085 = vunpack.c.l.b16 %v3599
    %v7086 = vunpack.c.h.b16 %v3599
    %v7087 = vunpack.c.l.b16 %v3600
    %v7088 = vunpack.c.h.b16 %v3600
    %v7089 = vunpack.c.l.b16 %v3601
    %v7090 = vunpack.c.h.b16 %v3601
    %v7091 = vunpack.c.l.b16 %v3602
    %v7092 = vunpack.c.h.b16 %v3602
    %v7093 = vunpack.c.l.b16 %v3603
    %v7094 = vunpack.c.h.b16 %v3603
    %v7095 = vunpack.c.l.b16 %v3604
    %v7096 = vunpack.c.h.b16 %v3604
    %v7097 = vunpack.c.l.b16 %v3605
    %v7098 = vunpack.c.h.b16 %v3605
    %v7099 = vunpack.c.l.b16 %v3606
    %v7100 = vunpack.c.h.b16 %v3606
    %v7101 = vunpack.c.l.b16 %v3607
    %v7102 = vunpack.c.h.b16 %v3607
    %v7103 = vunpack.c.l.b16 %v3608
    %v7104 = vunpack.c.h.b16 %v3608
    %v7105 = vunpack.c.l.b16 %v3609
    %v7106 = vunpack.c.h.b16 %v3609
    %v7107 = vunpack.c.l.b16 %v3610
    %v7108 = vunpack.c.h.b16 %v3610
    %v7109 = vunpack.c.l.b16 %v3611
    %v7110 = vunpack.c.h.b16 %v3611
    %v7111 = vunpack.c.l.b16 %v3612
    %v7112 = vunpack.c.h.b16 %v3612
    %v7113 = vunpack.c.l.b16 %v3613
    %v7114 = vunpack.c.h.b16 %v3613
    %v7115 = vunpack.c.l.b16 %v3614
    %v7116 = vunpack.c.h.b16 %v3614
    %v7117 = vunpack.c.l.b16 %v3615
    %v7118 = vunpack.c.h.b16 %v3615
    %v7119 = vunpack.c.l.b16 %v3616
    %v7120 = vunpack.c.h.b16 %v3616
    %v7121 = vunpack.c.l.b16 %v3617
    %v7122 = vunpack.c.h.b16 %v3617
    %v7123 = vunpack.c.l.b16 %v3618
    %v7124 = vunpack.c.h.b16 %v3618
    %v7125 = vunpack.c.l.b16 %v3619
    %v7126 = vunpack.c.h.b16 %v3619
    %v7127 = vunpack.c.l.b16 %v3620
    %v7128 = vunpack.c.h.b16 %v3620
    %v7129 = vunpack.c.l.b16 %v3621
    %v7130 = vunpack.c.h.b16 %v3621
    %v7131 = vunpack.c.l.b16 %v3622
    %v7132 = vunpack.c.h.b16 %v3622
    %v7133 = vunpack.c.l.b16 %v3623
    %v7134 = vunpack.c.h.b16 %v3623
    %v7135 = vunpack.c.l.b16 %v3624
    %v7136 = vunpack.c.h.b16 %v3624
    %v7137 = vunpack.c.l.b16 %v3625
    %v7138 = vunpack.c.h.b16 %v3625
    %v7139 = vunpack.c.l.b16 %v3626
    %v7140 = vunpack.c.h.b16 %v3626
    %v7141 = vunpack.c.l.b16 %v3627
    %v7142 = vunpack.c.h.b16 %v3627
    %v7143 = vunpack.c.l.b16 %v3628
    %v7144 = vunpack.c.h.b16 %v3628
    %v7145 = vunpack.c.l.b16 %v3629
    %v7146 = vunpack.c.h.b16 %v3629
    %v7147 = vunpack.c.l.b16 %v3630
    %v7148 = vunpack.c.h.b16 %v3630
    %v7149 = vunpack.c.l.b16 %v3631
    %v7150 = vunpack.c.h.b16 %v3631
    %v7151 = vunpack.c.l.b16 %v3632
    %v7152 = vunpack.c.h.b16 %v3632
    %v7153 = vunpack.c.l.b16 %v3633
    %v7154 = vunpack.c.h.b16 %v3633
    %v7155 = vunpack.c.l.b16 %v3634
    %v7156 = vunpack.c.h.b16 %v3634
    %v7157 = vunpack.c.l.b16 %v3635
    %v7158 = vunpack.c.h.b16 %v3635
    %v7159 = vunpack.c.l.b16 %v3636
    %v7160 = vunpack.c.h.b16 %v3636
    %v7161 = vunpack.c.l.b16 %v3637
    %v7162 = vunpack.c.h.b16 %v3637
    %v7163 = vunpack.c.l.b16 %v3638
    %v7164 = vunpack.c.h.b16 %v3638
    %v7165 = vunpack.c.l.b16 %v3639
    %v7166 = vunpack.c.h.b16 %v3639
    %v7167 = vunpack.c.l.b16 %v3640
    %v7168 = vunpack.c.h.b16 %v3640
    %v7169 = vunpack.c.l.b16 %v3641
    %v7170 = vunpack.c.h.b16 %v3641
    %v7171 = vunpack.c.l.b16 %v3642
    %v7172 = vunpack.c.h.b16 %v3642
    %v7173 = vunpack.c.l.b16 %v3643
    %v7174 = vunpack.c.h.b16 %v3643
    %v7175 = vunpack.c.l.b16 %v3644
    %v7176 = vunpack.c.h.b16 %v3644
    %v7177 = vunpack.c.l.b16 %v3645
    %v7178 = vunpack.c.h.b16 %v3645
    %v7179 = vunpack.c.l.b16 %v3646
    %v7180 = vunpack.c.h.b16 %v3646
    %v7181 = vunpack.c.l.b16 %v3647
    %v7182 = vunpack.c.h.b16 %v3647
    %v7183 = vunpack.c.l.b16 %v3648
    %v7184 = vunpack.c.h.b16 %v3648
    %v7185 = vunpack.c.l.b16 %v3649
    %v7186 = vunpack.c.h.b16 %v3649
    %v7187 = vunpack.c.l.b16 %v3650
    %v7188 = vunpack.c.h.b16 %v3650
    %v7189 = vunpack.c.l.b16 %v3651
    %v7190 = vunpack.c.h.b16 %v3651
    %v7191 = vunpack.c.l.b16 %v3652
    %v7192 = vunpack.c.h.b16 %v3652
    %v7193 = vunpack.c.l.b16 %v3653
    %v7194 = vunpack.c.h.b16 %v3653
    %v7195 = vunpack.c.l.b16 %v3654
    %v7196 = vunpack.c.h.b16 %v3654
    %v7197 = vunpack.c.l.b16 %v3655
    %v7198 = vunpack.c.h.b16 %v3655
    %v7199 = vunpack.c.l.b16 %v3656
    %v7200 = vunpack.c.h.b16 %v3656
    %v7201 = vunpack.c.l.b16 %v3657
    %v7202 = vunpack.c.h.b16 %v3657
    %v7203 = vunpack.c.l.b16 %v3658
    %v7204 = vunpack.c.h.b16 %v3658
    %v7205 = vunpack.c.l.b16 %v3659
    %v7206 = vunpack.c.h.b16 %v3659
    %v7207 = vunpack.c.l.b16 %v3660
    %v7208 = vunpack.c.h.b16 %v3660
    %v7209 = vunpack.c.l.b16 %v3661
    %v7210 = vunpack.c.h.b16 %v3661
    %v7211 = vunpack.c.l.b16 %v3662
    %v7212 = vunpack.c.h.b16 %v3662
    %v7213 = vunpack.c.l.b16 %v3663
    %v7214 = vunpack.c.h.b16 %v3663
    %v7215 = vunpack.c.l.b16 %v3664
    %v7216 = vunpack.c.h.b16 %v3664
    %v7217 = vunpack.c.l.b16 %v3665
    %v7218 = vunpack.c.h.b16 %v3665
    %v7219 = vunpack.c.l.b16 %v3666
    %v7220 = vunpack.c.h.b16 %v3666
    %v7221 = vunpack.c.l.b16 %v3667
    %v7222 = vunpack.c.h.b16 %v3667
    %v7223 = vunpack.c.l.b16 %v3668
    %v7224 = vunpack.c.h.b16 %v3668
    %v7225 = vunpack.c.l.b16 %v3669
    %v7226 = vunpack.c.h.b16 %v3669
    %v7227 = vunpack.c.l.b16 %v3670
    %v7228 = vunpack.c.h.b16 %v3670
    %v7229 = vunpack.c.l.b16 %v3671
    %v7230 = vunpack.c.h.b16 %v3671
    %v7231 = vunpack.c.l.b16 %v3672
    %v7232 = vunpack.c.h.b16 %v3672
    %v7233 = vunpack.c.l.b16 %v3673
    %v7234 = vunpack.c.h.b16 %v3673
    %v7235 = vunpack.c.l.b16 %v3674
    %v7236 = vunpack.c.h.b16 %v3674
    %v7237 = vunpack.c.l.b16 %v3675
    %v7238 = vunpack.c.h.b16 %v3675
    %v7239 = vunpack.c.l.b16 %v3676
    %v7240 = vunpack.c.h.b16 %v3676
    %v7241 = vunpack.c.l.b16 %v3677
    %v7242 = vunpack.c.h.b16 %v3677
    %v7243 = vunpack.c.l.b16 %v3678
    %v7244 = vunpack.c.h.b16 %v3678
    %v7245 = vunpack.c.l.b16 %v3679
    %v7246 = vunpack.c.h.b16 %v3679
    %v7247 = vunpack.c.l.b16 %v3680
    %v7248 = vunpack.c.h.b16 %v3680
    %v7249 = vunpack.c.l.b16 %v3681
    %v7250 = vunpack.c.h.b16 %v3681
    %v7251 = vunpack.c.l.b16 %v3682
    %v7252 = vunpack.c.h.b16 %v3682
    %v7253 = vunpack.c.l.b16 %v3683
    %v7254 = vunpack.c.h.b16 %v3683
    %v7255 = vunpack.c.l.b16 %v3684
    %v7256 = vunpack.c.h.b16 %v3684
    %v7257 = vunpack.c.l.b16 %v3685
    %v7258 = vunpack.c.h.b16 %v3685
    %v7259 = vunpack.c.l.b16 %v3686
    %v7260 = vunpack.c.h.b16 %v3686
    %v7261 = vunpack.c.l.b16 %v3687
    %v7262 = vunpack.c.h.b16 %v3687
    %v7263 = vunpack.c.l.b16 %v3688
    %v7264 = vunpack.c.h.b16 %v3688
    %v7265 = vunpack.c.l.b16 %v3689
    %v7266 = vunpack.c.h.b16 %v3689
    %v7267 = vunpack.c.l.b16 %v3690
    %v7268 = vunpack.c.h.b16 %v3690
    %v7269 = vunpack.c.l.b16 %v3691
    %v7270 = vunpack.c.h.b16 %v3691
    %v7271 = vunpack.c.l.b16 %v3692
    %v7272 = vunpack.c.h.b16 %v3692
    %v7273 = vunpack.c.l.b16 %v3693
    %v7274 = vunpack.c.h.b16 %v3693
    %v7275 = vunpack.c.l.b16 %v3694
    %v7276 = vunpack.c.h.b16 %v3694
    %v7277 = vunpack.c.l.b16 %v3695
    %v7278 = vunpack.c.h.b16 %v3695
    %v7279 = vunpack.c.l.b16 %v3696
    %v7280 = vunpack.c.h.b16 %v3696
    %v7281 = vunpack.c.l.b16 %v3697
    %v7282 = vunpack.c.h.b16 %v3697
    %v7283 = vunpack.c.l.b16 %v3698
    %v7284 = vunpack.c.h.b16 %v3698
    %v7285 = vunpack.c.l.b16 %v3699
    %v7286 = vunpack.c.h.b16 %v3699
    %v7287 = vunpack.c.l.b16 %v3700
    %v7288 = vunpack.c.h.b16 %v3700
    %v7289 = vunpack.c.l.b16 %v3701
    %v7290 = vunpack.c.h.b16 %v3701
    %v7291 = vunpack.c.l.b16 %v3702
    %v7292 = vunpack.c.h.b16 %v3702
    %v7293 = vunpack.c.l.b16 %v3703
    %v7294 = vunpack.c.h.b16 %v3703
    %v7295 = vunpack.c.l.b16 %v3704
    %v7296 = vunpack.c.h.b16 %v3704
    %v7297 = vunpack.c.l.b16 %v3705
    %v7298 = vunpack.c.h.b16 %v3705
    %v7299 = vunpack.c.l.b16 %v3706
    %v7300 = vunpack.c.h.b16 %v3706
    %v7301 = vunpack.c.l.b16 %v3707
    %v7302 = vunpack.c.h.b16 %v3707
    %v7303 = vunpack.c.l.b16 %v3708
    %v7304 = vunpack.c.h.b16 %v3708
    %v7305 = vunpack.c.l.b16 %v3709
    %v7306 = vunpack.c.h.b16 %v3709
    %v7307 = vunpack.c.l.b16 %v3710
    %v7308 = vunpack.c.h.b16 %v3710
    %v7309 = vunpack.c.l.b16 %v3711
    %v7310 = vunpack.c.h.b16 %v3711
    %v7311 = vunpack.c.l.b16 %v3712
    %v7312 = vunpack.c.h.b16 %v3712
    %v7313 = vunpack.c.l.b16 %v3713
    %v7314 = vunpack.c.h.b16 %v3713
    %v7315 = vunpack.c.l.b16 %v3714
    %v7316 = vunpack.c.h.b16 %v3714
    %v7317 = vunpack.c.l.b16 %v3715
    %v7318 = vunpack.c.h.b16 %v3715
    %v7319 = vunpack.c.l.b16 %v3716
    %v7320 = vunpack.c.h.b16 %v3716
    %v7321 = vunpack.c.l.b16 %v3717
    %v7322 = vunpack.c.h.b16 %v3717
    %v7323 = vunpack.c.l.b16 %v3718
    %v7324 = vunpack.c.h.b16 %v3718
    %v7325 = vunpack.c.l.b16 %v3719
    %v7326 = vunpack.c.h.b16 %v3719
    %v7327 = vunpack.c.l.b16 %v3720
    %v7328 = vunpack.c.h.b16 %v3720
    %v7329 = vunpack.c.l.b16 %v3721
    %v7330 = vunpack.c.h.b16 %v3721
    %v7331 = vunpack.c.l.b16 %v3722
    %v7332 = vunpack.c.h.b16 %v3722
    %v7333 = vunpack.c.l.b16 %v3723
    %v7334 = vunpack.c.h.b16 %v3723
    %v7335 = vunpack.c.l.b16 %v3724
    %v7336 = vunpack.c.h.b16 %v3724
    %v7337 = vunpack.c.l.b16 %v3725
    %v7338 = vunpack.c.h.b16 %v3725
    %v7339 = vunpack.c.l.b16 %v3726
    %v7340 = vunpack.c.h.b16 %v3726
    %v7341 = vunpack.c.l.b16 %v3727
    %v7342 = vunpack.c.h.b16 %v3727
    %v7343 = vunpack.c.l.b16 %v3728
    %v7344 = vunpack.c.h.b16 %v3728
    %v7345 = vunpack.c.l.b16 %v3729
    %v7346 = vunpack.c.h.b16 %v3729
    %v7347 = vunpack.c.l.b16 %v3730
    %v7348 = vunpack.c.h.b16 %v3730
    %v7349 = vunpack.c.l.b16 %v3731
    %v7350 = vunpack.c.h.b16 %v3731
    %v7351 = vunpack.c.l.b16 %v3732
    %v7352 = vunpack.c.h.b16 %v3732
    %v7353 = vunpack.c.l.b16 %v3733
    %v7354 = vunpack.c.h.b16 %v3733
    %v7355 = vunpack.c.l.b16 %v3734
    %v7356 = vunpack.c.h.b16 %v3734
    %v7357 = vunpack.c.l.b16 %v3735
    %v7358 = vunpack.c.h.b16 %v3735
    %v7359 = vunpack.c.l.b16 %v3736
    %v7360 = vunpack.c.h.b16 %v3736
    %v7361 = vunpack.c.l.b16 %v3737
    %v7362 = vunpack.c.h.b16 %v3737
    %v7363 = vunpack.c.l.b16 %v3738
    %v7364 = vunpack.c.h.b16 %v3738
    %v7365 = vunpack.c.l.b16 %v3739
    %v7366 = vunpack.c.h.b16 %v3739
    %v7367 = vunpack.c.l.b16 %v3740
    %v7368 = vunpack.c.h.b16 %v3740
    %v7369 = vunpack.c.l.b16 %v3741
    %v7370 = vunpack.c.h.b16 %v3741
    %v7371 = vunpack.c.l.b16 %v3742
    %v7372 = vunpack.c.h.b16 %v3742
    %v7373 = vunpack.c.l.b16 %v3743
    %v7374 = vunpack.c.h.b16 %v3743
    %v7375 = vunpack.c.l.b16 %v3744
    %v7376 = vunpack.c.h.b16 %v3744
    %v7377 = vunpack.c.l.b16 %v3745
    %v7378 = vunpack.c.h.b16 %v3745
    %v7379 = vunpack.c.l.b16 %v3746
    %v7380 = vunpack.c.h.b16 %v3746
    %v7381 = vunpack.c.l.b16 %v3747
    %v7382 = vunpack.c.h.b16 %v3747
    %v7383 = vunpack.c.l.b16 %v3748
    %v7384 = vunpack.c.h.b16 %v3748
    %v7385 = vunpack.c.l.b16 %v3749
    %v7386 = vunpack.c.h.b16 %v3749
    %v7387 = vunpack.c.l.b16 %v3750
    %v7388 = vunpack.c.h.b16 %v3750
    %v7389 = vunpack.c.l.b16 %v3751
    %v7390 = vunpack.c.h.b16 %v3751
    %v7391 = vunpack.c.l.b16 %v3752
    %v7392 = vunpack.c.h.b16 %v3752
    %v7393 = vunpack.c.l.b16 %v3753
    %v7394 = vunpack.c.h.b16 %v3753
    %v7395 = vunpack.c.l.b16 %v3754
    %v7396 = vunpack.c.h.b16 %v3754
    %v7397 = vunpack.c.l.b16 %v3755
    %v7398 = vunpack.c.h.b16 %v3755
    %v7399 = vunpack.c.l.b16 %v3756
    %v7400 = vunpack.c.h.b16 %v3756
    %v7401 = vunpack.c.l.b16 %v3757
    %v7402 = vunpack.c.h.b16 %v3757
    %v7403 = vunpack.c.l.b16 %v3758
    %v7404 = vunpack.c.h.b16 %v3758
    %v7405 = vunpack.c.l.b16 %v3759
    %v7406 = vunpack.c.h.b16 %v3759
    %v7407 = vunpack.c.l.b16 %v3760
    %v7408 = vunpack.c.h.b16 %v3760
    %v7409 = vunpack.c.l.b16 %v3761
    %v7410 = vunpack.c.h.b16 %v3761
    %v7411 = vunpack.c.l.b16 %v3762
    %v7412 = vunpack.c.h.b16 %v3762
    %v7413 = vunpack.c.l.b16 %v3763
    %v7414 = vunpack.c.h.b16 %v3763
    %v7415 = vunpack.c.l.b16 %v3764
    %v7416 = vunpack.c.h.b16 %v3764
    %v7417 = vunpack.c.l.b16 %v3765
    %v7418 = vunpack.c.h.b16 %v3765
    %v7419 = vunpack.c.l.b16 %v3766
    %v7420 = vunpack.c.h.b16 %v3766
    %v7421 = vunpack.c.l.b16 %v3767
    %v7422 = vunpack.c.h.b16 %v3767
    %v7423 = vunpack.c.l.b16 %v3768
    %v7424 = vunpack.c.h.b16 %v3768
    %v7425 = vunpack.c.l.b16 %v3769
    %v7426 = vunpack.c.h.b16 %v3769
    %v7427 = vunpack.c.l.b16 %v3770
    %v7428 = vunpack.c.h.b16 %v3770
    %v7429 = vunpack.c.l.b16 %v3771
    %v7430 = vunpack.c.h.b16 %v3771
    %v7431 = vunpack.c.l.b16 %v3772
    %v7432 = vunpack.c.h.b16 %v3772
    %v7433 = vunpack.c.l.b16 %v3773
    %v7434 = vunpack.c.h.b16 %v3773
    %v7435 = vunpack.c.l.b16 %v3774
    %v7436 = vunpack.c.h.b16 %v3774
    %v7437 = vunpack.c.l.b16 %v3775
    %v7438 = vunpack.c.h.b16 %v3775
    %v7439 = vunpack.c.l.b16 %v3776
    %v7440 = vunpack.c.h.b16 %v3776
    %v7441 = vunpack.c.l.b16 %v3777
    %v7442 = vunpack.c.h.b16 %v3777
    %v7443 = vunpack.c.l.b16 %v3778
    %v7444 = vunpack.c.h.b16 %v3778
    %v7445 = vunpack.c.l.b16 %v3779
    %v7446 = vunpack.c.h.b16 %v3779
    %v7447 = vunpack.c.l.b16 %v3780
    %v7448 = vunpack.c.h.b16 %v3780
    %v7449 = vunpack.c.l.b16 %v3781
    %v7450 = vunpack.c.h.b16 %v3781
    %v7451 = vunpack.c.l.b16 %v3782
    %v7452 = vunpack.c.h.b16 %v3782
    %v7453 = vunpack.c.l.b16 %v3783
    %v7454 = vunpack.c.h.b16 %v3783
    %v7455 = vunpack.c.l.b16 %v3784
    %v7456 = vunpack.c.h.b16 %v3784
    %v7457 = vunpack.c.l.b16 %v3785
    %v7458 = vunpack.c.h.b16 %v3785
    %v7459 = vunpack.c.l.b16 %v3786
    %v7460 = vunpack.c.h.b16 %v3786
    %v7461 = vunpack.c.l.b16 %v3787
    %v7462 = vunpack.c.h.b16 %v3787
    %v7463 = vunpack.c.l.b16 %v3788
    %v7464 = vunpack.c.h.b16 %v3788
    %v7465 = vunpack.c.l.b16 %v3789
    %v7466 = vunpack.c.h.b16 %v3789
    %v7467 = vunpack.c.l.b16 %v3790
    %v7468 = vunpack.c.h.b16 %v3790
    %v7469 = vunpack.c.l.b16 %v3791
    %v7470 = vunpack.c.h.b16 %v3791
    %v7471 = vunpack.c.l.b16 %v3792
    %v7472 = vunpack.c.h.b16 %v3792
    %v7473 = vunpack.c.l.b16 %v3793
    %v7474 = vunpack.c.h.b16 %v3793
    %v7475 = vunpack.c.l.b16 %v3794
    %v7476 = vunpack.c.h.b16 %v3794
    %v7477 = vunpack.c.l.b16 %v3795
    %v7478 = vunpack.c.h.b16 %v3795
    %v7479 = vunpack.c.l.b16 %v3796
    %v7480 = vunpack.c.h.b16 %v3796
    %v7481 = vunpack.c.l.b16 %v3797
    %v7482 = vunpack.c.h.b16 %v3797
    %v7483 = vunpack.c.l.b16 %v3798
    %v7484 = vunpack.c.h.b16 %v3798
    %v7485 = vunpack.c.l.b16 %v3799
    %v7486 = vunpack.c.h.b16 %v3799
    %v7487 = vunpack.c.l.b16 %v3800
    %v7488 = vunpack.c.h.b16 %v3800
    %v7489 = vunpack.c.l.b16 %v3801
    %v7490 = vunpack.c.h.b16 %v3801
    %v7491 = vunpack.c.l.b16 %v3802
    %v7492 = vunpack.c.h.b16 %v3802
    %v7493 = vunpack.c.l.b16 %v3803
    %v7494 = vunpack.c.h.b16 %v3803
    %v7495 = vunpack.c.l.b16 %v3804
    %v7496 = vunpack.c.h.b16 %v3804
    %v7497 = vunpack.c.l.b16 %v3805
    %v7498 = vunpack.c.h.b16 %v3805
    %v7499 = vunpack.c.l.b16 %v3806
    %v7500 = vunpack.c.h.b16 %v3806
    %v7501 = vunpack.c.l.b16 %v3807
    %v7502 = vunpack.c.h.b16 %v3807
    %v7503 = vunpack.c.l.b16 %v3808
    %v7504 = vunpack.c.h.b16 %v3808
    %v7505 = vunpack.c.l.b16 %v3809
    %v7506 = vunpack.c.h.b16 %v3809
    %v7507 = vunpack.c.l.b16 %v3810
    %v7508 = vunpack.c.h.b16 %v3810
    %v7509 = vunpack.c.l.b16 %v3811
    %v7510 = vunpack.c.h.b16 %v3811
    %v7511 = vunpack.c.l.b16 %v3812
    %v7512 = vunpack.c.h.b16 %v3812
    %v7513 = vunpack.c.l.b16 %v3813
    %v7514 = vunpack.c.h.b16 %v3813
    %v7515 = vunpack.c.l.b16 %v3814
    %v7516 = vunpack.c.h.b16 %v3814
    %v7517 = vunpack.c.l.b16 %v3815
    %v7518 = vunpack.c.h.b16 %v3815
    %v7519 = vunpack.c.l.b16 %v3816
    %v7520 = vunpack.c.h.b16 %v3816
    %v7521 = vunpack.c.l.b16 %v3817
    %v7522 = vunpack.c.h.b16 %v3817
    %v7523 = vunpack.c.l.b16 %v3818
    %v7524 = vunpack.c.h.b16 %v3818
    %v7525 = vunpack.c.l.b16 %v3819
    %v7526 = vunpack.c.h.b16 %v3819
    %v7527 = vunpack.c.l.b16 %v3820
    %v7528 = vunpack.c.h.b16 %v3820
    %v7529 = vunpack.c.l.b16 %v3821
    %v7530 = vunpack.c.h.b16 %v3821
    %v7531 = vunpack.c.l.b16 %v3822
    %v7532 = vunpack.c.h.b16 %v3822
    %v7533 = vunpack.c.l.b16 %v3823
    %v7534 = vunpack.c.h.b16 %v3823
    %v7535 = vunpack.c.l.b16 %v3824
    %v7536 = vunpack.c.h.b16 %v3824
    %v7537 = vunpack.c.l.b16 %v3825
    %v7538 = vunpack.c.h.b16 %v3825
    %v7539 = vunpack.c.l.b16 %v3826
    %v7540 = vunpack.c.h.b16 %v3826
    %v7541 = vunpack.c.l.b16 %v3827
    %v7542 = vunpack.c.h.b16 %v3827
    %v7543 = vunpack.c.l.b16 %v3828
    %v7544 = vunpack.c.h.b16 %v3828
    %v7545 = vunpack.c.l.b16 %v3829
    %v7546 = vunpack.c.h.b16 %v3829
    %v7547 = vunpack.c.l.b16 %v3830
    %v7548 = vunpack.c.h.b16 %v3830
    %v7549 = vunpack.c.l.b16 %v3831
    %v7550 = vunpack.c.h.b16 %v3831
    %v7551 = vunpack.c.l.b16 %v3832
    %v7552 = vunpack.c.h.b16 %v3832
    %v7553 = vunpack.c.l.b16 %v3833
    %v7554 = vunpack.c.h.b16 %v3833
    %v7555 = vunpack.c.l.b16 %v3834
    %v7556 = vunpack.c.h.b16 %v3834
    %v7557 = vunpack.c.l.b16 %v3835
    %v7558 = vunpack.c.h.b16 %v3835
    %v7559 = vunpack.c.l.b16 %v3836
    %v7560 = vunpack.c.h.b16 %v3836
    %v7561 = vunpack.c.l.b16 %v3837
    %v7562 = vunpack.c.h.b16 %v3837
    %v7563 = vunpack.c.l.b16 %v3838
    %v7564 = vunpack.c.h.b16 %v3838
    %v7565 = vunpack.c.l.b16 %v3839
    %v7566 = vunpack.c.h.b16 %v3839
    %v7567 = vunpack.c.l.b16 %v3840
    %v7568 = vunpack.c.h.b16 %v3840
    %v7569 = vunpack.c.l.b16 %v3841
    %v7570 = vunpack.c.h.b16 %v3841
    %v7571 = vunpack.c.l.b16 %v3842
    %v7572 = vunpack.c.h.b16 %v3842
    %v7573 = vunpack.c.l.b16 %v3843
    %v7574 = vunpack.c.h.b16 %v3843
    %v7575 = vunpack.c.l.b16 %v3844
    %v7576 = vunpack.c.h.b16 %v3844
    %v7577 = vunpack.c.l.b16 %v3845
    %v7578 = vunpack.c.h.b16 %v3845
    %v7579 = vunpack.c.l.b16 %v3846
    %v7580 = vunpack.c.h.b16 %v3846
    %v7581 = vunpack.c.l.b16 %v3847
    %v7582 = vunpack.c.h.b16 %v3847
    %v7583 = vunpack.c.l.b16 %v3848
    %v7584 = vunpack.c.h.b16 %v3848
    %v7585 = vunpack.c.l.b16 %v3849
    %v7586 = vunpack.c.h.b16 %v3849
    %v7587 = vunpack.c.l.b16 %v3850
    %v7588 = vunpack.c.h.b16 %v3850
    %v7589 = vunpack.c.l.b16 %v3851
    %v7590 = vunpack.c.h.b16 %v3851
    %v7591 = vunpack.c.l.b16 %v3852
    %v7592 = vunpack.c.h.b16 %v3852
    %v7593 = vunpack.c.l.b16 %v3853
    %v7594 = vunpack.c.h.b16 %v3853
    %v7595 = vunpack.c.l.b16 %v3854
    %v7596 = vunpack.c.h.b16 %v3854
    %v7597 = vunpack.c.l.b16 %v3855
    %v7598 = vunpack.c.h.b16 %v3855
    %v7599 = vunpack.c.l.b16 %v3856
    %v7600 = vunpack.c.h.b16 %v3856
    %v7601 = vunpack.c.l.b16 %v3857
    %v7602 = vunpack.c.h.b16 %v3857
    %v7603 = vunpack.c.l.b16 %v3858
    %v7604 = vunpack.c.h.b16 %v3858
    %v7605 = vunpack.c.l.b16 %v3859
    %v7606 = vunpack.c.h.b16 %v3859
    %v7607 = vunpack.c.l.b16 %v3860
    %v7608 = vunpack.c.h.b16 %v3860
    %v7609 = vunpack.c.l.b16 %v3861
    %v7610 = vunpack.c.h.b16 %v3861
    %v7611 = vunpack.c.l.b16 %v3862
    %v7612 = vunpack.c.h.b16 %v3862
    %v7613 = vunpack.c.l.b16 %v3863
    %v7614 = vunpack.c.h.b16 %v3863
    %v7615 = vunpack.c.l.b16 %v3864
    %v7616 = vunpack.c.h.b16 %v3864
    %v7617 = vunpack.c.l.b16 %v3865
    %v7618 = vunpack.c.h.b16 %v3865
    %v7619 = vunpack.c.l.b16 %v3866
    %v7620 = vunpack.c.h.b16 %v3866
    %v7621 = vunpack.c.l.b16 %v3867
    %v7622 = vunpack.c.h.b16 %v3867
    %v7623 = vunpack.c.l.b16 %v3868
    %v7624 = vunpack.c.h.b16 %v3868
    %v7625 = vunpack.c.l.b16 %v3869
    %v7626 = vunpack.c.h.b16 %v3869
    %v7627 = vunpack.c.l.b16 %v3870
    %v7628 = vunpack.c.h.b16 %v3870
    %v7629 = vunpack.c.l.b16 %v3871
    %v7630 = vunpack.c.h.b16 %v3871
    %v7631 = vunpack.c.l.b16 %v3872
    %v7632 = vunpack.c.h.b16 %v3872
    %v7633 = vunpack.c.l.b16 %v3873
    %v7634 = vunpack.c.h.b16 %v3873
    %v7635 = vunpack.c.l.b16 %v3874
    %v7636 = vunpack.c.h.b16 %v3874
    %v7637 = vunpack.c.l.b16 %v3875
    %v7638 = vunpack.c.h.b16 %v3875
    %v7639 = vunpack.c.l.b16 %v3876
    %v7640 = vunpack.c.h.b16 %v3876
    %v7641 = vunpack.c.l.b16 %v3877
    %v7642 = vunpack.c.h.b16 %v3877
    %v7643 = vunpack.c.l.b16 %v3878
    %v7644 = vunpack.c.h.b16 %v3878
    %v7645 = vunpack.c.l.b16 %v3879
    %v7646 = vunpack.c.h.b16 %v3879
    %v7647 = vunpack.c.l.b16 %v3880
    %v7648 = vunpack.c.h.b16 %v3880
    %v7649 = vunpack.c.l.b16 %v3881
    %v7650 = vunpack.c.h.b16 %v3881
    %v7651 = vunpack.c.l.b16 %v3882
    %v7652 = vunpack.c.h.b16 %v3882
    %v7653 = vunpack.c.l.b16 %v3883
    %v7654 = vunpack.c.h.b16 %v3883
    %v7655 = vunpack.c.l.b16 %v3884
    %v7656 = vunpack.c.h.b16 %v3884
    %v7657 = vunpack.c.l.b16 %v3885
    %v7658 = vunpack.c.h.b16 %v3885
    %v7659 = vunpack.c.l.b16 %v3886
    %v7660 = vunpack.c.h.b16 %v3886
    %v7661 = vunpack.c.l.b16 %v3887
    %v7662 = vunpack.c.h.b16 %v3887
    %v7663 = vunpack.c.l.b16 %v3888
    %v7664 = vunpack.c.h.b16 %v3888
    %v7665 = vunpack.c.l.b16 %v3889
    %v7666 = vunpack.c.h.b16 %v3889
    %v7667 = vunpack.c.l.b16 %v3890
    %v7668 = vunpack.c.h.b16 %v3890
    %v7669 = vunpack.c.l.b16 %v3891
    %v7670 = vunpack.c.h.b16 %v3891
    %v7671 = vunpack.c.l.b16 %v3892
    %v7672 = vunpack.c.h.b16 %v3892
    %v7673 = vunpack.c.l.b16 %v3893
    %v7674 = vunpack.c.h.b16 %v3893
    %v7675 = vunpack.c.l.b16 %v3894
    %v7676 = vunpack.c.h.b16 %v3894
    %v7677 = vunpack.c.l.b16 %v3895
    %v7678 = vunpack.c.h.b16 %v3895
    %v7679 = vunpack.c.l.b16 %v3896
    %v7680 = vunpack.c.h.b16 %v3896
    %v7681 = vunpack.c.l.b16 %v3897
    %v7682 = vunpack.c.h.b16 %v3897
    %v7683 = vunpack.c.l.b16 %v3898
    %v7684 = vunpack.c.h.b16 %v3898
    %v7685 = vunpack.c.l.b16 %v3899
    %v7686 = vunpack.c.h.b16 %v3899
    %v7687 = vunpack.c.l.b16 %v3900
    %v7688 = vunpack.c.h.b16 %v3900
    %v7689 = vunpack.c.l.b16 %v3901
    %v7690 = vunpack.c.h.b16 %v3901
    %v7691 = vunpack.c.l.b16 %v3902
    %v7692 = vunpack.c.h.b16 %v3902
    %v7693 = vunpack.c.l.b16 %v3903
    %v7694 = vunpack.c.h.b16 %v3903
    %v7695 = vunpack.c.l.b16 %v3904
    %v7696 = vunpack.c.h.b16 %v3904
    %v7697 = vunpack.c.l.b16 %v3905
    %v7698 = vunpack.c.h.b16 %v3905
    %v7699 = vunpack.c.l.b16 %v3906
    %v7700 = vunpack.c.h.b16 %v3906
    %v7701 = vunpack.c.l.b16 %v3907
    %v7702 = vunpack.c.h.b16 %v3907
    %v7703 = vunpack.c.l.b16 %v3908
    %v7704 = vunpack.c.h.b16 %v3908
    %v7705 = vunpack.c.l.b16 %v3909
    %v7706 = vunpack.c.h.b16 %v3909
    %v7707 = vunpack.c.l.b16 %v3910
    %v7708 = vunpack.c.h.b16 %v3910
    %v7709 = vunpack.c.l.b16 %v3911
    %v7710 = vunpack.c.h.b16 %v3911
    %v7711 = vunpack.c.l.b16 %v3912
    %v7712 = vunpack.c.h.b16 %v3912
    %v7713 = vunpack.c.l.b16 %v3913
    %v7714 = vunpack.c.h.b16 %v3913
    %v7715 = vunpack.c.l.b16 %v3914
    %v7716 = vunpack.c.h.b16 %v3914
    %v7717 = vunpack.c.l.b16 %v3915
    %v7718 = vunpack.c.h.b16 %v3915
    %v7719 = vunpack.c.l.b16 %v3916
    %v7720 = vunpack.c.h.b16 %v3916
    %v7721 = vunpack.c.l.b16 %v3917
    %v7722 = vunpack.c.h.b16 %v3917
    %v7723 = vunpack.c.l.b16 %v3918
    %v7724 = vunpack.c.h.b16 %v3918
    %v7725 = vunpack.c.l.b16 %v3919
    %v7726 = vunpack.c.h.b16 %v3919
    %v7727 = vunpack.c.l.b16 %v3920
    %v7728 = vunpack.c.h.b16 %v3920
    %v7729 = vunpack.c.l.b16 %v3921
    %v7730 = vunpack.c.h.b16 %v3921
    %v7731 = vunpack.c.l.b16 %v3922
    %v7732 = vunpack.c.h.b16 %v3922
    %v7733 = vunpack.c.l.b16 %v3923
    %v7734 = vunpack.c.h.b16 %v3923
    %v7735 = vunpack.c.l.b16 %v3924
    %v7736 = vunpack.c.h.b16 %v3924
    %v7737 = vunpack.c.l.b16 %v3925
    %v7738 = vunpack.c.h.b16 %v3925
    %v7739 = vunpack.c.l.b16 %v3926
    %v7740 = vunpack.c.h.b16 %v3926
    %v7741 = vunpack.c.l.b16 %v3927
    %v7742 = vunpack.c.h.b16 %v3927
    %v7743 = vunpack.c.l.b16 %v3928
    %v7744 = vunpack.c.h.b16 %v3928
    %v7745 = vunpack.c.l.b16 %v3929
    %v7746 = vunpack.c.h.b16 %v3929
    %v7747 = vunpack.c.l.b16 %v3930
    %v7748 = vunpack.c.h.b16 %v3930
    %v7749 = vunpack.c.l.b16 %v3931
    %v7750 = vunpack.c.h.b16 %v3931
    %v7751 = vunpack.c.l.b16 %v3932
    %v7752 = vunpack.c.h.b16 %v3932
    %v7753 = vunpack.c.l.b16 %v3933
    %v7754 = vunpack.c.h.b16 %v3933
    %v7755 = vunpack.c.l.b16 %v3934
    %v7756 = vunpack.c.h.b16 %v3934
    %v7757 = vunpack.c.l.b16 %v3935
    %v7758 = vunpack.c.h.b16 %v3935
    %v7759 = vunpack.c.l.b16 %v3936
    %v7760 = vunpack.c.h.b16 %v3936
    %v7761 = vunpack.c.l.b16 %v3937
    %v7762 = vunpack.c.h.b16 %v3937
    %v7763 = vunpack.c.l.b16 %v3938
    %v7764 = vunpack.c.h.b16 %v3938
    %v7765 = vunpack.c.l.b16 %v3939
    %v7766 = vunpack.c.h.b16 %v3939
    %v7767 = vunpack.c.l.b16 %v3940
    %v7768 = vunpack.c.h.b16 %v3940
    %v7769 = vunpack.c.l.b16 %v3941
    %v7770 = vunpack.c.h.b16 %v3941
    %v7771 = vunpack.c.l.b16 %v3942
    %v7772 = vunpack.c.h.b16 %v3942
    %v7773 = vunpack.c.l.b16 %v3943
    %v7774 = vunpack.c.h.b16 %v3943
    %v7775 = vunpack.c.l.b16 %v3944
    %v7776 = vunpack.c.h.b16 %v3944
    %v7777 = vunpack.c.l.b16 %v3945
    %v7778 = vunpack.c.h.b16 %v3945
    %v7779 = vunpack.c.l.b16 %v3946
    %v7780 = vunpack.c.h.b16 %v3946
    %v7781 = vunpack.c.l.b16 %v3947
    %v7782 = vunpack.c.h.b16 %v3947
    %v7783 = vunpack.c.l.b16 %v3948
    %v7784 = vunpack.c.h.b16 %v3948
    %v7785 = vunpack.c.l.b16 %v3949
    %v7786 = vunpack.c.h.b16 %v3949
    %v7787 = vunpack.c.l.b16 %v3950
    %v7788 = vunpack.c.h.b16 %v3950
    %v7789 = vunpack.c.l.b16 %v3951
    %v7790 = vunpack.c.h.b16 %v3951
    %v7791 = vunpack.c.l.b16 %v3952
    %v7792 = vunpack.c.h.b16 %v3952
    %v7793 = vunpack.c.l.b16 %v3953
    %v7794 = vunpack.c.h.b16 %v3953
    %v7795 = vunpack.c.l.b16 %v3954
    %v7796 = vunpack.c.h.b16 %v3954
    %v7797 = vunpack.c.l.b16 %v3955
    %v7798 = vunpack.c.h.b16 %v3955
    %v7799 = vunpack.c.l.b16 %v3956
    %v7800 = vunpack.c.h.b16 %v3956
    %v7801 = vunpack.c.l.b16 %v3957
    %v7802 = vunpack.c.h.b16 %v3957
    %v7803 = vunpack.c.l.b16 %v3958
    %v7804 = vunpack.c.h.b16 %v3958
    %v7805 = vunpack.c.l.b16 %v3959
    %v7806 = vunpack.c.h.b16 %v3959
    %v7807 = vunpack.c.l.b16 %v3960
    %v7808 = vunpack.c.h.b16 %v3960
    %v7809 = vunpack.c.l.b16 %v3961
    %v7810 = vunpack.c.h.b16 %v3961
    %v7811 = vunpack.c.l.b16 %v3962
    %v7812 = vunpack.c.h.b16 %v3962
    %v7813 = vunpack.c.l.b16 %v3963
    %v7814 = vunpack.c.h.b16 %v3963
    %v7815 = vunpack.c.l.b16 %v3964
    %v7816 = vunpack.c.h.b16 %v3964
    %v7817 = vunpack.c.l.b16 %v3965
    %v7818 = vunpack.c.h.b16 %v3965
    %v7819 = vunpack.c.l.b16 %v3966
    %v7820 = vunpack.c.h.b16 %v3966
    %v7821 = vunpack.c.l.b16 %v3967
    %v7822 = vunpack.c.h.b16 %v3967
    %v7823 = vunpack.c.l.b16 %v3968
    %v7824 = vunpack.c.h.b16 %v3968
    %v7825 = vunpack.c.l.b16 %v3969
    %v7826 = vunpack.c.h.b16 %v3969
    %v7827 = vunpack.c.l.b16 %v3970
    %v7828 = vunpack.c.h.b16 %v3970
    %v7829 = vunpack.c.l.b16 %v3971
    %v7830 = vunpack.c.h.b16 %v3971
    %v7831 = vunpack.c.l.b16 %v3972
    %v7832 = vunpack.c.h.b16 %v3972
    %v7833 = vunpack.c.l.b16 %v3973
    %v7834 = vunpack.c.h.b16 %v3973
    %v7835 = vunpack.c.l.b16 %v3974
    %v7836 = vunpack.c.h.b16 %v3974
    %v7837 = vunpack.c.l.b16 %v3975
    %v7838 = vunpack.c.h.b16 %v3975
    %v7839 = vunpack.c.l.b16 %v3976
    %v7840 = vunpack.c.h.b16 %v3976
    %v7841 = vunpack.c.l.b16 %v3977
    %v7842 = vunpack.c.h.b16 %v3977
    %v7843 = vunpack.c.l.b16 %v3978
    %v7844 = vunpack.c.h.b16 %v3978
    %v7845 = vunpack.c.l.b16 %v3979
    %v7846 = vunpack.c.h.b16 %v3979
    %v7847 = vunpack.c.l.b16 %v3980
    %v7848 = vunpack.c.h.b16 %v3980
    %v7849 = vunpack.c.l.b16 %v3981
    %v7850 = vunpack.c.h.b16 %v3981
    %v7851 = vunpack.c.l.b16 %v3982
    %v7852 = vunpack.c.h.b16 %v3982
    %v7853 = vunpack.c.l.b16 %v3983
    %v7854 = vunpack.c.h.b16 %v3983
    %v7855 = vunpack.c.l.b16 %v3984
    %v7856 = vunpack.c.h.b16 %v3984
    %v7857 = vunpack.c.l.b16 %v3985
    %v7858 = vunpack.c.h.b16 %v3985
    %v7859 = vunpack.c.l.b16 %v3986
    %v7860 = vunpack.c.h.b16 %v3986
    %v7861 = vunpack.c.l.b16 %v3987
    %v7862 = vunpack.c.h.b16 %v3987
    %v7863 = vunpack.c.l.b16 %v3988
    %v7864 = vunpack.c.h.b16 %v3988
    %v7865 = vunpack.c.l.b16 %v3989
    %v7866 = vunpack.c.h.b16 %v3989
    %v7867 = vunpack.c.l.b16 %v3990
    %v7868 = vunpack.c.h.b16 %v3990
    %v7869 = vunpack.c.l.b16 %v3991
    %v7870 = vunpack.c.h.b16 %v3991
    %v7871 = vunpack.c.l.b16 %v3992
    %v7872 = vunpack.c.h.b16 %v3992
    %v7873 = vunpack.c.l.b16 %v3993
    %v7874 = vunpack.c.h.b16 %v3993
    %v7875 = vunpack.c.l.b16 %v3994
    %v7876 = vunpack.c.h.b16 %v3994
    %v7877 = vunpack.c.l.b16 %v3995
    %v7878 = vunpack.c.h.b16 %v3995
    %v7879 = vunpack.c.l.b16 %v3996
    %v7880 = vunpack.c.h.b16 %v3996
    %v7881 = vunpack.c.l.b16 %v3997
    %v7882 = vunpack.c.h.b16 %v3997
    %v7883 = vunpack.c.l.b16 %v3998
    %v7884 = vunpack.c.h.b16 %v3998
    %v7885 = vunpack.c.l.b16 %v3999
    %v7886 = vunpack.c.h.b16 %v3999
    %v7887 = vunpack.c.l.b16 %v4000
    %v7888 = vunpack.c.h.b16 %v4000
    %v7889 = vunpack.c.l.b16 %v4001
    %v7890 = vunpack.c.h.b16 %v4001
    %v7891 = vpack.c.b16 %v5851, %v5843
    %v7892 = vpack.c.b16 %v5852, %v5844
    %v7893 = vpack.c.b16 %v5853, %v5845
    %v7894 = vpack.c.b16 %v5854, %v5846
    %v7895 = vpack.c.b16 %v5855, %v5847
    %v7896 = vpack.c.b16 %v5856, %v5848
    %v7897 = vpack.c.b16 %v5857, %v5849
    %v7898 = vpack.c.b16 %v5858, %v5850
    %v7899 = vpack.c.b16 %v5867, %v5859
    %v7900 = vpack.c.b16 %v5868, %v5860
    %v7901 = vpack.c.b16 %v5869, %v5861
    %v7902 = vpack.c.b16 %v5870, %v5862
    %v7903 = vpack.c.b16 %v5871, %v5863
    %v7904 = vpack.c.b16 %v5872, %v5864
    %v7905 = vpack.c.b16 %v5873, %v5865
    %v7906 = vpack.c.b16 %v5874, %v5866
    %v7907 = vpack.c.b16 %v5883, %v5875
    %v7908 = vpack.c.b16 %v5884, %v5876
    %v7909 = vpack.c.b16 %v5885, %v5877
    %v7910 = vpack.c.b16 %v5886, %v5878
    %v7911 = vpack.c.b16 %v5887, %v5879
    %v7912 = vpack.c.b16 %v5888, %v5880
    %v7913 = vpack.c.b16 %v5889, %v5881
    %v7914 = vpack.c.b16 %v5890, %v5882
    %v7915 = vpack.c.b16 %v5899, %v5891
    %v7916 = vpack.c.b16 %v5900, %v5892
    %v7917 = vpack.c.b16 %v5901, %v5893
    %v7918 = vpack.c.b16 %v5902, %v5894
    %v7919 = vpack.c.b16 %v5903, %v5895
    %v7920 = vpack.c.b16 %v5904, %v5896
    %v7921 = vpack.c.b16 %v5905, %v5897
    %v7922 = vpack.c.b16 %v5906, %v5898
    %v7923 = vpack.c.b16 %v5915, %v5907
    %v7924 = vpack.c.b16 %v5916, %v5908
    %v7925 = vpack.c.b16 %v5917, %v5909
    %v7926 = vpack.c.b16 %v5918, %v5910
    %v7927 = vpack.c.b16 %v5919, %v5911
    %v7928 = vpack.c.b16 %v5920, %v5912
    %v7929 = vpack.c.b16 %v5921, %v5913
    %v7930 = vpack.c.b16 %v5922, %v5914
    %v7931 = vpack.c.b16 %v5931, %v5923
    %v7932 = vpack.c.b16 %v5932, %v5924
    %v7933 = vpack.c.b16 %v5933, %v5925
    %v7934 = vpack.c.b16 %v5934, %v5926
    %v7935 = vpack.c.b16 %v5935, %v5927
    %v7936 = vpack.c.b16 %v5936, %v5928
    %v7937 = vpack.c.b16 %v5937, %v5929
    %v7938 = vpack.c.b16 %v5938, %v5930
    %v7939 = vpack.c.b16 %v5947, %v5939
    %v7940 = vpack.c.b16 %v5948, %v5940
    %v7941 = vpack.c.b16 %v5949, %v5941
    %v7942 = vpack.c.b16 %v5950, %v5942
    %v7943 = vpack.c.b16 %v5951, %v5943
    %v7944 = vpack.c.b16 %v5952, %v5944
    %v7945 = vpack.c.b16 %v5953, %v5945
    %v7946 = vpack.c.b16 %v5954, %v5946
    %v7947 = vpack.c.b16 %v5963, %v5955
    %v7948 = vpack.c.b16 %v5964, %v5956
    %v7949 = vpack.c.b16 %v5965, %v5957
    %v7950 = vpack.c.b16 %v5966, %v5958
    %v7951 = vpack.c.b16 %v5967, %v5959
    %v7952 = vpack.c.b16 %v5968, %v5960
    %v7953 = vpack.c.b16 %v5969, %v5961
    %v7954 = vpack.c.b16 %v5970, %v5962
    %v7955 = vpack.c.b16 %v5979, %v5971
    %v7956 = vpack.c.b16 %v5980, %v5972
    %v7957 = vpack.c.b16 %v5981, %v5973
    %v7958 = vpack.c.b16 %v5982, %v5974
    %v7959 = vpack.c.b16 %v5983, %v5975
    %v7960 = vpack.c.b16 %v5984, %v5976
    %v7961 = vpack.c.b16 %v5985, %v5977
    %v7962 = vpack.c.b16 %v5986, %v5978
    %v7963 = vpack.c.b16 %v5995, %v5987
    %v7964 = vpack.c.b16 %v5996, %v5988
    %v7965 = vpack.c.b16 %v5997, %v5989
    %v7966 = vpack.c.b16 %v5998, %v5990
    %v7967 = vpack.c.b16 %v5999, %v5991
    %v7968 = vpack.c.b16 %v6000, %v5992
    %v7969 = vpack.c.b16 %v6001, %v5993
    %v7970 = vpack.c.b16 %v6002, %v5994
    %v7971 = vpack.c.b16 %v6011, %v6003
    %v7972 = vpack.c.b16 %v6012, %v6004
    %v7973 = vpack.c.b16 %v6013, %v6005
    %v7974 = vpack.c.b16 %v6014, %v6006
    %v7975 = vpack.c.b16 %v6015, %v6007
    %v7976 = vpack.c.b16 %v6016, %v6008
    %v7977 = vpack.c.b16 %v6017, %v6009
    %v7978 = vpack.c.b16 %v6018, %v6010
    %v7979 = vpack.c.b16 %v6027, %v6019
    %v7980 = vpack.c.b16 %v6028, %v6020
    %v7981 = vpack.c.b16 %v6029, %v6021
    %v7982 = vpack.c.b16 %v6030, %v6022
    %v7983 = vpack.c.b16 %v6031, %v6023
    %v7984 = vpack.c.b16 %v6032, %v6024
    %v7985 = vpack.c.b16 %v6033, %v6025
    %v7986 = vpack.c.b16 %v6034, %v6026
    %v7987 = vpack.c.b16 %v6043, %v6035
    %v7988 = vpack.c.b16 %v6044, %v6036
    %v7989 = vpack.c.b16 %v6045, %v6037
    %v7990 = vpack.c.b16 %v6046, %v6038
    %v7991 = vpack.c.b16 %v6047, %v6039
    %v7992 = vpack.c.b16 %v6048, %v6040
    %v7993 = vpack.c.b16 %v6049, %v6041
    %v7994 = vpack.c.b16 %v6050, %v6042
    %v7995 = vpack.c.b16 %v6059, %v6051
    %v7996 = vpack.c.b16 %v6060, %v6052
    %v7997 = vpack.c.b16 %v6061, %v6053
    %v7998 = vpack.c.b16 %v6062, %v6054
    %v7999 = vpack.c.b16 %v6063, %v6055
    %v8000 = vpack.c.b16 %v6064, %v6056
    %v8001 = vpack.c.b16 %v6065, %v6057
    %v8002 = vpack.c.b16 %v6066, %v6058
    %v8003 = vpack.c.b16 %v6075, %v6067
    %v8004 = vpack.c.b16 %v6076, %v6068
    %v8005 = vpack.c.b16 %v6077, %v6069
    %v8006 = vpack.c.b16 %v6078, %v6070
    %v8007 = vpack.c.b16 %v6079, %v6071
    %v8008 = vpack.c.b16 %v6080, %v6072
    %v8009 = vpack.c.b16 %v6081, %v6073
    %v8010 = vpack.c.b16 %v6082, %v6074
    %v8011 = vpack.c.b16 %v6091, %v6083
    %v8012 = vpack.c.b16 %v6092, %v6084
    %v8013 = vpack.c.b16 %v6093, %v6085
    %v8014 = vpack.c.b16 %v6094, %v6086
    %v8015 = vpack.c.b16 %v6095, %v6087
    %v8016 = vpack.c.b16 %v6096, %v6088
    %v8017 = vpack.c.b16 %v6097, %v6089
    %v8018 = vpack.c.b16 %v6098, %v6090
    %v8019 = vpack.c.b16 %v6107, %v6099
    %v8020 = vpack.c.b16 %v6108, %v6100
    %v8021 = vpack.c.b16 %v6109, %v6101
    %v8022 = vpack.c.b16 %v6110, %v6102
    %v8023 = vpack.c.b16 %v6111, %v6103
    %v8024 = vpack.c.b16 %v6112, %v6104
    %v8025 = vpack.c.b16 %v6113, %v6105
    %v8026 = vpack.c.b16 %v6114, %v6106
    %v8027 = vpack.c.b16 %v6123, %v6115
    %v8028 = vpack.c.b16 %v6124, %v6116
    %v8029 = vpack.c.b16 %v6125, %v6117
    %v8030 = vpack.c.b16 %v6126, %v6118
    %v8031 = vpack.c.b16 %v6127, %v6119
    %v8032 = vpack.c.b16 %v6128, %v6120
    %v8033 = vpack.c.b16 %v6129, %v6121
    %v8034 = vpack.c.b16 %v6130, %v6122
    %v8035 = vpack.c.b16 %v6139, %v6131
    %v8036 = vpack.c.b16 %v6140, %v6132
    %v8037 = vpack.c.b16 %v6141, %v6133
    %v8038 = vpack.c.b16 %v6142, %v6134
    %v8039 = vpack.c.b16 %v6143, %v6135
    %v8040 = vpack.c.b16 %v6144, %v6136
    %v8041 = vpack.c.b16 %v6145, %v6137
    %v8042 = vpack.c.b16 %v6146, %v6138
    %v8043 = vpack.c.b16 %v6155, %v6147
    %v8044 = vpack.c.b16 %v6156, %v6148
    %v8045 = vpack.c.b16 %v6157, %v6149
    %v8046 = vpack.c.b16 %v6158, %v6150
    %v8047 = vpack.c.b16 %v6159, %v6151
    %v8048 = vpack.c.b16 %v6160, %v6152
    %v8049 = vpack.c.b16 %v6161, %v6153
    %v8050 = vpack.c.b16 %v6162, %v6154
    %v8051 = vpack.c.b16 %v6171, %v6163
    %v8052 = vpack.c.b16 %v6172, %v6164
    %v8053 = vpack.c.b16 %v6173, %v6165
    %v8054 = vpack.c.b16 %v6174, %v6166
    %v8055 = vpack.c.b16 %v6175, %v6167
    %v8056 = vpack.c.b16 %v6176, %v6168
    %v8057 = vpack.c.b16 %v6177, %v6169
    %v8058 = vpack.c.b16 %v6178, %v6170
    %v8059 = vpack.c.b16 %v6187, %v6179
    %v8060 = vpack.c.b16 %v6188, %v6180
    %v8061 = vpack.c.b16 %v6189, %v6181
    %v8062 = vpack.c.b16 %v6190, %v6182
    %v8063 = vpack.c.b16 %v6191, %v6183
    %v8064 = vpack.c.b16 %v6192, %v6184
    %v8065 = vpack.c.b16 %v6193, %v6185
    %v8066 = vpack.c.b16 %v6194, %v6186
    %v8067 = vpack.c.b16 %v6203, %v6195
    %v8068 = vpack.c.b16 %v6204, %v6196
    %v8069 = vpack.c.b16 %v6205, %v6197
    %v8070 = vpack.c.b16 %v6206, %v6198
    %v8071 = vpack.c.b16 %v6207, %v6199
    %v8072 = vpack.c.b16 %v6208, %v6200
    %v8073 = vpack.c.b16 %v6209, %v6201
    %v8074 = vpack.c.b16 %v6210, %v6202
    %v8075 = vpack.c.b16 %v6219, %v6211
    %v8076 = vpack.c.b16 %v6220, %v6212
    %v8077 = vpack.c.b16 %v6221, %v6213
    %v8078 = vpack.c.b16 %v6222, %v6214
    %v8079 = vpack.c.b16 %v6223, %v6215
    %v8080 = vpack.c.b16 %v6224, %v6216
    %v8081 = vpack.c.b16 %v6225, %v6217
    %v8082 = vpack.c.b16 %v6226, %v6218
    %v8083 = vpack.c.b16 %v6235, %v6227
    %v8084 = vpack.c.b16 %v6236, %v6228
    %v8085 = vpack.c.b16 %v6237, %v6229
    %v8086 = vpack.c.b16 %v6238, %v6230
    %v8087 = vpack.c.b16 %v6239, %v6231
    %v8088 = vpack.c.b16 %v6240, %v6232
    %v8089 = vpack.c.b16 %v6241, %v6233
    %v8090 = vpack.c.b16 %v6242, %v6234
    %v8091 = vpack.c.b16 %v6251, %v6243
    %v8092 = vpack.c.b16 %v6252, %v6244
    %v8093 = vpack.c.b16 %v6253, %v6245
    %v8094 = vpack.c.b16 %v6254, %v6246
    %v8095 = vpack.c.b16 %v6255, %v6247
    %v8096 = vpack.c.b16 %v6256, %v6248
    %v8097 = vpack.c.b16 %v6257, %v6249
    %v8098 = vpack.c.b16 %v6258, %v6250
    %v8099 = vpack.c.b16 %v6267, %v6259
    %v8100 = vpack.c.b16 %v6268, %v6260
    %v8101 = vpack.c.b16 %v6269, %v6261
    %v8102 = vpack.c.b16 %v6270, %v6262
    %v8103 = vpack.c.b16 %v6271, %v6263
    %v8104 = vpack.c.b16 %v6272, %v6264
    %v8105 = vpack.c.b16 %v6273, %v6265
    %v8106 = vpack.c.b16 %v6274, %v6266
    %v8107 = vpack.c.b16 %v6283, %v6275
    %v8108 = vpack.c.b16 %v6284, %v6276
    %v8109 = vpack.c.b16 %v6285, %v6277
    %v8110 = vpack.c.b16 %v6286, %v6278
    %v8111 = vpack.c.b16 %v6287, %v6279
    %v8112 = vpack.c.b16 %v6288, %v6280
    %v8113 = vpack.c.b16 %v6289, %v6281
    %v8114 = vpack.c.b16 %v6290, %v6282
    %v8115 = vpack.c.b16 %v6299, %v6291
    %v8116 = vpack.c.b16 %v6300, %v6292
    %v8117 = vpack.c.b16 %v6301, %v6293
    %v8118 = vpack.c.b16 %v6302, %v6294
    %v8119 = vpack.c.b16 %v6303, %v6295
    %v8120 = vpack.c.b16 %v6304, %v6296
    %v8121 = vpack.c.b16 %v6305, %v6297
    %v8122 = vpack.c.b16 %v6306, %v6298
    %v8123 = vpack.c.b16 %v6315, %v6307
    %v8124 = vpack.c.b16 %v6316, %v6308
    %v8125 = vpack.c.b16 %v6317, %v6309
    %v8126 = vpack.c.b16 %v6318, %v6310
    %v8127 = vpack.c.b16 %v6319, %v6311
    %v8128 = vpack.c.b16 %v6320, %v6312
    %v8129 = vpack.c.b16 %v6321, %v6313
    %v8130 = vpack.c.b16 %v6322, %v6314
    %v8131 = vpack.c.b16 %v6331, %v6323
    %v8132 = vpack.c.b16 %v6332, %v6324
    %v8133 = vpack.c.b16 %v6333, %v6325
    %v8134 = vpack.c.b16 %v6334, %v6326
    %v8135 = vpack.c.b16 %v6335, %v6327
    %v8136 = vpack.c.b16 %v6336, %v6328
    %v8137 = vpack.c.b16 %v6337, %v6329
    %v8138 = vpack.c.b16 %v6338, %v6330
    %v8139 = vpack.c.b16 %v6347, %v6339
    %v8140 = vpack.c.b16 %v6348, %v6340
    %v8141 = vpack.c.b16 %v6349, %v6341
    %v8142 = vpack.c.b16 %v6350, %v6342
    %v8143 = vpack.c.b16 %v6351, %v6343
    %v8144 = vpack.c.b16 %v6352, %v6344
    %v8145 = vpack.c.b16 %v6353, %v6345
    %v8146 = vpack.c.b16 %v6354, %v6346
    %v8147 = vpack.c.b16 %v6363, %v6355
    %v8148 = vpack.c.b16 %v6364, %v6356
    %v8149 = vpack.c.b16 %v6365, %v6357
    %v8150 = vpack.c.b16 %v6366, %v6358
    %v8151 = vpack.c.b16 %v6367, %v6359
    %v8152 = vpack.c.b16 %v6368, %v6360
    %v8153 = vpack.c.b16 %v6369, %v6361
    %v8154 = vpack.c.b16 %v6370, %v6362
    %v8155 = vpack.c.b16 %v6379, %v6371
    %v8156 = vpack.c.b16 %v6380, %v6372
    %v8157 = vpack.c.b16 %v6381, %v6373
    %v8158 = vpack.c.b16 %v6382, %v6374
    %v8159 = vpack.c.b16 %v6383, %v6375
    %v8160 = vpack.c.b16 %v6384, %v6376
    %v8161 = vpack.c.b16 %v6385, %v6377
    %v8162 = vpack.c.b16 %v6386, %v6378
    %v8163 = vpack.c.b16 %v6395, %v6387
    %v8164 = vpack.c.b16 %v6396, %v6388
    %v8165 = vpack.c.b16 %v6397, %v6389
    %v8166 = vpack.c.b16 %v6398, %v6390
    %v8167 = vpack.c.b16 %v6399, %v6391
    %v8168 = vpack.c.b16 %v6400, %v6392
    %v8169 = vpack.c.b16 %v6401, %v6393
    %v8170 = vpack.c.b16 %v6402, %v6394
    %v8171 = vpack.c.b16 %v6411, %v6403
    %v8172 = vpack.c.b16 %v6412, %v6404
    %v8173 = vpack.c.b16 %v6413, %v6405
    %v8174 = vpack.c.b16 %v6414, %v6406
    %v8175 = vpack.c.b16 %v6415, %v6407
    %v8176 = vpack.c.b16 %v6416, %v6408
    %v8177 = vpack.c.b16 %v6417, %v6409
    %v8178 = vpack.c.b16 %v6418, %v6410
    %v8179 = vpack.c.b16 %v6427, %v6419
    %v8180 = vpack.c.b16 %v6428, %v6420
    %v8181 = vpack.c.b16 %v6429, %v6421
    %v8182 = vpack.c.b16 %v6430, %v6422
    %v8183 = vpack.c.b16 %v6431, %v6423
    %v8184 = vpack.c.b16 %v6432, %v6424
    %v8185 = vpack.c.b16 %v6433, %v6425
    %v8186 = vpack.c.b16 %v6434, %v6426
    %v8187 = vpack.c.b16 %v6443, %v6435
    %v8188 = vpack.c.b16 %v6444, %v6436
    %v8189 = vpack.c.b16 %v6445, %v6437
    %v8190 = vpack.c.b16 %v6446, %v6438
    %v8191 = vpack.c.b16 %v6447, %v6439
    %v8192 = vpack.c.b16 %v6448, %v6440
    %v8193 = vpack.c.b16 %v6449, %v6441
    %v8194 = vpack.c.b16 %v6450, %v6442
    %v8195 = vpack.c.b16 %v6459, %v6451
    %v8196 = vpack.c.b16 %v6460, %v6452
    %v8197 = vpack.c.b16 %v6461, %v6453
    %v8198 = vpack.c.b16 %v6462, %v6454
    %v8199 = vpack.c.b16 %v6463, %v6455
    %v8200 = vpack.c.b16 %v6464, %v6456
    %v8201 = vpack.c.b16 %v6465, %v6457
    %v8202 = vpack.c.b16 %v6466, %v6458
    %v8203 = vpack.c.b16 %v6475, %v6467
    %v8204 = vpack.c.b16 %v6476, %v6468
    %v8205 = vpack.c.b16 %v6477, %v6469
    %v8206 = vpack.c.b16 %v6478, %v6470
    %v8207 = vpack.c.b16 %v6479, %v6471
    %v8208 = vpack.c.b16 %v6480, %v6472
    %v8209 = vpack.c.b16 %v6481, %v6473
    %v8210 = vpack.c.b16 %v6482, %v6474
    %v8211 = vpack.c.b16 %v6491, %v6483
    %v8212 = vpack.c.b16 %v6492, %v6484
    %v8213 = vpack.c.b16 %v6493, %v6485
    %v8214 = vpack.c.b16 %v6494, %v6486
    %v8215 = vpack.c.b16 %v6495, %v6487
    %v8216 = vpack.c.b16 %v6496, %v6488
    %v8217 = vpack.c.b16 %v6497, %v6489
    %v8218 = vpack.c.b16 %v6498, %v6490
    %v8219 = vpack.c.b16 %v6507, %v6499
    %v8220 = vpack.c.b16 %v6508, %v6500
    %v8221 = vpack.c.b16 %v6509, %v6501
    %v8222 = vpack.c.b16 %v6510, %v6502
    %v8223 = vpack.c.b16 %v6511, %v6503
    %v8224 = vpack.c.b16 %v6512, %v6504
    %v8225 = vpack.c.b16 %v6513, %v6505
    %v8226 = vpack.c.b16 %v6514, %v6506
    %v8227 = vpack.c.b16 %v6523, %v6515
    %v8228 = vpack.c.b16 %v6524, %v6516
    %v8229 = vpack.c.b16 %v6525, %v6517
    %v8230 = vpack.c.b16 %v6526, %v6518
    %v8231 = vpack.c.b16 %v6527, %v6519
    %v8232 = vpack.c.b16 %v6528, %v6520
    %v8233 = vpack.c.b16 %v6529, %v6521
    %v8234 = vpack.c.b16 %v6530, %v6522
    %v8235 = vpack.c.b16 %v6539, %v6531
    %v8236 = vpack.c.b16 %v6540, %v6532
    %v8237 = vpack.c.b16 %v6541, %v6533
    %v8238 = vpack.c.b16 %v6542, %v6534
    %v8239 = vpack.c.b16 %v6543, %v6535
    %v8240 = vpack.c.b16 %v6544, %v6536
    %v8241 = vpack.c.b16 %v6545, %v6537
    %v8242 = vpack.c.b16 %v6546, %v6538
    %v8243 = vpack.c.b16 %v6555, %v6547
    %v8244 = vpack.c.b16 %v6556, %v6548
    %v8245 = vpack.c.b16 %v6557, %v6549
    %v8246 = vpack.c.b16 %v6558, %v6550
    %v8247 = vpack.c.b16 %v6559, %v6551
    %v8248 = vpack.c.b16 %v6560, %v6552
    %v8249 = vpack.c.b16 %v6561, %v6553
    %v8250 = vpack.c.b16 %v6562, %v6554
    %v8251 = vpack.c.b16 %v6571, %v6563
    %v8252 = vpack.c.b16 %v6572, %v6564
    %v8253 = vpack.c.b16 %v6573, %v6565
    %v8254 = vpack.c.b16 %v6574, %v6566
    %v8255 = vpack.c.b16 %v6575, %v6567
    %v8256 = vpack.c.b16 %v6576, %v6568
    %v8257 = vpack.c.b16 %v6577, %v6569
    %v8258 = vpack.c.b16 %v6578, %v6570
    %v8259 = vpack.c.b16 %v6587, %v6579
    %v8260 = vpack.c.b16 %v6588, %v6580
    %v8261 = vpack.c.b16 %v6589, %v6581
    %v8262 = vpack.c.b16 %v6590, %v6582
    %v8263 = vpack.c.b16 %v6591, %v6583
    %v8264 = vpack.c.b16 %v6592, %v6584
    %v8265 = vpack.c.b16 %v6593, %v6585
    %v8266 = vpack.c.b16 %v6594, %v6586
    %v8267 = vpack.c.b16 %v6603, %v6595
    %v8268 = vpack.c.b16 %v6604, %v6596
    %v8269 = vpack.c.b16 %v6605, %v6597
    %v8270 = vpack.c.b16 %v6606, %v6598
    %v8271 = vpack.c.b16 %v6607, %v6599
    %v8272 = vpack.c.b16 %v6608, %v6600
    %v8273 = vpack.c.b16 %v6609, %v6601
    %v8274 = vpack.c.b16 %v6610, %v6602
    %v8275 = vpack.c.b16 %v6619, %v6611
    %v8276 = vpack.c.b16 %v6620, %v6612
    %v8277 = vpack.c.b16 %v6621, %v6613
    %v8278 = vpack.c.b16 %v6622, %v6614
    %v8279 = vpack.c.b16 %v6623, %v6615
    %v8280 = vpack.c.b16 %v6624, %v6616
    %v8281 = vpack.c.b16 %v6625, %v6617
    %v8282 = vpack.c.b16 %v6626, %v6618
    %v8283 = vpack.c.b16 %v6635, %v6627
    %v8284 = vpack.c.b16 %v6636, %v6628
    %v8285 = vpack.c.b16 %v6637, %v6629
    %v8286 = vpack.c.b16 %v6638, %v6630
    %v8287 = vpack.c.b16 %v6639, %v6631
    %v8288 = vpack.c.b16 %v6640, %v6632
    %v8289 = vpack.c.b16 %v6641, %v6633
    %v8290 = vpack.c.b16 %v6642, %v6634
    %v8291 = vpack.c.b16 %v6651, %v6643
    %v8292 = vpack.c.b16 %v6652, %v6644
    %v8293 = vpack.c.b16 %v6653, %v6645
    %v8294 = vpack.c.b16 %v6654, %v6646
    %v8295 = vpack.c.b16 %v6655, %v6647
    %v8296 = vpack.c.b16 %v6656, %v6648
    %v8297 = vpack.c.b16 %v6657, %v6649
    %v8298 = vpack.c.b16 %v6658, %v6650
    %v8299 = vpack.c.b16 %v6667, %v6659
    %v8300 = vpack.c.b16 %v6668, %v6660
    %v8301 = vpack.c.b16 %v6669, %v6661
    %v8302 = vpack.c.b16 %v6670, %v6662
    %v8303 = vpack.c.b16 %v6671, %v6663
    %v8304 = vpack.c.b16 %v6672, %v6664
    %v8305 = vpack.c.b16 %v6673, %v6665
    %v8306 = vpack.c.b16 %v6674, %v6666
    %v8307 = vpack.c.b16 %v6683, %v6675
    %v8308 = vpack.c.b16 %v6684, %v6676
    %v8309 = vpack.c.b16 %v6685, %v6677
    %v8310 = vpack.c.b16 %v6686, %v6678
    %v8311 = vpack.c.b16 %v6687, %v6679
    %v8312 = vpack.c.b16 %v6688, %v6680
    %v8313 = vpack.c.b16 %v6689, %v6681
    %v8314 = vpack.c.b16 %v6690, %v6682
    %v8315 = vpack.c.b16 %v6699, %v6691
    %v8316 = vpack.c.b16 %v6700, %v6692
    %v8317 = vpack.c.b16 %v6701, %v6693
    %v8318 = vpack.c.b16 %v6702, %v6694
    %v8319 = vpack.c.b16 %v6703, %v6695
    %v8320 = vpack.c.b16 %v6704, %v6696
    %v8321 = vpack.c.b16 %v6705, %v6697
    %v8322 = vpack.c.b16 %v6706, %v6698
    %v8323 = vpack.c.b16 %v6715, %v6707
    %v8324 = vpack.c.b16 %v6716, %v6708
    %v8325 = vpack.c.b16 %v6717, %v6709
    %v8326 = vpack.c.b16 %v6718, %v6710
    %v8327 = vpack.c.b16 %v6719, %v6711
    %v8328 = vpack.c.b16 %v6720, %v6712
    %v8329 = vpack.c.b16 %v6721, %v6713
    %v8330 = vpack.c.b16 %v6722, %v6714
    %v8331 = vpack.c.b16 %v6731, %v6723
    %v8332 = vpack.c.b16 %v6732, %v6724
    %v8333 = vpack.c.b16 %v6733, %v6725
    %v8334 = vpack.c.b16 %v6734, %v6726
    %v8335 = vpack.c.b16 %v6735, %v6727
    %v8336 = vpack.c.b16 %v6736, %v6728
    %v8337 = vpack.c.b16 %v6737, %v6729
    %v8338 = vpack.c.b16 %v6738, %v6730
    %v8339 = vpack.c.b16 %v6747, %v6739
    %v8340 = vpack.c.b16 %v6748, %v6740
    %v8341 = vpack.c.b16 %v6749, %v6741
    %v8342 = vpack.c.b16 %v6750, %v6742
    %v8343 = vpack.c.b16 %v6751, %v6743
    %v8344 = vpack.c.b16 %v6752, %v6744
    %v8345 = vpack.c.b16 %v6753, %v6745
    %v8346 = vpack.c.b16 %v6754, %v6746
    %v8347 = vpack.c.b16 %v6763, %v6755
    %v8348 = vpack.c.b16 %v6764, %v6756
    %v8349 = vpack.c.b16 %v6765, %v6757
    %v8350 = vpack.c.b16 %v6766, %v6758
    %v8351 = vpack.c.b16 %v6767, %v6759
    %v8352 = vpack.c.b16 %v6768, %v6760
    %v8353 = vpack.c.b16 %v6769, %v6761
    %v8354 = vpack.c.b16 %v6770, %v6762
    %v8355 = vpack.c.b16 %v6779, %v6771
    %v8356 = vpack.c.b16 %v6780, %v6772
    %v8357 = vpack.c.b16 %v6781, %v6773
    %v8358 = vpack.c.b16 %v6782, %v6774
    %v8359 = vpack.c.b16 %v6783, %v6775
    %v8360 = vpack.c.b16 %v6784, %v6776
    %v8361 = vpack.c.b16 %v6785, %v6777
    %v8362 = vpack.c.b16 %v6786, %v6778
    %v8363 = vpack.c.b16 %v6795, %v6787
    %v8364 = vpack.c.b16 %v6796, %v6788
    %v8365 = vpack.c.b16 %v6797, %v6789
    %v8366 = vpack.c.b16 %v6798, %v6790
    %v8367 = vpack.c.b16 %v6799, %v6791
    %v8368 = vpack.c.b16 %v6800, %v6792
    %v8369 = vpack.c.b16 %v6801, %v6793
    %v8370 = vpack.c.b16 %v6802, %v6794
    %v8371 = vpack.c.b16 %v6811, %v6803
    %v8372 = vpack.c.b16 %v6812, %v6804
    %v8373 = vpack.c.b16 %v6813, %v6805
    %v8374 = vpack.c.b16 %v6814, %v6806
    %v8375 = vpack.c.b16 %v6815, %v6807
    %v8376 = vpack.c.b16 %v6816, %v6808
    %v8377 = vpack.c.b16 %v6817, %v6809
    %v8378 = vpack.c.b16 %v6818, %v6810
    %v8379 = vpack.c.b16 %v6827, %v6819
    %v8380 = vpack.c.b16 %v6828, %v6820
    %v8381 = vpack.c.b16 %v6829, %v6821
    %v8382 = vpack.c.b16 %v6830, %v6822
    %v8383 = vpack.c.b16 %v6831, %v6823
    %v8384 = vpack.c.b16 %v6832, %v6824
    %v8385 = vpack.c.b16 %v6833, %v6825
    %v8386 = vpack.c.b16 %v6834, %v6826
    %v8387 = vpack.c.b16 %v6843, %v6835
    %v8388 = vpack.c.b16 %v6844, %v6836
    %v8389 = vpack.c.b16 %v6845, %v6837
    %v8390 = vpack.c.b16 %v6846, %v6838
    %v8391 = vpack.c.b16 %v6847, %v6839
    %v8392 = vpack.c.b16 %v6848, %v6840
    %v8393 = vpack.c.b16 %v6849, %v6841
    %v8394 = vpack.c.b16 %v6850, %v6842
    %v8395 = vpack.c.b16 %v6859, %v6851
    %v8396 = vpack.c.b16 %v6860, %v6852
    %v8397 = vpack.c.b16 %v6861, %v6853
    %v8398 = vpack.c.b16 %v6862, %v6854
    %v8399 = vpack.c.b16 %v6863, %v6855
    %v8400 = vpack.c.b16 %v6864, %v6856
    %v8401 = vpack.c.b16 %v6865, %v6857
    %v8402 = vpack.c.b16 %v6866, %v6858
    %v8403 = vpack.c.b16 %v6875, %v6867
    %v8404 = vpack.c.b16 %v6876, %v6868
    %v8405 = vpack.c.b16 %v6877, %v6869
    %v8406 = vpack.c.b16 %v6878, %v6870
    %v8407 = vpack.c.b16 %v6879, %v6871
    %v8408 = vpack.c.b16 %v6880, %v6872
    %v8409 = vpack.c.b16 %v6881, %v6873
    %v8410 = vpack.c.b16 %v6882, %v6874
    %v8411 = vpack.c.b16 %v6891, %v6883
    %v8412 = vpack.c.b16 %v6892, %v6884
    %v8413 = vpack.c.b16 %v6893, %v6885
    %v8414 = vpack.c.b16 %v6894, %v6886
    %v8415 = vpack.c.b16 %v6895, %v6887
    %v8416 = vpack.c.b16 %v6896, %v6888
    %v8417 = vpack.c.b16 %v6897, %v6889
    %v8418 = vpack.c.b16 %v6898, %v6890
    %v8419 = vpack.c.b16 %v6907, %v6899
    %v8420 = vpack.c.b16 %v6908, %v6900
    %v8421 = vpack.c.b16 %v6909, %v6901
    %v8422 = vpack.c.b16 %v6910, %v6902
    %v8423 = vpack.c.b16 %v6911, %v6903
    %v8424 = vpack.c.b16 %v6912, %v6904
    %v8425 = vpack.c.b16 %v6913, %v6905
    %v8426 = vpack.c.b16 %v6914, %v6906
    %v8427 = vpack.c.b16 %v6923, %v6915
    %v8428 = vpack.c.b16 %v6924, %v6916
    %v8429 = vpack.c.b16 %v6925, %v6917
    %v8430 = vpack.c.b16 %v6926, %v6918
    %v8431 = vpack.c.b16 %v6927, %v6919
    %v8432 = vpack.c.b16 %v6928, %v6920
    %v8433 = vpack.c.b16 %v6929, %v6921
    %v8434 = vpack.c.b16 %v6930, %v6922
    %v8435 = vpack.c.b16 %v6939, %v6931
    %v8436 = vpack.c.b16 %v6940, %v6932
    %v8437 = vpack.c.b16 %v6941, %v6933
    %v8438 = vpack.c.b16 %v6942, %v6934
    %v8439 = vpack.c.b16 %v6943, %v6935
    %v8440 = vpack.c.b16 %v6944, %v6936
    %v8441 = vpack.c.b16 %v6945, %v6937
    %v8442 = vpack.c.b16 %v6946, %v6938
    %v8443 = vpack.c.b16 %v6955, %v6947
    %v8444 = vpack.c.b16 %v6956, %v6948
    %v8445 = vpack.c.b16 %v6957, %v6949
    %v8446 = vpack.c.b16 %v6958, %v6950
    %v8447 = vpack.c.b16 %v6959, %v6951
    %v8448 = vpack.c.b16 %v6960, %v6952
    %v8449 = vpack.c.b16 %v6961, %v6953
    %v8450 = vpack.c.b16 %v6962, %v6954
    %v8451 = vpack.c.b16 %v6971, %v6963
    %v8452 = vpack.c.b16 %v6972, %v6964
    %v8453 = vpack.c.b16 %v6973, %v6965
    %v8454 = vpack.c.b16 %v6974, %v6966
    %v8455 = vpack.c.b16 %v6975, %v6967
    %v8456 = vpack.c.b16 %v6976, %v6968
    %v8457 = vpack.c.b16 %v6977, %v6969
    %v8458 = vpack.c.b16 %v6978, %v6970
    %v8459 = vpack.c.b16 %v6987, %v6979
    %v8460 = vpack.c.b16 %v6988, %v6980
    %v8461 = vpack.c.b16 %v6989, %v6981
    %v8462 = vpack.c.b16 %v6990, %v6982
    %v8463 = vpack.c.b16 %v6991, %v6983
    %v8464 = vpack.c.b16 %v6992, %v6984
    %v8465 = vpack.c.b16 %v6993, %v6985
    %v8466 = vpack.c.b16 %v6994, %v6986
    %v8467 = vpack.c.b16 %v7003, %v6995
    %v8468 = vpack.c.b16 %v7004, %v6996
    %v8469 = vpack.c.b16 %v7005, %v6997
    %v8470 = vpack.c.b16 %v7006, %v6998
    %v8471 = vpack.c.b16 %v7007, %v6999
    %v8472 = vpack.c.b16 %v7008, %v7000
    %v8473 = vpack.c.b16 %v7009, %v7001
    %v8474 = vpack.c.b16 %v7010, %v7002
    %v8475 = vpack.c.b16 %v7019, %v7011
    %v8476 = vpack.c.b16 %v7020, %v7012
    %v8477 = vpack.c.b16 %v7021, %v7013
    %v8478 = vpack.c.b16 %v7022, %v7014
    %v8479 = vpack.c.b16 %v7023, %v7015
    %v8480 = vpack.c.b16 %v7024, %v7016
    %v8481 = vpack.c.b16 %v7025, %v7017
    %v8482 = vpack.c.b16 %v7026, %v7018
    %v8483 = vpack.c.b16 %v7035, %v7027
    %v8484 = vpack.c.b16 %v7036, %v7028
    %v8485 = vpack.c.b16 %v7037, %v7029
    %v8486 = vpack.c.b16 %v7038, %v7030
    %v8487 = vpack.c.b16 %v7039, %v7031
    %v8488 = vpack.c.b16 %v7040, %v7032
    %v8489 = vpack.c.b16 %v7041, %v7033
    %v8490 = vpack.c.b16 %v7042, %v7034
    %v8491 = vpack.c.b16 %v7051, %v7043
    %v8492 = vpack.c.b16 %v7052, %v7044
    %v8493 = vpack.c.b16 %v7053, %v7045
    %v8494 = vpack.c.b16 %v7054, %v7046
    %v8495 = vpack.c.b16 %v7055, %v7047
    %v8496 = vpack.c.b16 %v7056, %v7048
    %v8497 = vpack.c.b16 %v7057, %v7049
    %v8498 = vpack.c.b16 %v7058, %v7050
    %v8499 = vpack.c.b16 %v7067, %v7059
    %v8500 = vpack.c.b16 %v7068, %v7060
    %v8501 = vpack.c.b16 %v7069, %v7061
    %v8502 = vpack.c.b16 %v7070, %v7062
    %v8503 = vpack.c.b16 %v7071, %v7063
    %v8504 = vpack.c.b16 %v7072, %v7064
    %v8505 = vpack.c.b16 %v7073, %v7065
    %v8506 = vpack.c.b16 %v7074, %v7066
    %v8507 = vpack.c.b16 %v7083, %v7075
    %v8508 = vpack.c.b16 %v7084, %v7076
    %v8509 = vpack.c.b16 %v7085, %v7077
    %v8510 = vpack.c.b16 %v7086, %v7078
    %v8511 = vpack.c.b16 %v7087, %v7079
    %v8512 = vpack.c.b16 %v7088, %v7080
    %v8513 = vpack.c.b16 %v7089, %v7081
    %v8514 = vpack.c.b16 %v7090, %v7082
    %v8515 = vpack.c.b16 %v7099, %v7091
    %v8516 = vpack.c.b16 %v7100, %v7092
    %v8517 = vpack.c.b16 %v7101, %v7093
    %v8518 = vpack.c.b16 %v7102, %v7094
    %v8519 = vpack.c.b16 %v7103, %v7095
    %v8520 = vpack.c.b16 %v7104, %v7096
    %v8521 = vpack.c.b16 %v7105, %v7097
    %v8522 = vpack.c.b16 %v7106, %v7098
    %v8523 = vpack.c.b16 %v7115, %v7107
    %v8524 = vpack.c.b16 %v7116, %v7108
    %v8525 = vpack.c.b16 %v7117, %v7109
    %v8526 = vpack.c.b16 %v7118, %v7110
    %v8527 = vpack.c.b16 %v7119, %v7111
    %v8528 = vpack.c.b16 %v7120, %v7112
    %v8529 = vpack.c.b16 %v7121, %v7113
    %v8530 = vpack.c.b16 %v7122, %v7114
    %v8531 = vpack.c.b16 %v7131, %v7123
    %v8532 = vpack.c.b16 %v7132, %v7124
    %v8533 = vpack.c.b16 %v7133, %v7125
    %v8534 = vpack.c.b16 %v7134, %v7126
    %v8535 = vpack.c.b16 %v7135, %v7127
    %v8536 = vpack.c.b16 %v7136, %v7128
    %v8537 = vpack.c.b16 %v7137, %v7129
    %v8538 = vpack.c.b16 %v7138, %v7130
    %v8539 = vpack.c.b16 %v7147, %v7139
    %v8540 = vpack.c.b16 %v7148, %v7140
    %v8541 = vpack.c.b16 %v7149, %v7141
    %v8542 = vpack.c.b16 %v7150, %v7142
    %v8543 = vpack.c.b16 %v7151, %v7143
    %v8544 = vpack.c.b16 %v7152, %v7144
    %v8545 = vpack.c.b16 %v7153, %v7145
    %v8546 = vpack.c.b16 %v7154, %v7146
    %v8547 = vpack.c.b16 %v7163, %v7155
    %v8548 = vpack.c.b16 %v7164, %v7156
    %v8549 = vpack.c.b16 %v7165, %v7157
    %v8550 = vpack.c.b16 %v7166, %v7158
    %v8551 = vpack.c.b16 %v7167, %v7159
    %v8552 = vpack.c.b16 %v7168, %v7160
    %v8553 = vpack.c.b16 %v7169, %v7161
    %v8554 = vpack.c.b16 %v7170, %v7162
    %v8555 = vpack.c.b16 %v7179, %v7171
    %v8556 = vpack.c.b16 %v7180, %v7172
    %v8557 = vpack.c.b16 %v7181, %v7173
    %v8558 = vpack.c.b16 %v7182, %v7174
    %v8559 = vpack.c.b16 %v7183, %v7175
    %v8560 = vpack.c.b16 %v7184, %v7176
    %v8561 = vpack.c.b16 %v7185, %v7177
    %v8562 = vpack.c.b16 %v7186, %v7178
    %v8563 = vpack.c.b16 %v7195, %v7187
    %v8564 = vpack.c.b16 %v7196, %v7188
    %v8565 = vpack.c.b16 %v7197, %v7189
    %v8566 = vpack.c.b16 %v7198, %v7190
    %v8567 = vpack.c.b16 %v7199, %v7191
    %v8568 = vpack.c.b16 %v7200, %v7192
    %v8569 = vpack.c.b16 %v7201, %v7193
    %v8570 = vpack.c.b16 %v7202, %v7194
    %v8571 = vpack.c.b16 %v7211, %v7203
    %v8572 = vpack.c.b16 %v7212, %v7204
    %v8573 = vpack.c.b16 %v7213, %v7205
    %v8574 = vpack.c.b16 %v7214, %v7206
    %v8575 = vpack.c.b16 %v7215, %v7207
    %v8576 = vpack.c.b16 %v7216, %v7208
    %v8577 = vpack.c.b16 %v7217, %v7209
    %v8578 = vpack.c.b16 %v7218, %v7210
    %v8579 = vpack.c.b16 %v7227, %v7219
    %v8580 = vpack.c.b16 %v7228, %v7220
    %v8581 = vpack.c.b16 %v7229, %v7221
    %v8582 = vpack.c.b16 %v7230, %v7222
    %v8583 = vpack.c.b16 %v7231, %v7223
    %v8584 = vpack.c.b16 %v7232, %v7224
    %v8585 = vpack.c.b16 %v7233, %v7225
    %v8586 = vpack.c.b16 %v7234, %v7226
    %v8587 = vpack.c.b16 %v7243, %v7235
    %v8588 = vpack.c.b16 %v7244, %v7236
    %v8589 = vpack.c.b16 %v7245, %v7237
    %v8590 = vpack.c.b16 %v7246, %v7238
    %v8591 = vpack.c.b16 %v7247, %v7239
    %v8592 = vpack.c.b16 %v7248, %v7240
    %v8593 = vpack.c.b16 %v7249, %v7241
    %v8594 = vpack.c.b16 %v7250, %v7242
    %v8595 = vpack.c.b16 %v7259, %v7251
    %v8596 = vpack.c.b16 %v7260, %v7252
    %v8597 = vpack.c.b16 %v7261, %v7253
    %v8598 = vpack.c.b16 %v7262, %v7254
    %v8599 = vpack.c.b16 %v7263, %v7255
    %v8600 = vpack.c.b16 %v7264, %v7256
    %v8601 = vpack.c.b16 %v7265, %v7257
    %v8602 = vpack.c.b16 %v7266, %v7258
    %v8603 = vpack.c.b16 %v7275, %v7267
    %v8604 = vpack.c.b16 %v7276, %v7268
    %v8605 = vpack.c.b16 %v7277, %v7269
    %v8606 = vpack.c.b16 %v7278, %v7270
    %v8607 = vpack.c.b16 %v7279, %v7271
    %v8608 = vpack.c.b16 %v7280, %v7272
    %v8609 = vpack.c.b16 %v7281, %v7273
    %v8610 = vpack.c.b16 %v7282, %v7274
    %v8611 = vpack.c.b16 %v7291, %v7283
    %v8612 = vpack.c.b16 %v7292, %v7284
    %v8613 = vpack.c.b16 %v7293, %v7285
    %v8614 = vpack.c.b16 %v7294, %v7286
    %v8615 = vpack.c.b16 %v7295, %v7287
    %v8616 = vpack.c.b16 %v7296, %v7288
    %v8617 = vpack.c.b16 %v7297, %v7289
    %v8618 = vpack.c.b16 %v7298, %v7290
    %v8619 = vpack.c.b16 %v7307, %v7299
    %v8620 = vpack.c.b16 %v7308, %v7300
    %v8621 = vpack.c.b16 %v7309, %v7301
    %v8622 = vpack.c.b16 %v7310, %v7302
    %v8623 = vpack.c.b16 %v7311, %v7303
    %v8624 = vpack.c.b16 %v7312, %v7304
    %v8625 = vpack.c.b16 %v7313, %v7305
    %v8626 = vpack.c.b16 %v7314, %v7306
    %v8627 = vpack.c.b16 %v7323, %v7315
    %v8628 = vpack.c.b16 %v7324, %v7316
    %v8629 = vpack.c.b16 %v7325, %v7317
    %v8630 = vpack.c.b16 %v7326, %v7318
    %v8631 = vpack.c.b16 %v7327, %v7319
    %v8632 = vpack.c.b16 %v7328, %v7320
    %v8633 = vpack.c.b16 %v7329, %v7321
    %v8634 = vpack.c.b16 %v7330, %v7322
    %v8635 = vpack.c.b16 %v7339, %v7331
    %v8636 = vpack.c.b16 %v7340, %v7332
    %v8637 = vpack.c.b16 %v7341, %v7333
    %v8638 = vpack.c.b16 %v7342, %v7334
    %v8639 = vpack.c.b16 %v7343, %v7335
    %v8640 = vpack.c.b16 %v7344, %v7336
    %v8641 = vpack.c.b16 %v7345, %v7337
    %v8642 = vpack.c.b16 %v7346, %v7338
    %v8643 = vpack.c.b16 %v7355, %v7347
    %v8644 = vpack.c.b16 %v7356, %v7348
    %v8645 = vpack.c.b16 %v7357, %v7349
    %v8646 = vpack.c.b16 %v7358, %v7350
    %v8647 = vpack.c.b16 %v7359, %v7351
    %v8648 = vpack.c.b16 %v7360, %v7352
    %v8649 = vpack.c.b16 %v7361, %v7353
    %v8650 = vpack.c.b16 %v7362, %v7354
    %v8651 = vpack.c.b16 %v7371, %v7363
    %v8652 = vpack.c.b16 %v7372, %v7364
    %v8653 = vpack.c.b16 %v7373, %v7365
    %v8654 = vpack.c.b16 %v7374, %v7366
    %v8655 = vpack.c.b16 %v7375, %v7367
    %v8656 = vpack.c.b16 %v7376, %v7368
    %v8657 = vpack.c.b16 %v7377, %v7369
    %v8658 = vpack.c.b16 %v7378, %v7370
    %v8659 = vpack.c.b16 %v7387, %v7379
    %v8660 = vpack.c.b16 %v7388, %v7380
    %v8661 = vpack.c.b16 %v7389, %v7381
    %v8662 = vpack.c.b16 %v7390, %v7382
    %v8663 = vpack.c.b16 %v7391, %v7383
    %v8664 = vpack.c.b16 %v7392, %v7384
    %v8665 = vpack.c.b16 %v7393, %v7385
    %v8666 = vpack.c.b16 %v7394, %v7386
    %v8667 = vpack.c.b16 %v7403, %v7395
    %v8668 = vpack.c.b16 %v7404, %v7396
    %v8669 = vpack.c.b16 %v7405, %v7397
    %v8670 = vpack.c.b16 %v7406, %v7398
    %v8671 = vpack.c.b16 %v7407, %v7399
    %v8672 = vpack.c.b16 %v7408, %v7400
    %v8673 = vpack.c.b16 %v7409, %v7401
    %v8674 = vpack.c.b16 %v7410, %v7402
    %v8675 = vpack.c.b16 %v7419, %v7411
    %v8676 = vpack.c.b16 %v7420, %v7412
    %v8677 = vpack.c.b16 %v7421, %v7413
    %v8678 = vpack.c.b16 %v7422, %v7414
    %v8679 = vpack.c.b16 %v7423, %v7415
    %v8680 = vpack.c.b16 %v7424, %v7416
    %v8681 = vpack.c.b16 %v7425, %v7417
    %v8682 = vpack.c.b16 %v7426, %v7418
    %v8683 = vpack.c.b16 %v7435, %v7427
    %v8684 = vpack.c.b16 %v7436, %v7428
    %v8685 = vpack.c.b16 %v7437, %v7429
    %v8686 = vpack.c.b16 %v7438, %v7430
    %v8687 = vpack.c.b16 %v7439, %v7431
    %v8688 = vpack.c.b16 %v7440, %v7432
    %v8689 = vpack.c.b16 %v7441, %v7433
    %v8690 = vpack.c.b16 %v7442, %v7434
    %v8691 = vpack.c.b16 %v7451, %v7443
    %v8692 = vpack.c.b16 %v7452, %v7444
    %v8693 = vpack.c.b16 %v7453, %v7445
    %v8694 = vpack.c.b16 %v7454, %v7446
    %v8695 = vpack.c.b16 %v7455, %v7447
    %v8696 = vpack.c.b16 %v7456, %v7448
    %v8697 = vpack.c.b16 %v7457, %v7449
    %v8698 = vpack.c.b16 %v7458, %v7450
    %v8699 = vpack.c.b16 %v7467, %v7459
    %v8700 = vpack.c.b16 %v7468, %v7460
    %v8701 = vpack.c.b16 %v7469, %v7461
    %v8702 = vpack.c.b16 %v7470, %v7462
    %v8703 = vpack.c.b16 %v7471, %v7463
    %v8704 = vpack.c.b16 %v7472, %v7464
    %v8705 = vpack.c.b16 %v7473, %v7465
    %v8706 = vpack.c.b16 %v7474, %v7466
    %v8707 = vpack.c.b16 %v7483, %v7475
    %v8708 = vpack.c.b16 %v7484, %v7476
    %v8709 = vpack.c.b16 %v7485, %v7477
    %v8710 = vpack.c.b16 %v7486, %v7478
    %v8711 = vpack.c.b16 %v7487, %v7479
    %v8712 = vpack.c.b16 %v7488, %v7480
    %v8713 = vpack.c.b16 %v7489, %v7481
    %v8714 = vpack.c.b16 %v7490, %v7482
    %v8715 = vpack.c.b16 %v7499, %v7491
    %v8716 = vpack.c.b16 %v7500, %v7492
    %v8717 = vpack.c.b16 %v7501, %v7493
    %v8718 = vpack.c.b16 %v7502, %v7494
    %v8719 = vpack.c.b16 %v7503, %v7495
    %v8720 = vpack.c.b16 %v7504, %v7496
    %v8721 = vpack.c.b16 %v7505, %v7497
    %v8722 = vpack.c.b16 %v7506, %v7498
    %v8723 = vpack.c.b16 %v7515, %v7507
    %v8724 = vpack.c.b16 %v7516, %v7508
    %v8725 = vpack.c.b16 %v7517, %v7509
    %v8726 = vpack.c.b16 %v7518, %v7510
    %v8727 = vpack.c.b16 %v7519, %v7511
    %v8728 = vpack.c.b16 %v7520, %v7512
    %v8729 = vpack.c.b16 %v7521, %v7513
    %v8730 = vpack.c.b16 %v7522, %v7514
    %v8731 = vpack.c.b16 %v7531, %v7523
    %v8732 = vpack.c.b16 %v7532, %v7524
    %v8733 = vpack.c.b16 %v7533, %v7525
    %v8734 = vpack.c.b16 %v7534, %v7526
    %v8735 = vpack.c.b16 %v7535, %v7527
    %v8736 = vpack.c.b16 %v7536, %v7528
    %v8737 = vpack.c.b16 %v7537, %v7529
    %v8738 = vpack.c.b16 %v7538, %v7530
    %v8739 = vpack.c.b16 %v7547, %v7539
    %v8740 = vpack.c.b16 %v7548, %v7540
    %v8741 = vpack.c.b16 %v7549, %v7541
    %v8742 = vpack.c.b16 %v7550, %v7542
    %v8743 = vpack.c.b16 %v7551, %v7543
    %v8744 = vpack.c.b16 %v7552, %v7544
    %v8745 = vpack.c.b16 %v7553, %v7545
    %v8746 = vpack.c.b16 %v7554, %v7546
    %v8747 = vpack.c.b16 %v7563, %v7555
    %v8748 = vpack.c.b16 %v7564, %v7556
    %v8749 = vpack.c.b16 %v7565, %v7557
    %v8750 = vpack.c.b16 %v7566, %v7558
    %v8751 = vpack.c.b16 %v7567, %v7559
    %v8752 = vpack.c.b16 %v7568, %v7560
    %v8753 = vpack.c.b16 %v7569, %v7561
    %v8754 = vpack.c.b16 %v7570, %v7562
    %v8755 = vpack.c.b16 %v7579, %v7571
    %v8756 = vpack.c.b16 %v7580, %v7572
    %v8757 = vpack.c.b16 %v7581, %v7573
    %v8758 = vpack.c.b16 %v7582, %v7574
    %v8759 = vpack.c.b16 %v7583, %v7575
    %v8760 = vpack.c.b16 %v7584, %v7576
    %v8761 = vpack.c.b16 %v7585, %v7577
    %v8762 = vpack.c.b16 %v7586, %v7578
    %v8763 = vpack.c.b16 %v7595, %v7587
    %v8764 = vpack.c.b16 %v7596, %v7588
    %v8765 = vpack.c.b16 %v7597, %v7589
    %v8766 = vpack.c.b16 %v7598, %v7590
    %v8767 = vpack.c.b16 %v7599, %v7591
    %v8768 = vpack.c.b16 %v7600, %v7592
    %v8769 = vpack.c.b16 %v7601, %v7593
    %v8770 = vpack.c.b16 %v7602, %v7594
    %v8771 = vpack.c.b16 %v7611, %v7603
    %v8772 = vpack.c.b16 %v7612, %v7604
    %v8773 = vpack.c.b16 %v7613, %v7605
    %v8774 = vpack.c.b16 %v7614, %v7606
    %v8775 = vpack.c.b16 %v7615, %v7607
    %v8776 = vpack.c.b16 %v7616, %v7608
    %v8777 = vpack.c.b16 %v7617, %v7609
    %v8778 = vpack.c.b16 %v7618, %v7610
    %v8779 = vpack.c.b16 %v7627, %v7619
    %v8780 = vpack.c.b16 %v7628, %v7620
    %v8781 = vpack.c.b16 %v7629, %v7621
    %v8782 = vpack.c.b16 %v7630, %v7622
    %v8783 = vpack.c.b16 %v7631, %v7623
    %v8784 = vpack.c.b16 %v7632, %v7624
    %v8785 = vpack.c.b16 %v7633, %v7625
    %v8786 = vpack.c.b16 %v7634, %v7626
    %v8787 = vpack.c.b16 %v7643, %v7635
    %v8788 = vpack.c.b16 %v7644, %v7636
    %v8789 = vpack.c.b16 %v7645, %v7637
    %v8790 = vpack.c.b16 %v7646, %v7638
    %v8791 = vpack.c.b16 %v7647, %v7639
    %v8792 = vpack.c.b16 %v7648, %v7640
    %v8793 = vpack.c.b16 %v7649, %v7641
    %v8794 = vpack.c.b16 %v7650, %v7642
    %v8795 = vpack.c.b16 %v7659, %v7651
    %v8796 = vpack.c.b16 %v7660, %v7652
    %v8797 = vpack.c.b16 %v7661, %v7653
    %v8798 = vpack.c.b16 %v7662, %v7654
    %v8799 = vpack.c.b16 %v7663, %v7655
    %v8800 = vpack.c.b16 %v7664, %v7656
    %v8801 = vpack.c.b16 %v7665, %v7657
    %v8802 = vpack.c.b16 %v7666, %v7658
    %v8803 = vpack.c.b16 %v7675, %v7667
    %v8804 = vpack.c.b16 %v7676, %v7668
    %v8805 = vpack.c.b16 %v7677, %v7669
    %v8806 = vpack.c.b16 %v7678, %v7670
    %v8807 = vpack.c.b16 %v7679, %v7671
    %v8808 = vpack.c.b16 %v7680, %v7672
    %v8809 = vpack.c.b16 %v7681, %v7673
    %v8810 = vpack.c.b16 %v7682, %v7674
    %v8811 = vpack.c.b16 %v7691, %v7683
    %v8812 = vpack.c.b16 %v7692, %v7684
    %v8813 = vpack.c.b16 %v7693, %v7685
    %v8814 = vpack.c.b16 %v7694, %v7686
    %v8815 = vpack.c.b16 %v7695, %v7687
    %v8816 = vpack.c.b16 %v7696, %v7688
    %v8817 = vpack.c.b16 %v7697, %v7689
    %v8818 = vpack.c.b16 %v7698, %v7690
    %v8819 = vpack.c.b16 %v7707, %v7699
    %v8820 = vpack.c.b16 %v7708, %v7700
    %v8821 = vpack.c.b16 %v7709, %v7701
    %v8822 = vpack.c.b16 %v7710, %v7702
    %v8823 = vpack.c.b16 %v7711, %v7703
    %v8824 = vpack.c.b16 %v7712, %v7704
    %v8825 = vpack.c.b16 %v7713, %v7705
    %v8826 = vpack.c.b16 %v7714, %v7706
    %v8827 = vpack.c.b16 %v7723, %v7715
    %v8828 = vpack.c.b16 %v7724, %v7716
    %v8829 = vpack.c.b16 %v7725, %v7717
    %v8830 = vpack.c.b16 %v7726, %v7718
    %v8831 = vpack.c.b16 %v7727, %v7719
    %v8832 = vpack.c.b16 %v7728, %v7720
    %v8833 = vpack.c.b16 %v7729, %v7721
    %v8834 = vpack.c.b16 %v7730, %v7722
    %v8835 = vpack.c.b16 %v7739, %v7731
    %v8836 = vpack.c.b16 %v7740, %v7732
    %v8837 = vpack.c.b16 %v7741, %v7733
    %v8838 = vpack.c.b16 %v7742, %v7734
    %v8839 = vpack.c.b16 %v7743, %v7735
    %v8840 = vpack.c.b16 %v7744, %v7736
    %v8841 = vpack.c.b16 %v7745, %v7737
    %v8842 = vpack.c.b16 %v7746, %v7738
    %v8843 = vpack.c.b16 %v7755, %v7747
    %v8844 = vpack.c.b16 %v7756, %v7748
    %v8845 = vpack.c.b16 %v7757, %v7749
    %v8846 = vpack.c.b16 %v7758, %v7750
    %v8847 = vpack.c.b16 %v7759, %v7751
    %v8848 = vpack.c.b16 %v7760, %v7752
    %v8849 = vpack.c.b16 %v7761, %v7753
    %v8850 = vpack.c.b16 %v7762, %v7754
    %v8851 = vpack.c.b16 %v7771, %v7763
    %v8852 = vpack.c.b16 %v7772, %v7764
    %v8853 = vpack.c.b16 %v7773, %v7765
    %v8854 = vpack.c.b16 %v7774, %v7766
    %v8855 = vpack.c.b16 %v7775, %v7767
    %v8856 = vpack.c.b16 %v7776, %v7768
    %v8857 = vpack.c.b16 %v7777, %v7769
    %v8858 = vpack.c.b16 %v7778, %v7770
    %v8859 = vpack.c.b16 %v7787, %v7779
    %v8860 = vpack.c.b16 %v7788, %v7780
    %v8861 = vpack.c.b16 %v7789, %v7781
    %v8862 = vpack.c.b16 %v7790, %v7782
    %v8863 = vpack.c.b16 %v7791, %v7783
    %v8864 = vpack.c.b16 %v7792, %v7784
    %v8865 = vpack.c.b16 %v7793, %v7785
    %v8866 = vpack.c.b16 %v7794, %v7786
    %v8867 = vpack.c.b16 %v7803, %v7795
    %v8868 = vpack.c.b16 %v7804, %v7796
    %v8869 = vpack.c.b16 %v7805, %v7797
    %v8870 = vpack.c.b16 %v7806, %v7798
    %v8871 = vpack.c.b16 %v7807, %v7799
    %v8872 = vpack.c.b16 %v7808, %v7800
    %v8873 = vpack.c.b16 %v7809, %v7801
    %v8874 = vpack.c.b16 %v7810, %v7802
    %v8875 = vpack.c.b16 %v7819, %v7811
    %v8876 = vpack.c.b16 %v7820, %v7812
    %v8877 = vpack.c.b16 %v7821, %v7813
    %v8878 = vpack.c.b16 %v7822, %v7814
    %v8879 = vpack.c.b16 %v7823, %v7815
    %v8880 = vpack.c.b16 %v7824, %v7816
    %v8881 = vpack.c.b16 %v7825, %v7817
    %v8882 = vpack.c.b16 %v7826, %v7818
    %v8883 = vpack.c.b16 %v7835, %v7827
    %v8884 = vpack.c.b16 %v7836, %v7828
    %v8885 = vpack.c.b16 %v7837, %v7829
    %v8886 = vpack.c.b16 %v7838, %v7830
    %v8887 = vpack.c.b16 %v7839, %v7831
    %v8888 = vpack.c.b16 %v7840, %v7832
    %v8889 = vpack.c.b16 %v7841, %v7833
    %v8890 = vpack.c.b16 %v7842, %v7834
    %v8891 = vpack.c.b16 %v7851, %v7843
    %v8892 = vpack.c.b16 %v7852, %v7844
    %v8893 = vpack.c.b16 %v7853, %v7845
    %v8894 = vpack.c.b16 %v7854, %v7846
    %v8895 = vpack.c.b16 %v7855, %v7847
    %v8896 = vpack.c.b16 %v7856, %v7848
    %v8897 = vpack.c.b16 %v7857, %v7849
    %v8898 = vpack.c.b16 %v7858, %v7850
    %v8899 = vpack.c.b16 %v7867, %v7859
    %v8900 = vpack.c.b16 %v7868, %v7860
    %v8901 = vpack.c.b16 %v7869, %v7861
    %v8902 = vpack.c.b16 %v7870, %v7862
    %v8903 = vpack.c.b16 %v7871, %v7863
    %v8904 = vpack.c.b16 %v7872, %v7864
    %v8905 = vpack.c.b16 %v7873, %v7865
    %v8906 = vpack.c.b16 %v7874, %v7866
    %v8907 = vpack.c.b16 %v7883, %v7875
    %v8908 = vpack.c.b16 %v7884, %v7876
    %v8909 = vpack.c.b16 %v7885, %v7877
    %v8910 = vpack.c.b16 %v7886, %v7878
    %v8911 = vpack.c.b16 %v7887, %v7879
    %v8912 = vpack.c.b16 %v7888, %v7880
    %v8913 = vpack.c.b16 %v7889, %v7881
    %v8914 = vpack.c.b16 %v7890, %v7882
    %9939 = vmatprep.subr.bf16.mxu0 %v7892
    %9940 = vmatpush1.bf16.msra.mxu0 %v7891
    %9941 = vmatprep.subr.bf16.mxu0 %v7900
    %9942 = vmatpush1.bf16.msra.mxu0 %v7899
    %9943 = vmatprep.subr.bf16.mxu0 %v7908
    %9944 = vmatpush1.bf16.msra.mxu0 %v7907
    %9945 = vmatprep.subr.bf16.mxu0 %v7916
    %9946 = vmatpush1.bf16.msra.mxu0 %v7915
    %9947 = vmatprep.subr.bf16.mxu0 %v7924
    %9948 = vmatpush1.bf16.msra.mxu0 %v7923
    %9949 = vmatprep.subr.bf16.mxu0 %v7932
    %9950 = vmatpush1.bf16.msra.mxu0 %v7931
    %9951 = vmatprep.subr.bf16.mxu0 %v7940
    %9952 = vmatpush1.bf16.msra.mxu0 %v7939
    %9953 = vmatprep.subr.bf16.mxu0 %v7948
    %9954 = vmatpush1.bf16.msra.mxu0 %v7947
    %9955 = vmatprep.subr.bf16.mxu0 %v7956
    %9956 = vmatpush1.bf16.msra.mxu0 %v7955
    %9957 = vmatprep.subr.bf16.mxu0 %v7964
    %9958 = vmatpush1.bf16.msra.mxu0 %v7963
    %9959 = vmatprep.subr.bf16.mxu0 %v7972
    %9960 = vmatpush1.bf16.msra.mxu0 %v7971
    %9961 = vmatprep.subr.bf16.mxu0 %v7980
    %9962 = vmatpush1.bf16.msra.mxu0 %v7979
    %9963 = vmatprep.subr.bf16.mxu0 %v7988
    %9964 = vmatpush1.bf16.msra.mxu0 %v7987
    %9965 = vmatprep.subr.bf16.mxu0 %v7996
    %9966 = vmatpush1.bf16.msra.mxu0 %v7995
    %9967 = vmatprep.subr.bf16.mxu0 %v8004
    %9968 = vmatpush1.bf16.msra.mxu0 %v8003
    %9969 = vmatprep.subr.bf16.mxu0 %v8012
    %9970 = vmatpush1.bf16.msra.mxu0 %v8011
    %9971 = vmatprep.mubr.bf16.mxu0 %v4788
    %9972 = vmatmul.mubr.bf16.gmra.mrb[0].mxu0 %v4787
    %v9973 = vpop.f32.mrb[0].mxu0
    %v9974 = vadd.f32 %v4007, %v9973
    %v9975 = vpop.f32.mrb[0].mxu0
    %v9976 = vadd.f32 %v4011, %v9975
    %v9977 = vpop.f32.mrb[0].mxu0
    %v9978 = vadd.f32 %v4007, %v9977
    %v9979 = vpop.f32.mrb[0].mxu0
    %v9980 = vadd.f32 %v4011, %v9979
    %9981 = vdwg.mxu0
    %9982 = vmatprep.subr.bf16.mxu0 %v8020
    %9983 = vmatpush1.bf16.msra.mxu0 %v8019
    %9984 = vmatprep.subr.bf16.mxu0 %v8028
    %9985 = vmatpush1.bf16.msra.mxu0 %v8027
    %9986 = vmatprep.subr.bf16.mxu0 %v8036
    %9987 = vmatpush1.bf16.msra.mxu0 %v8035
    %9988 = vmatprep.subr.bf16.mxu0 %v8044
    %9989 = vmatpush1.bf16.msra.mxu0 %v8043
    %9990 = vmatprep.subr.bf16.mxu0 %v8052
    %9991 = vmatpush1.bf16.msra.mxu0 %v8051
    %9992 = vmatprep.subr.bf16.mxu0 %v8060
    %9993 = vmatpush1.bf16.msra.mxu0 %v8059
    %9994 = vmatprep.subr.bf16.mxu0 %v8068
    %9995 = vmatpush1.bf16.msra.mxu0 %v8067
    %9996 = vmatprep.subr.bf16.mxu0 %v8076
    %9997 = vmatpush1.bf16.msra.mxu0 %v8075
    %9998 = vmatprep.subr.bf16.mxu0 %v8084
    %9999 = vmatpush1.bf16.msra.mxu0 %v8083
    %10000 = vmatprep.subr.bf16.mxu0 %v8092
    %10001 = vmatpush1.bf16.msra.mxu0 %v8091
    %10002 = vmatprep.subr.bf16.mxu0 %v8100
    %10003 = vmatpush1.bf16.msra.mxu0 %v8099
    %10004 = vmatprep.subr.bf16.mxu0 %v8108
    %10005 = vmatpush1.bf16.msra.mxu0 %v8107
    %10006 = vmatprep.subr.bf16.mxu0 %v8116
    %10007 = vmatpush1.bf16.msra.mxu0 %v8115
    %10008 = vmatprep.subr.bf16.mxu0 %v8124
    %10009 = vmatpush1.bf16.msra.mxu0 %v8123
    %10010 = vmatprep.subr.bf16.mxu0 %v8132
    %10011 = vmatpush1.bf16.msra.mxu0 %v8131
    %10012 = vmatprep.subr.bf16.mxu0 %v8140
    %10013 = vmatpush1.bf16.msra.mxu0 %v8139
    %10014 = vmatprep.mubr.bf16.mxu0 %v4790
    %10015 = vmatmul.mubr.bf16.gmra.mrb[0].mxu0 %v4789
    %v10016 = vpop.f32.mrb[0].mxu0
    %v10017 = vadd.f32 %v9974, %v10016
    %v10018 = vpop.f32.mrb[0].mxu0
    %v10019 = vadd.f32 %v9976, %v10018
    %v10020 = vpop.f32.mrb[0].mxu0
    %v10021 = vadd.f32 %v9978, %v10020
    %v10022 = vpop.f32.mrb[0].mxu0
    %v10023 = vadd.f32 %v9980, %v10022
    %10024 = vdwg.mxu0
    %10025 = vmatprep.subr.bf16.mxu0 %v8148
    %10026 = vmatpush1.bf16.msra.mxu0 %v8147
    %10027 = vmatprep.subr.bf16.mxu0 %v8156
    %10028 = vmatpush1.bf16.msra.mxu0 %v8155
    %10029 = vmatprep.subr.bf16.mxu0 %v8164
    %10030 = vmatpush1.bf16.msra.mxu0 %v8163
    %10031 = vmatprep.subr.bf16.mxu0 %v8172
    %10032 = vmatpush1.bf16.msra.mxu0 %v8171
    %10033 = vmatprep.subr.bf16.mxu0 %v8180
    %10034 = vmatpush1.bf16.msra.mxu0 %v8179
    %10035 = vmatprep.subr.bf16.mxu0 %v8188
    %10036 = vmatpush1.bf16.msra.mxu0 %v8187
    %10037 = vmatprep.subr.bf16.mxu0 %v8196
    %10038 = vmatpush1.bf16.msra.mxu0 %v8195
    %10039 = vmatprep.subr.bf16.mxu0 %v8204
    %10040 = vmatpush1.bf16.msra.mxu0 %v8203
    %10041 = vmatprep.subr.bf16.mxu0 %v8212
    %10042 = vmatpush1.bf16.msra.mxu0 %v8211
    %10043 = vmatprep.subr.bf16.mxu0 %v8220
    %10044 = vmatpush1.bf16.msra.mxu0 %v8219
    %10045 = vmatprep.subr.bf16.mxu0 %v8228
    %10046 = vmatpush1.bf16.msra.mxu0 %v8227
    %10047 = vmatprep.subr.bf16.mxu0 %v8236
    %10048 = vmatpush1.bf16.msra.mxu0 %v8235
    %10049 = vmatprep.subr.bf16.mxu0 %v8244
    %10050 = vmatpush1.bf16.msra.mxu0 %v8243
    %10051 = vmatprep.subr.bf16.mxu0 %v8252
    %10052 = vmatpush1.bf16.msra.mxu0 %v8251
    %10053 = vmatprep.subr.bf16.mxu0 %v8260
    %10054 = vmatpush1.bf16.msra.mxu0 %v8259
    %10055 = vmatprep.subr.bf16.mxu0 %v8268
    %10056 = vmatpush1.bf16.msra.mxu0 %v8267
    %10057 = vmatprep.mubr.bf16.mxu0 %v4792
    %10058 = vmatmul.mubr.bf16.gmra.mrb[0].mxu0 %v4791
    %v10059 = vpop.f32.mrb[0].mxu0
    %v10060 = vadd.f32 %v10017, %v10059
    %v10061 = vpop.f32.mrb[0].mxu0
    %v10062 = vadd.f32 %v10019, %v10061
    %v10063 = vpop.f32.mrb[0].mxu0
    %v10064 = vadd.f32 %v10021, %v10063
    %v10065 = vpop.f32.mrb[0].mxu0
    %v10066 = vadd.f32 %v10023, %v10065
    %10067 = vdwg.mxu0
    %10068 = vmatprep.subr.bf16.mxu0 %v8276
    %10069 = vmatpush1.bf16.msra.mxu0 %v8275
    %10070 = vmatprep.subr.bf16.mxu0 %v8284
    %10071 = vmatpush1.bf16.msra.mxu0 %v8283
    %10072 = vmatprep.subr.bf16.mxu0 %v8292
    %10073 = vmatpush1.bf16.msra.mxu0 %v8291
    %10074 = vmatprep.subr.bf16.mxu0 %v8300
    %10075 = vmatpush1.bf16.msra.mxu0 %v8299
    %10076 = vmatprep.subr.bf16.mxu0 %v8308
    %10077 = vmatpush1.bf16.msra.mxu0 %v8307
    %10078 = vmatprep.subr.bf16.mxu0 %v8316
    %10079 = vmatpush1.bf16.msra.mxu0 %v8315
    %10080 = vmatprep.subr.bf16.mxu0 %v8324
    %10081 = vmatpush1.bf16.msra.mxu0 %v8323
    %10082 = vmatprep.subr.bf16.mxu0 %v8332
    %10083 = vmatpush1.bf16.msra.mxu0 %v8331
    %10084 = vmatprep.subr.bf16.mxu0 %v8340
    %10085 = vmatpush1.bf16.msra.mxu0 %v8339
    %10086 = vmatprep.subr.bf16.mxu0 %v8348
    %10087 = vmatpush1.bf16.msra.mxu0 %v8347
    %10088 = vmatprep.subr.bf16.mxu0 %v8356
    %10089 = vmatpush1.bf16.msra.mxu0 %v8355
    %10090 = vmatprep.subr.bf16.mxu0 %v8364
    %10091 = vmatpush1.bf16.msra.mxu0 %v8363
    %10092 = vmatprep.subr.bf16.mxu0 %v8372
    %10093 = vmatpush1.bf16.msra.mxu0 %v8371
    %10094 = vmatprep.subr.bf16.mxu0 %v8380
    %10095 = vmatpush1.bf16.msra.mxu0 %v8379
    %10096 = vmatprep.subr.bf16.mxu0 %v8388
    %10097 = vmatpush1.bf16.msra.mxu0 %v8387
    %10098 = vmatprep.subr.bf16.mxu0 %v8396
    %10099 = vmatpush1.bf16.msra.mxu0 %v8395
    %10100 = vmatprep.mubr.bf16.mxu0 %v4794
    %10101 = vmatmul.mubr.bf16.gmra.mrb[0].mxu0 %v4793
    %v10102 = vpop.f32.mrb[0].mxu0
    %v10103 = vadd.f32 %v10060, %v10102
    %v10104 = vpop.f32.mrb[0].mxu0
    %v10105 = vadd.f32 %v10062, %v10104
    %v10106 = vpop.f32.mrb[0].mxu0
    %v10107 = vadd.f32 %v10064, %v10106
    %v10108 = vpop.f32.mrb[0].mxu0
    %v10109 = vadd.f32 %v10066, %v10108
    %10110 = vdwg.mxu0
    %10111 = vmatprep.subr.bf16.mxu0 %v8404
    %10112 = vmatpush1.bf16.msra.mxu0 %v8403
    %10113 = vmatprep.subr.bf16.mxu0 %v8412
    %10114 = vmatpush1.bf16.msra.mxu0 %v8411
    %10115 = vmatprep.subr.bf16.mxu0 %v8420
    %10116 = vmatpush1.bf16.msra.mxu0 %v8419
    %10117 = vmatprep.subr.bf16.mxu0 %v8428
    %10118 = vmatpush1.bf16.msra.mxu0 %v8427
    %10119 = vmatprep.subr.bf16.mxu0 %v8436
    %10120 = vmatpush1.bf16.msra.mxu0 %v8435
    %10121 = vmatprep.subr.bf16.mxu0 %v8444
    %10122 = vmatpush1.bf16.msra.mxu0 %v8443
    %10123 = vmatprep.subr.bf16.mxu0 %v8452
    %10124 = vmatpush1.bf16.msra.mxu0 %v8451
    %10125 = vmatprep.subr.bf16.mxu0 %v8460
    %10126 = vmatpush1.bf16.msra.mxu0 %v8459
    %10127 = vmatprep.subr.bf16.mxu0 %v8468
    %10128 = vmatpush1.bf16.msra.mxu0 %v8467
    %10129 = vmatprep.subr.bf16.mxu0 %v8476
    %10130 = vmatpush1.bf16.msra.mxu0 %v8475
    %10131 = vmatprep.subr.bf16.mxu0 %v8484
    %10132 = vmatpush1.bf16.msra.mxu0 %v8483
    %10133 = vmatprep.subr.bf16.mxu0 %v8492
    %10134 = vmatpush1.bf16.msra.mxu0 %v8491
    %10135 = vmatprep.subr.bf16.mxu0 %v8500
    %10136 = vmatpush1.bf16.msra.mxu0 %v8499
    %10137 = vmatprep.subr.bf16.mxu0 %v8508
    %10138 = vmatpush1.bf16.msra.mxu0 %v8507
    %10139 = vmatprep.subr.bf16.mxu0 %v8516
    %10140 = vmatpush1.bf16.msra.mxu0 %v8515
    %10141 = vmatprep.subr.bf16.mxu0 %v8524
    %10142 = vmatpush1.bf16.msra.mxu0 %v8523
    %10143 = vmatprep.mubr.bf16.mxu0 %v4796
    %10144 = vmatmul.mubr.bf16.gmra.mrb[0].mxu0 %v4795
    %v10145 = vpop.f32.mrb[0].mxu0
    %v10146 = vadd.f32 %v10103, %v10145
    %v10147 = vpop.f32.mrb[0].mxu0
    %v10148 = vadd.f32 %v10105, %v10147
    %v10149 = vpop.f32.mrb[0].mxu0
    %v10150 = vadd.f32 %v10107, %v10149
    %v10151 = vpop.f32.mrb[0].mxu0
    %v10152 = vadd.f32 %v10109, %v10151
    %10153 = vdwg.mxu0
    %10154 = vmatprep.subr.bf16.mxu0 %v8532
    %10155 = vmatpush1.bf16.msra.mxu0 %v8531
    %10156 = vmatprep.subr.bf16.mxu0 %v8540
    %10157 = vmatpush1.bf16.msra.mxu0 %v8539
    %10158 = vmatprep.subr.bf16.mxu0 %v8548
    %10159 = vmatpush1.bf16.msra.mxu0 %v8547
    %10160 = vmatprep.subr.bf16.mxu0 %v8556
    %10161 = vmatpush1.bf16.msra.mxu0 %v8555
    %10162 = vmatprep.subr.bf16.mxu0 %v8564
    %10163 = vmatpush1.bf16.msra.mxu0 %v8563
    %10164 = vmatprep.subr.bf16.mxu0 %v8572
    %10165 = vmatpush1.bf16.msra.mxu0 %v8571
    %10166 = vmatprep.subr.bf16.mxu0 %v8580
    %10167 = vmatpush1.bf16.msra.mxu0 %v8579
    %10168 = vmatprep.subr.bf16.mxu0 %v8588
    %10169 = vmatpush1.bf16.msra.mxu0 %v8587
    %10170 = vmatprep.subr.bf16.mxu0 %v8596
    %10171 = vmatpush1.bf16.msra.mxu0 %v8595
    %10172 = vmatprep.subr.bf16.mxu0 %v8604
    %10173 = vmatpush1.bf16.msra.mxu0 %v8603
    %10174 = vmatprep.subr.bf16.mxu0 %v8612
    %10175 = vmatpush1.bf16.msra.mxu0 %v8611
    %10176 = vmatprep.subr.bf16.mxu0 %v8620
    %10177 = vmatpush1.bf16.msra.mxu0 %v8619
    %10178 = vmatprep.subr.bf16.mxu0 %v8628
    %10179 = vmatpush1.bf16.msra.mxu0 %v8627
    %10180 = vmatprep.subr.bf16.mxu0 %v8636
    %10181 = vmatpush1.bf16.msra.mxu0 %v8635
    %10182 = vmatprep.subr.bf16.mxu0 %v8644
    %10183 = vmatpush1.bf16.msra.mxu0 %v8643
    %10184 = vmatprep.subr.bf16.mxu0 %v8652
    %10185 = vmatpush1.bf16.msra.mxu0 %v8651
    %10186 = vmatprep.mubr.bf16.mxu0 %v4798
    %10187 = vmatmul.mubr.bf16.gmra.mrb[0].mxu0 %v4797
    %v10188 = vpop.f32.mrb[0].mxu0
    %v10189 = vadd.f32 %v10146, %v10188
    %v10190 = vpop.f32.mrb[0].mxu0
    %v10191 = vadd.f32 %v10148, %v10190
    %v10192 = vpop.f32.mrb[0].mxu0
    %v10193 = vadd.f32 %v10150, %v10192
    %v10194 = vpop.f32.mrb[0].mxu0
    %v10195 = vadd.f32 %v10152, %v10194
    %10196 = vdwg.mxu0
    %10197 = vmatprep.subr.bf16.mxu0 %v8660
    %10198 = vmatpush1.bf16.msra.mxu0 %v8659
    %10199 = vmatprep.subr.bf16.mxu0 %v8668
    %10200 = vmatpush1.bf16.msra.mxu0 %v8667
    %10201 = vmatprep.subr.bf16.mxu0 %v8676
    %10202 = vmatpush1.bf16.msra.mxu0 %v8675
    %10203 = vmatprep.subr.bf16.mxu0 %v8684
    %10204 = vmatpush1.bf16.msra.mxu0 %v8683
    %10205 = vmatprep.subr.bf16.mxu0 %v8692
    %10206 = vmatpush1.bf16.msra.mxu0 %v8691
    %10207 = vmatprep.subr.bf16.mxu0 %v8700
    %10208 = vmatpush1.bf16.msra.mxu0 %v8699
    %10209 = vmatprep.subr.bf16.mxu0 %v8708
    %10210 = vmatpush1.bf16.msra.mxu0 %v8707
    %10211 = vmatprep.subr.bf16.mxu0 %v8716
    %10212 = vmatpush1.bf16.msra.mxu0 %v8715
    %10213 = vmatprep.subr.bf16.mxu0 %v8724
    %10214 = vmatpush1.bf16.msra.mxu0 %v8723
    %10215 = vmatprep.subr.bf16.mxu0 %v8732
    %10216 = vmatpush1.bf16.msra.mxu0 %v8731
    %10217 = vmatprep.subr.bf16.mxu0 %v8740
    %10218 = vmatpush1.bf16.msra.mxu0 %v8739
    %10219 = vmatprep.subr.bf16.mxu0 %v8748
    %10220 = vmatpush1.bf16.msra.mxu0 %v8747
    %10221 = vmatprep.subr.bf16.mxu0 %v8756
    %10222 = vmatpush1.bf16.msra.mxu0 %v8755
    %10223 = vmatprep.subr.bf16.mxu0 %v8764
    %10224 = vmatpush1.bf16.msra.mxu0 %v8763
    %10225 = vmatprep.subr.bf16.mxu0 %v8772
    %10226 = vmatpush1.bf16.msra.mxu0 %v8771
    %10227 = vmatprep.subr.bf16.mxu0 %v8780
    %10228 = vmatpush1.bf16.msra.mxu0 %v8779
    %10229 = vmatprep.mubr.bf16.mxu0 %v4800
    %10230 = vmatmul.mubr.bf16.gmra.mrb[0].mxu0 %v4799
    %v10231 = vpop.f32.mrb[0].mxu0
    %v10232 = vadd.f32 %v10189, %v10231
    %v10233 = vpop.f32.mrb[0].mxu0
    %v10234 = vadd.f32 %v10191, %v10233
    %v10235 = vpop.f32.mrb[0].mxu0
    %v10236 = vadd.f32 %v10193, %v10235
    %v10237 = vpop.f32.mrb[0].mxu0
    %v10238 = vadd.f32 %v10195, %v10237
    %10239 = vdwg.mxu0
    %10240 = vmatprep.subr.bf16.mxu0 %v8788
    %10241 = vmatpush1.bf16.msra.mxu0 %v8787
    %10242 = vmatprep.subr.bf16.mxu0 %v8796
    %10243 = vmatpush1.bf16.msra.mxu0 %v8795
    %10244 = vmatprep.subr.bf16.mxu0 %v8804
    %10245 = vmatpush1.bf16.msra.mxu0 %v8803
    %10246 = vmatprep.subr.bf16.mxu0 %v8812
    %10247 = vmatpush1.bf16.msra.mxu0 %v8811
    %10248 = vmatprep.subr.bf16.mxu0 %v8820
    %10249 = vmatpush1.bf16.msra.mxu0 %v8819
    %10250 = vmatprep.subr.bf16.mxu0 %v8828
    %10251 = vmatpush1.bf16.msra.mxu0 %v8827
    %10252 = vmatprep.subr.bf16.mxu0 %v8836
    %10253 = vmatpush1.bf16.msra.mxu0 %v8835
    %10254 = vmatprep.subr.bf16.mxu0 %v8844
    %10255 = vmatpush1.bf16.msra.mxu0 %v8843
    %10256 = vmatprep.subr.bf16.mxu0 %v8852
    %10257 = vmatpush1.bf16.msra.mxu0 %v8851
    %10258 = vmatprep.subr.bf16.mxu0 %v8860
    %10259 = vmatpush1.bf16.msra.mxu0 %v8859
    %10260 = vmatprep.subr.bf16.mxu0 %v8868
    %10261 = vmatpush1.bf16.msra.mxu0 %v8867
    %10262 = vmatprep.subr.bf16.mxu0 %v8876
    %10263 = vmatpush1.bf16.msra.mxu0 %v8875
    %10264 = vmatprep.subr.bf16.mxu0 %v8884
    %10265 = vmatpush1.bf16.msra.mxu0 %v8883
    %10266 = vmatprep.subr.bf16.mxu0 %v8892
    %10267 = vmatpush1.bf16.msra.mxu0 %v8891
    %10268 = vmatprep.subr.bf16.mxu0 %v8900
    %10269 = vmatpush1.bf16.msra.mxu0 %v8899
    %10270 = vmatprep.subr.bf16.mxu0 %v8908
    %10271 = vmatpush1.bf16.msra.mxu0 %v8907
    %10272 = vmatprep.mubr.bf16.mxu0 %v4802
    %10273 = vmatmul.mubr.bf16.gmra.mrb[0].mxu0 %v4801
    %v10274 = vpop.f32.mrb[0].mxu0
    %v10275 = vadd.f32 %v10232, %v10274
    %v10276 = vpop.f32.mrb[0].mxu0
    %v10277 = vadd.f32 %v10234, %v10276
    %v10278 = vpop.f32.mrb[0].mxu0
    %v10279 = vadd.f32 %v10236, %v10278
    %v10280 = vpop.f32.mrb[0].mxu0
    %v10281 = vadd.f32 %v10238, %v10280
    %10282 = vdwg.mxu0
    %10283 = vmatprep.subr.bf16.mxu0 %v7894
    %10284 = vmatpush1.bf16.msra.mxu0 %v7893
    %10285 = vmatprep.subr.bf16.mxu0 %v7902
    %10286 = vmatpush1.bf16.msra.mxu0 %v7901
    %10287 = vmatprep.subr.bf16.mxu0 %v7910
    %10288 = vmatpush1.bf16.msra.mxu0 %v7909
    %10289 = vmatprep.subr.bf16.mxu0 %v7918
    %10290 = vmatpush1.bf16.msra.mxu0 %v7917
    %10291 = vmatprep.subr.bf16.mxu0 %v7926
    %10292 = vmatpush1.bf16.msra.mxu0 %v7925
    %10293 = vmatprep.subr.bf16.mxu0 %v7934
    %10294 = vmatpush1.bf16.msra.mxu0 %v7933
    %10295 = vmatprep.subr.bf16.mxu0 %v7942
    %10296 = vmatpush1.bf16.msra.mxu0 %v7941
    %10297 = vmatprep.subr.bf16.mxu0 %v7950
    %10298 = vmatpush1.bf16.msra.mxu0 %v7949
    %10299 = vmatprep.subr.bf16.mxu0 %v7958
    %10300 = vmatpush1.bf16.msra.mxu0 %v7957
    %10301 = vmatprep.subr.bf16.mxu0 %v7966
    %10302 = vmatpush1.bf16.msra.mxu0 %v7965
    %10303 = vmatprep.subr.bf16.mxu0 %v7974
    %10304 = vmatpush1.bf16.msra.mxu0 %v7973
    %10305 = vmatprep.subr.bf16.mxu0 %v7982
    %10306 = vmatpush1.bf16.msra.mxu0 %v7981
    %10307 = vmatprep.subr.bf16.mxu0 %v7990
    %10308 = vmatpush1.bf16.msra.mxu0 %v7989
    %10309 = vmatprep.subr.bf16.mxu0 %v7998
    %10310 = vmatpush1.bf16.msra.mxu0 %v7997
    %10311 = vmatprep.subr.bf16.mxu0 %v8006
    %10312 = vmatpush1.bf16.msra.mxu0 %v8005
    %10313 = vmatprep.subr.bf16.mxu0 %v8014
    %10314 = vmatpush1.bf16.msra.mxu0 %v8013
    %10315 = vmatprep.mubr.bf16.mxu0 %v4788
    %10316 = vmatmul.mubr.bf16.gmra.mrb[0].mxu0 %v4787
    %v10317 = vpop.f32.mrb[0].mxu0
    %v10318 = vadd.f32 %v4015, %v10317
    %v10319 = vpop.f32.mrb[0].mxu0
    %v10320 = vadd.f32 %v4019, %v10319
    %v10321 = vpop.f32.mrb[0].mxu0
    %v10322 = vadd.f32 %v4015, %v10321
    %v10323 = vpop.f32.mrb[0].mxu0
    %v10324 = vadd.f32 %v4019, %v10323
    %10325 = vdwg.mxu0
    %10326 = vmatprep.subr.bf16.mxu0 %v8022
    %10327 = vmatpush1.bf16.msra.mxu0 %v8021
    %10328 = vmatprep.subr.bf16.mxu0 %v8030
    %10329 = vmatpush1.bf16.msra.mxu0 %v8029
    %10330 = vmatprep.subr.bf16.mxu0 %v8038
    %10331 = vmatpush1.bf16.msra.mxu0 %v8037
    %10332 = vmatprep.subr.bf16.mxu0 %v8046
    %10333 = vmatpush1.bf16.msra.mxu0 %v8045
    %10334 = vmatprep.subr.bf16.mxu0 %v8054
    %10335 = vmatpush1.bf16.msra.mxu0 %v8053
    %10336 = vmatprep.subr.bf16.mxu0 %v8062
    %10337 = vmatpush1.bf16.msra.mxu0 %v8061
    %10338 = vmatprep.subr.bf16.mxu0 %v8070
    %10339 = vmatpush1.bf16.msra.mxu0 %v8069
    %10340 = vmatprep.subr.bf16.mxu0 %v8078
    %10341 = vmatpush1.bf16.msra.mxu0 %v8077
    %10342 = vmatprep.subr.bf16.mxu0 %v8086
    %10343 = vmatpush1.bf16.msra.mxu0 %v8085
    %10344 = vmatprep.subr.bf16.mxu0 %v8094
    %10345 = vmatpush1.bf16.msra.mxu0 %v8093
    %10346 = vmatprep.subr.bf16.mxu0 %v8102
    %10347 = vmatpush1.bf16.msra.mxu0 %v8101
    %10348 = vmatprep.subr.bf16.mxu0 %v8110
    %10349 = vmatpush1.bf16.msra.mxu0 %v8109
    %10350 = vmatprep.subr.bf16.mxu0 %v8118
    %10351 = vmatpush1.bf16.msra.mxu0 %v8117
    %10352 = vmatprep.subr.bf16.mxu0 %v8126
    %10353 = vmatpush1.bf16.msra.mxu0 %v8125
    %10354 = vmatprep.subr.bf16.mxu0 %v8134
    %10355 = vmatpush1.bf16.msra.mxu0 %v8133
    %10356 = vmatprep.subr.bf16.mxu0 %v8142
    %10357 = vmatpush1.bf16.msra.mxu0 %v8141
    %10358 = vmatprep.mubr.bf16.mxu0 %v4790
    %10359 = vmatmul.mubr.bf16.gmra.mrb[0].mxu0 %v4789
    %v10360 = vpop.f32.mrb[0].mxu0
    %v10361 = vadd.f32 %v10318, %v10360
    %v10362 = vpop.f32.mrb[0].mxu0
    %v10363 = vadd.f32 %v10320, %v10362
    %v10364 = vpop.f32.mrb[0].mxu0
    %v10365 = vadd.f32 %v10322, %v10364
    %v10366 = vpop.f32.mrb[0].mxu0
    %v10367 = vadd.f32 %v10324, %v10366
    %10368 = vdwg.mxu0
    %10369 = vmatprep.subr.bf16.mxu0 %v8150
    %10370 = vmatpush1.bf16.msra.mxu0 %v8149
    %10371 = vmatprep.subr.bf16.mxu0 %v8158
    %10372 = vmatpush1.bf16.msra.mxu0 %v8157
    %10373 = vmatprep.subr.bf16.mxu0 %v8166
    %10374 = vmatpush1.bf16.msra.mxu0 %v8165
    %10375 = vmatprep.subr.bf16.mxu0 %v8174
    %10376 = vmatpush1.bf16.msra.mxu0 %v8173
    %10377 = vmatprep.subr.bf16.mxu0 %v8182
    %10378 = vmatpush1.bf16.msra.mxu0 %v8181
    %10379 = vmatprep.subr.bf16.mxu0 %v8190
    %10380 = vmatpush1.bf16.msra.mxu0 %v8189
    %10381 = vmatprep.subr.bf16.mxu0 %v8198
    %10382 = vmatpush1.bf16.msra.mxu0 %v8197
    %10383 = vmatprep.subr.bf16.mxu0 %v8206
    %10384 = vmatpush1.bf16.msra.mxu0 %v8205
    %10385 = vmatprep.subr.bf16.mxu0 %v8214
    %10386 = vmatpush1.bf16.msra.mxu0 %v8213
    %10387 = vmatprep.subr.bf16.mxu0 %v8222
    %10388 = vmatpush1.bf16.msra.mxu0 %v8221
    %10389 = vmatprep.subr.bf16.mxu0 %v8230
    %10390 = vmatpush1.bf16.msra.mxu0 %v8229
    %10391 = vmatprep.subr.bf16.mxu0 %v8238
    %10392 = vmatpush1.bf16.msra.mxu0 %v8237
    %10393 = vmatprep.subr.bf16.mxu0 %v8246
    %10394 = vmatpush1.bf16.msra.mxu0 %v8245
    %10395 = vmatprep.subr.bf16.mxu0 %v8254
    %10396 = vmatpush1.bf16.msra.mxu0 %v8253
    %10397 = vmatprep.subr.bf16.mxu0 %v8262
    %10398 = vmatpush1.bf16.msra.mxu0 %v8261
    %10399 = vmatprep.subr.bf16.mxu0 %v8270
    %10400 = vmatpush1.bf16.msra.mxu0 %v8269
    %10401 = vmatprep.mubr.bf16.mxu0 %v4792
    %10402 = vmatmul.mubr.bf16.gmra.mrb[0].mxu0 %v4791
    %v10403 = vpop.f32.mrb[0].mxu0
    %v10404 = vadd.f32 %v10361, %v10403
    %v10405 = vpop.f32.mrb[0].mxu0
    %v10406 = vadd.f32 %v10363, %v10405
    %v10407 = vpop.f32.mrb[0].mxu0
    %v10408 = vadd.f32 %v10365, %v10407
    %v10409 = vpop.f32.mrb[0].mxu0
    %v10410 = vadd.f32 %v10367, %v10409
    %10411 = vdwg.mxu0
    %10412 = vmatprep.subr.bf16.mxu0 %v8278
    %10413 = vmatpush1.bf16.msra.mxu0 %v8277
    %10414 = vmatprep.subr.bf16.mxu0 %v8286
    %10415 = vmatpush1.bf16.msra.mxu0 %v8285
    %10416 = vmatprep.subr.bf16.mxu0 %v8294
    %10417 = vmatpush1.bf16.msra.mxu0 %v8293
    %10418 = vmatprep.subr.bf16.mxu0 %v8302
    %10419 = vmatpush1.bf16.msra.mxu0 %v8301
    %10420 = vmatprep.subr.bf16.mxu0 %v8310
    %10421 = vmatpush1.bf16.msra.mxu0 %v8309
    %10422 = vmatprep.subr.bf16.mxu0 %v8318
    %10423 = vmatpush1.bf16.msra.mxu0 %v8317
    %10424 = vmatprep.subr.bf16.mxu0 %v8326
    %10425 = vmatpush1.bf16.msra.mxu0 %v8325
    %10426 = vmatprep.subr.bf16.mxu0 %v8334
    %10427 = vmatpush1.bf16.msra.mxu0 %v8333
    %10428 = vmatprep.subr.bf16.mxu0 %v8342
    %10429 = vmatpush1.bf16.msra.mxu0 %v8341
    %10430 = vmatprep.subr.bf16.mxu0 %v8350
    %10431 = vmatpush1.bf16.msra.mxu0 %v8349
    %10432 = vmatprep.subr.bf16.mxu0 %v8358
    %10433 = vmatpush1.bf16.msra.mxu0 %v8357
    %10434 = vmatprep.subr.bf16.mxu0 %v8366
    %10435 = vmatpush1.bf16.msra.mxu0 %v8365
    %10436 = vmatprep.subr.bf16.mxu0 %v8374
    %10437 = vmatpush1.bf16.msra.mxu0 %v8373
    %10438 = vmatprep.subr.bf16.mxu0 %v8382
    %10439 = vmatpush1.bf16.msra.mxu0 %v8381
    %10440 = vmatprep.subr.bf16.mxu0 %v8390
    %10441 = vmatpush1.bf16.msra.mxu0 %v8389
    %10442 = vmatprep.subr.bf16.mxu0 %v8398
    %10443 = vmatpush1.bf16.msra.mxu0 %v8397
    %10444 = vmatprep.mubr.bf16.mxu0 %v4794
    %10445 = vmatmul.mubr.bf16.gmra.mrb[0].mxu0 %v4793
    %v10446 = vpop.f32.mrb[0].mxu0
    %v10447 = vadd.f32 %v10404, %v10446
    %v10448 = vpop.f32.mrb[0].mxu0
    %v10449 = vadd.f32 %v10406, %v10448
    %v10450 = vpop.f32.mrb[0].mxu0
    %v10451 = vadd.f32 %v10408, %v10450
    %v10452 = vpop.f32.mrb[0].mxu0
    %v10453 = vadd.f32 %v10410, %v10452
    %10454 = vdwg.mxu0
    %10455 = vmatprep.subr.bf16.mxu0 %v8406
    %10456 = vmatpush1.bf16.msra.mxu0 %v8405
    %10457 = vmatprep.subr.bf16.mxu0 %v8414
    %10458 = vmatpush1.bf16.msra.mxu0 %v8413
    %10459 = vmatprep.subr.bf16.mxu0 %v8422
    %10460 = vmatpush1.bf16.msra.mxu0 %v8421
    %10461 = vmatprep.subr.bf16.mxu0 %v8430
    %10462 = vmatpush1.bf16.msra.mxu0 %v8429
    %10463 = vmatprep.subr.bf16.mxu0 %v8438
    %10464 = vmatpush1.bf16.msra.mxu0 %v8437
    %10465 = vmatprep.subr.bf16.mxu0 %v8446
    %10466 = vmatpush1.bf16.msra.mxu0 %v8445
    %10467 = vmatprep.subr.bf16.mxu0 %v8454
    %10468 = vmatpush1.bf16.msra.mxu0 %v8453
    %10469 = vmatprep.subr.bf16.mxu0 %v8462
    %10470 = vmatpush1.bf16.msra.mxu0 %v8461
    %10471 = vmatprep.subr.bf16.mxu0 %v8470
    %10472 = vmatpush1.bf16.msra.mxu0 %v8469
    %10473 = vmatprep.subr.bf16.mxu0 %v8478
    %10474 = vmatpush1.bf16.msra.mxu0 %v8477
    %10475 = vmatprep.subr.bf16.mxu0 %v8486
    %10476 = vmatpush1.bf16.msra.mxu0 %v8485
    %10477 = vmatprep.subr.bf16.mxu0 %v8494
    %10478 = vmatpush1.bf16.msra.mxu0 %v8493
    %10479 = vmatprep.subr.bf16.mxu0 %v8502
    %10480 = vmatpush1.bf16.msra.mxu0 %v8501
    %10481 = vmatprep.subr.bf16.mxu0 %v8510
    %10482 = vmatpush1.bf16.msra.mxu0 %v8509
    %10483 = vmatprep.subr.bf16.mxu0 %v8518
    %10484 = vmatpush1.bf16.msra.mxu0 %v8517
    %10485 = vmatprep.subr.bf16.mxu0 %v8526
    %10486 = vmatpush1.bf16.msra.mxu0 %v8525
    %10487 = vmatprep.mubr.bf16.mxu0 %v4796
    %10488 = vmatmul.mubr.bf16.gmra.mrb[0].mxu0 %v4795
    %v10489 = vpop.f32.mrb[0].mxu0
    %v10490 = vadd.f32 %v10447, %v10489
    %v10491 = vpop.f32.mrb[0].mxu0
    %v10492 = vadd.f32 %v10449, %v10491
    %v10493 = vpop.f32.mrb[0].mxu0
    %v10494 = vadd.f32 %v10451, %v10493
    %v10495 = vpop.f32.mrb[0].mxu0
    %v10496 = vadd.f32 %v10453, %v10495
    %10497 = vdwg.mxu0
    %10498 = vmatprep.subr.bf16.mxu0 %v8534
    %10499 = vmatpush1.bf16.msra.mxu0 %v8533
    %10500 = vmatprep.subr.bf16.mxu0 %v8542
    %10501 = vmatpush1.bf16.msra.mxu0 %v8541
    %10502 = vmatprep.subr.bf16.mxu0 %v8550
    %10503 = vmatpush1.bf16.msra.mxu0 %v8549
    %10504 = vmatprep.subr.bf16.mxu0 %v8558
    %10505 = vmatpush1.bf16.msra.mxu0 %v8557
    %10506 = vmatprep.subr.bf16.mxu0 %v8566
    %10507 = vmatpush1.bf16.msra.mxu0 %v8565
    %10508 = vmatprep.subr.bf16.mxu0 %v8574
    %10509 = vmatpush1.bf16.msra.mxu0 %v8573
    %10510 = vmatprep.subr.bf16.mxu0 %v8582
    %10511 = vmatpush1.bf16.msra.mxu0 %v8581
    %10512 = vmatprep.subr.bf16.mxu0 %v8590
    %10513 = vmatpush1.bf16.msra.mxu0 %v8589
    %10514 = vmatprep.subr.bf16.mxu0 %v8598
    %10515 = vmatpush1.bf16.msra.mxu0 %v8597
    %10516 = vmatprep.subr.bf16.mxu0 %v8606
    %10517 = vmatpush1.bf16.msra.mxu0 %v8605
    %10518 = vmatprep.subr.bf16.mxu0 %v8614
    %10519 = vmatpush1.bf16.msra.mxu0 %v8613
    %10520 = vmatprep.subr.bf16.mxu0 %v8622
    %10521 = vmatpush1.bf16.msra.mxu0 %v8621
    %10522 = vmatprep.subr.bf16.mxu0 %v8630
    %10523 = vmatpush1.bf16.msra.mxu0 %v8629
    %10524 = vmatprep.subr.bf16.mxu0 %v8638
    %10525 = vmatpush1.bf16.msra.mxu0 %v8637
    %10526 = vmatprep.subr.bf16.mxu0 %v8646
    %10527 = vmatpush1.bf16.msra.mxu0 %v8645
    %10528 = vmatprep.subr.bf16.mxu0 %v8654
    %10529 = vmatpush1.bf16.msra.mxu0 %v8653
    %10530 = vmatprep.mubr.bf16.mxu0 %v4798
    %10531 = vmatmul.mubr.bf16.gmra.mrb[0].mxu0 %v4797
    %v10532 = vpop.f32.mrb[0].mxu0
    %v10533 = vadd.f32 %v10490, %v10532
    %v10534 = vpop.f32.mrb[0].mxu0
    %v10535 = vadd.f32 %v10492, %v10534
    %v10536 = vpop.f32.mrb[0].mxu0
    %v10537 = vadd.f32 %v10494, %v10536
    %v10538 = vpop.f32.mrb[0].mxu0
    %v10539 = vadd.f32 %v10496, %v10538
    %10540 = vdwg.mxu0
    %10541 = vmatprep.subr.bf16.mxu0 %v8662
    %10542 = vmatpush1.bf16.msra.mxu0 %v8661
    %10543 = vmatprep.subr.bf16.mxu0 %v8670
    %10544 = vmatpush1.bf16.msra.mxu0 %v8669
    %10545 = vmatprep.subr.bf16.mxu0 %v8678
    %10546 = vmatpush1.bf16.msra.mxu0 %v8677
    %10547 = vmatprep.subr.bf16.mxu0 %v8686
    %10548 = vmatpush1.bf16.msra.mxu0 %v8685
    %10549 = vmatprep.subr.bf16.mxu0 %v8694
    %10550 = vmatpush1.bf16.msra.mxu0 %v8693
    %10551 = vmatprep.subr.bf16.mxu0 %v8702
    %10552 = vmatpush1.bf16.msra.mxu0 %v8701
    %10553 = vmatprep.subr.bf16.mxu0 %v8710
    %10554 = vmatpush1.bf16.msra.mxu0 %v8709
    %10555 = vmatprep.subr.bf16.mxu0 %v8718
    %10556 = vmatpush1.bf16.msra.mxu0 %v8717
    %10557 = vmatprep.subr.bf16.mxu0 %v8726
    %10558 = vmatpush1.bf16.msra.mxu0 %v8725
    %10559 = vmatprep.subr.bf16.mxu0 %v8734
    %10560 = vmatpush1.bf16.msra.mxu0 %v8733
    %10561 = vmatprep.subr.bf16.mxu0 %v8742
    %10562 = vmatpush1.bf16.msra.mxu0 %v8741
    %10563 = vmatprep.subr.bf16.mxu0 %v8750
    %10564 = vmatpush1.bf16.msra.mxu0 %v8749
    %10565 = vmatprep.subr.bf16.mxu0 %v8758
    %10566 = vmatpush1.bf16.msra.mxu0 %v8757
    %10567 = vmatprep.subr.bf16.mxu0 %v8766
    %10568 = vmatpush1.bf16.msra.mxu0 %v8765
    %10569 = vmatprep.subr.bf16.mxu0 %v8774
    %10570 = vmatpush1.bf16.msra.mxu0 %v8773
    %10571 = vmatprep.subr.bf16.mxu0 %v8782
    %10572 = vmatpush1.bf16.msra.mxu0 %v8781
    %10573 = vmatprep.mubr.bf16.mxu0 %v4800
    %10574 = vmatmul.mubr.bf16.gmra.mrb[0].mxu0 %v4799
    %v10575 = vpop.f32.mrb[0].mxu0
    %v10576 = vadd.f32 %v10533, %v10575
    %v10577 = vpop.f32.mrb[0].mxu0
    %v10578 = vadd.f32 %v10535, %v10577
    %v10579 = vpop.f32.mrb[0].mxu0
    %v10580 = vadd.f32 %v10537, %v10579
    %v10581 = vpop.f32.mrb[0].mxu0
    %v10582 = vadd.f32 %v10539, %v10581
    %10583 = vdwg.mxu0
    %10584 = vmatprep.subr.bf16.mxu0 %v8790
    %10585 = vmatpush1.bf16.msra.mxu0 %v8789
    %10586 = vmatprep.subr.bf16.mxu0 %v8798
    %10587 = vmatpush1.bf16.msra.mxu0 %v8797
    %10588 = vmatprep.subr.bf16.mxu0 %v8806
    %10589 = vmatpush1.bf16.msra.mxu0 %v8805
    %10590 = vmatprep.subr.bf16.mxu0 %v8814
    %10591 = vmatpush1.bf16.msra.mxu0 %v8813
    %10592 = vmatprep.subr.bf16.mxu0 %v8822
    %10593 = vmatpush1.bf16.msra.mxu0 %v8821
    %10594 = vmatprep.subr.bf16.mxu0 %v8830
    %10595 = vmatpush1.bf16.msra.mxu0 %v8829
    %10596 = vmatprep.subr.bf16.mxu0 %v8838
    %10597 = vmatpush1.bf16.msra.mxu0 %v8837
    %10598 = vmatprep.subr.bf16.mxu0 %v8846
    %10599 = vmatpush1.bf16.msra.mxu0 %v8845
    %10600 = vmatprep.subr.bf16.mxu0 %v8854
    %10601 = vmatpush1.bf16.msra.mxu0 %v8853
    %10602 = vmatprep.subr.bf16.mxu0 %v8862
    %10603 = vmatpush1.bf16.msra.mxu0 %v8861
    %10604 = vmatprep.subr.bf16.mxu0 %v8870
    %10605 = vmatpush1.bf16.msra.mxu0 %v8869
    %10606 = vmatprep.subr.bf16.mxu0 %v8878
    %10607 = vmatpush1.bf16.msra.mxu0 %v8877
    %10608 = vmatprep.subr.bf16.mxu0 %v8886
    %10609 = vmatpush1.bf16.msra.mxu0 %v8885
    %10610 = vmatprep.subr.bf16.mxu0 %v8894
    %10611 = vmatpush1.bf16.msra.mxu0 %v8893
    %10612 = vmatprep.subr.bf16.mxu0 %v8902
    %10613 = vmatpush1.bf16.msra.mxu0 %v8901
    %10614 = vmatprep.subr.bf16.mxu0 %v8910
    %10615 = vmatpush1.bf16.msra.mxu0 %v8909
    %10616 = vmatprep.mubr.bf16.mxu0 %v4802
    %10617 = vmatmul.mubr.bf16.gmra.mrb[0].mxu0 %v4801
    %v10618 = vpop.f32.mrb[0].mxu0
    %v10619 = vadd.f32 %v10576, %v10618
    %v10620 = vpop.f32.mrb[0].mxu0
    %v10621 = vadd.f32 %v10578, %v10620
    %v10622 = vpop.f32.mrb[0].mxu0
    %v10623 = vadd.f32 %v10580, %v10622
    %v10624 = vpop.f32.mrb[0].mxu0
    %v10625 = vadd.f32 %v10582, %v10624
    %10626 = vdwg.mxu0
    %10627 = vmatprep.subr.bf16.mxu0 %v7896
    %10628 = vmatpush1.bf16.msra.mxu0 %v7895
    %10629 = vmatprep.subr.bf16.mxu0 %v7904
    %10630 = vmatpush1.bf16.msra.mxu0 %v7903
    %10631 = vmatprep.subr.bf16.mxu0 %v7912
    %10632 = vmatpush1.bf16.msra.mxu0 %v7911
    %10633 = vmatprep.subr.bf16.mxu0 %v7920
    %10634 = vmatpush1.bf16.msra.mxu0 %v7919
    %10635 = vmatprep.subr.bf16.mxu0 %v7928
    %10636 = vmatpush1.bf16.msra.mxu0 %v7927
    %10637 = vmatprep.subr.bf16.mxu0 %v7936
    %10638 = vmatpush1.bf16.msra.mxu0 %v7935
    %10639 = vmatprep.subr.bf16.mxu0 %v7944
    %10640 = vmatpush1.bf16.msra.mxu0 %v7943
    %10641 = vmatprep.subr.bf16.mxu0 %v7952
    %10642 = vmatpush1.bf16.msra.mxu0 %v7951
    %10643 = vmatprep.subr.bf16.mxu0 %v7960
    %10644 = vmatpush1.bf16.msra.mxu0 %v7959
    %10645 = vmatprep.subr.bf16.mxu0 %v7968
    %10646 = vmatpush1.bf16.msra.mxu0 %v7967
    %10647 = vmatprep.subr.bf16.mxu0 %v7976
    %10648 = vmatpush1.bf16.msra.mxu0 %v7975
    %10649 = vmatprep.subr.bf16.mxu0 %v7984
    %10650 = vmatpush1.bf16.msra.mxu0 %v7983
    %10651 = vmatprep.subr.bf16.mxu0 %v7992
    %10652 = vmatpush1.bf16.msra.mxu0 %v7991
    %10653 = vmatprep.subr.bf16.mxu0 %v8000
    %10654 = vmatpush1.bf16.msra.mxu0 %v7999
    %10655 = vmatprep.subr.bf16.mxu0 %v8008
    %10656 = vmatpush1.bf16.msra.mxu0 %v8007
    %10657 = vmatprep.subr.bf16.mxu0 %v8016
    %10658 = vmatpush1.bf16.msra.mxu0 %v8015
    %10659 = vmatprep.mubr.bf16.mxu0 %v4788
    %10660 = vmatmul.mubr.bf16.gmra.mrb[0].mxu0 %v4787
    %v10661 = vpop.f32.mrb[0].mxu0
    %v10662 = vadd.f32 %v4023, %v10661
    %v10663 = vpop.f32.mrb[0].mxu0
    %v10664 = vadd.f32 %v4027, %v10663
    %v10665 = vpop.f32.mrb[0].mxu0
    %v10666 = vadd.f32 %v4023, %v10665
    %v10667 = vpop.f32.mrb[0].mxu0
    %v10668 = vadd.f32 %v4027, %v10667
    %10669 = vdwg.mxu0
    %10670 = vmatprep.subr.bf16.mxu0 %v8024
    %10671 = vmatpush1.bf16.msra.mxu0 %v8023
    %10672 = vmatprep.subr.bf16.mxu0 %v8032
    %10673 = vmatpush1.bf16.msra.mxu0 %v8031
    %10674 = vmatprep.subr.bf16.mxu0 %v8040
    %10675 = vmatpush1.bf16.msra.mxu0 %v8039
    %10676 = vmatprep.subr.bf16.mxu0 %v8048
    %10677 = vmatpush1.bf16.msra.mxu0 %v8047
    %10678 = vmatprep.subr.bf16.mxu0 %v8056
    %10679 = vmatpush1.bf16.msra.mxu0 %v8055
    %10680 = vmatprep.subr.bf16.mxu0 %v8064
    %10681 = vmatpush1.bf16.msra.mxu0 %v8063
    %10682 = vmatprep.subr.bf16.mxu0 %v8072
    %10683 = vmatpush1.bf16.msra.mxu0 %v8071
    %10684 = vmatprep.subr.bf16.mxu0 %v8080
    %10685 = vmatpush1.bf16.msra.mxu0 %v8079
    %10686 = vmatprep.subr.bf16.mxu0 %v8088
    %10687 = vmatpush1.bf16.msra.mxu0 %v8087
    %10688 = vmatprep.subr.bf16.mxu0 %v8096
    %10689 = vmatpush1.bf16.msra.mxu0 %v8095
    %10690 = vmatprep.subr.bf16.mxu0 %v8104
    %10691 = vmatpush1.bf16.msra.mxu0 %v8103
    %10692 = vmatprep.subr.bf16.mxu0 %v8112
    %10693 = vmatpush1.bf16.msra.mxu0 %v8111
    %10694 = vmatprep.subr.bf16.mxu0 %v8120
    %10695 = vmatpush1.bf16.msra.mxu0 %v8119
    %10696 = vmatprep.subr.bf16.mxu0 %v8128
    %10697 = vmatpush1.bf16.msra.mxu0 %v8127
    %10698 = vmatprep.subr.bf16.mxu0 %v8136
    %10699 = vmatpush1.bf16.msra.mxu0 %v8135
    %10700 = vmatprep.subr.bf16.mxu0 %v8144
    %10701 = vmatpush1.bf16.msra.mxu0 %v8143
    %10702 = vmatprep.mubr.bf16.mxu0 %v4790
    %10703 = vmatmul.mubr.bf16.gmra.mrb[0].mxu0 %v4789
    %v10704 = vpop.f32.mrb[0].mxu0
    %v10705 = vadd.f32 %v10662, %v10704
    %v10706 = vpop.f32.mrb[0].mxu0
    %v10707 = vadd.f32 %v10664, %v10706
    %v10708 = vpop.f32.mrb[0].mxu0
    %v10709 = vadd.f32 %v10666, %v10708
    %v10710 = vpop.f32.mrb[0].mxu0
    %v10711 = vadd.f32 %v10668, %v10710
    %10712 = vdwg.mxu0
    %10713 = vmatprep.subr.bf16.mxu0 %v8152
    %10714 = vmatpush1.bf16.msra.mxu0 %v8151
    %10715 = vmatprep.subr.bf16.mxu0 %v8160
    %10716 = vmatpush1.bf16.msra.mxu0 %v8159
    %10717 = vmatprep.subr.bf16.mxu0 %v8168
    %10718 = vmatpush1.bf16.msra.mxu0 %v8167
    %10719 = vmatprep.subr.bf16.mxu0 %v8176
    %10720 = vmatpush1.bf16.msra.mxu0 %v8175
    %10721 = vmatprep.subr.bf16.mxu0 %v8184
    %10722 = vmatpush1.bf16.msra.mxu0 %v8183
    %10723 = vmatprep.subr.bf16.mxu0 %v8192
    %10724 = vmatpush1.bf16.msra.mxu0 %v8191
    %10725 = vmatprep.subr.bf16.mxu0 %v8200
    %10726 = vmatpush1.bf16.msra.mxu0 %v8199
    %10727 = vmatprep.subr.bf16.mxu0 %v8208
    %10728 = vmatpush1.bf16.msra.mxu0 %v8207
    %10729 = vmatprep.subr.bf16.mxu0 %v8216
    %10730 = vmatpush1.bf16.msra.mxu0 %v8215
    %10731 = vmatprep.subr.bf16.mxu0 %v8224
    %10732 = vmatpush1.bf16.msra.mxu0 %v8223
    %10733 = vmatprep.subr.bf16.mxu0 %v8232
    %10734 = vmatpush1.bf16.msra.mxu0 %v8231
    %10735 = vmatprep.subr.bf16.mxu0 %v8240
    %10736 = vmatpush1.bf16.msra.mxu0 %v8239
    %10737 = vmatprep.subr.bf16.mxu0 %v8248
    %10738 = vmatpush1.bf16.msra.mxu0 %v8247
    %10739 = vmatprep.subr.bf16.mxu0 %v8256
    %10740 = vmatpush1.bf16.msra.mxu0 %v8255
    %10741 = vmatprep.subr.bf16.mxu0 %v8264
    %10742 = vmatpush1.bf16.msra.mxu0 %v8263
    %10743 = vmatprep.subr.bf16.mxu0 %v8272
    %10744 = vmatpush1.bf16.msra.mxu0 %v8271
    %10745 = vmatprep.mubr.bf16.mxu0 %v4792
    %10746 = vmatmul.mubr.bf16.gmra.mrb[0].mxu0 %v4791
    %v10747 = vpop.f32.mrb[0].mxu0
    %v10748 = vadd.f32 %v10705, %v10747
    %v10749 = vpop.f32.mrb[0].mxu0
    %v10750 = vadd.f32 %v10707, %v10749
    %v10751 = vpop.f32.mrb[0].mxu0
    %v10752 = vadd.f32 %v10709, %v10751
    %v10753 = vpop.f32.mrb[0].mxu0
    %v10754 = vadd.f32 %v10711, %v10753
    %10755 = vdwg.mxu0
    %10756 = vmatprep.subr.bf16.mxu0 %v8280
    %10757 = vmatpush1.bf16.msra.mxu0 %v8279
    %10758 = vmatprep.subr.bf16.mxu0 %v8288
    %10759 = vmatpush1.bf16.msra.mxu0 %v8287
    %10760 = vmatprep.subr.bf16.mxu0 %v8296
    %10761 = vmatpush1.bf16.msra.mxu0 %v8295
    %10762 = vmatprep.subr.bf16.mxu0 %v8304
    %10763 = vmatpush1.bf16.msra.mxu0 %v8303
    %10764 = vmatprep.subr.bf16.mxu0 %v8312
    %10765 = vmatpush1.bf16.msra.mxu0 %v8311
    %10766 = vmatprep.subr.bf16.mxu0 %v8320
    %10767 = vmatpush1.bf16.msra.mxu0 %v8319
    %10768 = vmatprep.subr.bf16.mxu0 %v8328
    %10769 = vmatpush1.bf16.msra.mxu0 %v8327
    %10770 = vmatprep.subr.bf16.mxu0 %v8336
    %10771 = vmatpush1.bf16.msra.mxu0 %v8335
    %10772 = vmatprep.subr.bf16.mxu0 %v8344
    %10773 = vmatpush1.bf16.msra.mxu0 %v8343
    %10774 = vmatprep.subr.bf16.mxu0 %v8352
    %10775 = vmatpush1.bf16.msra.mxu0 %v8351
    %10776 = vmatprep.subr.bf16.mxu0 %v8360
    %10777 = vmatpush1.bf16.msra.mxu0 %v8359
    %10778 = vmatprep.subr.bf16.mxu0 %v8368
    %10779 = vmatpush1.bf16.msra.mxu0 %v8367
    %10780 = vmatprep.subr.bf16.mxu0 %v8376
    %10781 = vmatpush1.bf16.msra.mxu0 %v8375
    %10782 = vmatprep.subr.bf16.mxu0 %v8384
    %10783 = vmatpush1.bf16.msra.mxu0 %v8383
    %10784 = vmatprep.subr.bf16.mxu0 %v8392
    %10785 = vmatpush1.bf16.msra.mxu0 %v8391
    %10786 = vmatprep.subr.bf16.mxu0 %v8400
    %10787 = vmatpush1.bf16.msra.mxu0 %v8399
    %10788 = vmatprep.mubr.bf16.mxu0 %v4794
    %10789 = vmatmul.mubr.bf16.gmra.mrb[0].mxu0 %v4793
    %v10790 = vpop.f32.mrb[0].mxu0
    %v10791 = vadd.f32 %v10748, %v10790
    %v10792 = vpop.f32.mrb[0].mxu0
    %v10793 = vadd.f32 %v10750, %v10792
    %v10794 = vpop.f32.mrb[0].mxu0
    %v10795 = vadd.f32 %v10752, %v10794
    %v10796 = vpop.f32.mrb[0].mxu0
    %v10797 = vadd.f32 %v10754, %v10796
    %10798 = vdwg.mxu0
    %10799 = vmatprep.subr.bf16.mxu0 %v8408
    %10800 = vmatpush1.bf16.msra.mxu0 %v8407
    %10801 = vmatprep.subr.bf16.mxu0 %v8416
    %10802 = vmatpush1.bf16.msra.mxu0 %v8415
    %10803 = vmatprep.subr.bf16.mxu0 %v8424
    %10804 = vmatpush1.bf16.msra.mxu0 %v8423
    %10805 = vmatprep.subr.bf16.mxu0 %v8432
    %10806 = vmatpush1.bf16.msra.mxu0 %v8431
    %10807 = vmatprep.subr.bf16.mxu0 %v8440
    %10808 = vmatpush1.bf16.msra.mxu0 %v8439
    %10809 = vmatprep.subr.bf16.mxu0 %v8448
    %10810 = vmatpush1.bf16.msra.mxu0 %v8447
    %10811 = vmatprep.subr.bf16.mxu0 %v8456
    %10812 = vmatpush1.bf16.msra.mxu0 %v8455
    %10813 = vmatprep.subr.bf16.mxu0 %v8464
    %10814 = vmatpush1.bf16.msra.mxu0 %v8463
    %10815 = vmatprep.subr.bf16.mxu0 %v8472
    %10816 = vmatpush1.bf16.msra.mxu0 %v8471
    %10817 = vmatprep.subr.bf16.mxu0 %v8480
    %10818 = vmatpush1.bf16.msra.mxu0 %v8479
    %10819 = vmatprep.subr.bf16.mxu0 %v8488
    %10820 = vmatpush1.bf16.msra.mxu0 %v8487
    %10821 = vmatprep.subr.bf16.mxu0 %v8496
    %10822 = vmatpush1.bf16.msra.mxu0 %v8495
    %10823 = vmatprep.subr.bf16.mxu0 %v8504
    %10824 = vmatpush1.bf16.msra.mxu0 %v8503
    %10825 = vmatprep.subr.bf16.mxu0 %v8512
    %10826 = vmatpush1.bf16.msra.mxu0 %v8511
    %10827 = vmatprep.subr.bf16.mxu0 %v8520
    %10828 = vmatpush1.bf16.msra.mxu0 %v8519
    %10829 = vmatprep.subr.bf16.mxu0 %v8528
    %10830 = vmatpush1.bf16.msra.mxu0 %v8527
    %10831 = vmatprep.mubr.bf16.mxu0 %v4796
    %10832 = vmatmul.mubr.bf16.gmra.mrb[0].mxu0 %v4795
    %v10833 = vpop.f32.mrb[0].mxu0
    %v10834 = vadd.f32 %v10791, %v10833
    %v10835 = vpop.f32.mrb[0].mxu0
    %v10836 = vadd.f32 %v10793, %v10835
    %v10837 = vpop.f32.mrb[0].mxu0
    %v10838 = vadd.f32 %v10795, %v10837
    %v10839 = vpop.f32.mrb[0].mxu0
    %v10840 = vadd.f32 %v10797, %v10839
    %10841 = vdwg.mxu0
    %10842 = vmatprep.subr.bf16.mxu0 %v8536
    %10843 = vmatpush1.bf16.msra.mxu0 %v8535
    %10844 = vmatprep.subr.bf16.mxu0 %v8544
    %10845 = vmatpush1.bf16.msra.mxu0 %v8543
    %10846 = vmatprep.subr.bf16.mxu0 %v8552
    %10847 = vmatpush1.bf16.msra.mxu0 %v8551
    %10848 = vmatprep.subr.bf16.mxu0 %v8560
    %10849 = vmatpush1.bf16.msra.mxu0 %v8559
    %10850 = vmatprep.subr.bf16.mxu0 %v8568
    %10851 = vmatpush1.bf16.msra.mxu0 %v8567
    %10852 = vmatprep.subr.bf16.mxu0 %v8576
    %10853 = vmatpush1.bf16.msra.mxu0 %v8575
    %10854 = vmatprep.subr.bf16.mxu0 %v8584
    %10855 = vmatpush1.bf16.msra.mxu0 %v8583
    %10856 = vmatprep.subr.bf16.mxu0 %v8592
    %10857 = vmatpush1.bf16.msra.mxu0 %v8591
    %10858 = vmatprep.subr.bf16.mxu0 %v8600
    %10859 = vmatpush1.bf16.msra.mxu0 %v8599
    %10860 = vmatprep.subr.bf16.mxu0 %v8608
    %10861 = vmatpush1.bf16.msra.mxu0 %v8607
    %10862 = vmatprep.subr.bf16.mxu0 %v8616
    %10863 = vmatpush1.bf16.msra.mxu0 %v8615
    %10864 = vmatprep.subr.bf16.mxu0 %v8624
    %10865 = vmatpush1.bf16.msra.mxu0 %v8623
    %10866 = vmatprep.subr.bf16.mxu0 %v8632
    %10867 = vmatpush1.bf16.msra.mxu0 %v8631
    %10868 = vmatprep.subr.bf16.mxu0 %v8640
    %10869 = vmatpush1.bf16.msra.mxu0 %v8639
    %10870 = vmatprep.subr.bf16.mxu0 %v8648
    %10871 = vmatpush1.bf16.msra.mxu0 %v8647
    %10872 = vmatprep.subr.bf16.mxu0 %v8656
    %10873 = vmatpush1.bf16.msra.mxu0 %v8655
    %10874 = vmatprep.mubr.bf16.mxu0 %v4798
    %10875 = vmatmul.mubr.bf16.gmra.mrb[0].mxu0 %v4797
    %v10876 = vpop.f32.mrb[0].mxu0
    %v10877 = vadd.f32 %v10834, %v10876
    %v10878 = vpop.f32.mrb[0].mxu0
    %v10879 = vadd.f32 %v10836, %v10878
    %v10880 = vpop.f32.mrb[0].mxu0
    %v10881 = vadd.f32 %v10838, %v10880
    %v10882 = vpop.f32.mrb[0].mxu0
    %v10883 = vadd.f32 %v10840, %v10882
    %10884 = vdwg.mxu0
    %10885 = vmatprep.subr.bf16.mxu0 %v8664
    %10886 = vmatpush1.bf16.msra.mxu0 %v8663
    %10887 = vmatprep.subr.bf16.mxu0 %v8672
    %10888 = vmatpush1.bf16.msra.mxu0 %v8671
    %10889 = vmatprep.subr.bf16.mxu0 %v8680
    %10890 = vmatpush1.bf16.msra.mxu0 %v8679
    %10891 = vmatprep.subr.bf16.mxu0 %v8688
    %10892 = vmatpush1.bf16.msra.mxu0 %v8687
    %10893 = vmatprep.subr.bf16.mxu0 %v8696
    %10894 = vmatpush1.bf16.msra.mxu0 %v8695
    %10895 = vmatprep.subr.bf16.mxu0 %v8704
    %10896 = vmatpush1.bf16.msra.mxu0 %v8703
    %10897 = vmatprep.subr.bf16.mxu0 %v8712
    %10898 = vmatpush1.bf16.msra.mxu0 %v8711
    %10899 = vmatprep.subr.bf16.mxu0 %v8720
    %10900 = vmatpush1.bf16.msra.mxu0 %v8719
    %10901 = vmatprep.subr.bf16.mxu0 %v8728
    %10902 = vmatpush1.bf16.msra.mxu0 %v8727
    %10903 = vmatprep.subr.bf16.mxu0 %v8736
    %10904 = vmatpush1.bf16.msra.mxu0 %v8735
    %10905 = vmatprep.subr.bf16.mxu0 %v8744
    %10906 = vmatpush1.bf16.msra.mxu0 %v8743
    %10907 = vmatprep.subr.bf16.mxu0 %v8752
    %10908 = vmatpush1.bf16.msra.mxu0 %v8751
    %10909 = vmatprep.subr.bf16.mxu0 %v8760
    %10910 = vmatpush1.bf16.msra.mxu0 %v8759
    %10911 = vmatprep.subr.bf16.mxu0 %v8768
    %10912 = vmatpush1.bf16.msra.mxu0 %v8767
    %10913 = vmatprep.subr.bf16.mxu0 %v8776
    %10914 = vmatpush1.bf16.msra.mxu0 %v8775
    %10915 = vmatprep.subr.bf16.mxu0 %v8784
    %10916 = vmatpush1.bf16.msra.mxu0 %v8783
    %10917 = vmatprep.mubr.bf16.mxu0 %v4800
    %10918 = vmatmul.mubr.bf16.gmra.mrb[0].mxu0 %v4799
    %v10919 = vpop.f32.mrb[0].mxu0
    %v10920 = vadd.f32 %v10877, %v10919
    %v10921 = vpop.f32.mrb[0].mxu0
    %v10922 = vadd.f32 %v10879, %v10921
    %v10923 = vpop.f32.mrb[0].mxu0
    %v10924 = vadd.f32 %v10881, %v10923
    %v10925 = vpop.f32.mrb[0].mxu0
    %v10926 = vadd.f32 %v10883, %v10925
    %10927 = vdwg.mxu0
    %10928 = vmatprep.subr.bf16.mxu0 %v8792
    %10929 = vmatpush1.bf16.msra.mxu0 %v8791
    %10930 = vmatprep.subr.bf16.mxu0 %v8800
    %10931 = vmatpush1.bf16.msra.mxu0 %v8799
    %10932 = vmatprep.subr.bf16.mxu0 %v8808
    %10933 = vmatpush1.bf16.msra.mxu0 %v8807
    %10934 = vmatprep.subr.bf16.mxu0 %v8816
    %10935 = vmatpush1.bf16.msra.mxu0 %v8815
    %10936 = vmatprep.subr.bf16.mxu0 %v8824
    %10937 = vmatpush1.bf16.msra.mxu0 %v8823
    %10938 = vmatprep.subr.bf16.mxu0 %v8832
    %10939 = vmatpush1.bf16.msra.mxu0 %v8831
    %10940 = vmatprep.subr.bf16.mxu0 %v8840
    %10941 = vmatpush1.bf16.msra.mxu0 %v8839
    %10942 = vmatprep.subr.bf16.mxu0 %v8848
    %10943 = vmatpush1.bf16.msra.mxu0 %v8847
    %10944 = vmatprep.subr.bf16.mxu0 %v8856
    %10945 = vmatpush1.bf16.msra.mxu0 %v8855
    %10946 = vmatprep.subr.bf16.mxu0 %v8864
    %10947 = vmatpush1.bf16.msra.mxu0 %v8863
    %10948 = vmatprep.subr.bf16.mxu0 %v8872
    %10949 = vmatpush1.bf16.msra.mxu0 %v8871
    %10950 = vmatprep.subr.bf16.mxu0 %v8880
    %10951 = vmatpush1.bf16.msra.mxu0 %v8879
    %10952 = vmatprep.subr.bf16.mxu0 %v8888
    %10953 = vmatpush1.bf16.msra.mxu0 %v8887
    %10954 = vmatprep.subr.bf16.mxu0 %v8896
    %10955 = vmatpush1.bf16.msra.mxu0 %v8895
    %10956 = vmatprep.subr.bf16.mxu0 %v8904
    %10957 = vmatpush1.bf16.msra.mxu0 %v8903
    %10958 = vmatprep.subr.bf16.mxu0 %v8912
    %10959 = vmatpush1.bf16.msra.mxu0 %v8911
    %10960 = vmatprep.mubr.bf16.mxu0 %v4802
    %10961 = vmatmul.mubr.bf16.gmra.mrb[0].mxu0 %v4801
    %v10962 = vpop.f32.mrb[0].mxu0
    %v10963 = vadd.f32 %v10920, %v10962
    %v10964 = vpop.f32.mrb[0].mxu0
    %v10965 = vadd.f32 %v10922, %v10964
    %v10966 = vpop.f32.mrb[0].mxu0
    %v10967 = vadd.f32 %v10924, %v10966
    %v10968 = vpop.f32.mrb[0].mxu0
    %v10969 = vadd.f32 %v10926, %v10968
    %10970 = vdwg.mxu0
    %10971 = vmatprep.subr.bf16.mxu0 %v7898
    %10972 = vmatpush1.bf16.msra.mxu0 %v7897
    %10973 = vmatprep.subr.bf16.mxu0 %v7906
    %10974 = vmatpush1.bf16.msra.mxu0 %v7905
    %10975 = vmatprep.subr.bf16.mxu0 %v7914
    %10976 = vmatpush1.bf16.msra.mxu0 %v7913
    %10977 = vmatprep.subr.bf16.mxu0 %v7922
    %10978 = vmatpush1.bf16.msra.mxu0 %v7921
    %10979 = vmatprep.subr.bf16.mxu0 %v7930
    %10980 = vmatpush1.bf16.msra.mxu0 %v7929
    %10981 = vmatprep.subr.bf16.mxu0 %v7938
    %10982 = vmatpush1.bf16.msra.mxu0 %v7937
    %10983 = vmatprep.subr.bf16.mxu0 %v7946
    %10984 = vmatpush1.bf16.msra.mxu0 %v7945
    %10985 = vmatprep.subr.bf16.mxu0 %v7954
    %10986 = vmatpush1.bf16.msra.mxu0 %v7953
    %10987 = vmatprep.subr.bf16.mxu0 %v7962
    %10988 = vmatpush1.bf16.msra.mxu0 %v7961
    %10989 = vmatprep.subr.bf16.mxu0 %v7970
    %10990 = vmatpush1.bf16.msra.mxu0 %v7969
    %10991 = vmatprep.subr.bf16.mxu0 %v7978
    %10992 = vmatpush1.bf16.msra.mxu0 %v7977
    %10993 = vmatprep.subr.bf16.mxu0 %v7986
    %10994 = vmatpush1.bf16.msra.mxu0 %v7985
    %10995 = vmatprep.subr.bf16.mxu0 %v7994
    %10996 = vmatpush1.bf16.msra.mxu0 %v7993
    %10997 = vmatprep.subr.bf16.mxu0 %v8002
    %10998 = vmatpush1.bf16.msra.mxu0 %v8001
    %10999 = vmatprep.subr.bf16.mxu0 %v8010
    %11000 = vmatpush1.bf16.msra.mxu0 %v8009
    %11001 = vmatprep.subr.bf16.mxu0 %v8018
    %11002 = vmatpush1.bf16.msra.mxu0 %v8017
    %11003 = vmatprep.mubr.bf16.mxu0 %v4788
    %11004 = vmatmul.mubr.bf16.gmra.mrb[0].mxu0 %v4787
    %v11005 = vpop.f32.mrb[0].mxu0
    %v11006 = vadd.f32 %v4031, %v11005
    %v11007 = vpop.f32.mrb[0].mxu0
    %v11008 = vadd.f32 %v4035, %v11007
    %v11009 = vpop.f32.mrb[0].mxu0
    %v11010 = vadd.f32 %v4031, %v11009
    %v11011 = vpop.f32.mrb[0].mxu0
    %v11012 = vadd.f32 %v4035, %v11011
    %11013 = vdwg.mxu0
    %11014 = vmatprep.subr.bf16.mxu0 %v8026
    %11015 = vmatpush1.bf16.msra.mxu0 %v8025
    %11016 = vmatprep.subr.bf16.mxu0 %v8034
    %11017 = vmatpush1.bf16.msra.mxu0 %v8033
    %11018 = vmatprep.subr.bf16.mxu0 %v8042
    %11019 = vmatpush1.bf16.msra.mxu0 %v8041
    %11020 = vmatprep.subr.bf16.mxu0 %v8050
    %11021 = vmatpush1.bf16.msra.mxu0 %v8049
    %11022 = vmatprep.subr.bf16.mxu0 %v8058
    %11023 = vmatpush1.bf16.msra.mxu0 %v8057
    %11024 = vmatprep.subr.bf16.mxu0 %v8066
    %11025 = vmatpush1.bf16.msra.mxu0 %v8065
    %11026 = vmatprep.subr.bf16.mxu0 %v8074
    %11027 = vmatpush1.bf16.msra.mxu0 %v8073
    %11028 = vmatprep.subr.bf16.mxu0 %v8082
    %11029 = vmatpush1.bf16.msra.mxu0 %v8081
    %11030 = vmatprep.subr.bf16.mxu0 %v8090
    %11031 = vmatpush1.bf16.msra.mxu0 %v8089
    %11032 = vmatprep.subr.bf16.mxu0 %v8098
    %11033 = vmatpush1.bf16.msra.mxu0 %v8097
    %11034 = vmatprep.subr.bf16.mxu0 %v8106
    %11035 = vmatpush1.bf16.msra.mxu0 %v8105
    %11036 = vmatprep.subr.bf16.mxu0 %v8114
    %11037 = vmatpush1.bf16.msra.mxu0 %v8113
    %11038 = vmatprep.subr.bf16.mxu0 %v8122
    %11039 = vmatpush1.bf16.msra.mxu0 %v8121
    %11040 = vmatprep.subr.bf16.mxu0 %v8130
    %11041 = vmatpush1.bf16.msra.mxu0 %v8129
    %11042 = vmatprep.subr.bf16.mxu0 %v8138
    %11043 = vmatpush1.bf16.msra.mxu0 %v8137
    %11044 = vmatprep.subr.bf16.mxu0 %v8146
    %11045 = vmatpush1.bf16.msra.mxu0 %v8145
    %11046 = vmatprep.mubr.bf16.mxu0 %v4790
    %11047 = vmatmul.mubr.bf16.gmra.mrb[0].mxu0 %v4789
    %v11048 = vpop.f32.mrb[0].mxu0
    %v11049 = vadd.f32 %v11006, %v11048
    %v11050 = vpop.f32.mrb[0].mxu0
    %v11051 = vadd.f32 %v11008, %v11050
    %v11052 = vpop.f32.mrb[0].mxu0
    %v11053 = vadd.f32 %v11010, %v11052
    %v11054 = vpop.f32.mrb[0].mxu0
    %v11055 = vadd.f32 %v11012, %v11054
    %11056 = vdwg.mxu0
    %11057 = vmatprep.subr.bf16.mxu0 %v8154
    %11058 = vmatpush1.bf16.msra.mxu0 %v8153
    %11059 = vmatprep.subr.bf16.mxu0 %v8162
    %11060 = vmatpush1.bf16.msra.mxu0 %v8161
    %11061 = vmatprep.subr.bf16.mxu0 %v8170
    %11062 = vmatpush1.bf16.msra.mxu0 %v8169
    %11063 = vmatprep.subr.bf16.mxu0 %v8178
    %11064 = vmatpush1.bf16.msra.mxu0 %v8177
    %11065 = vmatprep.subr.bf16.mxu0 %v8186
    %11066 = vmatpush1.bf16.msra.mxu0 %v8185
    %11067 = vmatprep.subr.bf16.mxu0 %v8194
    %11068 = vmatpush1.bf16.msra.mxu0 %v8193
    %11069 = vmatprep.subr.bf16.mxu0 %v8202
    %11070 = vmatpush1.bf16.msra.mxu0 %v8201
    %11071 = vmatprep.subr.bf16.mxu0 %v8210
    %11072 = vmatpush1.bf16.msra.mxu0 %v8209
    %11073 = vmatprep.subr.bf16.mxu0 %v8218
    %11074 = vmatpush1.bf16.msra.mxu0 %v8217
    %11075 = vmatprep.subr.bf16.mxu0 %v8226
    %11076 = vmatpush1.bf16.msra.mxu0 %v8225
    %11077 = vmatprep.subr.bf16.mxu0 %v8234
    %11078 = vmatpush1.bf16.msra.mxu0 %v8233
    %11079 = vmatprep.subr.bf16.mxu0 %v8242
    %11080 = vmatpush1.bf16.msra.mxu0 %v8241
    %11081 = vmatprep.subr.bf16.mxu0 %v8250
    %11082 = vmatpush1.bf16.msra.mxu0 %v8249
    %11083 = vmatprep.subr.bf16.mxu0 %v8258
    %11084 = vmatpush1.bf16.msra.mxu0 %v8257
    %11085 = vmatprep.subr.bf16.mxu0 %v8266
    %11086 = vmatpush1.bf16.msra.mxu0 %v8265
    %11087 = vmatprep.subr.bf16.mxu0 %v8274
    %11088 = vmatpush1.bf16.msra.mxu0 %v8273
    %11089 = vmatprep.mubr.bf16.mxu0 %v4792
    %11090 = vmatmul.mubr.bf16.gmra.mrb[0].mxu0 %v4791
    %v11091 = vpop.f32.mrb[0].mxu0
    %v11092 = vadd.f32 %v11049, %v11091
    %v11093 = vpop.f32.mrb[0].mxu0
    %v11094 = vadd.f32 %v11051, %v11093
    %v11095 = vpop.f32.mrb[0].mxu0
    %v11096 = vadd.f32 %v11053, %v11095
    %v11097 = vpop.f32.mrb[0].mxu0
    %v11098 = vadd.f32 %v11055, %v11097
    %11099 = vdwg.mxu0
    %11100 = vmatprep.subr.bf16.mxu0 %v8282
    %11101 = vmatpush1.bf16.msra.mxu0 %v8281
    %11102 = vmatprep.subr.bf16.mxu0 %v8290
    %11103 = vmatpush1.bf16.msra.mxu0 %v8289
    %11104 = vmatprep.subr.bf16.mxu0 %v8298
    %11105 = vmatpush1.bf16.msra.mxu0 %v8297
    %11106 = vmatprep.subr.bf16.mxu0 %v8306
    %11107 = vmatpush1.bf16.msra.mxu0 %v8305
    %11108 = vmatprep.subr.bf16.mxu0 %v8314
    %11109 = vmatpush1.bf16.msra.mxu0 %v8313
    %11110 = vmatprep.subr.bf16.mxu0 %v8322
    %11111 = vmatpush1.bf16.msra.mxu0 %v8321
    %11112 = vmatprep.subr.bf16.mxu0 %v8330
    %11113 = vmatpush1.bf16.msra.mxu0 %v8329
    %11114 = vmatprep.subr.bf16.mxu0 %v8338
    %11115 = vmatpush1.bf16.msra.mxu0 %v8337
    %11116 = vmatprep.subr.bf16.mxu0 %v8346
    %11117 = vmatpush1.bf16.msra.mxu0 %v8345
    %11118 = vmatprep.subr.bf16.mxu0 %v8354
    %11119 = vmatpush1.bf16.msra.mxu0 %v8353
    %11120 = vmatprep.subr.bf16.mxu0 %v8362
    %11121 = vmatpush1.bf16.msra.mxu0 %v8361
    %11122 = vmatprep.subr.bf16.mxu0 %v8370
    %11123 = vmatpush1.bf16.msra.mxu0 %v8369
    %11124 = vmatprep.subr.bf16.mxu0 %v8378
    %11125 = vmatpush1.bf16.msra.mxu0 %v8377
    %11126 = vmatprep.subr.bf16.mxu0 %v8386
    %11127 = vmatpush1.bf16.msra.mxu0 %v8385
    %11128 = vmatprep.subr.bf16.mxu0 %v8394
    %11129 = vmatpush1.bf16.msra.mxu0 %v8393
    %11130 = vmatprep.subr.bf16.mxu0 %v8402
    %11131 = vmatpush1.bf16.msra.mxu0 %v8401
    %11132 = vmatprep.mubr.bf16.mxu0 %v4794
    %11133 = vmatmul.mubr.bf16.gmra.mrb[0].mxu0 %v4793
    %v11134 = vpop.f32.mrb[0].mxu0
    %v11135 = vadd.f32 %v11092, %v11134
    %v11136 = vpop.f32.mrb[0].mxu0
    %v11137 = vadd.f32 %v11094, %v11136
    %v11138 = vpop.f32.mrb[0].mxu0
    %v11139 = vadd.f32 %v11096, %v11138
    %v11140 = vpop.f32.mrb[0].mxu0
    %v11141 = vadd.f32 %v11098, %v11140
    %11142 = vdwg.mxu0
    %11143 = vmatprep.subr.bf16.mxu0 %v8410
    %11144 = vmatpush1.bf16.msra.mxu0 %v8409
    %11145 = vmatprep.subr.bf16.mxu0 %v8418
    %11146 = vmatpush1.bf16.msra.mxu0 %v8417
    %11147 = vmatprep.subr.bf16.mxu0 %v8426
    %11148 = vmatpush1.bf16.msra.mxu0 %v8425
    %11149 = vmatprep.subr.bf16.mxu0 %v8434
    %11150 = vmatpush1.bf16.msra.mxu0 %v8433
    %11151 = vmatprep.subr.bf16.mxu0 %v8442
    %11152 = vmatpush1.bf16.msra.mxu0 %v8441
    %11153 = vmatprep.subr.bf16.mxu0 %v8450
    %11154 = vmatpush1.bf16.msra.mxu0 %v8449
    %11155 = vmatprep.subr.bf16.mxu0 %v8458
    %11156 = vmatpush1.bf16.msra.mxu0 %v8457
    %11157 = vmatprep.subr.bf16.mxu0 %v8466
    %11158 = vmatpush1.bf16.msra.mxu0 %v8465
    %11159 = vmatprep.subr.bf16.mxu0 %v8474
    %11160 = vmatpush1.bf16.msra.mxu0 %v8473
    %11161 = vmatprep.subr.bf16.mxu0 %v8482
    %11162 = vmatpush1.bf16.msra.mxu0 %v8481
    %11163 = vmatprep.subr.bf16.mxu0 %v8490
    %11164 = vmatpush1.bf16.msra.mxu0 %v8489
    %11165 = vmatprep.subr.bf16.mxu0 %v8498
    %11166 = vmatpush1.bf16.msra.mxu0 %v8497
    %11167 = vmatprep.subr.bf16.mxu0 %v8506
    %11168 = vmatpush1.bf16.msra.mxu0 %v8505
    %11169 = vmatprep.subr.bf16.mxu0 %v8514
    %11170 = vmatpush1.bf16.msra.mxu0 %v8513
    %11171 = vmatprep.subr.bf16.mxu0 %v8522
    %11172 = vmatpush1.bf16.msra.mxu0 %v8521
    %11173 = vmatprep.subr.bf16.mxu0 %v8530
    %11174 = vmatpush1.bf16.msra.mxu0 %v8529
    %11175 = vmatprep.mubr.bf16.mxu0 %v4796
    %11176 = vmatmul.mubr.bf16.gmra.mrb[0].mxu0 %v4795
    %v11177 = vpop.f32.mrb[0].mxu0
    %v11178 = vadd.f32 %v11135, %v11177
    %v11179 = vpop.f32.mrb[0].mxu0
    %v11180 = vadd.f32 %v11137, %v11179
    %v11181 = vpop.f32.mrb[0].mxu0
    %v11182 = vadd.f32 %v11139, %v11181
    %v11183 = vpop.f32.mrb[0].mxu0
    %v11184 = vadd.f32 %v11141, %v11183
    %11185 = vdwg.mxu0
    %11186 = vmatprep.subr.bf16.mxu0 %v8538
    %11187 = vmatpush1.bf16.msra.mxu0 %v8537
    %11188 = vmatprep.subr.bf16.mxu0 %v8546
    %11189 = vmatpush1.bf16.msra.mxu0 %v8545
    %11190 = vmatprep.subr.bf16.mxu0 %v8554
    %11191 = vmatpush1.bf16.msra.mxu0 %v8553
    %11192 = vmatprep.subr.bf16.mxu0 %v8562
    %11193 = vmatpush1.bf16.msra.mxu0 %v8561
    %11194 = vmatprep.subr.bf16.mxu0 %v8570
    %11195 = vmatpush1.bf16.msra.mxu0 %v8569
    %11196 = vmatprep.subr.bf16.mxu0 %v8578
    %11197 = vmatpush1.bf16.msra.mxu0 %v8577
    %11198 = vmatprep.subr.bf16.mxu0 %v8586
    %11199 = vmatpush1.bf16.msra.mxu0 %v8585
    %11200 = vmatprep.subr.bf16.mxu0 %v8594
    %11201 = vmatpush1.bf16.msra.mxu0 %v8593
    %11202 = vmatprep.subr.bf16.mxu0 %v8602
    %11203 = vmatpush1.bf16.msra.mxu0 %v8601
    %11204 = vmatprep.subr.bf16.mxu0 %v8610
    %11205 = vmatpush1.bf16.msra.mxu0 %v8609
    %11206 = vmatprep.subr.bf16.mxu0 %v8618
    %11207 = vmatpush1.bf16.msra.mxu0 %v8617
    %11208 = vmatprep.subr.bf16.mxu0 %v8626
    %11209 = vmatpush1.bf16.msra.mxu0 %v8625
    %11210 = vmatprep.subr.bf16.mxu0 %v8634
    %11211 = vmatpush1.bf16.msra.mxu0 %v8633
    %11212 = vmatprep.subr.bf16.mxu0 %v8642
    %11213 = vmatpush1.bf16.msra.mxu0 %v8641
    %11214 = vmatprep.subr.bf16.mxu0 %v8650
    %11215 = vmatpush1.bf16.msra.mxu0 %v8649
    %11216 = vmatprep.subr.bf16.mxu0 %v8658
    %11217 = vmatpush1.bf16.msra.mxu0 %v8657
    %11218 = vmatprep.mubr.bf16.mxu0 %v4798
    %11219 = vmatmul.mubr.bf16.gmra.mrb[0].mxu0 %v4797
    %v11220 = vpop.f32.mrb[0].mxu0
    %v11221 = vadd.f32 %v11178, %v11220
    %v11222 = vpop.f32.mrb[0].mxu0
    %v11223 = vadd.f32 %v11180, %v11222
    %v11224 = vpop.f32.mrb[0].mxu0
    %v11225 = vadd.f32 %v11182, %v11224
    %v11226 = vpop.f32.mrb[0].mxu0
    %v11227 = vadd.f32 %v11184, %v11226
    %11228 = vdwg.mxu0
    %11229 = vmatprep.subr.bf16.mxu0 %v8666
    %11230 = vmatpush1.bf16.msra.mxu0 %v8665
    %11231 = vmatprep.subr.bf16.mxu0 %v8674
    %11232 = vmatpush1.bf16.msra.mxu0 %v8673
    %11233 = vmatprep.subr.bf16.mxu0 %v8682
    %11234 = vmatpush1.bf16.msra.mxu0 %v8681
    %11235 = vmatprep.subr.bf16.mxu0 %v8690
    %11236 = vmatpush1.bf16.msra.mxu0 %v8689
    %11237 = vmatprep.subr.bf16.mxu0 %v8698
    %11238 = vmatpush1.bf16.msra.mxu0 %v8697
    %11239 = vmatprep.subr.bf16.mxu0 %v8706
    %11240 = vmatpush1.bf16.msra.mxu0 %v8705
    %11241 = vmatprep.subr.bf16.mxu0 %v8714
    %11242 = vmatpush1.bf16.msra.mxu0 %v8713
    %11243 = vmatprep.subr.bf16.mxu0 %v8722
    %11244 = vmatpush1.bf16.msra.mxu0 %v8721
    %11245 = vmatprep.subr.bf16.mxu0 %v8730
    %11246 = vmatpush1.bf16.msra.mxu0 %v8729
    %11247 = vmatprep.subr.bf16.mxu0 %v8738
    %11248 = vmatpush1.bf16.msra.mxu0 %v8737
    %11249 = vmatprep.subr.bf16.mxu0 %v8746
    %11250 = vmatpush1.bf16.msra.mxu0 %v8745
    %11251 = vmatprep.subr.bf16.mxu0 %v8754
    %11252 = vmatpush1.bf16.msra.mxu0 %v8753
    %11253 = vmatprep.subr.bf16.mxu0 %v8762
    %11254 = vmatpush1.bf16.msra.mxu0 %v8761
    %11255 = vmatprep.subr.bf16.mxu0 %v8770
    %11256 = vmatpush1.bf16.msra.mxu0 %v8769
    %11257 = vmatprep.subr.bf16.mxu0 %v8778
    %11258 = vmatpush1.bf16.msra.mxu0 %v8777
    %11259 = vmatprep.subr.bf16.mxu0 %v8786
    %11260 = vmatpush1.bf16.msra.mxu0 %v8785
    %11261 = vmatprep.mubr.bf16.mxu0 %v4800
    %11262 = vmatmul.mubr.bf16.gmra.mrb[0].mxu0 %v4799
    %v11263 = vpop.f32.mrb[0].mxu0
    %v11264 = vadd.f32 %v11221, %v11263
    %v11265 = vpop.f32.mrb[0].mxu0
    %v11266 = vadd.f32 %v11223, %v11265
    %v11267 = vpop.f32.mrb[0].mxu0
    %v11268 = vadd.f32 %v11225, %v11267
    %v11269 = vpop.f32.mrb[0].mxu0
    %v11270 = vadd.f32 %v11227, %v11269
    %11271 = vdwg.mxu0
    %11272 = vmatprep.subr.bf16.mxu0 %v8794
    %11273 = vmatpush1.bf16.msra.mxu0 %v8793
    %11274 = vmatprep.subr.bf16.mxu0 %v8802
    %11275 = vmatpush1.bf16.msra.mxu0 %v8801
    %11276 = vmatprep.subr.bf16.mxu0 %v8810
    %11277 = vmatpush1.bf16.msra.mxu0 %v8809
    %11278 = vmatprep.subr.bf16.mxu0 %v8818
    %11279 = vmatpush1.bf16.msra.mxu0 %v8817
    %11280 = vmatprep.subr.bf16.mxu0 %v8826
    %11281 = vmatpush1.bf16.msra.mxu0 %v8825
    %11282 = vmatprep.subr.bf16.mxu0 %v8834
    %11283 = vmatpush1.bf16.msra.mxu0 %v8833
    %11284 = vmatprep.subr.bf16.mxu0 %v8842
    %11285 = vmatpush1.bf16.msra.mxu0 %v8841
    %11286 = vmatprep.subr.bf16.mxu0 %v8850
    %11287 = vmatpush1.bf16.msra.mxu0 %v8849
    %11288 = vmatprep.subr.bf16.mxu0 %v8858
    %11289 = vmatpush1.bf16.msra.mxu0 %v8857
    %11290 = vmatprep.subr.bf16.mxu0 %v8866
    %11291 = vmatpush1.bf16.msra.mxu0 %v8865
    %11292 = vmatprep.subr.bf16.mxu0 %v8874
    %11293 = vmatpush1.bf16.msra.mxu0 %v8873
    %11294 = vmatprep.subr.bf16.mxu0 %v8882
    %11295 = vmatpush1.bf16.msra.mxu0 %v8881
    %11296 = vmatprep.subr.bf16.mxu0 %v8890
    %11297 = vmatpush1.bf16.msra.mxu0 %v8889
    %11298 = vmatprep.subr.bf16.mxu0 %v8898
    %11299 = vmatpush1.bf16.msra.mxu0 %v8897
    %11300 = vmatprep.subr.bf16.mxu0 %v8906
    %11301 = vmatpush1.bf16.msra.mxu0 %v8905
    %11302 = vmatprep.subr.bf16.mxu0 %v8914
    %11303 = vmatpush1.bf16.msra.mxu0 %v8913
    %11304 = vmatprep.mubr.bf16.mxu0 %v4802
    %11305 = vmatmul.mubr.bf16.gmra.mrb[0].mxu0 %v4801
    %v11306 = vpop.f32.mrb[0].mxu0
    %v11307 = vadd.f32 %v11264, %v11306
    %v11308 = vpop.f32.mrb[0].mxu0
    %v11309 = vadd.f32 %v11266, %v11308
    %v11310 = vpop.f32.mrb[0].mxu0
    %v11311 = vadd.f32 %v11268, %v11310
    %v11312 = vpop.f32.mrb[0].mxu0
    %v11313 = vadd.f32 %v11270, %v11312
    %11314 = vdwg.mxu0
    %v11315 = vmax.f32 %v10275, 0.0
    %v11316 = vmax.f32 %v10277, 0.0
    %v11317 = vmax.f32 %v10619, 0.0
    %v11318 = vmax.f32 %v10621, 0.0
    %v11319 = vmax.f32 %v10963, 0.0
    %v11320 = vmax.f32 %v10965, 0.0
    %v11321 = vmax.f32 %v11307, 0.0
    %v11322 = vmax.f32 %v11309, 0.0
    %v11323 = vmax.f32 %v10279, 0.0
    %v11324 = vmax.f32 %v10281, 0.0
    %v11325 = vmax.f32 %v10623, 0.0
    %v11326 = vmax.f32 %v10625, 0.0
    %v11327 = vmax.f32 %v10967, 0.0
    %v11328 = vmax.f32 %v10969, 0.0
    %v11329 = vmax.f32 %v11311, 0.0
    %v11330 = vmax.f32 %v11313, 0.0
    %v11331 = vpack.c.bf16 %v11323, %v11315
    %v11332 = vpack.c.bf16 %v11324, %v11316
    %v11333 = vpack.c.bf16 %v11325, %v11317
    %v11334 = vpack.c.bf16 %v11326, %v11318
    %v11335 = vpack.c.bf16 %v11327, %v11319
    %v11336 = vpack.c.bf16 %v11328, %v11320
    %v11337 = vpack.c.bf16 %v11329, %v11321
    %v11338 = vpack.c.bf16 %v11330, %v11322
    %v11339 = vld [vmem:[#allocation7] sm:$0xff]
    %v11340 = vld [vmem:[#allocation7 + $0x8] sm:$0xff]
    %v11341 = vld [vmem:[#allocation7 + $0x10] sm:$0xff]
    %v11342 = vld [vmem:[#allocation7 + $0x18] sm:$0xff]
    %v11343 = vld [vmem:[#allocation7 + $0x20] sm:$0xff]
    %v11344 = vld [vmem:[#allocation7 + $0x28] sm:$0xff]
    %v11345 = vld [vmem:[#allocation7 + $0x30] sm:$0xff]
    %v11346 = vld [vmem:[#allocation7 + $0x38] sm:$0xff]
    %v11347 = vld [vmem:[#allocation7 + $0x40] sm:$0xff]
    %v11348 = vld [vmem:[#allocation7 + $0x48] sm:$0xff]
    %v11349 = vld [vmem:[#allocation7 + $0x50] sm:$0xff]
    %v11350 = vld [vmem:[#allocation7 + $0x58] sm:$0xff]
    %v11351 = vld [vmem:[#allocation7 + $0x60] sm:$0xff]
    %v11352 = vld [vmem:[#allocation7 + $0x68] sm:$0xff]
    %v11353 = vld [vmem:[#allocation7 + $0x70] sm:$0xff]
    %v11354 = vld [vmem:[#allocation7 + $0x78] sm:$0xff]
    %v11355 = vld [vmem:[#allocation7 + $0x80] sm:$0xff]
    %v11356 = vld [vmem:[#allocation7 + $0x88] sm:$0xff]
    %v11357 = vld [vmem:[#allocation7 + $0x90] sm:$0xff]
    %v11358 = vld [vmem:[#allocation7 + $0x98] sm:$0xff]
    %v11359 = vld [vmem:[#allocation7 + $0xa0] sm:$0xff]
    %v11360 = vld [vmem:[#allocation7 + $0xa8] sm:$0xff]
    %v11361 = vld [vmem:[#allocation7 + $0xb0] sm:$0xff]
    %v11362 = vld [vmem:[#allocation7 + $0xb8] sm:$0xff]
    %v11363 = vld [vmem:[#allocation7 + $0xc0] sm:$0xff]
    %v11364 = vld [vmem:[#allocation7 + $0xc8] sm:$0xff]
    %v11365 = vld [vmem:[#allocation7 + $0xd0] sm:$0xff]
    %v11366 = vld [vmem:[#allocation7 + $0xd8] sm:$0xff]
    %v11367 = vld [vmem:[#allocation7 + $0xe0] sm:$0xff]
    %v11368 = vld [vmem:[#allocation7 + $0xe8] sm:$0xff]
    %v11369 = vld [vmem:[#allocation7 + $0xf0] sm:$0xff]
    %v11370 = vld [vmem:[#allocation7 + $0xf8] sm:$0xff]
    %v11371 = vld [vmem:[#allocation7 + $0x100] sm:$0xff]
    %v11372 = vld [vmem:[#allocation7 + $0x108] sm:$0xff]
    %v11373 = vld [vmem:[#allocation7 + $0x110] sm:$0xff]
    %v11374 = vld [vmem:[#allocation7 + $0x118] sm:$0xff]
    %v11375 = vld [vmem:[#allocation7 + $0x120] sm:$0xff]
    %v11376 = vld [vmem:[#allocation7 + $0x128] sm:$0xff]
    %v11377 = vld [vmem:[#allocation7 + $0x130] sm:$0xff]
    %v11378 = vld [vmem:[#allocation7 + $0x138] sm:$0xff]
    %v11379 = vld [vmem:[#allocation7 + $0x140] sm:$0xff]
    %v11380 = vld [vmem:[#allocation7 + $0x148] sm:$0xff]
    %v11381 = vld [vmem:[#allocation7 + $0x150] sm:$0xff]
    %v11382 = vld [vmem:[#allocation7 + $0x158] sm:$0xff]
    %v11383 = vld [vmem:[#allocation7 + $0x160] sm:$0xff]
    %v11384 = vld [vmem:[#allocation7 + $0x168] sm:$0xff]
    %v11385 = vld [vmem:[#allocation7 + $0x170] sm:$0xff]
    %v11386 = vld [vmem:[#allocation7 + $0x178] sm:$0xff]
    %v11387 = vld [vmem:[#allocation7 + $0x180] sm:$0xff]
    %v11388 = vld [vmem:[#allocation7 + $0x188] sm:$0xff]
    %v11389 = vld [vmem:[#allocation7 + $0x190] sm:$0xff]
    %v11390 = vld [vmem:[#allocation7 + $0x198] sm:$0xff]
    %v11391 = vld [vmem:[#allocation7 + $0x1a0] sm:$0xff]
    %v11392 = vld [vmem:[#allocation7 + $0x1a8] sm:$0xff]
    %v11393 = vld [vmem:[#allocation7 + $0x1b0] sm:$0xff]
    %v11394 = vld [vmem:[#allocation7 + $0x1b8] sm:$0xff]
    %v11395 = vld [vmem:[#allocation7 + $0x1c0] sm:$0xff]
    %v11396 = vld [vmem:[#allocation7 + $0x1c8] sm:$0xff]
    %v11397 = vld [vmem:[#allocation7 + $0x1d0] sm:$0xff]
    %v11398 = vld [vmem:[#allocation7 + $0x1d8] sm:$0xff]
    %v11399 = vld [vmem:[#allocation7 + $0x1e0] sm:$0xff]
    %v11400 = vld [vmem:[#allocation7 + $0x1e8] sm:$0xff]
    %v11401 = vld [vmem:[#allocation7 + $0x1f0] sm:$0xff]
    %v11402 = vld [vmem:[#allocation7 + $0x1f8] sm:$0xff]
    %v11403 = vld [vmem:[#allocation7 + $0x200] sm:$0xff]
    %v11404 = vld [vmem:[#allocation7 + $0x208] sm:$0xff]
    %v11405 = vld [vmem:[#allocation7 + $0x210] sm:$0xff]
    %v11406 = vld [vmem:[#allocation7 + $0x218] sm:$0xff]
    %v11407 = vld [vmem:[#allocation7 + $0x220] sm:$0xff]
    %v11408 = vld [vmem:[#allocation7 + $0x228] sm:$0xff]
    %v11409 = vld [vmem:[#allocation7 + $0x230] sm:$0xff]
    %v11410 = vld [vmem:[#allocation7 + $0x238] sm:$0xff]
    %v11411 = vld [vmem:[#allocation7 + $0x240] sm:$0xff]
    %v11412 = vld [vmem:[#allocation7 + $0x248] sm:$0xff]
    %v11413 = vld [vmem:[#allocation7 + $0x250] sm:$0xff]
    %v11414 = vld [vmem:[#allocation7 + $0x258] sm:$0xff]
    %v11415 = vld [vmem:[#allocation7 + $0x260] sm:$0xff]
    %v11416 = vld [vmem:[#allocation7 + $0x268] sm:$0xff]
    %v11417 = vld [vmem:[#allocation7 + $0x270] sm:$0xff]
    %v11418 = vld [vmem:[#allocation7 + $0x278] sm:$0xff]
    %v11419 = vld [vmem:[#allocation7 + $0x280] sm:$0xff]
    %v11420 = vld [vmem:[#allocation7 + $0x288] sm:$0xff]
    %v11421 = vld [vmem:[#allocation7 + $0x290] sm:$0xff]
    %v11422 = vld [vmem:[#allocation7 + $0x298] sm:$0xff]
    %v11423 = vld [vmem:[#allocation7 + $0x2a0] sm:$0xff]
    %v11424 = vld [vmem:[#allocation7 + $0x2a8] sm:$0xff]
    %v11425 = vld [vmem:[#allocation7 + $0x2b0] sm:$0xff]
    %v11426 = vld [vmem:[#allocation7 + $0x2b8] sm:$0xff]
    %v11427 = vld [vmem:[#allocation7 + $0x2c0] sm:$0xff]
    %v11428 = vld [vmem:[#allocation7 + $0x2c8] sm:$0xff]
    %v11429 = vld [vmem:[#allocation7 + $0x2d0] sm:$0xff]
    %v11430 = vld [vmem:[#allocation7 + $0x2d8] sm:$0xff]
    %v11431 = vld [vmem:[#allocation7 + $0x2e0] sm:$0xff]
    %v11432 = vld [vmem:[#allocation7 + $0x2e8] sm:$0xff]
    %v11433 = vld [vmem:[#allocation7 + $0x2f0] sm:$0xff]
    %v11434 = vld [vmem:[#allocation7 + $0x2f8] sm:$0xff]
    %v11435 = vld [vmem:[#allocation7 + $0x300] sm:$0xff]
    %v11436 = vld [vmem:[#allocation7 + $0x308] sm:$0xff]
    %v11437 = vld [vmem:[#allocation7 + $0x310] sm:$0xff]
    %v11438 = vld [vmem:[#allocation7 + $0x318] sm:$0xff]
    %v11439 = vld [vmem:[#allocation7 + $0x320] sm:$0xff]
    %v11440 = vld [vmem:[#allocation7 + $0x328] sm:$0xff]
    %v11441 = vld [vmem:[#allocation7 + $0x330] sm:$0xff]
    %v11442 = vld [vmem:[#allocation7 + $0x338] sm:$0xff]
    %v11443 = vld [vmem:[#allocation7 + $0x340] sm:$0xff]
    %v11444 = vld [vmem:[#allocation7 + $0x348] sm:$0xff]
    %v11445 = vld [vmem:[#allocation7 + $0x350] sm:$0xff]
    %v11446 = vld [vmem:[#allocation7 + $0x358] sm:$0xff]
    %v11447 = vld [vmem:[#allocation7 + $0x360] sm:$0xff]
    %v11448 = vld [vmem:[#allocation7 + $0x368] sm:$0xff]
    %v11449 = vld [vmem:[#allocation7 + $0x370] sm:$0xff]
    %v11450 = vld [vmem:[#allocation7 + $0x378] sm:$0xff]
    %v11451 = vld [vmem:[#allocation7 + $0x380] sm:$0xff]
    %v11452 = vld [vmem:[#allocation7 + $0x388] sm:$0xff]
    %v11453 = vld [vmem:[#allocation7 + $0x390] sm:$0xff]
    %v11454 = vld [vmem:[#allocation7 + $0x398] sm:$0xff]
    %v11455 = vld [vmem:[#allocation7 + $0x3a0] sm:$0xff]
    %v11456 = vld [vmem:[#allocation7 + $0x3a8] sm:$0xff]
    %v11457 = vld [vmem:[#allocation7 + $0x3b0] sm:$0xff]
    %v11458 = vld [vmem:[#allocation7 + $0x3b8] sm:$0xff]
    %v11459 = vld [vmem:[#allocation7 + $0x3c0] sm:$0xff]
    %v11460 = vld [vmem:[#allocation7 + $0x3c8] sm:$0xff]
    %v11461 = vld [vmem:[#allocation7 + $0x3d0] sm:$0xff]
    %v11462 = vld [vmem:[#allocation7 + $0x3d8] sm:$0xff]
    %v11463 = vld [vmem:[#allocation7 + $0x3e0] sm:$0xff]
    %v11464 = vld [vmem:[#allocation7 + $0x3e8] sm:$0xff]
    %v11465 = vld [vmem:[#allocation7 + $0x3f0] sm:$0xff]
    %v11466 = vld [vmem:[#allocation7 + $0x3f8] sm:$0xff]
    %v11467 = vld [vmem:[#allocation7 + $0x400] sm:$0xff]
    %v11468 = vld [vmem:[#allocation7 + $0x408] sm:$0xff]
    %v11469 = vld [vmem:[#allocation7 + $0x410] sm:$0xff]
    %v11470 = vld [vmem:[#allocation7 + $0x418] sm:$0xff]
    %v11471 = vld [vmem:[#allocation7 + $0x420] sm:$0xff]
    %v11472 = vld [vmem:[#allocation7 + $0x428] sm:$0xff]
    %v11473 = vld [vmem:[#allocation7 + $0x430] sm:$0xff]
    %v11474 = vld [vmem:[#allocation7 + $0x438] sm:$0xff]
    %v11475 = vld [vmem:[#allocation7 + $0x440] sm:$0xff]
    %v11476 = vld [vmem:[#allocation7 + $0x448] sm:$0xff]
    %v11477 = vld [vmem:[#allocation7 + $0x450] sm:$0xff]
    %v11478 = vld [vmem:[#allocation7 + $0x458] sm:$0xff]
    %v11479 = vld [vmem:[#allocation7 + $0x460] sm:$0xff]
    %v11480 = vld [vmem:[#allocation7 + $0x468] sm:$0xff]
    %v11481 = vld [vmem:[#allocation7 + $0x470] sm:$0xff]
    %v11482 = vld [vmem:[#allocation7 + $0x478] sm:$0xff]
    %v11483 = vld [vmem:[#allocation7 + $0x480] sm:$0xff]
    %v11484 = vld [vmem:[#allocation7 + $0x488] sm:$0xff]
    %v11485 = vld [vmem:[#allocation7 + $0x490] sm:$0xff]
    %v11486 = vld [vmem:[#allocation7 + $0x498] sm:$0xff]
    %v11487 = vld [vmem:[#allocation7 + $0x4a0] sm:$0xff]
    %v11488 = vld [vmem:[#allocation7 + $0x4a8] sm:$0xff]
    %v11489 = vld [vmem:[#allocation7 + $0x4b0] sm:$0xff]
    %v11490 = vld [vmem:[#allocation7 + $0x4b8] sm:$0xff]
    %v11491 = vld [vmem:[#allocation7 + $0x4c0] sm:$0xff]
    %v11492 = vld [vmem:[#allocation7 + $0x4c8] sm:$0xff]
    %v11493 = vld [vmem:[#allocation7 + $0x4d0] sm:$0xff]
    %v11494 = vld [vmem:[#allocation7 + $0x4d8] sm:$0xff]
    %v11495 = vld [vmem:[#allocation7 + $0x4e0] sm:$0xff]
    %v11496 = vld [vmem:[#allocation7 + $0x4e8] sm:$0xff]
    %v11497 = vld [vmem:[#allocation7 + $0x4f0] sm:$0xff]
    %v11498 = vld [vmem:[#allocation7 + $0x4f8] sm:$0xff]
    %v11499 = vld [vmem:[#allocation7 + $0x500] sm:$0xff]
    %v11500 = vld [vmem:[#allocation7 + $0x508] sm:$0xff]
    %v11501 = vld [vmem:[#allocation7 + $0x510] sm:$0xff]
    %v11502 = vld [vmem:[#allocation7 + $0x518] sm:$0xff]
    %v11503 = vld [vmem:[#allocation7 + $0x520] sm:$0xff]
    %v11504 = vld [vmem:[#allocation7 + $0x528] sm:$0xff]
    %v11505 = vld [vmem:[#allocation7 + $0x530] sm:$0xff]
    %v11506 = vld [vmem:[#allocation7 + $0x538] sm:$0xff]
    %v11507 = vld [vmem:[#allocation7 + $0x540] sm:$0xff]
    %v11508 = vld [vmem:[#allocation7 + $0x548] sm:$0xff]
    %v11509 = vld [vmem:[#allocation7 + $0x550] sm:$0xff]
    %v11510 = vld [vmem:[#allocation7 + $0x558] sm:$0xff]
    %v11511 = vld [vmem:[#allocation7 + $0x560] sm:$0xff]
    %v11512 = vld [vmem:[#allocation7 + $0x568] sm:$0xff]
    %v11513 = vld [vmem:[#allocation7 + $0x570] sm:$0xff]
    %v11514 = vld [vmem:[#allocation7 + $0x578] sm:$0xff]
    %v11515 = vld [vmem:[#allocation7 + $0x580] sm:$0xff]
    %v11516 = vld [vmem:[#allocation7 + $0x588] sm:$0xff]
    %v11517 = vld [vmem:[#allocation7 + $0x590] sm:$0xff]
    %v11518 = vld [vmem:[#allocation7 + $0x598] sm:$0xff]
    %v11519 = vld [vmem:[#allocation7 + $0x5a0] sm:$0xff]
    %v11520 = vld [vmem:[#allocation7 + $0x5a8] sm:$0xff]
    %v11521 = vld [vmem:[#allocation7 + $0x5b0] sm:$0xff]
    %v11522 = vld [vmem:[#allocation7 + $0x5b8] sm:$0xff]
    %v11523 = vld [vmem:[#allocation7 + $0x5c0] sm:$0xff]
    %v11524 = vld [vmem:[#allocation7 + $0x5c8] sm:$0xff]
    %v11525 = vld [vmem:[#allocation7 + $0x5d0] sm:$0xff]
    %v11526 = vld [vmem:[#allocation7 + $0x5d8] sm:$0xff]
    %v11527 = vld [vmem:[#allocation7 + $0x5e0] sm:$0xff]
    %v11528 = vld [vmem:[#allocation7 + $0x5e8] sm:$0xff]
    %v11529 = vld [vmem:[#allocation7 + $0x5f0] sm:$0xff]
    %v11530 = vld [vmem:[#allocation7 + $0x5f8] sm:$0xff]
    %v11531 = vld [vmem:[#allocation7 + $0x600] sm:$0xff]
    %v11532 = vld [vmem:[#allocation7 + $0x608] sm:$0xff]
    %v11533 = vld [vmem:[#allocation7 + $0x610] sm:$0xff]
    %v11534 = vld [vmem:[#allocation7 + $0x618] sm:$0xff]
    %v11535 = vld [vmem:[#allocation7 + $0x620] sm:$0xff]
    %v11536 = vld [vmem:[#allocation7 + $0x628] sm:$0xff]
    %v11537 = vld [vmem:[#allocation7 + $0x630] sm:$0xff]
    %v11538 = vld [vmem:[#allocation7 + $0x638] sm:$0xff]
    %v11539 = vld [vmem:[#allocation7 + $0x640] sm:$0xff]
    %v11540 = vld [vmem:[#allocation7 + $0x648] sm:$0xff]
    %v11541 = vld [vmem:[#allocation7 + $0x650] sm:$0xff]
    %v11542 = vld [vmem:[#allocation7 + $0x658] sm:$0xff]
    %v11543 = vld [vmem:[#allocation7 + $0x660] sm:$0xff]
    %v11544 = vld [vmem:[#allocation7 + $0x668] sm:$0xff]
    %v11545 = vld [vmem:[#allocation7 + $0x670] sm:$0xff]
    %v11546 = vld [vmem:[#allocation7 + $0x678] sm:$0xff]
    %v11547 = vld [vmem:[#allocation7 + $0x680] sm:$0xff]
    %v11548 = vld [vmem:[#allocation7 + $0x688] sm:$0xff]
    %v11549 = vld [vmem:[#allocation7 + $0x690] sm:$0xff]
    %v11550 = vld [vmem:[#allocation7 + $0x698] sm:$0xff]
    %v11551 = vld [vmem:[#allocation7 + $0x6a0] sm:$0xff]
    %v11552 = vld [vmem:[#allocation7 + $0x6a8] sm:$0xff]
    %v11553 = vld [vmem:[#allocation7 + $0x6b0] sm:$0xff]
    %v11554 = vld [vmem:[#allocation7 + $0x6b8] sm:$0xff]
    %v11555 = vld [vmem:[#allocation7 + $0x6c0] sm:$0xff]
    %v11556 = vld [vmem:[#allocation7 + $0x6c8] sm:$0xff]
    %v11557 = vld [vmem:[#allocation7 + $0x6d0] sm:$0xff]
    %v11558 = vld [vmem:[#allocation7 + $0x6d8] sm:$0xff]
    %v11559 = vld [vmem:[#allocation7 + $0x6e0] sm:$0xff]
    %v11560 = vld [vmem:[#allocation7 + $0x6e8] sm:$0xff]
    %v11561 = vld [vmem:[#allocation7 + $0x6f0] sm:$0xff]
    %v11562 = vld [vmem:[#allocation7 + $0x6f8] sm:$0xff]
    %v11563 = vld [vmem:[#allocation7 + $0x700] sm:$0xff]
    %v11564 = vld [vmem:[#allocation7 + $0x708] sm:$0xff]
    %v11565 = vld [vmem:[#allocation7 + $0x710] sm:$0xff]
    %v11566 = vld [vmem:[#allocation7 + $0x718] sm:$0xff]
    %v11567 = vld [vmem:[#allocation7 + $0x720] sm:$0xff]
    %v11568 = vld [vmem:[#allocation7 + $0x728] sm:$0xff]
    %v11569 = vld [vmem:[#allocation7 + $0x730] sm:$0xff]
    %v11570 = vld [vmem:[#allocation7 + $0x738] sm:$0xff]
    %v11571 = vld [vmem:[#allocation7 + $0x740] sm:$0xff]
    %v11572 = vld [vmem:[#allocation7 + $0x748] sm:$0xff]
    %v11573 = vld [vmem:[#allocation7 + $0x750] sm:$0xff]
    %v11574 = vld [vmem:[#allocation7 + $0x758] sm:$0xff]
    %v11575 = vld [vmem:[#allocation7 + $0x760] sm:$0xff]
    %v11576 = vld [vmem:[#allocation7 + $0x768] sm:$0xff]
    %v11577 = vld [vmem:[#allocation7 + $0x770] sm:$0xff]
    %v11578 = vld [vmem:[#allocation7 + $0x778] sm:$0xff]
    %v11579 = vld [vmem:[#allocation7 + $0x780] sm:$0xff]
    %v11580 = vld [vmem:[#allocation7 + $0x788] sm:$0xff]
    %v11581 = vld [vmem:[#allocation7 + $0x790] sm:$0xff]
    %v11582 = vld [vmem:[#allocation7 + $0x798] sm:$0xff]
    %v11583 = vld [vmem:[#allocation7 + $0x7a0] sm:$0xff]
    %v11584 = vld [vmem:[#allocation7 + $0x7a8] sm:$0xff]
    %v11585 = vld [vmem:[#allocation7 + $0x7b0] sm:$0xff]
    %v11586 = vld [vmem:[#allocation7 + $0x7b8] sm:$0xff]
    %v11587 = vld [vmem:[#allocation7 + $0x7c0] sm:$0xff]
    %v11588 = vld [vmem:[#allocation7 + $0x7c8] sm:$0xff]
    %v11589 = vld [vmem:[#allocation7 + $0x7d0] sm:$0xff]
    %v11590 = vld [vmem:[#allocation7 + $0x7d8] sm:$0xff]
    %v11591 = vld [vmem:[#allocation7 + $0x7e0] sm:$0xff]
    %v11592 = vld [vmem:[#allocation7 + $0x7e8] sm:$0xff]
    %v11593 = vld [vmem:[#allocation7 + $0x7f0] sm:$0xff]
    %v11594 = vld [vmem:[#allocation7 + $0x7f8] sm:$0xff]
    %v11595 = vld [vmem:[#allocation9] sm:$0xf]
    %v11597 = vlaneseq
    %v11598 = vshrl.u32 %v11597, 7
    %v11599 = vsub.s32 0, %v11598
    %v11600 = vrot.slane %v11595, %v11599
    %v11601 = vlaneseq
    %v11602 = vshrl.u32 %v11601, 7
    %v11603 = vsub.s32 1, %v11602
    %v11604 = vrot.slane %v11595, %v11603
    %v11605 = vlaneseq
    %v11606 = vshrl.u32 %v11605, 7
    %v11607 = vsub.s32 2, %v11606
    %v11608 = vrot.slane %v11595, %v11607
    %v11609 = vlaneseq
    %v11610 = vshrl.u32 %v11609, 7
    %v11611 = vsub.s32 3, %v11610
    %v11612 = vrot.slane %v11595, %v11611
    %v11873 = vunpack.c.l.b16 %v11339
    %v11874 = vunpack.c.h.b16 %v11339
    %v11875 = vunpack.c.l.b16 %v11340
    %v11876 = vunpack.c.h.b16 %v11340
    %v11877 = vunpack.c.l.b16 %v11341
    %v11878 = vunpack.c.h.b16 %v11341
    %v11879 = vunpack.c.l.b16 %v11342
    %v11880 = vunpack.c.h.b16 %v11342
    %v11881 = vunpack.c.l.b16 %v11343
    %v11882 = vunpack.c.h.b16 %v11343
    %v11883 = vunpack.c.l.b16 %v11344
    %v11884 = vunpack.c.h.b16 %v11344
    %v11885 = vunpack.c.l.b16 %v11345
    %v11886 = vunpack.c.h.b16 %v11345
    %v11887 = vunpack.c.l.b16 %v11346
    %v11888 = vunpack.c.h.b16 %v11346
    %v11889 = vunpack.c.l.b16 %v11347
    %v11890 = vunpack.c.h.b16 %v11347
    %v11891 = vunpack.c.l.b16 %v11348
    %v11892 = vunpack.c.h.b16 %v11348
    %v11893 = vunpack.c.l.b16 %v11349
    %v11894 = vunpack.c.h.b16 %v11349
    %v11895 = vunpack.c.l.b16 %v11350
    %v11896 = vunpack.c.h.b16 %v11350
    %v11897 = vunpack.c.l.b16 %v11351
    %v11898 = vunpack.c.h.b16 %v11351
    %v11899 = vunpack.c.l.b16 %v11352
    %v11900 = vunpack.c.h.b16 %v11352
    %v11901 = vunpack.c.l.b16 %v11353
    %v11902 = vunpack.c.h.b16 %v11353
    %v11903 = vunpack.c.l.b16 %v11354
    %v11904 = vunpack.c.h.b16 %v11354
    %v11905 = vunpack.c.l.b16 %v11355
    %v11906 = vunpack.c.h.b16 %v11355
    %v11907 = vunpack.c.l.b16 %v11356
    %v11908 = vunpack.c.h.b16 %v11356
    %v11909 = vunpack.c.l.b16 %v11357
    %v11910 = vunpack.c.h.b16 %v11357
    %v11911 = vunpack.c.l.b16 %v11358
    %v11912 = vunpack.c.h.b16 %v11358
    %v11913 = vunpack.c.l.b16 %v11359
    %v11914 = vunpack.c.h.b16 %v11359
    %v11915 = vunpack.c.l.b16 %v11360
    %v11916 = vunpack.c.h.b16 %v11360
    %v11917 = vunpack.c.l.b16 %v11361
    %v11918 = vunpack.c.h.b16 %v11361
    %v11919 = vunpack.c.l.b16 %v11362
    %v11920 = vunpack.c.h.b16 %v11362
    %v11921 = vunpack.c.l.b16 %v11363
    %v11922 = vunpack.c.h.b16 %v11363
    %v11923 = vunpack.c.l.b16 %v11364
    %v11924 = vunpack.c.h.b16 %v11364
    %v11925 = vunpack.c.l.b16 %v11365
    %v11926 = vunpack.c.h.b16 %v11365
    %v11927 = vunpack.c.l.b16 %v11366
    %v11928 = vunpack.c.h.b16 %v11366
    %v11929 = vunpack.c.l.b16 %v11367
    %v11930 = vunpack.c.h.b16 %v11367
    %v11931 = vunpack.c.l.b16 %v11368
    %v11932 = vunpack.c.h.b16 %v11368
    %v11933 = vunpack.c.l.b16 %v11369
    %v11934 = vunpack.c.h.b16 %v11369
    %v11935 = vunpack.c.l.b16 %v11370
    %v11936 = vunpack.c.h.b16 %v11370
    %v11937 = vunpack.c.l.b16 %v11371
    %v11938 = vunpack.c.h.b16 %v11371
    %v11939 = vunpack.c.l.b16 %v11372
    %v11940 = vunpack.c.h.b16 %v11372
    %v11941 = vunpack.c.l.b16 %v11373
    %v11942 = vunpack.c.h.b16 %v11373
    %v11943 = vunpack.c.l.b16 %v11374
    %v11944 = vunpack.c.h.b16 %v11374
    %v11945 = vunpack.c.l.b16 %v11375
    %v11946 = vunpack.c.h.b16 %v11375
    %v11947 = vunpack.c.l.b16 %v11376
    %v11948 = vunpack.c.h.b16 %v11376
    %v11949 = vunpack.c.l.b16 %v11377
    %v11950 = vunpack.c.h.b16 %v11377
    %v11951 = vunpack.c.l.b16 %v11378
    %v11952 = vunpack.c.h.b16 %v11378
    %v11953 = vunpack.c.l.b16 %v11379
    %v11954 = vunpack.c.h.b16 %v11379
    %v11955 = vunpack.c.l.b16 %v11380
    %v11956 = vunpack.c.h.b16 %v11380
    %v11957 = vunpack.c.l.b16 %v11381
    %v11958 = vunpack.c.h.b16 %v11381
    %v11959 = vunpack.c.l.b16 %v11382
    %v11960 = vunpack.c.h.b16 %v11382
    %v11961 = vunpack.c.l.b16 %v11383
    %v11962 = vunpack.c.h.b16 %v11383
    %v11963 = vunpack.c.l.b16 %v11384
    %v11964 = vunpack.c.h.b16 %v11384
    %v11965 = vunpack.c.l.b16 %v11385
    %v11966 = vunpack.c.h.b16 %v11385
    %v11967 = vunpack.c.l.b16 %v11386
    %v11968 = vunpack.c.h.b16 %v11386
    %v11969 = vunpack.c.l.b16 %v11387
    %v11970 = vunpack.c.h.b16 %v11387
    %v11971 = vunpack.c.l.b16 %v11388
    %v11972 = vunpack.c.h.b16 %v11388
    %v11973 = vunpack.c.l.b16 %v11389
    %v11974 = vunpack.c.h.b16 %v11389
    %v11975 = vunpack.c.l.b16 %v11390
    %v11976 = vunpack.c.h.b16 %v11390
    %v11977 = vunpack.c.l.b16 %v11391
    %v11978 = vunpack.c.h.b16 %v11391
    %v11979 = vunpack.c.l.b16 %v11392
    %v11980 = vunpack.c.h.b16 %v11392
    %v11981 = vunpack.c.l.b16 %v11393
    %v11982 = vunpack.c.h.b16 %v11393
    %v11983 = vunpack.c.l.b16 %v11394
    %v11984 = vunpack.c.h.b16 %v11394
    %v11985 = vunpack.c.l.b16 %v11395
    %v11986 = vunpack.c.h.b16 %v11395
    %v11987 = vunpack.c.l.b16 %v11396
    %v11988 = vunpack.c.h.b16 %v11396
    %v11989 = vunpack.c.l.b16 %v11397
    %v11990 = vunpack.c.h.b16 %v11397
    %v11991 = vunpack.c.l.b16 %v11398
    %v11992 = vunpack.c.h.b16 %v11398
    %v11993 = vunpack.c.l.b16 %v11399
    %v11994 = vunpack.c.h.b16 %v11399
    %v11995 = vunpack.c.l.b16 %v11400
    %v11996 = vunpack.c.h.b16 %v11400
    %v11997 = vunpack.c.l.b16 %v11401
    %v11998 = vunpack.c.h.b16 %v11401
    %v11999 = vunpack.c.l.b16 %v11402
    %v12000 = vunpack.c.h.b16 %v11402
    %v12001 = vunpack.c.l.b16 %v11403
    %v12002 = vunpack.c.h.b16 %v11403
    %v12003 = vunpack.c.l.b16 %v11404
    %v12004 = vunpack.c.h.b16 %v11404
    %v12005 = vunpack.c.l.b16 %v11405
    %v12006 = vunpack.c.h.b16 %v11405
    %v12007 = vunpack.c.l.b16 %v11406
    %v12008 = vunpack.c.h.b16 %v11406
    %v12009 = vunpack.c.l.b16 %v11407
    %v12010 = vunpack.c.h.b16 %v11407
    %v12011 = vunpack.c.l.b16 %v11408
    %v12012 = vunpack.c.h.b16 %v11408
    %v12013 = vunpack.c.l.b16 %v11409
    %v12014 = vunpack.c.h.b16 %v11409
    %v12015 = vunpack.c.l.b16 %v11410
    %v12016 = vunpack.c.h.b16 %v11410
    %v12017 = vunpack.c.l.b16 %v11411
    %v12018 = vunpack.c.h.b16 %v11411
    %v12019 = vunpack.c.l.b16 %v11412
    %v12020 = vunpack.c.h.b16 %v11412
    %v12021 = vunpack.c.l.b16 %v11413
    %v12022 = vunpack.c.h.b16 %v11413
    %v12023 = vunpack.c.l.b16 %v11414
    %v12024 = vunpack.c.h.b16 %v11414
    %v12025 = vunpack.c.l.b16 %v11415
    %v12026 = vunpack.c.h.b16 %v11415
    %v12027 = vunpack.c.l.b16 %v11416
    %v12028 = vunpack.c.h.b16 %v11416
    %v12029 = vunpack.c.l.b16 %v11417
    %v12030 = vunpack.c.h.b16 %v11417
    %v12031 = vunpack.c.l.b16 %v11418
    %v12032 = vunpack.c.h.b16 %v11418
    %v12033 = vunpack.c.l.b16 %v11419
    %v12034 = vunpack.c.h.b16 %v11419
    %v12035 = vunpack.c.l.b16 %v11420
    %v12036 = vunpack.c.h.b16 %v11420
    %v12037 = vunpack.c.l.b16 %v11421
    %v12038 = vunpack.c.h.b16 %v11421
    %v12039 = vunpack.c.l.b16 %v11422
    %v12040 = vunpack.c.h.b16 %v11422
    %v12041 = vunpack.c.l.b16 %v11423
    %v12042 = vunpack.c.h.b16 %v11423
    %v12043 = vunpack.c.l.b16 %v11424
    %v12044 = vunpack.c.h.b16 %v11424
    %v12045 = vunpack.c.l.b16 %v11425
    %v12046 = vunpack.c.h.b16 %v11425
    %v12047 = vunpack.c.l.b16 %v11426
    %v12048 = vunpack.c.h.b16 %v11426
    %v12049 = vunpack.c.l.b16 %v11427
    %v12050 = vunpack.c.h.b16 %v11427
    %v12051 = vunpack.c.l.b16 %v11428
    %v12052 = vunpack.c.h.b16 %v11428
    %v12053 = vunpack.c.l.b16 %v11429
    %v12054 = vunpack.c.h.b16 %v11429
    %v12055 = vunpack.c.l.b16 %v11430
    %v12056 = vunpack.c.h.b16 %v11430
    %v12057 = vunpack.c.l.b16 %v11431
    %v12058 = vunpack.c.h.b16 %v11431
    %v12059 = vunpack.c.l.b16 %v11432
    %v12060 = vunpack.c.h.b16 %v11432
    %v12061 = vunpack.c.l.b16 %v11433
    %v12062 = vunpack.c.h.b16 %v11433
    %v12063 = vunpack.c.l.b16 %v11434
    %v12064 = vunpack.c.h.b16 %v11434
    %v12065 = vunpack.c.l.b16 %v11435
    %v12066 = vunpack.c.h.b16 %v11435
    %v12067 = vunpack.c.l.b16 %v11436
    %v12068 = vunpack.c.h.b16 %v11436
    %v12069 = vunpack.c.l.b16 %v11437
    %v12070 = vunpack.c.h.b16 %v11437
    %v12071 = vunpack.c.l.b16 %v11438
    %v12072 = vunpack.c.h.b16 %v11438
    %v12073 = vunpack.c.l.b16 %v11439
    %v12074 = vunpack.c.h.b16 %v11439
    %v12075 = vunpack.c.l.b16 %v11440
    %v12076 = vunpack.c.h.b16 %v11440
    %v12077 = vunpack.c.l.b16 %v11441
    %v12078 = vunpack.c.h.b16 %v11441
    %v12079 = vunpack.c.l.b16 %v11442
    %v12080 = vunpack.c.h.b16 %v11442
    %v12081 = vunpack.c.l.b16 %v11443
    %v12082 = vunpack.c.h.b16 %v11443
    %v12083 = vunpack.c.l.b16 %v11444
    %v12084 = vunpack.c.h.b16 %v11444
    %v12085 = vunpack.c.l.b16 %v11445
    %v12086 = vunpack.c.h.b16 %v11445
    %v12087 = vunpack.c.l.b16 %v11446
    %v12088 = vunpack.c.h.b16 %v11446
    %v12089 = vunpack.c.l.b16 %v11447
    %v12090 = vunpack.c.h.b16 %v11447
    %v12091 = vunpack.c.l.b16 %v11448
    %v12092 = vunpack.c.h.b16 %v11448
    %v12093 = vunpack.c.l.b16 %v11449
    %v12094 = vunpack.c.h.b16 %v11449
    %v12095 = vunpack.c.l.b16 %v11450
    %v12096 = vunpack.c.h.b16 %v11450
    %v12097 = vunpack.c.l.b16 %v11451
    %v12098 = vunpack.c.h.b16 %v11451
    %v12099 = vunpack.c.l.b16 %v11452
    %v12100 = vunpack.c.h.b16 %v11452
    %v12101 = vunpack.c.l.b16 %v11453
    %v12102 = vunpack.c.h.b16 %v11453
    %v12103 = vunpack.c.l.b16 %v11454
    %v12104 = vunpack.c.h.b16 %v11454
    %v12105 = vunpack.c.l.b16 %v11455
    %v12106 = vunpack.c.h.b16 %v11455
    %v12107 = vunpack.c.l.b16 %v11456
    %v12108 = vunpack.c.h.b16 %v11456
    %v12109 = vunpack.c.l.b16 %v11457
    %v12110 = vunpack.c.h.b16 %v11457
    %v12111 = vunpack.c.l.b16 %v11458
    %v12112 = vunpack.c.h.b16 %v11458
    %v12113 = vunpack.c.l.b16 %v11459
    %v12114 = vunpack.c.h.b16 %v11459
    %v12115 = vunpack.c.l.b16 %v11460
    %v12116 = vunpack.c.h.b16 %v11460
    %v12117 = vunpack.c.l.b16 %v11461
    %v12118 = vunpack.c.h.b16 %v11461
    %v12119 = vunpack.c.l.b16 %v11462
    %v12120 = vunpack.c.h.b16 %v11462
    %v12121 = vunpack.c.l.b16 %v11463
    %v12122 = vunpack.c.h.b16 %v11463
    %v12123 = vunpack.c.l.b16 %v11464
    %v12124 = vunpack.c.h.b16 %v11464
    %v12125 = vunpack.c.l.b16 %v11465
    %v12126 = vunpack.c.h.b16 %v11465
    %v12127 = vunpack.c.l.b16 %v11466
    %v12128 = vunpack.c.h.b16 %v11466
    %v12129 = vunpack.c.l.b16 %v11467
    %v12130 = vunpack.c.h.b16 %v11467
    %v12131 = vunpack.c.l.b16 %v11468
    %v12132 = vunpack.c.h.b16 %v11468
    %v12133 = vunpack.c.l.b16 %v11469
    %v12134 = vunpack.c.h.b16 %v11469
    %v12135 = vunpack.c.l.b16 %v11470
    %v12136 = vunpack.c.h.b16 %v11470
    %v12137 = vunpack.c.l.b16 %v11471
    %v12138 = vunpack.c.h.b16 %v11471
    %v12139 = vunpack.c.l.b16 %v11472
    %v12140 = vunpack.c.h.b16 %v11472
    %v12141 = vunpack.c.l.b16 %v11473
    %v12142 = vunpack.c.h.b16 %v11473
    %v12143 = vunpack.c.l.b16 %v11474
    %v12144 = vunpack.c.h.b16 %v11474
    %v12145 = vunpack.c.l.b16 %v11475
    %v12146 = vunpack.c.h.b16 %v11475
    %v12147 = vunpack.c.l.b16 %v11476
    %v12148 = vunpack.c.h.b16 %v11476
    %v12149 = vunpack.c.l.b16 %v11477
    %v12150 = vunpack.c.h.b16 %v11477
    %v12151 = vunpack.c.l.b16 %v11478
    %v12152 = vunpack.c.h.b16 %v11478
    %v12153 = vunpack.c.l.b16 %v11479
    %v12154 = vunpack.c.h.b16 %v11479
    %v12155 = vunpack.c.l.b16 %v11480
    %v12156 = vunpack.c.h.b16 %v11480
    %v12157 = vunpack.c.l.b16 %v11481
    %v12158 = vunpack.c.h.b16 %v11481
    %v12159 = vunpack.c.l.b16 %v11482
    %v12160 = vunpack.c.h.b16 %v11482
    %v12161 = vunpack.c.l.b16 %v11483
    %v12162 = vunpack.c.h.b16 %v11483
    %v12163 = vunpack.c.l.b16 %v11484
    %v12164 = vunpack.c.h.b16 %v11484
    %v12165 = vunpack.c.l.b16 %v11485
    %v12166 = vunpack.c.h.b16 %v11485
    %v12167 = vunpack.c.l.b16 %v11486
    %v12168 = vunpack.c.h.b16 %v11486
    %v12169 = vunpack.c.l.b16 %v11487
    %v12170 = vunpack.c.h.b16 %v11487
    %v12171 = vunpack.c.l.b16 %v11488
    %v12172 = vunpack.c.h.b16 %v11488
    %v12173 = vunpack.c.l.b16 %v11489
    %v12174 = vunpack.c.h.b16 %v11489
    %v12175 = vunpack.c.l.b16 %v11490
    %v12176 = vunpack.c.h.b16 %v11490
    %v12177 = vunpack.c.l.b16 %v11491
    %v12178 = vunpack.c.h.b16 %v11491
    %v12179 = vunpack.c.l.b16 %v11492
    %v12180 = vunpack.c.h.b16 %v11492
    %v12181 = vunpack.c.l.b16 %v11493
    %v12182 = vunpack.c.h.b16 %v11493
    %v12183 = vunpack.c.l.b16 %v11494
    %v12184 = vunpack.c.h.b16 %v11494
    %v12185 = vunpack.c.l.b16 %v11495
    %v12186 = vunpack.c.h.b16 %v11495
    %v12187 = vunpack.c.l.b16 %v11496
    %v12188 = vunpack.c.h.b16 %v11496
    %v12189 = vunpack.c.l.b16 %v11497
    %v12190 = vunpack.c.h.b16 %v11497
    %v12191 = vunpack.c.l.b16 %v11498
    %v12192 = vunpack.c.h.b16 %v11498
    %v12193 = vunpack.c.l.b16 %v11499
    %v12194 = vunpack.c.h.b16 %v11499
    %v12195 = vunpack.c.l.b16 %v11500
    %v12196 = vunpack.c.h.b16 %v11500
    %v12197 = vunpack.c.l.b16 %v11501
    %v12198 = vunpack.c.h.b16 %v11501
    %v12199 = vunpack.c.l.b16 %v11502
    %v12200 = vunpack.c.h.b16 %v11502
    %v12201 = vunpack.c.l.b16 %v11503
    %v12202 = vunpack.c.h.b16 %v11503
    %v12203 = vunpack.c.l.b16 %v11504
    %v12204 = vunpack.c.h.b16 %v11504
    %v12205 = vunpack.c.l.b16 %v11505
    %v12206 = vunpack.c.h.b16 %v11505
    %v12207 = vunpack.c.l.b16 %v11506
    %v12208 = vunpack.c.h.b16 %v11506
    %v12209 = vunpack.c.l.b16 %v11507
    %v12210 = vunpack.c.h.b16 %v11507
    %v12211 = vunpack.c.l.b16 %v11508
    %v12212 = vunpack.c.h.b16 %v11508
    %v12213 = vunpack.c.l.b16 %v11509
    %v12214 = vunpack.c.h.b16 %v11509
    %v12215 = vunpack.c.l.b16 %v11510
    %v12216 = vunpack.c.h.b16 %v11510
    %v12217 = vunpack.c.l.b16 %v11511
    %v12218 = vunpack.c.h.b16 %v11511
    %v12219 = vunpack.c.l.b16 %v11512
    %v12220 = vunpack.c.h.b16 %v11512
    %v12221 = vunpack.c.l.b16 %v11513
    %v12222 = vunpack.c.h.b16 %v11513
    %v12223 = vunpack.c.l.b16 %v11514
    %v12224 = vunpack.c.h.b16 %v11514
    %v12225 = vunpack.c.l.b16 %v11515
    %v12226 = vunpack.c.h.b16 %v11515
    %v12227 = vunpack.c.l.b16 %v11516
    %v12228 = vunpack.c.h.b16 %v11516
    %v12229 = vunpack.c.l.b16 %v11517
    %v12230 = vunpack.c.h.b16 %v11517
    %v12231 = vunpack.c.l.b16 %v11518
    %v12232 = vunpack.c.h.b16 %v11518
    %v12233 = vunpack.c.l.b16 %v11519
    %v12234 = vunpack.c.h.b16 %v11519
    %v12235 = vunpack.c.l.b16 %v11520
    %v12236 = vunpack.c.h.b16 %v11520
    %v12237 = vunpack.c.l.b16 %v11521
    %v12238 = vunpack.c.h.b16 %v11521
    %v12239 = vunpack.c.l.b16 %v11522
    %v12240 = vunpack.c.h.b16 %v11522
    %v12241 = vunpack.c.l.b16 %v11523
    %v12242 = vunpack.c.h.b16 %v11523
    %v12243 = vunpack.c.l.b16 %v11524
    %v12244 = vunpack.c.h.b16 %v11524
    %v12245 = vunpack.c.l.b16 %v11525
    %v12246 = vunpack.c.h.b16 %v11525
    %v12247 = vunpack.c.l.b16 %v11526
    %v12248 = vunpack.c.h.b16 %v11526
    %v12249 = vunpack.c.l.b16 %v11527
    %v12250 = vunpack.c.h.b16 %v11527
    %v12251 = vunpack.c.l.b16 %v11528
    %v12252 = vunpack.c.h.b16 %v11528
    %v12253 = vunpack.c.l.b16 %v11529
    %v12254 = vunpack.c.h.b16 %v11529
    %v12255 = vunpack.c.l.b16 %v11530
    %v12256 = vunpack.c.h.b16 %v11530
    %v12257 = vunpack.c.l.b16 %v11531
    %v12258 = vunpack.c.h.b16 %v11531
    %v12259 = vunpack.c.l.b16 %v11532
    %v12260 = vunpack.c.h.b16 %v11532
    %v12261 = vunpack.c.l.b16 %v11533
    %v12262 = vunpack.c.h.b16 %v11533
    %v12263 = vunpack.c.l.b16 %v11534
    %v12264 = vunpack.c.h.b16 %v11534
    %v12265 = vunpack.c.l.b16 %v11535
    %v12266 = vunpack.c.h.b16 %v11535
    %v12267 = vunpack.c.l.b16 %v11536
    %v12268 = vunpack.c.h.b16 %v11536
    %v12269 = vunpack.c.l.b16 %v11537
    %v12270 = vunpack.c.h.b16 %v11537
    %v12271 = vunpack.c.l.b16 %v11538
    %v12272 = vunpack.c.h.b16 %v11538
    %v12273 = vunpack.c.l.b16 %v11539
    %v12274 = vunpack.c.h.b16 %v11539
    %v12275 = vunpack.c.l.b16 %v11540
    %v12276 = vunpack.c.h.b16 %v11540
    %v12277 = vunpack.c.l.b16 %v11541
    %v12278 = vunpack.c.h.b16 %v11541
    %v12279 = vunpack.c.l.b16 %v11542
    %v12280 = vunpack.c.h.b16 %v11542
    %v12281 = vunpack.c.l.b16 %v11543
    %v12282 = vunpack.c.h.b16 %v11543
    %v12283 = vunpack.c.l.b16 %v11544
    %v12284 = vunpack.c.h.b16 %v11544
    %v12285 = vunpack.c.l.b16 %v11545
    %v12286 = vunpack.c.h.b16 %v11545
    %v12287 = vunpack.c.l.b16 %v11546
    %v12288 = vunpack.c.h.b16 %v11546
    %v12289 = vunpack.c.l.b16 %v11547
    %v12290 = vunpack.c.h.b16 %v11547
    %v12291 = vunpack.c.l.b16 %v11548
    %v12292 = vunpack.c.h.b16 %v11548
    %v12293 = vunpack.c.l.b16 %v11549
    %v12294 = vunpack.c.h.b16 %v11549
    %v12295 = vunpack.c.l.b16 %v11550
    %v12296 = vunpack.c.h.b16 %v11550
    %v12297 = vunpack.c.l.b16 %v11551
    %v12298 = vunpack.c.h.b16 %v11551
    %v12299 = vunpack.c.l.b16 %v11552
    %v12300 = vunpack.c.h.b16 %v11552
    %v12301 = vunpack.c.l.b16 %v11553
    %v12302 = vunpack.c.h.b16 %v11553
    %v12303 = vunpack.c.l.b16 %v11554
    %v12304 = vunpack.c.h.b16 %v11554
    %v12305 = vunpack.c.l.b16 %v11555
    %v12306 = vunpack.c.h.b16 %v11555
    %v12307 = vunpack.c.l.b16 %v11556
    %v12308 = vunpack.c.h.b16 %v11556
    %v12309 = vunpack.c.l.b16 %v11557
    %v12310 = vunpack.c.h.b16 %v11557
    %v12311 = vunpack.c.l.b16 %v11558
    %v12312 = vunpack.c.h.b16 %v11558
    %v12313 = vunpack.c.l.b16 %v11559
    %v12314 = vunpack.c.h.b16 %v11559
    %v12315 = vunpack.c.l.b16 %v11560
    %v12316 = vunpack.c.h.b16 %v11560
    %v12317 = vunpack.c.l.b16 %v11561
    %v12318 = vunpack.c.h.b16 %v11561
    %v12319 = vunpack.c.l.b16 %v11562
    %v12320 = vunpack.c.h.b16 %v11562
    %v12321 = vunpack.c.l.b16 %v11563
    %v12322 = vunpack.c.h.b16 %v11563
    %v12323 = vunpack.c.l.b16 %v11564
    %v12324 = vunpack.c.h.b16 %v11564
    %v12325 = vunpack.c.l.b16 %v11565
    %v12326 = vunpack.c.h.b16 %v11565
    %v12327 = vunpack.c.l.b16 %v11566
    %v12328 = vunpack.c.h.b16 %v11566
    %v12329 = vunpack.c.l.b16 %v11567
    %v12330 = vunpack.c.h.b16 %v11567
    %v12331 = vunpack.c.l.b16 %v11568
    %v12332 = vunpack.c.h.b16 %v11568
    %v12333 = vunpack.c.l.b16 %v11569
    %v12334 = vunpack.c.h.b16 %v11569
    %v12335 = vunpack.c.l.b16 %v11570
    %v12336 = vunpack.c.h.b16 %v11570
    %v12337 = vunpack.c.l.b16 %v11571
    %v12338 = vunpack.c.h.b16 %v11571
    %v12339 = vunpack.c.l.b16 %v11572
    %v12340 = vunpack.c.h.b16 %v11572
    %v12341 = vunpack.c.l.b16 %v11573
    %v12342 = vunpack.c.h.b16 %v11573
    %v12343 = vunpack.c.l.b16 %v11574
    %v12344 = vunpack.c.h.b16 %v11574
    %v12345 = vunpack.c.l.b16 %v11575
    %v12346 = vunpack.c.h.b16 %v11575
    %v12347 = vunpack.c.l.b16 %v11576
    %v12348 = vunpack.c.h.b16 %v11576
    %v12349 = vunpack.c.l.b16 %v11577
    %v12350 = vunpack.c.h.b16 %v11577
    %v12351 = vunpack.c.l.b16 %v11578
    %v12352 = vunpack.c.h.b16 %v11578
    %v12353 = vunpack.c.l.b16 %v11579
    %v12354 = vunpack.c.h.b16 %v11579
    %v12355 = vunpack.c.l.b16 %v11580
    %v12356 = vunpack.c.h.b16 %v11580
    %v12357 = vunpack.c.l.b16 %v11581
    %v12358 = vunpack.c.h.b16 %v11581
    %v12359 = vunpack.c.l.b16 %v11582
    %v12360 = vunpack.c.h.b16 %v11582
    %v12361 = vunpack.c.l.b16 %v11583
    %v12362 = vunpack.c.h.b16 %v11583
    %v12363 = vunpack.c.l.b16 %v11584
    %v12364 = vunpack.c.h.b16 %v11584
    %v12365 = vunpack.c.l.b16 %v11585
    %v12366 = vunpack.c.h.b16 %v11585
    %v12367 = vunpack.c.l.b16 %v11586
    %v12368 = vunpack.c.h.b16 %v11586
    %v12369 = vunpack.c.l.b16 %v11587
    %v12370 = vunpack.c.h.b16 %v11587
    %v12371 = vunpack.c.l.b16 %v11588
    %v12372 = vunpack.c.h.b16 %v11588
    %v12373 = vunpack.c.l.b16 %v11589
    %v12374 = vunpack.c.h.b16 %v11589
    %v12375 = vunpack.c.l.b16 %v11590
    %v12376 = vunpack.c.h.b16 %v11590
    %v12377 = vunpack.c.l.b16 %v11591
    %v12378 = vunpack.c.h.b16 %v11591
    %v12379 = vunpack.c.l.b16 %v11592
    %v12380 = vunpack.c.h.b16 %v11592
    %v12381 = vunpack.c.l.b16 %v11593
    %v12382 = vunpack.c.h.b16 %v11593
    %v12383 = vunpack.c.l.b16 %v11594
    %v12384 = vunpack.c.h.b16 %v11594
    %v12385 = vpack.c.b16 %v11877, %v11873
    %v12386 = vpack.c.b16 %v11878, %v11874
    %v12387 = vpack.c.b16 %v11879, %v11875
    %v12388 = vpack.c.b16 %v11880, %v11876
    %v12389 = vpack.c.b16 %v11885, %v11881
    %v12390 = vpack.c.b16 %v11886, %v11882
    %v12391 = vpack.c.b16 %v11887, %v11883
    %v12392 = vpack.c.b16 %v11888, %v11884
    %v12393 = vpack.c.b16 %v11893, %v11889
    %v12394 = vpack.c.b16 %v11894, %v11890
    %v12395 = vpack.c.b16 %v11895, %v11891
    %v12396 = vpack.c.b16 %v11896, %v11892
    %v12397 = vpack.c.b16 %v11901, %v11897
    %v12398 = vpack.c.b16 %v11902, %v11898
    %v12399 = vpack.c.b16 %v11903, %v11899
    %v12400 = vpack.c.b16 %v11904, %v11900
    %v12401 = vpack.c.b16 %v11909, %v11905
    %v12402 = vpack.c.b16 %v11910, %v11906
    %v12403 = vpack.c.b16 %v11911, %v11907
    %v12404 = vpack.c.b16 %v11912, %v11908
    %v12405 = vpack.c.b16 %v11917, %v11913
    %v12406 = vpack.c.b16 %v11918, %v11914
    %v12407 = vpack.c.b16 %v11919, %v11915
    %v12408 = vpack.c.b16 %v11920, %v11916
    %v12409 = vpack.c.b16 %v11925, %v11921
    %v12410 = vpack.c.b16 %v11926, %v11922
    %v12411 = vpack.c.b16 %v11927, %v11923
    %v12412 = vpack.c.b16 %v11928, %v11924
    %v12413 = vpack.c.b16 %v11933, %v11929
    %v12414 = vpack.c.b16 %v11934, %v11930
    %v12415 = vpack.c.b16 %v11935, %v11931
    %v12416 = vpack.c.b16 %v11936, %v11932
    %v12417 = vpack.c.b16 %v11941, %v11937
    %v12418 = vpack.c.b16 %v11942, %v11938
    %v12419 = vpack.c.b16 %v11943, %v11939
    %v12420 = vpack.c.b16 %v11944, %v11940
    %v12421 = vpack.c.b16 %v11949, %v11945
    %v12422 = vpack.c.b16 %v11950, %v11946
    %v12423 = vpack.c.b16 %v11951, %v11947
    %v12424 = vpack.c.b16 %v11952, %v11948
    %v12425 = vpack.c.b16 %v11957, %v11953
    %v12426 = vpack.c.b16 %v11958, %v11954
    %v12427 = vpack.c.b16 %v11959, %v11955
    %v12428 = vpack.c.b16 %v11960, %v11956
    %v12429 = vpack.c.b16 %v11965, %v11961
    %v12430 = vpack.c.b16 %v11966, %v11962
    %v12431 = vpack.c.b16 %v11967, %v11963
    %v12432 = vpack.c.b16 %v11968, %v11964
    %v12433 = vpack.c.b16 %v11973, %v11969
    %v12434 = vpack.c.b16 %v11974, %v11970
    %v12435 = vpack.c.b16 %v11975, %v11971
    %v12436 = vpack.c.b16 %v11976, %v11972
    %v12437 = vpack.c.b16 %v11981, %v11977
    %v12438 = vpack.c.b16 %v11982, %v11978
    %v12439 = vpack.c.b16 %v11983, %v11979
    %v12440 = vpack.c.b16 %v11984, %v11980
    %v12441 = vpack.c.b16 %v11989, %v11985
    %v12442 = vpack.c.b16 %v11990, %v11986
    %v12443 = vpack.c.b16 %v11991, %v11987
    %v12444 = vpack.c.b16 %v11992, %v11988
    %v12445 = vpack.c.b16 %v11997, %v11993
    %v12446 = vpack.c.b16 %v11998, %v11994
    %v12447 = vpack.c.b16 %v11999, %v11995
    %v12448 = vpack.c.b16 %v12000, %v11996
    %v12449 = vpack.c.b16 %v12005, %v12001
    %v12450 = vpack.c.b16 %v12006, %v12002
    %v12451 = vpack.c.b16 %v12007, %v12003
    %v12452 = vpack.c.b16 %v12008, %v12004
    %v12453 = vpack.c.b16 %v12013, %v12009
    %v12454 = vpack.c.b16 %v12014, %v12010
    %v12455 = vpack.c.b16 %v12015, %v12011
    %v12456 = vpack.c.b16 %v12016, %v12012
    %v12457 = vpack.c.b16 %v12021, %v12017
    %v12458 = vpack.c.b16 %v12022, %v12018
    %v12459 = vpack.c.b16 %v12023, %v12019
    %v12460 = vpack.c.b16 %v12024, %v12020
    %v12461 = vpack.c.b16 %v12029, %v12025
    %v12462 = vpack.c.b16 %v12030, %v12026
    %v12463 = vpack.c.b16 %v12031, %v12027
    %v12464 = vpack.c.b16 %v12032, %v12028
    %v12465 = vpack.c.b16 %v12037, %v12033
    %v12466 = vpack.c.b16 %v12038, %v12034
    %v12467 = vpack.c.b16 %v12039, %v12035
    %v12468 = vpack.c.b16 %v12040, %v12036
    %v12469 = vpack.c.b16 %v12045, %v12041
    %v12470 = vpack.c.b16 %v12046, %v12042
    %v12471 = vpack.c.b16 %v12047, %v12043
    %v12472 = vpack.c.b16 %v12048, %v12044
    %v12473 = vpack.c.b16 %v12053, %v12049
    %v12474 = vpack.c.b16 %v12054, %v12050
    %v12475 = vpack.c.b16 %v12055, %v12051
    %v12476 = vpack.c.b16 %v12056, %v12052
    %v12477 = vpack.c.b16 %v12061, %v12057
    %v12478 = vpack.c.b16 %v12062, %v12058
    %v12479 = vpack.c.b16 %v12063, %v12059
    %v12480 = vpack.c.b16 %v12064, %v12060
    %v12481 = vpack.c.b16 %v12069, %v12065
    %v12482 = vpack.c.b16 %v12070, %v12066
    %v12483 = vpack.c.b16 %v12071, %v12067
    %v12484 = vpack.c.b16 %v12072, %v12068
    %v12485 = vpack.c.b16 %v12077, %v12073
    %v12486 = vpack.c.b16 %v12078, %v12074
    %v12487 = vpack.c.b16 %v12079, %v12075
    %v12488 = vpack.c.b16 %v12080, %v12076
    %v12489 = vpack.c.b16 %v12085, %v12081
    %v12490 = vpack.c.b16 %v12086, %v12082
    %v12491 = vpack.c.b16 %v12087, %v12083
    %v12492 = vpack.c.b16 %v12088, %v12084
    %v12493 = vpack.c.b16 %v12093, %v12089
    %v12494 = vpack.c.b16 %v12094, %v12090
    %v12495 = vpack.c.b16 %v12095, %v12091
    %v12496 = vpack.c.b16 %v12096, %v12092
    %v12497 = vpack.c.b16 %v12101, %v12097
    %v12498 = vpack.c.b16 %v12102, %v12098
    %v12499 = vpack.c.b16 %v12103, %v12099
    %v12500 = vpack.c.b16 %v12104, %v12100
    %v12501 = vpack.c.b16 %v12109, %v12105
    %v12502 = vpack.c.b16 %v12110, %v12106
    %v12503 = vpack.c.b16 %v12111, %v12107
    %v12504 = vpack.c.b16 %v12112, %v12108
    %v12505 = vpack.c.b16 %v12117, %v12113
    %v12506 = vpack.c.b16 %v12118, %v12114
    %v12507 = vpack.c.b16 %v12119, %v12115
    %v12508 = vpack.c.b16 %v12120, %v12116
    %v12509 = vpack.c.b16 %v12125, %v12121
    %v12510 = vpack.c.b16 %v12126, %v12122
    %v12511 = vpack.c.b16 %v12127, %v12123
    %v12512 = vpack.c.b16 %v12128, %v12124
    %v12513 = vpack.c.b16 %v12133, %v12129
    %v12514 = vpack.c.b16 %v12134, %v12130
    %v12515 = vpack.c.b16 %v12135, %v12131
    %v12516 = vpack.c.b16 %v12136, %v12132
    %v12517 = vpack.c.b16 %v12141, %v12137
    %v12518 = vpack.c.b16 %v12142, %v12138
    %v12519 = vpack.c.b16 %v12143, %v12139
    %v12520 = vpack.c.b16 %v12144, %v12140
    %v12521 = vpack.c.b16 %v12149, %v12145
    %v12522 = vpack.c.b16 %v12150, %v12146
    %v12523 = vpack.c.b16 %v12151, %v12147
    %v12524 = vpack.c.b16 %v12152, %v12148
    %v12525 = vpack.c.b16 %v12157, %v12153
    %v12526 = vpack.c.b16 %v12158, %v12154
    %v12527 = vpack.c.b16 %v12159, %v12155
    %v12528 = vpack.c.b16 %v12160, %v12156
    %v12529 = vpack.c.b16 %v12165, %v12161
    %v12530 = vpack.c.b16 %v12166, %v12162
    %v12531 = vpack.c.b16 %v12167, %v12163
    %v12532 = vpack.c.b16 %v12168, %v12164
    %v12533 = vpack.c.b16 %v12173, %v12169
    %v12534 = vpack.c.b16 %v12174, %v12170
    %v12535 = vpack.c.b16 %v12175, %v12171
    %v12536 = vpack.c.b16 %v12176, %v12172
    %v12537 = vpack.c.b16 %v12181, %v12177
    %v12538 = vpack.c.b16 %v12182, %v12178
    %v12539 = vpack.c.b16 %v12183, %v12179
    %v12540 = vpack.c.b16 %v12184, %v12180
    %v12541 = vpack.c.b16 %v12189, %v12185
    %v12542 = vpack.c.b16 %v12190, %v12186
    %v12543 = vpack.c.b16 %v12191, %v12187
    %v12544 = vpack.c.b16 %v12192, %v12188
    %v12545 = vpack.c.b16 %v12197, %v12193
    %v12546 = vpack.c.b16 %v12198, %v12194
    %v12547 = vpack.c.b16 %v12199, %v12195
    %v12548 = vpack.c.b16 %v12200, %v12196
    %v12549 = vpack.c.b16 %v12205, %v12201
    %v12550 = vpack.c.b16 %v12206, %v12202
    %v12551 = vpack.c.b16 %v12207, %v12203
    %v12552 = vpack.c.b16 %v12208, %v12204
    %v12553 = vpack.c.b16 %v12213, %v12209
    %v12554 = vpack.c.b16 %v12214, %v12210
    %v12555 = vpack.c.b16 %v12215, %v12211
    %v12556 = vpack.c.b16 %v12216, %v12212
    %v12557 = vpack.c.b16 %v12221, %v12217
    %v12558 = vpack.c.b16 %v12222, %v12218
    %v12559 = vpack.c.b16 %v12223, %v12219
    %v12560 = vpack.c.b16 %v12224, %v12220
    %v12561 = vpack.c.b16 %v12229, %v12225
    %v12562 = vpack.c.b16 %v12230, %v12226
    %v12563 = vpack.c.b16 %v12231, %v12227
    %v12564 = vpack.c.b16 %v12232, %v12228
    %v12565 = vpack.c.b16 %v12237, %v12233
    %v12566 = vpack.c.b16 %v12238, %v12234
    %v12567 = vpack.c.b16 %v12239, %v12235
    %v12568 = vpack.c.b16 %v12240, %v12236
    %v12569 = vpack.c.b16 %v12245, %v12241
    %v12570 = vpack.c.b16 %v12246, %v12242
    %v12571 = vpack.c.b16 %v12247, %v12243
    %v12572 = vpack.c.b16 %v12248, %v12244
    %v12573 = vpack.c.b16 %v12253, %v12249
    %v12574 = vpack.c.b16 %v12254, %v12250
    %v12575 = vpack.c.b16 %v12255, %v12251
    %v12576 = vpack.c.b16 %v12256, %v12252
    %v12577 = vpack.c.b16 %v12261, %v12257
    %v12578 = vpack.c.b16 %v12262, %v12258
    %v12579 = vpack.c.b16 %v12263, %v12259
    %v12580 = vpack.c.b16 %v12264, %v12260
    %v12581 = vpack.c.b16 %v12269, %v12265
    %v12582 = vpack.c.b16 %v12270, %v12266
    %v12583 = vpack.c.b16 %v12271, %v12267
    %v12584 = vpack.c.b16 %v12272, %v12268
    %v12585 = vpack.c.b16 %v12277, %v12273
    %v12586 = vpack.c.b16 %v12278, %v12274
    %v12587 = vpack.c.b16 %v12279, %v12275
    %v12588 = vpack.c.b16 %v12280, %v12276
    %v12589 = vpack.c.b16 %v12285, %v12281
    %v12590 = vpack.c.b16 %v12286, %v12282
    %v12591 = vpack.c.b16 %v12287, %v12283
    %v12592 = vpack.c.b16 %v12288, %v12284
    %v12593 = vpack.c.b16 %v12293, %v12289
    %v12594 = vpack.c.b16 %v12294, %v12290
    %v12595 = vpack.c.b16 %v12295, %v12291
    %v12596 = vpack.c.b16 %v12296, %v12292
    %v12597 = vpack.c.b16 %v12301, %v12297
    %v12598 = vpack.c.b16 %v12302, %v12298
    %v12599 = vpack.c.b16 %v12303, %v12299
    %v12600 = vpack.c.b16 %v12304, %v12300
    %v12601 = vpack.c.b16 %v12309, %v12305
    %v12602 = vpack.c.b16 %v12310, %v12306
    %v12603 = vpack.c.b16 %v12311, %v12307
    %v12604 = vpack.c.b16 %v12312, %v12308
    %v12605 = vpack.c.b16 %v12317, %v12313
    %v12606 = vpack.c.b16 %v12318, %v12314
    %v12607 = vpack.c.b16 %v12319, %v12315
    %v12608 = vpack.c.b16 %v12320, %v12316
    %v12609 = vpack.c.b16 %v12325, %v12321
    %v12610 = vpack.c.b16 %v12326, %v12322
    %v12611 = vpack.c.b16 %v12327, %v12323
    %v12612 = vpack.c.b16 %v12328, %v12324
    %v12613 = vpack.c.b16 %v12333, %v12329
    %v12614 = vpack.c.b16 %v12334, %v12330
    %v12615 = vpack.c.b16 %v12335, %v12331
    %v12616 = vpack.c.b16 %v12336, %v12332
    %v12617 = vpack.c.b16 %v12341, %v12337
    %v12618 = vpack.c.b16 %v12342, %v12338
    %v12619 = vpack.c.b16 %v12343, %v12339
    %v12620 = vpack.c.b16 %v12344, %v12340
    %v12621 = vpack.c.b16 %v12349, %v12345
    %v12622 = vpack.c.b16 %v12350, %v12346
    %v12623 = vpack.c.b16 %v12351, %v12347
    %v12624 = vpack.c.b16 %v12352, %v12348
    %v12625 = vpack.c.b16 %v12357, %v12353
    %v12626 = vpack.c.b16 %v12358, %v12354
    %v12627 = vpack.c.b16 %v12359, %v12355
    %v12628 = vpack.c.b16 %v12360, %v12356
    %v12629 = vpack.c.b16 %v12365, %v12361
    %v12630 = vpack.c.b16 %v12366, %v12362
    %v12631 = vpack.c.b16 %v12367, %v12363
    %v12632 = vpack.c.b16 %v12368, %v12364
    %v12633 = vpack.c.b16 %v12373, %v12369
    %v12634 = vpack.c.b16 %v12374, %v12370
    %v12635 = vpack.c.b16 %v12375, %v12371
    %v12636 = vpack.c.b16 %v12376, %v12372
    %v12637 = vpack.c.b16 %v12381, %v12377
    %v12638 = vpack.c.b16 %v12382, %v12378
    %v12639 = vpack.c.b16 %v12383, %v12379
    %v12640 = vpack.c.b16 %v12384, %v12380
    %12897 = vmatprep.subr.bf16.mxu0 %v12386
    %12898 = vmatpush1.bf16.msra.mxu0 %v12385
    %12899 = vmatprep.subr.bf16.mxu0 %v12390
    %12900 = vmatpush1.bf16.msra.mxu0 %v12389
    %12901 = vmatprep.subr.bf16.mxu0 %v12394
    %12902 = vmatpush1.bf16.msra.mxu0 %v12393
    %12903 = vmatprep.subr.bf16.mxu0 %v12398
    %12904 = vmatpush1.bf16.msra.mxu0 %v12397
    %12905 = vmatprep.subr.bf16.mxu0 %v12402
    %12906 = vmatpush1.bf16.msra.mxu0 %v12401
    %12907 = vmatprep.subr.bf16.mxu0 %v12406
    %12908 = vmatpush1.bf16.msra.mxu0 %v12405
    %12909 = vmatprep.subr.bf16.mxu0 %v12410
    %12910 = vmatpush1.bf16.msra.mxu0 %v12409
    %12911 = vmatprep.subr.bf16.mxu0 %v12414
    %12912 = vmatpush1.bf16.msra.mxu0 %v12413
    %12913 = vmatprep.subr.bf16.mxu0 %v12418
    %12914 = vmatpush1.bf16.msra.mxu0 %v12417
    %12915 = vmatprep.subr.bf16.mxu0 %v12422
    %12916 = vmatpush1.bf16.msra.mxu0 %v12421
    %12917 = vmatprep.subr.bf16.mxu0 %v12426
    %12918 = vmatpush1.bf16.msra.mxu0 %v12425
    %12919 = vmatprep.subr.bf16.mxu0 %v12430
    %12920 = vmatpush1.bf16.msra.mxu0 %v12429
    %12921 = vmatprep.subr.bf16.mxu0 %v12434
    %12922 = vmatpush1.bf16.msra.mxu0 %v12433
    %12923 = vmatprep.subr.bf16.mxu0 %v12438
    %12924 = vmatpush1.bf16.msra.mxu0 %v12437
    %12925 = vmatprep.subr.bf16.mxu0 %v12442
    %12926 = vmatpush1.bf16.msra.mxu0 %v12441
    %12927 = vmatprep.subr.bf16.mxu0 %v12446
    %12928 = vmatpush1.bf16.msra.mxu0 %v12445
    %12929 = vmatprep.mubr.bf16.mxu0 %v11332
    %12930 = vmatmul.mubr.bf16.gmra.mrb[0].mxu0 %v11331
    %v12931 = vpop.f32.mrb[0].mxu0
    %v12932 = vadd.f32 %v11600, %v12931
    %v12933 = vpop.f32.mrb[0].mxu0
    %v12934 = vadd.f32 %v11604, %v12933
    %v12935 = vpop.f32.mrb[0].mxu0
    %v12936 = vadd.f32 %v11600, %v12935
    %v12937 = vpop.f32.mrb[0].mxu0
    %v12938 = vadd.f32 %v11604, %v12937
    %12939 = vdwg.mxu0
    %12940 = vmatprep.subr.bf16.mxu0 %v12450
    %12941 = vmatpush1.bf16.msra.mxu0 %v12449
    %12942 = vmatprep.subr.bf16.mxu0 %v12454
    %12943 = vmatpush1.bf16.msra.mxu0 %v12453
    %12944 = vmatprep.subr.bf16.mxu0 %v12458
    %12945 = vmatpush1.bf16.msra.mxu0 %v12457
    %12946 = vmatprep.subr.bf16.mxu0 %v12462
    %12947 = vmatpush1.bf16.msra.mxu0 %v12461
    %12948 = vmatprep.subr.bf16.mxu0 %v12466
    %12949 = vmatpush1.bf16.msra.mxu0 %v12465
    %12950 = vmatprep.subr.bf16.mxu0 %v12470
    %12951 = vmatpush1.bf16.msra.mxu0 %v12469
    %12952 = vmatprep.subr.bf16.mxu0 %v12474
    %12953 = vmatpush1.bf16.msra.mxu0 %v12473
    %12954 = vmatprep.subr.bf16.mxu0 %v12478
    %12955 = vmatpush1.bf16.msra.mxu0 %v12477
    %12956 = vmatprep.subr.bf16.mxu0 %v12482
    %12957 = vmatpush1.bf16.msra.mxu0 %v12481
    %12958 = vmatprep.subr.bf16.mxu0 %v12486
    %12959 = vmatpush1.bf16.msra.mxu0 %v12485
    %12960 = vmatprep.subr.bf16.mxu0 %v12490
    %12961 = vmatpush1.bf16.msra.mxu0 %v12489
    %12962 = vmatprep.subr.bf16.mxu0 %v12494
    %12963 = vmatpush1.bf16.msra.mxu0 %v12493
    %12964 = vmatprep.subr.bf16.mxu0 %v12498
    %12965 = vmatpush1.bf16.msra.mxu0 %v12497
    %12966 = vmatprep.subr.bf16.mxu0 %v12502
    %12967 = vmatpush1.bf16.msra.mxu0 %v12501
    %12968 = vmatprep.subr.bf16.mxu0 %v12506
    %12969 = vmatpush1.bf16.msra.mxu0 %v12505
    %12970 = vmatprep.subr.bf16.mxu0 %v12510
    %12971 = vmatpush1.bf16.msra.mxu0 %v12509
    %12972 = vmatprep.mubr.bf16.mxu0 %v11334
    %12973 = vmatmul.mubr.bf16.gmra.mrb[0].mxu0 %v11333
    %v12974 = vpop.f32.mrb[0].mxu0
    %v12975 = vadd.f32 %v12932, %v12974
    %v12976 = vpop.f32.mrb[0].mxu0
    %v12977 = vadd.f32 %v12934, %v12976
    %v12978 = vpop.f32.mrb[0].mxu0
    %v12979 = vadd.f32 %v12936, %v12978
    %v12980 = vpop.f32.mrb[0].mxu0
    %v12981 = vadd.f32 %v12938, %v12980
    %12982 = vdwg.mxu0
    %12983 = vmatprep.subr.bf16.mxu0 %v12514
    %12984 = vmatpush1.bf16.msra.mxu0 %v12513
    %12985 = vmatprep.subr.bf16.mxu0 %v12518
    %12986 = vmatpush1.bf16.msra.mxu0 %v12517
    %12987 = vmatprep.subr.bf16.mxu0 %v12522
    %12988 = vmatpush1.bf16.msra.mxu0 %v12521
    %12989 = vmatprep.subr.bf16.mxu0 %v12526
    %12990 = vmatpush1.bf16.msra.mxu0 %v12525
    %12991 = vmatprep.subr.bf16.mxu0 %v12530
    %12992 = vmatpush1.bf16.msra.mxu0 %v12529
    %12993 = vmatprep.subr.bf16.mxu0 %v12534
    %12994 = vmatpush1.bf16.msra.mxu0 %v12533
    %12995 = vmatprep.subr.bf16.mxu0 %v12538
    %12996 = vmatpush1.bf16.msra.mxu0 %v12537
    %12997 = vmatprep.subr.bf16.mxu0 %v12542
    %12998 = vmatpush1.bf16.msra.mxu0 %v12541
    %12999 = vmatprep.subr.bf16.mxu0 %v12546
    %13000 = vmatpush1.bf16.msra.mxu0 %v12545
    %13001 = vmatprep.subr.bf16.mxu0 %v12550
    %13002 = vmatpush1.bf16.msra.mxu0 %v12549
    %13003 = vmatprep.subr.bf16.mxu0 %v12554
    %13004 = vmatpush1.bf16.msra.mxu0 %v12553
    %13005 = vmatprep.subr.bf16.mxu0 %v12558
    %13006 = vmatpush1.bf16.msra.mxu0 %v12557
    %13007 = vmatprep.subr.bf16.mxu0 %v12562
    %13008 = vmatpush1.bf16.msra.mxu0 %v12561
    %13009 = vmatprep.subr.bf16.mxu0 %v12566
    %13010 = vmatpush1.bf16.msra.mxu0 %v12565
    %13011 = vmatprep.subr.bf16.mxu0 %v12570
    %13012 = vmatpush1.bf16.msra.mxu0 %v12569
    %13013 = vmatprep.subr.bf16.mxu0 %v12574
    %13014 = vmatpush1.bf16.msra.mxu0 %v12573
    %13015 = vmatprep.mubr.bf16.mxu0 %v11336
    %13016 = vmatmul.mubr.bf16.gmra.mrb[0].mxu0 %v11335
    %v13017 = vpop.f32.mrb[0].mxu0
    %v13018 = vadd.f32 %v12975, %v13017
    %v13019 = vpop.f32.mrb[0].mxu0
    %v13020 = vadd.f32 %v12977, %v13019
    %v13021 = vpop.f32.mrb[0].mxu0
    %v13022 = vadd.f32 %v12979, %v13021
    %v13023 = vpop.f32.mrb[0].mxu0
    %v13024 = vadd.f32 %v12981, %v13023
    %13025 = vdwg.mxu0
    %13026 = vmatprep.subr.bf16.mxu0 %v12578
    %13027 = vmatpush1.bf16.msra.mxu0 %v12577
    %13028 = vmatprep.subr.bf16.mxu0 %v12582
    %13029 = vmatpush1.bf16.msra.mxu0 %v12581
    %13030 = vmatprep.subr.bf16.mxu0 %v12586
    %13031 = vmatpush1.bf16.msra.mxu0 %v12585
    %13032 = vmatprep.subr.bf16.mxu0 %v12590
    %13033 = vmatpush1.bf16.msra.mxu0 %v12589
    %13034 = vmatprep.subr.bf16.mxu0 %v12594
    %13035 = vmatpush1.bf16.msra.mxu0 %v12593
    %13036 = vmatprep.subr.bf16.mxu0 %v12598
    %13037 = vmatpush1.bf16.msra.mxu0 %v12597
    %13038 = vmatprep.subr.bf16.mxu0 %v12602
    %13039 = vmatpush1.bf16.msra.mxu0 %v12601
    %13040 = vmatprep.subr.bf16.mxu0 %v12606
    %13041 = vmatpush1.bf16.msra.mxu0 %v12605
    %13042 = vmatprep.subr.bf16.mxu0 %v12610
    %13043 = vmatpush1.bf16.msra.mxu0 %v12609
    %13044 = vmatprep.subr.bf16.mxu0 %v12614
    %13045 = vmatpush1.bf16.msra.mxu0 %v12613
    %13046 = vmatprep.subr.bf16.mxu0 %v12618
    %13047 = vmatpush1.bf16.msra.mxu0 %v12617
    %13048 = vmatprep.subr.bf16.mxu0 %v12622
    %13049 = vmatpush1.bf16.msra.mxu0 %v12621
    %13050 = vmatprep.subr.bf16.mxu0 %v12626
    %13051 = vmatpush1.bf16.msra.mxu0 %v12625
    %13052 = vmatprep.subr.bf16.mxu0 %v12630
    %13053 = vmatpush1.bf16.msra.mxu0 %v12629
    %13054 = vmatprep.subr.bf16.mxu0 %v12634
    %13055 = vmatpush1.bf16.msra.mxu0 %v12633
    %13056 = vmatprep.subr.bf16.mxu0 %v12638
    %13057 = vmatpush1.bf16.msra.mxu0 %v12637
    %13058 = vmatprep.mubr.bf16.mxu0 %v11338
    %13059 = vmatmul.mubr.bf16.gmra.mrb[0].mxu0 %v11337
    %v13060 = vpop.f32.mrb[0].mxu0
    %v13061 = vadd.f32 %v13018, %v13060
    %v13062 = vpop.f32.mrb[0].mxu0
    %v13063 = vadd.f32 %v13020, %v13062
    %v13064 = vpop.f32.mrb[0].mxu0
    %v13065 = vadd.f32 %v13022, %v13064
    %v13066 = vpop.f32.mrb[0].mxu0
    %v13067 = vadd.f32 %v13024, %v13066
    %13068 = vdwg.mxu0
    %13069 = vmatprep.subr.bf16.mxu0 %v12388
    %13070 = vmatpush1.bf16.msra.mxu0 %v12387
    %13071 = vmatprep.subr.bf16.mxu0 %v12392
    %13072 = vmatpush1.bf16.msra.mxu0 %v12391
    %13073 = vmatprep.subr.bf16.mxu0 %v12396
    %13074 = vmatpush1.bf16.msra.mxu0 %v12395
    %13075 = vmatprep.subr.bf16.mxu0 %v12400
    %13076 = vmatpush1.bf16.msra.mxu0 %v12399
    %13077 = vmatprep.subr.bf16.mxu0 %v12404
    %13078 = vmatpush1.bf16.msra.mxu0 %v12403
    %13079 = vmatprep.subr.bf16.mxu0 %v12408
    %13080 = vmatpush1.bf16.msra.mxu0 %v12407
    %13081 = vmatprep.subr.bf16.mxu0 %v12412
    %13082 = vmatpush1.bf16.msra.mxu0 %v12411
    %13083 = vmatprep.subr.bf16.mxu0 %v12416
    %13084 = vmatpush1.bf16.msra.mxu0 %v12415
    %13085 = vmatprep.subr.bf16.mxu0 %v12420
    %13086 = vmatpush1.bf16.msra.mxu0 %v12419
    %13087 = vmatprep.subr.bf16.mxu0 %v12424
    %13088 = vmatpush1.bf16.msra.mxu0 %v12423
    %13089 = vmatprep.subr.bf16.mxu0 %v12428
    %13090 = vmatpush1.bf16.msra.mxu0 %v12427
    %13091 = vmatprep.subr.bf16.mxu0 %v12432
    %13092 = vmatpush1.bf16.msra.mxu0 %v12431
    %13093 = vmatprep.subr.bf16.mxu0 %v12436
    %13094 = vmatpush1.bf16.msra.mxu0 %v12435
    %13095 = vmatprep.subr.bf16.mxu0 %v12440
    %13096 = vmatpush1.bf16.msra.mxu0 %v12439
    %13097 = vmatprep.subr.bf16.mxu0 %v12444
    %13098 = vmatpush1.bf16.msra.mxu0 %v12443
    %13099 = vmatprep.subr.bf16.mxu0 %v12448
    %13100 = vmatpush1.bf16.msra.mxu0 %v12447
    %13101 = vmatprep.mubr.bf16.mxu0 %v11332
    %13102 = vmatmul.mubr.bf16.gmra.mrb[0].mxu0 %v11331
    %v13103 = vpop.f32.mrb[0].mxu0
    %v13104 = vadd.f32 %v11608, %v13103
    %v13105 = vpop.f32.mrb[0].mxu0
    %v13106 = vadd.f32 %v11612, %v13105
    %v13107 = vpop.f32.mrb[0].mxu0
    %v13108 = vadd.f32 %v11608, %v13107
    %v13109 = vpop.f32.mrb[0].mxu0
    %v13110 = vadd.f32 %v11612, %v13109
    %13111 = vdwg.mxu0
    %13112 = vmatprep.subr.bf16.mxu0 %v12452
    %13113 = vmatpush1.bf16.msra.mxu0 %v12451
    %13114 = vmatprep.subr.bf16.mxu0 %v12456
    %13115 = vmatpush1.bf16.msra.mxu0 %v12455
    %13116 = vmatprep.subr.bf16.mxu0 %v12460
    %13117 = vmatpush1.bf16.msra.mxu0 %v12459
    %13118 = vmatprep.subr.bf16.mxu0 %v12464
    %13119 = vmatpush1.bf16.msra.mxu0 %v12463
    %13120 = vmatprep.subr.bf16.mxu0 %v12468
    %13121 = vmatpush1.bf16.msra.mxu0 %v12467
    %13122 = vmatprep.subr.bf16.mxu0 %v12472
    %13123 = vmatpush1.bf16.msra.mxu0 %v12471
    %13124 = vmatprep.subr.bf16.mxu0 %v12476
    %13125 = vmatpush1.bf16.msra.mxu0 %v12475
    %13126 = vmatprep.subr.bf16.mxu0 %v12480
    %13127 = vmatpush1.bf16.msra.mxu0 %v12479
    %13128 = vmatprep.subr.bf16.mxu0 %v12484
    %13129 = vmatpush1.bf16.msra.mxu0 %v12483
    %13130 = vmatprep.subr.bf16.mxu0 %v12488
    %13131 = vmatpush1.bf16.msra.mxu0 %v12487
    %13132 = vmatprep.subr.bf16.mxu0 %v12492
    %13133 = vmatpush1.bf16.msra.mxu0 %v12491
    %13134 = vmatprep.subr.bf16.mxu0 %v12496
    %13135 = vmatpush1.bf16.msra.mxu0 %v12495
    %13136 = vmatprep.subr.bf16.mxu0 %v12500
    %13137 = vmatpush1.bf16.msra.mxu0 %v12499
    %13138 = vmatprep.subr.bf16.mxu0 %v12504
    %13139 = vmatpush1.bf16.msra.mxu0 %v12503
    %13140 = vmatprep.subr.bf16.mxu0 %v12508
    %13141 = vmatpush1.bf16.msra.mxu0 %v12507
    %13142 = vmatprep.subr.bf16.mxu0 %v12512
    %13143 = vmatpush1.bf16.msra.mxu0 %v12511
    %13144 = vmatprep.mubr.bf16.mxu0 %v11334
    %13145 = vmatmul.mubr.bf16.gmra.mrb[0].mxu0 %v11333
    %v13146 = vpop.f32.mrb[0].mxu0
    %v13147 = vadd.f32 %v13104, %v13146
    %v13148 = vpop.f32.mrb[0].mxu0
    %v13149 = vadd.f32 %v13106, %v13148
    %v13150 = vpop.f32.mrb[0].mxu0
    %v13151 = vadd.f32 %v13108, %v13150
    %v13152 = vpop.f32.mrb[0].mxu0
    %v13153 = vadd.f32 %v13110, %v13152
    %13154 = vdwg.mxu0
    %13155 = vmatprep.subr.bf16.mxu0 %v12516
    %13156 = vmatpush1.bf16.msra.mxu0 %v12515
    %13157 = vmatprep.subr.bf16.mxu0 %v12520
    %13158 = vmatpush1.bf16.msra.mxu0 %v12519
    %13159 = vmatprep.subr.bf16.mxu0 %v12524
    %13160 = vmatpush1.bf16.msra.mxu0 %v12523
    %13161 = vmatprep.subr.bf16.mxu0 %v12528
    %13162 = vmatpush1.bf16.msra.mxu0 %v12527
    %13163 = vmatprep.subr.bf16.mxu0 %v12532
    %13164 = vmatpush1.bf16.msra.mxu0 %v12531
    %13165 = vmatprep.subr.bf16.mxu0 %v12536
    %13166 = vmatpush1.bf16.msra.mxu0 %v12535
    %13167 = vmatprep.subr.bf16.mxu0 %v12540
    %13168 = vmatpush1.bf16.msra.mxu0 %v12539
    %13169 = vmatprep.subr.bf16.mxu0 %v12544
    %13170 = vmatpush1.bf16.msra.mxu0 %v12543
    %13171 = vmatprep.subr.bf16.mxu0 %v12548
    %13172 = vmatpush1.bf16.msra.mxu0 %v12547
    %13173 = vmatprep.subr.bf16.mxu0 %v12552
    %13174 = vmatpush1.bf16.msra.mxu0 %v12551
    %13175 = vmatprep.subr.bf16.mxu0 %v12556
    %13176 = vmatpush1.bf16.msra.mxu0 %v12555
    %13177 = vmatprep.subr.bf16.mxu0 %v12560
    %13178 = vmatpush1.bf16.msra.mxu0 %v12559
    %13179 = vmatprep.subr.bf16.mxu0 %v12564
    %13180 = vmatpush1.bf16.msra.mxu0 %v12563
    %13181 = vmatprep.subr.bf16.mxu0 %v12568
    %13182 = vmatpush1.bf16.msra.mxu0 %v12567
    %13183 = vmatprep.subr.bf16.mxu0 %v12572
    %13184 = vmatpush1.bf16.msra.mxu0 %v12571
    %13185 = vmatprep.subr.bf16.mxu0 %v12576
    %13186 = vmatpush1.bf16.msra.mxu0 %v12575
    %13187 = vmatprep.mubr.bf16.mxu0 %v11336
    %13188 = vmatmul.mubr.bf16.gmra.mrb[0].mxu0 %v11335
    %v13189 = vpop.f32.mrb[0].mxu0
    %v13190 = vadd.f32 %v13147, %v13189
    %v13191 = vpop.f32.mrb[0].mxu0
    %v13192 = vadd.f32 %v13149, %v13191
    %v13193 = vpop.f32.mrb[0].mxu0
    %v13194 = vadd.f32 %v13151, %v13193
    %v13195 = vpop.f32.mrb[0].mxu0
    %v13196 = vadd.f32 %v13153, %v13195
    %13197 = vdwg.mxu0
    %13198 = vmatprep.subr.bf16.mxu0 %v12580
    %13199 = vmatpush1.bf16.msra.mxu0 %v12579
    %13200 = vmatprep.subr.bf16.mxu0 %v12584
    %13201 = vmatpush1.bf16.msra.mxu0 %v12583
    %13202 = vmatprep.subr.bf16.mxu0 %v12588
    %13203 = vmatpush1.bf16.msra.mxu0 %v12587
    %13204 = vmatprep.subr.bf16.mxu0 %v12592
    %13205 = vmatpush1.bf16.msra.mxu0 %v12591
    %13206 = vmatprep.subr.bf16.mxu0 %v12596
    %13207 = vmatpush1.bf16.msra.mxu0 %v12595
    %13208 = vmatprep.subr.bf16.mxu0 %v12600
    %13209 = vmatpush1.bf16.msra.mxu0 %v12599
    %13210 = vmatprep.subr.bf16.mxu0 %v12604
    %13211 = vmatpush1.bf16.msra.mxu0 %v12603
    %13212 = vmatprep.subr.bf16.mxu0 %v12608
    %13213 = vmatpush1.bf16.msra.mxu0 %v12607
    %13214 = vmatprep.subr.bf16.mxu0 %v12612
    %13215 = vmatpush1.bf16.msra.mxu0 %v12611
    %13216 = vmatprep.subr.bf16.mxu0 %v12616
    %13217 = vmatpush1.bf16.msra.mxu0 %v12615
    %13218 = vmatprep.subr.bf16.mxu0 %v12620
    %13219 = vmatpush1.bf16.msra.mxu0 %v12619
    %13220 = vmatprep.subr.bf16.mxu0 %v12624
    %13221 = vmatpush1.bf16.msra.mxu0 %v12623
    %13222 = vmatprep.subr.bf16.mxu0 %v12628
    %13223 = vmatpush1.bf16.msra.mxu0 %v12627
    %13224 = vmatprep.subr.bf16.mxu0 %v12632
    %13225 = vmatpush1.bf16.msra.mxu0 %v12631
    %13226 = vmatprep.subr.bf16.mxu0 %v12636
    %13227 = vmatpush1.bf16.msra.mxu0 %v12635
    %13228 = vmatprep.subr.bf16.mxu0 %v12640
    %13229 = vmatpush1.bf16.msra.mxu0 %v12639
    %13230 = vmatprep.mubr.bf16.mxu0 %v11338
    %13231 = vmatmul.mubr.bf16.gmra.mrb[0].mxu0 %v11337
    %v13232 = vpop.f32.mrb[0].mxu0
    %v13233 = vadd.f32 %v13190, %v13232
    %v13234 = vpop.f32.mrb[0].mxu0
    %v13235 = vadd.f32 %v13192, %v13234
    %v13236 = vpop.f32.mrb[0].mxu0
    %v13237 = vadd.f32 %v13194, %v13236
    %v13238 = vpop.f32.mrb[0].mxu0
    %v13239 = vadd.f32 %v13196, %v13238
    %13240 = vdwg.mxu0
    %v13241 = vmax.f32 %v13061, 0.0
    %v13242 = vmax.f32 %v13063, 0.0
    %v13243 = vmax.f32 %v13233, 0.0
    %v13244 = vmax.f32 %v13235, 0.0
    %v13245 = vmax.f32 %v13065, 0.0
    %v13246 = vmax.f32 %v13067, 0.0
    %v13247 = vmax.f32 %v13237, 0.0
    %v13248 = vmax.f32 %v13239, 0.0
    %v13249 = vpack.c.bf16 %v13245, %v13241
    %v13250 = vpack.c.bf16 %v13246, %v13242
    %v13251 = vpack.c.bf16 %v13247, %v13243
    %v13252 = vpack.c.bf16 %v13248, %v13244
    %v13253 = vld [vmem:[#allocation10] sm:$0xf]
    %v13254 = vld [vmem:[#allocation10 + $0x4] sm:$0xf]
    %v13255 = vld [vmem:[#allocation10 + $0x8] sm:$0xf]
    %v13256 = vld [vmem:[#allocation10 + $0xc] sm:$0xf]
    %v13257 = vld [vmem:[#allocation10 + $0x10] sm:$0xf]
    %v13258 = vld [vmem:[#allocation10 + $0x14] sm:$0xf]
    %v13259 = vld [vmem:[#allocation10 + $0x18] sm:$0xf]
    %v13260 = vld [vmem:[#allocation10 + $0x1c] sm:$0xf]
    %v13261 = vld [vmem:[#allocation10 + $0x20] sm:$0xf]
    %v13262 = vld [vmem:[#allocation10 + $0x24] sm:$0xf]
    %v13263 = vld [vmem:[#allocation10 + $0x28] sm:$0xf]
    %v13264 = vld [vmem:[#allocation10 + $0x2c] sm:$0xf]
    %v13265 = vld [vmem:[#allocation10 + $0x30] sm:$0xf]
    %v13266 = vld [vmem:[#allocation10 + $0x34] sm:$0xf]
    %v13267 = vld [vmem:[#allocation10 + $0x38] sm:$0xf]
    %v13268 = vld [vmem:[#allocation10 + $0x3c] sm:$0xf]
    %v13269 = vld [vmem:[#allocation10 + $0x40] sm:$0xf]
    %v13270 = vld [vmem:[#allocation10 + $0x44] sm:$0xf]
    %v13271 = vld [vmem:[#allocation10 + $0x48] sm:$0xf]
    %v13272 = vld [vmem:[#allocation10 + $0x4c] sm:$0xf]
    %v13273 = vld [vmem:[#allocation10 + $0x50] sm:$0xf]
    %v13274 = vld [vmem:[#allocation10 + $0x54] sm:$0xf]
    %v13275 = vld [vmem:[#allocation10 + $0x58] sm:$0xf]
    %v13276 = vld [vmem:[#allocation10 + $0x5c] sm:$0xf]
    %v13277 = vld [vmem:[#allocation10 + $0x60] sm:$0xf]
    %v13278 = vld [vmem:[#allocation10 + $0x64] sm:$0xf]
    %v13279 = vld [vmem:[#allocation10 + $0x68] sm:$0xf]
    %v13280 = vld [vmem:[#allocation10 + $0x6c] sm:$0xf]
    %v13281 = vld [vmem:[#allocation10 + $0x70] sm:$0xf]
    %v13282 = vld [vmem:[#allocation10 + $0x74] sm:$0xf]
    %v13283 = vld [vmem:[#allocation10 + $0x78] sm:$0xf]
    %v13284 = vld [vmem:[#allocation10 + $0x7c] sm:$0xf]
    %v13285 = vld [vmem:[#allocation10 + $0x80] sm:$0xf]
    %v13286 = vld [vmem:[#allocation10 + $0x84] sm:$0xf]
    %v13287 = vld [vmem:[#allocation10 + $0x88] sm:$0xf]
    %v13288 = vld [vmem:[#allocation10 + $0x8c] sm:$0xf]
    %v13289 = vld [vmem:[#allocation10 + $0x90] sm:$0xf]
    %v13290 = vld [vmem:[#allocation10 + $0x94] sm:$0xf]
    %v13291 = vld [vmem:[#allocation10 + $0x98] sm:$0xf]
    %v13292 = vld [vmem:[#allocation10 + $0x9c] sm:$0xf]
    %v13293 = vld [vmem:[#allocation10 + $0xa0] sm:$0xf]
    %v13294 = vld [vmem:[#allocation10 + $0xa4] sm:$0xf]
    %v13295 = vld [vmem:[#allocation10 + $0xa8] sm:$0xf]
    %v13296 = vld [vmem:[#allocation10 + $0xac] sm:$0xf]
    %v13297 = vld [vmem:[#allocation10 + $0xb0] sm:$0xf]
    %v13298 = vld [vmem:[#allocation10 + $0xb4] sm:$0xf]
    %v13299 = vld [vmem:[#allocation10 + $0xb8] sm:$0xf]
    %v13300 = vld [vmem:[#allocation10 + $0xbc] sm:$0xf]
    %v13301 = vld [vmem:[#allocation10 + $0xc0] sm:$0xf]
    %v13302 = vld [vmem:[#allocation10 + $0xc4] sm:$0xf]
    %v13303 = vld [vmem:[#allocation10 + $0xc8] sm:$0xf]
    %v13304 = vld [vmem:[#allocation10 + $0xcc] sm:$0xf]
    %v13305 = vld [vmem:[#allocation10 + $0xd0] sm:$0xf]
    %v13306 = vld [vmem:[#allocation10 + $0xd4] sm:$0xf]
    %v13307 = vld [vmem:[#allocation10 + $0xd8] sm:$0xf]
    %v13308 = vld [vmem:[#allocation10 + $0xdc] sm:$0xf]
    %v13309 = vld [vmem:[#allocation10 + $0xe0] sm:$0xf]
    %v13310 = vld [vmem:[#allocation10 + $0xe4] sm:$0xf]
    %v13311 = vld [vmem:[#allocation10 + $0xe8] sm:$0xf]
    %v13312 = vld [vmem:[#allocation10 + $0xec] sm:$0xf]
    %v13313 = vld [vmem:[#allocation10 + $0xf0] sm:$0xf]
    %v13314 = vld [vmem:[#allocation10 + $0xf4] sm:$0xf]
    %v13315 = vld [vmem:[#allocation10 + $0xf8] sm:$0xf]
    %v13316 = vld [vmem:[#allocation10 + $0xfc] sm:$0xf]
    %v13317 = vld [vmem:[#allocation12] sm:$0x1]
    %v13319 = vlaneseq
    %v13320 = vshrl.u32 %v13319, 7
    %v13321 = vsub.s32 0, %v13320
    %v13322 = vrot.slane %v13317, %v13321
    %v13388 = vunpack.c.l.b16 %v13253
    %v13389 = vunpack.c.l.b16 %v13254
    %v13390 = vunpack.c.l.b16 %v13255
    %v13391 = vunpack.c.l.b16 %v13256
    %v13392 = vunpack.c.l.b16 %v13257
    %v13393 = vunpack.c.l.b16 %v13258
    %v13394 = vunpack.c.l.b16 %v13259
    %v13395 = vunpack.c.l.b16 %v13260
    %v13396 = vunpack.c.l.b16 %v13261
    %v13397 = vunpack.c.l.b16 %v13262
    %v13398 = vunpack.c.l.b16 %v13263
    %v13399 = vunpack.c.l.b16 %v13264
    %v13400 = vunpack.c.l.b16 %v13265
    %v13401 = vunpack.c.l.b16 %v13266
    %v13402 = vunpack.c.l.b16 %v13267
    %v13403 = vunpack.c.l.b16 %v13268
    %v13404 = vunpack.c.l.b16 %v13269
    %v13405 = vunpack.c.l.b16 %v13270
    %v13406 = vunpack.c.l.b16 %v13271
    %v13407 = vunpack.c.l.b16 %v13272
    %v13408 = vunpack.c.l.b16 %v13273
    %v13409 = vunpack.c.l.b16 %v13274
    %v13410 = vunpack.c.l.b16 %v13275
    %v13411 = vunpack.c.l.b16 %v13276
    %v13412 = vunpack.c.l.b16 %v13277
    %v13413 = vunpack.c.l.b16 %v13278
    %v13414 = vunpack.c.l.b16 %v13279
    %v13415 = vunpack.c.l.b16 %v13280
    %v13416 = vunpack.c.l.b16 %v13281
    %v13417 = vunpack.c.l.b16 %v13282
    %v13418 = vunpack.c.l.b16 %v13283
    %v13419 = vunpack.c.l.b16 %v13284
    %v13420 = vunpack.c.l.b16 %v13285
    %v13421 = vunpack.c.l.b16 %v13286
    %v13422 = vunpack.c.l.b16 %v13287
    %v13423 = vunpack.c.l.b16 %v13288
    %v13424 = vunpack.c.l.b16 %v13289
    %v13425 = vunpack.c.l.b16 %v13290
    %v13426 = vunpack.c.l.b16 %v13291
    %v13427 = vunpack.c.l.b16 %v13292
    %v13428 = vunpack.c.l.b16 %v13293
    %v13429 = vunpack.c.l.b16 %v13294
    %v13430 = vunpack.c.l.b16 %v13295
    %v13431 = vunpack.c.l.b16 %v13296
    %v13432 = vunpack.c.l.b16 %v13297
    %v13433 = vunpack.c.l.b16 %v13298
    %v13434 = vunpack.c.l.b16 %v13299
    %v13435 = vunpack.c.l.b16 %v13300
    %v13436 = vunpack.c.l.b16 %v13301
    %v13437 = vunpack.c.l.b16 %v13302
    %v13438 = vunpack.c.l.b16 %v13303
    %v13439 = vunpack.c.l.b16 %v13304
    %v13440 = vunpack.c.l.b16 %v13305
    %v13441 = vunpack.c.l.b16 %v13306
    %v13442 = vunpack.c.l.b16 %v13307
    %v13443 = vunpack.c.l.b16 %v13308
    %v13444 = vunpack.c.l.b16 %v13309
    %v13445 = vunpack.c.l.b16 %v13310
    %v13446 = vunpack.c.l.b16 %v13311
    %v13447 = vunpack.c.l.b16 %v13312
    %v13448 = vunpack.c.l.b16 %v13313
    %v13449 = vunpack.c.l.b16 %v13314
    %v13450 = vunpack.c.l.b16 %v13315
    %v13451 = vunpack.c.l.b16 %v13316
    %v13452 = vpack.c.b16 %v13389, %v13388
    %v13453 = vpack.c.b16 %v13391, %v13390
    %v13454 = vpack.c.b16 %v13393, %v13392
    %v13455 = vpack.c.b16 %v13395, %v13394
    %v13456 = vpack.c.b16 %v13397, %v13396
    %v13457 = vpack.c.b16 %v13399, %v13398
    %v13458 = vpack.c.b16 %v13401, %v13400
    %v13459 = vpack.c.b16 %v13403, %v13402
    %v13460 = vpack.c.b16 %v13405, %v13404
    %v13461 = vpack.c.b16 %v13407, %v13406
    %v13462 = vpack.c.b16 %v13409, %v13408
    %v13463 = vpack.c.b16 %v13411, %v13410
    %v13464 = vpack.c.b16 %v13413, %v13412
    %v13465 = vpack.c.b16 %v13415, %v13414
    %v13466 = vpack.c.b16 %v13417, %v13416
    %v13467 = vpack.c.b16 %v13419, %v13418
    %v13468 = vpack.c.b16 %v13421, %v13420
    %v13469 = vpack.c.b16 %v13423, %v13422
    %v13470 = vpack.c.b16 %v13425, %v13424
    %v13471 = vpack.c.b16 %v13427, %v13426
    %v13472 = vpack.c.b16 %v13429, %v13428
    %v13473 = vpack.c.b16 %v13431, %v13430
    %v13474 = vpack.c.b16 %v13433, %v13432
    %v13475 = vpack.c.b16 %v13435, %v13434
    %v13476 = vpack.c.b16 %v13437, %v13436
    %v13477 = vpack.c.b16 %v13439, %v13438
    %v13478 = vpack.c.b16 %v13441, %v13440
    %v13479 = vpack.c.b16 %v13443, %v13442
    %v13480 = vpack.c.b16 %v13445, %v13444
    %v13481 = vpack.c.b16 %v13447, %v13446
    %v13482 = vpack.c.b16 %v13449, %v13448
    %v13483 = vpack.c.b16 %v13451, %v13450
    %13516 = vmatprep.subr.bf16.mxu0 0
    %13517 = vmatpush1.bf16.msra.mxu0 %v13452
    %13518 = vmatprep.subr.bf16.mxu0 0
    %13519 = vmatpush1.bf16.msra.mxu0 %v13453
    %13520 = vmatprep.subr.bf16.mxu0 0
    %13521 = vmatpush1.bf16.msra.mxu0 %v13454
    %13522 = vmatprep.subr.bf16.mxu0 0
    %13523 = vmatpush1.bf16.msra.mxu0 %v13455
    %13524 = vmatprep.subr.bf16.mxu0 0
    %13525 = vmatpush1.bf16.msra.mxu0 %v13456
    %13526 = vmatprep.subr.bf16.mxu0 0
    %13527 = vmatpush1.bf16.msra.mxu0 %v13457
    %13528 = vmatprep.subr.bf16.mxu0 0
    %13529 = vmatpush1.bf16.msra.mxu0 %v13458
    %13530 = vmatprep.subr.bf16.mxu0 0
    %13531 = vmatpush1.bf16.msra.mxu0 %v13459
    %13532 = vmatprep.subr.bf16.mxu0 0
    %13533 = vmatpush1.bf16.msra.mxu0 %v13460
    %13534 = vmatprep.subr.bf16.mxu0 0
    %13535 = vmatpush1.bf16.msra.mxu0 %v13461
    %13536 = vmatprep.subr.bf16.mxu0 0
    %13537 = vmatpush1.bf16.msra.mxu0 %v13462
    %13538 = vmatprep.subr.bf16.mxu0 0
    %13539 = vmatpush1.bf16.msra.mxu0 %v13463
    %13540 = vmatprep.subr.bf16.mxu0 0
    %13541 = vmatpush1.bf16.msra.mxu0 %v13464
    %13542 = vmatprep.subr.bf16.mxu0 0
    %13543 = vmatpush1.bf16.msra.mxu0 %v13465
    %13544 = vmatprep.subr.bf16.mxu0 0
    %13545 = vmatpush1.bf16.msra.mxu0 %v13466
    %13546 = vmatprep.subr.bf16.mxu0 0
    %13547 = vmatpush1.bf16.msra.mxu0 %v13467
    %13548 = vmatprep.mubr.bf16.mxu0 %v13250
    %13549 = vmatmul.mubr.bf16.gmra.mrb[0].mxu0 %v13249
    %v13550 = vpop.f32.mrb[0].mxu0
    %v13551 = vadd.f32 %v13322, %v13550
    %v13552 = vpop.f32.mrb[0].mxu0
    %v13553 = vpop.f32.mrb[0].mxu0
    %v13554 = vadd.f32 %v13322, %v13553
    %v13555 = vpop.f32.mrb[0].mxu0
    %13556 = vdwg.mxu0
    %13557 = vmatprep.subr.bf16.mxu0 0
    %13558 = vmatpush1.bf16.msra.mxu0 %v13468
    %13559 = vmatprep.subr.bf16.mxu0 0
    %13560 = vmatpush1.bf16.msra.mxu0 %v13469
    %13561 = vmatprep.subr.bf16.mxu0 0
    %13562 = vmatpush1.bf16.msra.mxu0 %v13470
    %13563 = vmatprep.subr.bf16.mxu0 0
    %13564 = vmatpush1.bf16.msra.mxu0 %v13471
    %13565 = vmatprep.subr.bf16.mxu0 0
    %13566 = vmatpush1.bf16.msra.mxu0 %v13472
    %13567 = vmatprep.subr.bf16.mxu0 0
    %13568 = vmatpush1.bf16.msra.mxu0 %v13473
    %13569 = vmatprep.subr.bf16.mxu0 0
    %13570 = vmatpush1.bf16.msra.mxu0 %v13474
    %13571 = vmatprep.subr.bf16.mxu0 0
    %13572 = vmatpush1.bf16.msra.mxu0 %v13475
    %13573 = vmatprep.subr.bf16.mxu0 0
    %13574 = vmatpush1.bf16.msra.mxu0 %v13476
    %13575 = vmatprep.subr.bf16.mxu0 0
    %13576 = vmatpush1.bf16.msra.mxu0 %v13477
    %13577 = vmatprep.subr.bf16.mxu0 0
    %13578 = vmatpush1.bf16.msra.mxu0 %v13478
    %13579 = vmatprep.subr.bf16.mxu0 0
    %13580 = vmatpush1.bf16.msra.mxu0 %v13479
    %13581 = vmatprep.subr.bf16.mxu0 0
    %13582 = vmatpush1.bf16.msra.mxu0 %v13480
    %13583 = vmatprep.subr.bf16.mxu0 0
    %13584 = vmatpush1.bf16.msra.mxu0 %v13481
    %13585 = vmatprep.subr.bf16.mxu0 0
    %13586 = vmatpush1.bf16.msra.mxu0 %v13482
    %13587 = vmatprep.subr.bf16.mxu0 0
    %13588 = vmatpush1.bf16.msra.mxu0 %v13483
    %13589 = vmatprep.mubr.bf16.mxu0 %v13252
    %13590 = vmatmul.mubr.bf16.gmra.mrb[0].mxu0 %v13251
    %v13591 = vpop.f32.mrb[0].mxu0
    %v13592 = vadd.f32 %v13551, %v13591
    %v13593 = vpop.f32.mrb[0].mxu0
    %v13594 = vpop.f32.mrb[0].mxu0
    %v13595 = vadd.f32 %v13554, %v13594
    %v13596 = vpop.f32.mrb[0].mxu0
    %13597 = vdwg.mxu0
    %v13598 = vmax.f32 %v13592, 0.0
    %v13599 = vmax.f32 %v13595, 0.0
    %v13600 = vpack.c.bf16 %v13599, %v13598
    %v13601 = vld [vmem:[#allocation13] sm:$0xf]
    %v13602 = vld [vmem:[#allocation13 + $0x4] sm:$0xf]
    %v13603 = vld [vmem:[#allocation13 + $0x8] sm:$0xf]
    %v13604 = vld [vmem:[#allocation13 + $0xc] sm:$0xf]
    %v13605 = vld [vmem:[#allocation13 + $0x10] sm:$0xf]
    %v13606 = vld [vmem:[#allocation13 + $0x14] sm:$0xf]
    %v13607 = vld [vmem:[#allocation13 + $0x18] sm:$0xf]
    %v13608 = vld [vmem:[#allocation13 + $0x1c] sm:$0xf]
    %v13609 = vld [vmem:[#allocation13 + $0x20] sm:$0xf]
    %v13610 = vld [vmem:[#allocation13 + $0x24] sm:$0xf]
    %v13611 = vld [vmem:[#allocation13 + $0x28] sm:$0xf]
    %v13612 = vld [vmem:[#allocation13 + $0x2c] sm:$0xf]
    %v13613 = vld [vmem:[#allocation13 + $0x30] sm:$0xf]
    %v13614 = vld [vmem:[#allocation13 + $0x34] sm:$0xf]
    %v13615 = vld [vmem:[#allocation13 + $0x38] sm:$0xf]
    %v13616 = vld [vmem:[#allocation13 + $0x3c] sm:$0xf]
    %v13617 = vld [vmem:[#allocation15] sm:$0x1]
    %v13619 = vlaneseq
    %v13620 = vshrl.u32 %v13619, 7
    %v13621 = vsub.s32 0, %v13620
    %v13622 = vrot.slane %v13617, %v13621
    %v13640 = vunpack.c.l.b16 %v13601
    %v13641 = vunpack.c.l.b16 %v13602
    %v13642 = vunpack.c.l.b16 %v13603
    %v13643 = vunpack.c.l.b16 %v13604
    %v13644 = vunpack.c.l.b16 %v13605
    %v13645 = vunpack.c.l.b16 %v13606
    %v13646 = vunpack.c.l.b16 %v13607
    %v13647 = vunpack.c.l.b16 %v13608
    %v13648 = vunpack.c.l.b16 %v13609
    %v13649 = vunpack.c.l.b16 %v13610
    %v13650 = vunpack.c.l.b16 %v13611
    %v13651 = vunpack.c.l.b16 %v13612
    %v13652 = vunpack.c.l.b16 %v13613
    %v13653 = vunpack.c.l.b16 %v13614
    %v13654 = vunpack.c.l.b16 %v13615
    %v13655 = vunpack.c.l.b16 %v13616
    %v13656 = vpack.c.b16 %v13641, %v13640
    %v13657 = vpack.c.b16 %v13643, %v13642
    %v13658 = vpack.c.b16 %v13645, %v13644
    %v13659 = vpack.c.b16 %v13647, %v13646
    %v13660 = vpack.c.b16 %v13649, %v13648
    %v13661 = vpack.c.b16 %v13651, %v13650
    %v13662 = vpack.c.b16 %v13653, %v13652
    %v13663 = vpack.c.b16 %v13655, %v13654
    %13672 = vmatprep.subr.bf16.mxu0 0
    %13673 = vmatpush1.bf16.msra.mxu0 %v13656
    %13674 = vmatprep.subr.bf16.mxu0 0
    %13675 = vmatpush1.bf16.msra.mxu0 %v13657
    %13676 = vmatprep.subr.bf16.mxu0 0
    %13677 = vmatpush1.bf16.msra.mxu0 %v13658
    %13678 = vmatprep.subr.bf16.mxu0 0
    %13679 = vmatpush1.bf16.msra.mxu0 %v13659
    %13680 = vmatprep.subr.bf16.mxu0 0
    %13681 = vmatpush1.bf16.msra.mxu0 %v13660
    %13682 = vmatprep.subr.bf16.mxu0 0
    %13683 = vmatpush1.bf16.msra.mxu0 %v13661
    %13684 = vmatprep.subr.bf16.mxu0 0
    %13685 = vmatpush1.bf16.msra.mxu0 %v13662
    %13686 = vmatprep.subr.bf16.mxu0 0
    %13687 = vmatpush1.bf16.msra.mxu0 %v13663
    %13688 = vmatprep.subr.bf16.mxu0 0
    %13689 = vmatpush1.bf16.msra.mxu0 0
    %13690 = vmatprep.subr.bf16.mxu0 0
    %13691 = vmatpush1.bf16.msra.mxu0 0
    %13692 = vmatprep.subr.bf16.mxu0 0
    %13693 = vmatpush1.bf16.msra.mxu0 0
    %13694 = vmatprep.subr.bf16.mxu0 0
    %13695 = vmatpush1.bf16.msra.mxu0 0
    %13696 = vmatprep.subr.bf16.mxu0 0
    %13697 = vmatpush1.bf16.msra.mxu0 0
    %13698 = vmatprep.subr.bf16.mxu0 0
    %13699 = vmatpush1.bf16.msra.mxu0 0
    %13700 = vmatprep.subr.bf16.mxu0 0
    %13701 = vmatpush1.bf16.msra.mxu0 0
    %13702 = vmatprep.subr.bf16.mxu0 0
    %13703 = vmatpush1.bf16.msra.mxu0 0
    %13704 = vmatprep.mubr.bf16.mxu0 0
    %13705 = vmatmul.mubr.bf16.gmra.mrb[0].mxu0 %v13600
    %v13706 = vpop.f32.mrb[0].mxu0
    %v13707 = vadd.f32 %v13622, %v13706
    %v13708 = vpop.f32.mrb[0].mxu0
    %v13709 = vpop.f32.mrb[0].mxu0
    %v13710 = vadd.f32 %v13622, %v13709
    %v13711 = vpop.f32.mrb[0].mxu0
    %13712 = vdwg.mxu0
    %13713 = vmax.xlane.f32.xlu0 %v13707
    %v13714 = vpop.xlane.xlu0 %13713
    %13715 = vmax.xlane.f32.xlu0 %v13710
    %v13716 = vpop.xlane.xlu0 %13715
    %v13717 = vsub.f32 %v13707, %v13714
    %v13718 = vsub.f32 %v13710, %v13716
    %v13719 = vmul.f32 %v13717, 1.442695
    %v13720 = vpow.pop %v13719
    %v13721 = vmul.f32 %v13718, 1.442695
    %v13722 = vpow.pop %v13721
    %13723 = vadd.xlane.f32.xlu0 %v13720
    %v13724 = vpop.xlane.xlu0 %13723
    %13725 = vadd.xlane.f32.xlu0 %v13722
    %v13726 = vpop.xlane.xlu0 %13725
    %v13727 = vld [vmem:[#allocation16] sm:$0x1]
    %v13729 = vlaneseq
    %v13730 = vshrl.u32 %v13729, 7
    %v13731 = vsub.s32 0, %v13730
    %v13732 = vrot.slane %v13727, %v13731
    %v13734 = vmul.f32 %v13720, %v13732
    %v13735 = vmul.f32 %v13722, %v13732
    %13736 = vadd.xlane.f32.xlu0 %v13734
    %v13737 = vpop.xlane.xlu0 %13736
    %13738 = vadd.xlane.f32.xlu0 %v13735
    %v13739 = vpop.xlane.xlu0 %13738
    %v13740 = vrcp.pop %v13724
    %v13741 = vmul.f32 %v13737, %v13740
    %v13742 = vrcp.pop %v13726
    %v13743 = vmul.f32 %v13739, %v13742
    %vm13744 = vcmask 7168
    %13745 = vst.msk [vmem:[%s10] sm:$0xff] %vm13744, %v13741
    %13746 = vst.msk [vmem:[%s10 + $0x8] sm:$0xff] %vm13744, %v13743
    // Predicated region
    $region82: #{tpu_custom_call.1} parent=1 // pred_check
      _
    $region83: #{tpu_custom_call.1} parent=1 // pred_check_branch
      %13748 = sbr.rel (0) target = $region85
    $region84: #{tpu_custom_call.1} parent=1 // pred_region
      _
    $region85: #{tpu_custom_call.1} parent=1 // pred_fallthru
      _
    // Predicated region
    $region86: #{tpu_custom_call.1} parent=1 // pred_check
      _
    $region87: #{tpu_custom_call.1} parent=1 // pred_check_branch
      %13750 = sbr.rel (0) target = $region89
    $region88: #{tpu_custom_call.1} parent=1 // pred_region
      _
    $region89: #{tpu_custom_call.1} parent=1 // pred_fallthru
      _
    %13751 = vsyncpa [#allocation3], 1
    %13752 = vsyncpa [#allocation5], 1
    %13753 = vsyncpa [#allocation8], 1
    %13754 = vsyncpa [#allocation11], 1
    %13755 = vsyncpa [#allocation14], 1
    %13756 = vsyncpa [#allocation17], 1

</llo_original>
